<compile_context>
chip_gen: v7x
topology: tpu7x:2x2x1
jax: 0.10.0
libtpu: 0.0.40
codegen_flags: <defaults>
</compile_context>

<pallas_src>
import jax
import jax.numpy as jnp
from jax.experimental import pallas as pl
from jax.experimental.pallas import tpu as pltpu

IN_FEATURES = 3 * 64 * 64   # 12288
HIDDEN = 80
OUT = 6

HIDDEN_PAD = 128            # lane-aligned hidden width
OUT_PAD = 128               # lane-aligned output width (== HIDDEN_PAD, reused in place)

assert HIDDEN_PAD == OUT_PAD            # required by in-place output accumulation


def mlp_kernel(x_ref, w1_ref, b1_ref, w2_ref, b2_ref, o_ref):
    """Fused MLP: accumulate x @ W1 into o_ref over the K axis; on the last
    K step apply bias + ReLU and the second Linear, overwriting o_ref."""
    k = pl.program_id(1)

    @pl.when(k == 0)
    def _():
        o_ref[...] = jnp.zeros_like(o_ref)

    # Cast f32 x -> bf16 in-kernel (free VPU pack in a mem-bound kernel);
    # bf16 x bf16 -> f32 accumulate on the MXU.
    o_ref[...] += jnp.dot(x_ref[...].astype(jnp.bfloat16), w1_ref[...],
                          preferred_element_type=jnp.float32)

    @pl.when(k == pl.num_programs(1) - 1)
    def _():
        h = jnp.maximum(o_ref[...] + b1_ref[...], 0.0)
        o_ref[...] = (jnp.dot(h.astype(jnp.bfloat16), w2_ref[...],
                              preferred_element_type=jnp.float32)
                      + b2_ref[...])


def prepare_params(w1, b1, w2, b2):
    """One-time padding / casting of parameters (run once at init, not per call).

    w1: (12288, 80), b1: (80,), w2: (80, 6), b2: (6,)  -- x @ W + b layout
    (i.e. transposed relative to torch's nn.Linear weight)."""
    w1_p = jnp.zeros((IN_FEATURES, HIDDEN_PAD), jnp.bfloat16).at[:, :HIDDEN].set(
        w1.astype(jnp.bfloat16))
    b1_p = jnp.zeros((1, HIDDEN_PAD), jnp.float32).at[0, :HIDDEN].set(b1)
    w2_p = jnp.zeros((HIDDEN_PAD, OUT_PAD), jnp.bfloat16).at[:HIDDEN, :OUT].set(
        w2.astype(jnp.bfloat16))
    b2_p = jnp.zeros((1, OUT_PAD), jnp.float32).at[0, :OUT].set(b2)
    return w1_p, b1_p, w2_p, b2_p


def _choose_tiling(B):
    """Pick (BM, K_TILE) from the (static) batch size."""
    if B <= 128:
        # Single batch tile, whole-K block: 1 (or few) grid steps, W1 resident.
        BM = max(16, ((B + 15) // 16) * 16)     # 16-row multiple (bf16 packing)
        k_tile = IN_FEATURES
    elif B <= 512:
        # >=2 batch tiles so the "parallel" axis shards across both v7x TCs;
        # whole-K block keeps W1's block index constant -> fetched once.
        BM = 128
        k_tile = IN_FEATURES
    else:
        # Large batch: big batch tile to amortize W1 re-fetches; 4 K steps.
        BM = 512
        k_tile = 3072
    return BM, k_tile


@jax.jit
def mlp_forward(x, w1_p, b1_p, w2_p, b2_p):
    """x: (B, 3, 64, 64) float32.  Returns (B, 6) float32."""
    B = x.shape[0]
    x_flat = x.reshape(B, IN_FEATURES)          # f32 view; no cast, no pad copy

    BM, k_tile = _choose_tiling(B)
    n_b = pl.cdiv(B, BM)                        # partial last block handled by Pallas
    n_k = IN_FEATURES // k_tile

    cost = pl.CostEstimate(
        flops=2 * B * IN_FEATURES * HIDDEN_PAD
              + 2 * B * HIDDEN_PAD * OUT_PAD,
        transcendentals=0,
        bytes_accessed=(x_flat.size * 4            # f32 x (read once)
                        + w1_p.size * 2            # bf16 W1
                        + w2_p.size * 2 + b1_p.size * 4 + b2_p.size * 4
                        + B * OUT_PAD * 4),        # f32 out
    )

    out_pad = pl.pallas_call(
        mlp_kernel,
        out_shape=jax.ShapeDtypeStruct((B, OUT_PAD), jnp.float32),
        grid_spec=pltpu.PrefetchScalarGridSpec(
            num_scalar_prefetch=0,
            grid=(n_b, n_k),
            in_specs=[
                pl.BlockSpec((BM, k_tile), lambda i, k: (i, k)),          # x (f32)
                pl.BlockSpec((k_tile, HIDDEN_PAD), lambda i, k: (k, 0)),  # W1 (bf16)
                pl.BlockSpec((1, HIDDEN_PAD), lambda i, k: (0, 0)),       # b1 (f32)
                pl.BlockSpec((HIDDEN_PAD, OUT_PAD), lambda i, k: (0, 0)), # W2 (bf16)
                pl.BlockSpec((1, OUT_PAD), lambda i, k: (0, 0)),          # b2 (f32)
            ],
            out_specs=pl.BlockSpec((BM, OUT_PAD), lambda i, k: (i, 0)),
        ),
        compiler_params=pltpu.CompilerParams(
            dimension_semantics=("parallel", "arbitrary"),
            vmem_limit_bytes=32 * 1024 * 1024,   # all tilings <= ~18 MB; safe on v5e/v6e/v7x
        ),
        cost_estimate=cost,
    )(x_flat, w1_p, b1_p, w2_p, b2_p)

    return out_pad[:, :OUT]


def init_params(key):
    """Deterministic init mimicking nn.Linear default (uniform +/- 1/sqrt(fan_in))."""
    k1, k2, k3, k4 = jax.random.split(key, 4)
    bound1 = 1.0 / jnp.sqrt(jnp.float32(IN_FEATURES))
    bound2 = 1.0 / jnp.sqrt(jnp.float32(HIDDEN))
    w1 = jax.random.uniform(k1, (IN_FEATURES, HIDDEN), jnp.float32, -bound1, bound1)
    b1 = jax.random.uniform(k2, (HIDDEN,), jnp.float32, -bound1, bound1)
    w2 = jax.random.uniform(k3, (HIDDEN, OUT), jnp.float32, -bound2, bound2)
    b2 = jax.random.uniform(k4, (OUT,), jnp.float32, -bound2, bound2)
    return w1, b1, w2, b2


def _reference(x, w1, b1, w2, b2):
    """Pure-JAX reference mirroring the kernel numerics (bf16 x/W1/h/W2, f32 acc)."""
    x_flat = x.reshape(x.shape[0], -1)
    x_bf = x_flat.astype(jnp.bfloat16).astype(jnp.float32)
    w1_bf = w1.astype(jnp.bfloat16).astype(jnp.float32)
    h = jnp.maximum(x_bf @ w1_bf + b1, 0.0)
    h_bf = h.astype(jnp.bfloat16).astype(jnp.float32)
    w2_bf = w2.astype(jnp.bfloat16).astype(jnp.float32)
    return h_bf @ w2_bf + b2


if __name__ == "__main__":
    key = jax.random.PRNGKey(0)
    kx, kx2, kp = jax.random.split(key, 3)

    w1, b1, w2, b2 = init_params(kp)
    # One-time parameter preparation (padding + bf16 casts).
    w1_p, b1_p, w2_p, b2_p = prepare_params(w1, b1, w2, b2)

    # --- Small-batch path (B=2, single batch tile, single K step) ---
    x = jax.random.normal(kx, (2, 3, 64, 64), jnp.float32)
    out = jax.block_until_ready(mlp_forward(x, w1_p, b1_p, w2_p, b2_p))
    ref = _reference(x, w1, b1, w2, b2)
    assert out.shape == (2, 6), out.shape
    assert jnp.allclose(out, ref, atol=5e-3, rtol=5e-3), (
        "small-batch mismatch", float(jnp.max(jnp.abs(out - ref))))

    # --- Large / ragged-batch path (B=530: BM=512, 4 K steps, partial tile) ---
    x_big = jax.random.normal(kx2, (530, 3, 64, 64), jnp.float32)
    out_big = jax.block_until_ready(mlp_forward(x_big, w1_p, b1_p, w2_p, b2_p))
    ref_big = _reference(x_big, w1, b1, w2, b2)
    assert out_big.shape == (530, 6), out_big.shape
    assert jnp.allclose(out_big, ref_big, atol=5e-3, rtol=5e-3), (
        "large-batch mismatch", float(jnp.max(jnp.abs(out_big - ref_big))))

    print("KERNEL_OK")
</pallas_src>

<mosaic_0001>
module attributes {stable_mosaic.version = 11 : i64} {
  func.func @mlp_kernel(%arg0: i32, %arg1: i32, %arg2: memref<16x12288xf32, #tpu.memory_space<vmem>>, %arg3: memref<12288x128xbf16, #tpu.memory_space<vmem>>, %arg4: memref<1x128xf32, #tpu.memory_space<vmem>>, %arg5: memref<128x128xbf16, #tpu.memory_space<vmem>>, %arg6: memref<1x128xf32, #tpu.memory_space<vmem>>, %arg7: memref<16x128xf32, #tpu.memory_space<vmem>>) attributes {dimension_semantics = [#tpu.dimension_semantics<parallel>, #tpu.dimension_semantics<arbitrary>], iteration_bounds = array<i64: 1, 1>, scalar_prefetch = 0 : i64, scratch_operands = 0 : i64, tpu.core_type = #tpu.core_type<tc>, window_params = [{transform_indices = @transform_0, window_bounds = array<i64: 16, 12288>}, {transform_indices = @transform_1, window_bounds = array<i64: 12288, 128>}, {pipeline_mode = #tpu.pipeline_mode<synchronous>, transform_indices = @transform_2, window_bounds = array<i64: 1, 128>}, {pipeline_mode = #tpu.pipeline_mode<synchronous>, transform_indices = @transform_3, window_bounds = array<i64: 128, 128>}, {pipeline_mode = #tpu.pipeline_mode<synchronous>, transform_indices = @transform_4, window_bounds = array<i64: 1, 128>}, {transform_indices = @transform_5, window_bounds = array<i64: 16, 128>}]} {
    %c0_i32 = arith.constant 0 : i32
    %0 = arith.cmpi eq, %arg1, %c0_i32 : i32
    %1 = arith.extui %0 : i1 to i32
    %c0_i32_0 = arith.constant 0 : i32
    %2 = arith.cmpi ne, %1, %c0_i32_0 : i32
    scf.if %2 {
      %cst_10 = arith.constant 0.000000e+00 : f32
      %13 = vector.broadcast %cst_10 : f32 to vector<16x128xf32>
      %c0_11 = arith.constant 0 : index
      %c0_12 = arith.constant 0 : index
      %14 = vector.load %arg7[%c0_11, %c0_12] : memref<16x128xf32, #tpu.memory_space<vmem>>, vector<16x128xf32>
      tpu.vector_store %arg7[%c0_11, %c0_12], %13 {strides = array<i32>} : memref<16x128xf32, #tpu.memory_space<vmem>>, vector<16x128xf32>,
    } else {
    }
    %c0 = arith.constant 0 : index
    %c0_1 = arith.constant 0 : index
    %3 = vector.load %arg7[%c0, %c0_1] : memref<16x128xf32, #tpu.memory_space<vmem>>, vector<16x128xf32>
    %c0_2 = arith.constant 0 : index
    %c0_3 = arith.constant 0 : index
    %4 = vector.load %arg2[%c0_2, %c0_3] : memref<16x12288xf32, #tpu.memory_space<vmem>>, vector<16x12288xf32>
    %5 = arith.truncf %4 : vector<16x12288xf32> to vector<16x12288xbf16>
    %c0_4 = arith.constant 0 : index
    %c0_5 = arith.constant 0 : index
    %6 = vector.load %arg3[%c0_4, %c0_5] : memref<12288x128xbf16, #tpu.memory_space<vmem>>, vector<12288x128xbf16>
    %cst = arith.constant dense<0.000000e+00> : vector<16x128xf32>
    %7 = tpu.matmul %5, %6, %cst {dimension_numbers = #tpu.dot_dimension_numbers<[1], [0], [0], [1], [0, 0, 1, 1], [], []>} : vector<16x12288xbf16>, vector<12288x128xbf16>, vector<16x128xf32> -> vector<16x128xf32>
    %8 = arith.addf %3, %7 : vector<16x128xf32>
    %c0_6 = arith.constant 0 : index
    %c0_7 = arith.constant 0 : index
    %9 = vector.load %arg7[%c0_6, %c0_7] : memref<16x128xf32, #tpu.memory_space<vmem>>, vector<16x128xf32>
    tpu.vector_store %arg7[%c0_6, %c0_7], %8 {strides = array<i32>} : memref<16x128xf32, #tpu.memory_space<vmem>>, vector<16x128xf32>,
    %c0_i32_8 = arith.constant 0 : i32
    %10 = arith.cmpi eq, %arg1, %c0_i32_8 : i32
    %11 = arith.extui %10 : i1 to i32
    %c0_i32_9 = arith.constant 0 : i32
    %12 = arith.cmpi ne, %11, %c0_i32_9 : i32
    scf.if %12 {
      %c0_10 = arith.constant 0 : index
      %c0_11 = arith.constant 0 : index
      %13 = vector.load %arg7[%c0_10, %c0_11] : memref<16x128xf32, #tpu.memory_space<vmem>>, vector<16x128xf32>
      %c0_12 = arith.constant 0 : index
      %c0_13 = arith.constant 0 : index
      %14 = vector.load %arg4[%c0_12, %c0_13] : memref<1x128xf32, #tpu.memory_space<vmem>>, vector<1x128xf32>
      %15 = vector.broadcast %14 : vector<1x128xf32> to vector<16x128xf32>
      %16 = arith.addf %13, %15 : vector<16x128xf32>
      %cst_14 = arith.constant 0.000000e+00 : f32
      %17 = vector.broadcast %cst_14 : f32 to vector<16x128xf32>
      %18 = arith.maximumf %16, %17 : vector<16x128xf32>
      %19 = arith.truncf %18 : vector<16x128xf32> to vector<16x128xbf16>
      %c0_15 = arith.constant 0 : index
      %c0_16 = arith.constant 0 : index
      %20 = vector.load %arg5[%c0_15, %c0_16] : memref<128x128xbf16, #tpu.memory_space<vmem>>, vector<128x128xbf16>
      %cst_17 = arith.constant dense<0.000000e+00> : vector<16x128xf32>
      %21 = tpu.matmul %19, %20, %cst_17 {dimension_numbers = #tpu.dot_dimension_numbers<[1], [0], [0], [1], [0, 0, 1, 1], [], []>} : vector<16x128xbf16>, vector<128x128xbf16>, vector<16x128xf32> -> vector<16x128xf32>
      %c0_18 = arith.constant 0 : index
      %c0_19 = arith.constant 0 : index
      %22 = vector.load %arg6[%c0_18, %c0_19] : memref<1x128xf32, #tpu.memory_space<vmem>>, vector<1x128xf32>
      %23 = vector.broadcast %22 : vector<1x128xf32> to vector<16x128xf32>
      %24 = arith.addf %21, %23 : vector<16x128xf32>
      %c0_20 = arith.constant 0 : index
      %c0_21 = arith.constant 0 : index
      %25 = vector.load %arg7[%c0_20, %c0_21] : memref<16x128xf32, #tpu.memory_space<vmem>>, vector<16x128xf32>
      tpu.vector_store %arg7[%c0_20, %c0_21], %24 {strides = array<i32>} : memref<16x128xf32, #tpu.memory_space<vmem>>, vector<16x128xf32>,
    } else {
    }
    return
  }
  func.func @transform_0(%arg0: i32, %arg1: i32) -> (i32, i32) {
    %c0_i32 = arith.constant 0 : i32
    return %arg0, %arg1 : i32, i32
  }
  func.func @transform_1(%arg0: i32, %arg1: i32) -> (i32, i32) {
    %c0_i32 = arith.constant 0 : i32
    %c0_i32_0 = arith.constant 0 : i32
    return %arg1, %c0_i32 : i32, i32
  }
  func.func @transform_2(%arg0: i32, %arg1: i32) -> (i32, i32) {
    %c0_i32 = arith.constant 0 : i32
    %c0_i32_0 = arith.constant 0 : i32
    %c0_i32_1 = arith.constant 0 : i32
    return %c0_i32, %c0_i32_0 : i32, i32
  }
  func.func @transform_3(%arg0: i32, %arg1: i32) -> (i32, i32) {
    %c0_i32 = arith.constant 0 : i32
    %c0_i32_0 = arith.constant 0 : i32
    %c0_i32_1 = arith.constant 0 : i32
    return %c0_i32, %c0_i32_0 : i32, i32
  }
  func.func @transform_4(%arg0: i32, %arg1: i32) -> (i32, i32) {
    %c0_i32 = arith.constant 0 : i32
    %c0_i32_0 = arith.constant 0 : i32
    %c0_i32_1 = arith.constant 0 : i32
    return %c0_i32, %c0_i32_0 : i32, i32
  }
  func.func @transform_5(%arg0: i32, %arg1: i32) -> (i32, i32) {
    %c0_i32 = arith.constant 0 : i32
    %c0_i32_0 = arith.constant 0 : i32
    return %arg0, %c0_i32 : i32, i32
  }
}

</mosaic_0001>

<llo_original>
// kernel: mlp_forward.1
$region0: #{mlp_forward.1}
  #allocation0 [shape = 'u32[]', space=smem, size = 0x4, offset = 0x4, fixed_abs, tag = 'smem constant byte address 0x4 - core index']
  #allocation1 [shape = 'u32[144,128]{1,0:T(1,128)}', space=vmem, size = 0x12000, scoped, tag = 'internal scratch']
  %s0 = inlined_call_operand.vmem [shape: f32[2,12288], index: 0, kind: input, shape index: {}]
  %s1 = inlined_call_operand.hbm [shape: bf16[12288,128], index: 1, kind: input, shape index: {}]
  %s2 = inlined_call_operand.hbm [shape: f32[1,128], index: 2, kind: input, shape index: {}]
  %s3 = inlined_call_operand.hbm [shape: bf16[128,128], index: 3, kind: input, shape index: {}]
  %s4 = inlined_call_operand.hbm [shape: f32[1,128], index: 4, kind: input, shape index: {}]
  %s5 = inlined_call_operand.hbm [shape: f32[2,128], index: 5, kind: output, shape index: {}]
  %s6 = sld [smem:[#allocation0]]
  $region54: #{mlp_forward.1} parent=0
    _
  %s8 = ssub.s32 1, %s6
  %s9 = scalar_select 0, %s8, %s6
  $region1: #{mlp_forward.1} parent=0
    #allocation2 [shape = 'u8[3145728]{0}', space=vmem, size = 0x300000, scoped, tag = 'input window, operand 1, single buffered']
    #allocation3 [shape = 's32[1]{0}', space=sflag, size = 0x4, scoped, tag = 'scoped memory for mlp_forward.1']
    #allocation4 [shape = 's32[1]{0}', space=sflag, size = 0x4, scoped, tag = 'scoped memory for mlp_forward.1']
    #allocation5 [shape = 'u8[512]{0}', space=vmem, size = 0x400, scoped, tag = 'input window, operand 2, single buffered']
    #allocation6 [shape = 's32[1]{0}', space=sflag, size = 0x4, scoped, tag = 'scoped memory for mlp_forward.1']
    #allocation7 [shape = 'u8[32768]{0}', space=vmem, size = 0x8000, scoped, tag = 'input window, operand 3, single buffered']
    #allocation8 [shape = 'u8[512]{0}', space=vmem, size = 0x400, scoped, tag = 'input window, operand 4, single buffered']
    #allocation9 [shape = 's32[1]{0}', space=sflag, size = 0x4, scoped, tag = 'scoped memory for mlp_forward.1']
    #allocation10 [shape = 'u8[8192]{0}', space=vmem, size = 0x2000, scoped, tag = 'output window, operand 0, single buffered']
    %10 = vsyncpa [#allocation3], 0
    %11 = vsyncpa [#allocation6], 0
    %12 = vsyncpa [#allocation9], 0
    %13 = vsyncpa [#allocation4], 0
    // Predicated region
    $region2: #{mlp_forward.1} parent=1 // pred_check
      _
    $region3: #{mlp_forward.1} parent=1 // pred_check_branch
      %15 = sbr.rel (0) target = $region5
    $region4: #{mlp_forward.1} parent=1 // pred_region
      _
    $region5: #{mlp_forward.1} parent=1 // pred_fallthru
      _
    // Predicated region
    $region6: #{mlp_forward.1} parent=1 // pred_check
      _
    $region7: #{mlp_forward.1} parent=1 // pred_check_branch
      %17 = sbr.rel (0) target = $region9
    $region8: #{mlp_forward.1} parent=1 // pred_region
      %s19 = ssub.s32 98304, 98304
      %20 = vsyncadd [#allocation3], %s19
      %s21 = sshll.u32 [#allocation2], 4
      %s22 = int_to_ptr.vmem [resolvable:$true] %s21
      %27 = dma.hbm_to_vmem [thread:$0]  %s1, 98304, %s22, [#allocation3], 64, 64, 4
    $region9: #{mlp_forward.1} parent=1 // pred_fallthru
      _
    // Predicated region
    $region10: #{mlp_forward.1} parent=1 // pred_check
      _
    $region11: #{mlp_forward.1} parent=1 // pred_check_branch
      %29 = sbr.rel (0) target = $region13
    $region12: #{mlp_forward.1} parent=1 // pred_region
      %s31 = ssub.s32 16, 16
      %32 = vsyncadd [#allocation6], %s31
      %s34 = sshll.u32 [#allocation5], 4
      %s35 = int_to_ptr.vmem [resolvable:$true] %s34
      %37 = dma.hbm_to_vmem [thread:$0]  %s2, 16, %s35, [#allocation6]
    $region13: #{mlp_forward.1} parent=1 // pred_fallthru
      _
    // Predicated region
    $region14: #{mlp_forward.1} parent=1 // pred_check
      _
    $region15: #{mlp_forward.1} parent=1 // pred_check_branch
      %39 = sbr.rel (0) target = $region17
    $region16: #{mlp_forward.1} parent=1 // pred_region
      %s41 = ssub.s32 1024, 1024
      %42 = vsyncadd [#allocation6], %s41
      %s43 = sshll.u32 [#allocation7], 4
      %s44 = int_to_ptr.vmem [resolvable:$true] %s43
      %49 = dma.hbm_to_vmem [thread:$0]  %s3, 1024, %s44, [#allocation6], 64, 64, 4
    $region17: #{mlp_forward.1} parent=1 // pred_fallthru
      _
    // Predicated region
    $region18: #{mlp_forward.1} parent=1 // pred_check
      _
    $region19: #{mlp_forward.1} parent=1 // pred_check_branch
      %51 = sbr.rel (0) target = $region21
    $region20: #{mlp_forward.1} parent=1 // pred_region
      %s53 = ssub.s32 16, 16
      %54 = vsyncadd [#allocation9], %s53
      %s56 = sshll.u32 [#allocation8], 4
      %s57 = int_to_ptr.vmem [resolvable:$true] %s56
      %59 = dma.hbm_to_vmem [thread:$0]  %s4, 16, %s57, [#allocation9]
    $region21: #{mlp_forward.1} parent=1 // pred_fallthru
      _
    // Predicated region
    $region22: #{mlp_forward.1} parent=1 // pred_check
      _
    $region23: #{mlp_forward.1} parent=1 // pred_check_branch
      %61 = sbr.rel (0) target = $region25
    $region24: #{mlp_forward.1} parent=1 // pred_region
      %62 = dma.done [#allocation3], 98304
    $region25: #{mlp_forward.1} parent=1 // pred_fallthru
      _
    // Predicated region
    $region26: #{mlp_forward.1} parent=1 // pred_check
      _
    $region27: #{mlp_forward.1} parent=1 // pred_check_branch
      %64 = sbr.rel (0) target = $region29
    $region28: #{mlp_forward.1} parent=1 // pred_region
      %65 = dma.done [#allocation6], 16
    $region29: #{mlp_forward.1} parent=1 // pred_fallthru
      _
    // Predicated region
    $region30: #{mlp_forward.1} parent=1 // pred_check
      _
    $region31: #{mlp_forward.1} parent=1 // pred_check_branch
      %67 = sbr.rel (0) target = $region33
    $region32: #{mlp_forward.1} parent=1 // pred_region
      %68 = dma.done [#allocation6], 1024
    $region33: #{mlp_forward.1} parent=1 // pred_fallthru
      _
    // Predicated region
    $region34: #{mlp_forward.1} parent=1 // pred_check
      _
    $region35: #{mlp_forward.1} parent=1 // pred_check_branch
      %70 = sbr.rel (0) target = $region37
    $region36: #{mlp_forward.1} parent=1 // pred_region
      %71 = dma.done [#allocation9], 16
    $region37: #{mlp_forward.1} parent=1 // pred_fallthru
      _
    %p73 = scmp.eq.s32.totalorder 0, 0
    // Predicated region
    $region38: #{mlp_forward.1} parent=1 // pred_check
      %p74 = pneg %p73
    $region39: #{mlp_forward.1} parent=1 // pred_check_branch
      %76 = sbr.rel (%p74) target = $region41
    $region40: #{mlp_forward.1} parent=1 // pred_region
      %77 = vst [vmem:[#allocation10] sm:$0xff] 0.0
      %78 = vst [vmem:[#allocation10 + $0x8] sm:$0xff] 0.0
    $region41: #{mlp_forward.1} parent=1 // pred_fallthru
      _
    %v79 = vld [vmem:[#allocation10] sm:$0xff]
    %v80 = vld [vmem:[#allocation10 + $0x8] sm:$0xff]
    %v81 = vld [vmem:[%s0] sm:$0xff]
    %v82 = vld [vmem:[%s0 + $0x8] sm:$0xff]
    %v83 = vld [vmem:[%s0 + $0x10] sm:$0xff]
    %v84 = vld [vmem:[%s0 + $0x18] sm:$0xff]
    %v85 = vld [vmem:[%s0 + $0x20] sm:$0xff]
    %v86 = vld [vmem:[%s0 + $0x28] sm:$0xff]
    %v87 = vld [vmem:[%s0 + $0x30] sm:$0xff]
    %v88 = vld [vmem:[%s0 + $0x38] sm:$0xff]
    %v89 = vld [vmem:[%s0 + $0x40] sm:$0xff]
    %v90 = vld [vmem:[%s0 + $0x48] sm:$0xff]
    %v91 = vld [vmem:[%s0 + $0x50] sm:$0xff]
    %v92 = vld [vmem:[%s0 + $0x58] sm:$0xff]
    %v93 = vld [vmem:[%s0 + $0x60] sm:$0xff]
    %v94 = vld [vmem:[%s0 + $0x68] sm:$0xff]
    %v95 = vld [vmem:[%s0 + $0x70] sm:$0xff]
    %v96 = vld [vmem:[%s0 + $0x78] sm:$0xff]
    %v97 = vld [vmem:[%s0 + $0x80] sm:$0xff]
    %v98 = vld [vmem:[%s0 + $0x88] sm:$0xff]
    %v99 = vld [vmem:[%s0 + $0x90] sm:$0xff]
    %v100 = vld [vmem:[%s0 + $0x98] sm:$0xff]
    %v101 = vld [vmem:[%s0 + $0xa0] sm:$0xff]
    %v102 = vld [vmem:[%s0 + $0xa8] sm:$0xff]
    %v103 = vld [vmem:[%s0 + $0xb0] sm:$0xff]
    %v104 = vld [vmem:[%s0 + $0xb8] sm:$0xff]
    %v105 = vld [vmem:[%s0 + $0xc0] sm:$0xff]
    %v106 = vld [vmem:[%s0 + $0xc8] sm:$0xff]
    %v107 = vld [vmem:[%s0 + $0xd0] sm:$0xff]
    %v108 = vld [vmem:[%s0 + $0xd8] sm:$0xff]
    %v109 = vld [vmem:[%s0 + $0xe0] sm:$0xff]
    %v110 = vld [vmem:[%s0 + $0xe8] sm:$0xff]
    %v111 = vld [vmem:[%s0 + $0xf0] sm:$0xff]
    %v112 = vld [vmem:[%s0 + $0xf8] sm:$0xff]
    %v113 = vld [vmem:[%s0 + $0x100] sm:$0xff]
    %v114 = vld [vmem:[%s0 + $0x108] sm:$0xff]
    %v115 = vld [vmem:[%s0 + $0x110] sm:$0xff]
    %v116 = vld [vmem:[%s0 + $0x118] sm:$0xff]
    %v117 = vld [vmem:[%s0 + $0x120] sm:$0xff]
    %v118 = vld [vmem:[%s0 + $0x128] sm:$0xff]
    %v119 = vld [vmem:[%s0 + $0x130] sm:$0xff]
    %v120 = vld [vmem:[%s0 + $0x138] sm:$0xff]
    %v121 = vld [vmem:[%s0 + $0x140] sm:$0xff]
    %v122 = vld [vmem:[%s0 + $0x148] sm:$0xff]
    %v123 = vld [vmem:[%s0 + $0x150] sm:$0xff]
    %v124 = vld [vmem:[%s0 + $0x158] sm:$0xff]
    %v125 = vld [vmem:[%s0 + $0x160] sm:$0xff]
    %v126 = vld [vmem:[%s0 + $0x168] sm:$0xff]
    %v127 = vld [vmem:[%s0 + $0x170] sm:$0xff]
    %v128 = vld [vmem:[%s0 + $0x178] sm:$0xff]
    %v129 = vld [vmem:[%s0 + $0x180] sm:$0xff]
    %v130 = vld [vmem:[%s0 + $0x188] sm:$0xff]
    %v131 = vld [vmem:[%s0 + $0x190] sm:$0xff]
    %v132 = vld [vmem:[%s0 + $0x198] sm:$0xff]
    %v133 = vld [vmem:[%s0 + $0x1a0] sm:$0xff]
    %v134 = vld [vmem:[%s0 + $0x1a8] sm:$0xff]
    %v135 = vld [vmem:[%s0 + $0x1b0] sm:$0xff]
    %v136 = vld [vmem:[%s0 + $0x1b8] sm:$0xff]
    %v137 = vld [vmem:[%s0 + $0x1c0] sm:$0xff]
    %v138 = vld [vmem:[%s0 + $0x1c8] sm:$0xff]
    %v139 = vld [vmem:[%s0 + $0x1d0] sm:$0xff]
    %v140 = vld [vmem:[%s0 + $0x1d8] sm:$0xff]
    %v141 = vld [vmem:[%s0 + $0x1e0] sm:$0xff]
    %v142 = vld [vmem:[%s0 + $0x1e8] sm:$0xff]
    %v143 = vld [vmem:[%s0 + $0x1f0] sm:$0xff]
    %v144 = vld [vmem:[%s0 + $0x1f8] sm:$0xff]
    %v145 = vld [vmem:[%s0 + $0x200] sm:$0xff]
    %v146 = vld [vmem:[%s0 + $0x208] sm:$0xff]
    %v147 = vld [vmem:[%s0 + $0x210] sm:$0xff]
    %v148 = vld [vmem:[%s0 + $0x218] sm:$0xff]
    %v149 = vld [vmem:[%s0 + $0x220] sm:$0xff]
    %v150 = vld [vmem:[%s0 + $0x228] sm:$0xff]
    %v151 = vld [vmem:[%s0 + $0x230] sm:$0xff]
    %v152 = vld [vmem:[%s0 + $0x238] sm:$0xff]
    %v153 = vld [vmem:[%s0 + $0x240] sm:$0xff]
    %v154 = vld [vmem:[%s0 + $0x248] sm:$0xff]
    %v155 = vld [vmem:[%s0 + $0x250] sm:$0xff]
    %v156 = vld [vmem:[%s0 + $0x258] sm:$0xff]
    %v157 = vld [vmem:[%s0 + $0x260] sm:$0xff]
    %v158 = vld [vmem:[%s0 + $0x268] sm:$0xff]
    %v159 = vld [vmem:[%s0 + $0x270] sm:$0xff]
    %v160 = vld [vmem:[%s0 + $0x278] sm:$0xff]
    %v161 = vld [vmem:[%s0 + $0x280] sm:$0xff]
    %v162 = vld [vmem:[%s0 + $0x288] sm:$0xff]
    %v163 = vld [vmem:[%s0 + $0x290] sm:$0xff]
    %v164 = vld [vmem:[%s0 + $0x298] sm:$0xff]
    %v165 = vld [vmem:[%s0 + $0x2a0] sm:$0xff]
    %v166 = vld [vmem:[%s0 + $0x2a8] sm:$0xff]
    %v167 = vld [vmem:[%s0 + $0x2b0] sm:$0xff]
    %v168 = vld [vmem:[%s0 + $0x2b8] sm:$0xff]
    %v169 = vld [vmem:[%s0 + $0x2c0] sm:$0xff]
    %v170 = vld [vmem:[%s0 + $0x2c8] sm:$0xff]
    %v171 = vld [vmem:[%s0 + $0x2d0] sm:$0xff]
    %v172 = vld [vmem:[%s0 + $0x2d8] sm:$0xff]
    %v173 = vld [vmem:[%s0 + $0x2e0] sm:$0xff]
    %v174 = vld [vmem:[%s0 + $0x2e8] sm:$0xff]
    %v175 = vld [vmem:[%s0 + $0x2f0] sm:$0xff]
    %v176 = vld [vmem:[%s0 + $0x2f8] sm:$0xff]
    %v177 = vld [vmem:[%s0 + $0x300] sm:$0xff]
    %v178 = vld [vmem:[%s0 + $0x308] sm:$0xff]
    %v179 = vld [vmem:[%s0 + $0x310] sm:$0xff]
    %v180 = vld [vmem:[%s0 + $0x318] sm:$0xff]
    %v181 = vld [vmem:[%s0 + $0x320] sm:$0xff]
    %v182 = vld [vmem:[%s0 + $0x328] sm:$0xff]
    %v183 = vld [vmem:[%s0 + $0x330] sm:$0xff]
    %v184 = vld [vmem:[%s0 + $0x338] sm:$0xff]
    %v185 = vld [vmem:[%s0 + $0x340] sm:$0xff]
    %v186 = vld [vmem:[%s0 + $0x348] sm:$0xff]
    %v187 = vld [vmem:[%s0 + $0x350] sm:$0xff]
    %v188 = vld [vmem:[%s0 + $0x358] sm:$0xff]
    %v189 = vld [vmem:[%s0 + $0x360] sm:$0xff]
    %v190 = vld [vmem:[%s0 + $0x368] sm:$0xff]
    %v191 = vld [vmem:[%s0 + $0x370] sm:$0xff]
    %v192 = vld [vmem:[%s0 + $0x378] sm:$0xff]
    %v193 = vld [vmem:[%s0 + $0x380] sm:$0xff]
    %v194 = vld [vmem:[%s0 + $0x388] sm:$0xff]
    %v195 = vld [vmem:[%s0 + $0x390] sm:$0xff]
    %v196 = vld [vmem:[%s0 + $0x398] sm:$0xff]
    %v197 = vld [vmem:[%s0 + $0x3a0] sm:$0xff]
    %v198 = vld [vmem:[%s0 + $0x3a8] sm:$0xff]
    %v199 = vld [vmem:[%s0 + $0x3b0] sm:$0xff]
    %v200 = vld [vmem:[%s0 + $0x3b8] sm:$0xff]
    %v201 = vld [vmem:[%s0 + $0x3c0] sm:$0xff]
    %v202 = vld [vmem:[%s0 + $0x3c8] sm:$0xff]
    %v203 = vld [vmem:[%s0 + $0x3d0] sm:$0xff]
    %v204 = vld [vmem:[%s0 + $0x3d8] sm:$0xff]
    %v205 = vld [vmem:[%s0 + $0x3e0] sm:$0xff]
    %v206 = vld [vmem:[%s0 + $0x3e8] sm:$0xff]
    %v207 = vld [vmem:[%s0 + $0x3f0] sm:$0xff]
    %v208 = vld [vmem:[%s0 + $0x3f8] sm:$0xff]
    %v209 = vld [vmem:[%s0 + $0x400] sm:$0xff]
    %v210 = vld [vmem:[%s0 + $0x408] sm:$0xff]
    %v211 = vld [vmem:[%s0 + $0x410] sm:$0xff]
    %v212 = vld [vmem:[%s0 + $0x418] sm:$0xff]
    %v213 = vld [vmem:[%s0 + $0x420] sm:$0xff]
    %v214 = vld [vmem:[%s0 + $0x428] sm:$0xff]
    %v215 = vld [vmem:[%s0 + $0x430] sm:$0xff]
    %v216 = vld [vmem:[%s0 + $0x438] sm:$0xff]
    %v217 = vld [vmem:[%s0 + $0x440] sm:$0xff]
    %v218 = vld [vmem:[%s0 + $0x448] sm:$0xff]
    %v219 = vld [vmem:[%s0 + $0x450] sm:$0xff]
    %v220 = vld [vmem:[%s0 + $0x458] sm:$0xff]
    %v221 = vld [vmem:[%s0 + $0x460] sm:$0xff]
    %v222 = vld [vmem:[%s0 + $0x468] sm:$0xff]
    %v223 = vld [vmem:[%s0 + $0x470] sm:$0xff]
    %v224 = vld [vmem:[%s0 + $0x478] sm:$0xff]
    %v225 = vld [vmem:[%s0 + $0x480] sm:$0xff]
    %v226 = vld [vmem:[%s0 + $0x488] sm:$0xff]
    %v227 = vld [vmem:[%s0 + $0x490] sm:$0xff]
    %v228 = vld [vmem:[%s0 + $0x498] sm:$0xff]
    %v229 = vld [vmem:[%s0 + $0x4a0] sm:$0xff]
    %v230 = vld [vmem:[%s0 + $0x4a8] sm:$0xff]
    %v231 = vld [vmem:[%s0 + $0x4b0] sm:$0xff]
    %v232 = vld [vmem:[%s0 + $0x4b8] sm:$0xff]
    %v233 = vld [vmem:[%s0 + $0x4c0] sm:$0xff]
    %v234 = vld [vmem:[%s0 + $0x4c8] sm:$0xff]
    %v235 = vld [vmem:[%s0 + $0x4d0] sm:$0xff]
    %v236 = vld [vmem:[%s0 + $0x4d8] sm:$0xff]
    %v237 = vld [vmem:[%s0 + $0x4e0] sm:$0xff]
    %v238 = vld [vmem:[%s0 + $0x4e8] sm:$0xff]
    %v239 = vld [vmem:[%s0 + $0x4f0] sm:$0xff]
    %v240 = vld [vmem:[%s0 + $0x4f8] sm:$0xff]
    %v241 = vld [vmem:[%s0 + $0x500] sm:$0xff]
    %v242 = vld [vmem:[%s0 + $0x508] sm:$0xff]
    %v243 = vld [vmem:[%s0 + $0x510] sm:$0xff]
    %v244 = vld [vmem:[%s0 + $0x518] sm:$0xff]
    %v245 = vld [vmem:[%s0 + $0x520] sm:$0xff]
    %v246 = vld [vmem:[%s0 + $0x528] sm:$0xff]
    %v247 = vld [vmem:[%s0 + $0x530] sm:$0xff]
    %v248 = vld [vmem:[%s0 + $0x538] sm:$0xff]
    %v249 = vld [vmem:[%s0 + $0x540] sm:$0xff]
    %v250 = vld [vmem:[%s0 + $0x548] sm:$0xff]
    %v251 = vld [vmem:[%s0 + $0x550] sm:$0xff]
    %v252 = vld [vmem:[%s0 + $0x558] sm:$0xff]
    %v253 = vld [vmem:[%s0 + $0x560] sm:$0xff]
    %v254 = vld [vmem:[%s0 + $0x568] sm:$0xff]
    %v255 = vld [vmem:[%s0 + $0x570] sm:$0xff]
    %v256 = vld [vmem:[%s0 + $0x578] sm:$0xff]
    %v257 = vld [vmem:[%s0 + $0x580] sm:$0xff]
    %v258 = vld [vmem:[%s0 + $0x588] sm:$0xff]
    %v259 = vld [vmem:[%s0 + $0x590] sm:$0xff]
    %v260 = vld [vmem:[%s0 + $0x598] sm:$0xff]
    %v261 = vld [vmem:[%s0 + $0x5a0] sm:$0xff]
    %v262 = vld [vmem:[%s0 + $0x5a8] sm:$0xff]
    %v263 = vld [vmem:[%s0 + $0x5b0] sm:$0xff]
    %v264 = vld [vmem:[%s0 + $0x5b8] sm:$0xff]
    %v265 = vld [vmem:[%s0 + $0x5c0] sm:$0xff]
    %v266 = vld [vmem:[%s0 + $0x5c8] sm:$0xff]
    %v267 = vld [vmem:[%s0 + $0x5d0] sm:$0xff]
    %v268 = vld [vmem:[%s0 + $0x5d8] sm:$0xff]
    %v269 = vld [vmem:[%s0 + $0x5e0] sm:$0xff]
    %v270 = vld [vmem:[%s0 + $0x5e8] sm:$0xff]
    %v271 = vld [vmem:[%s0 + $0x5f0] sm:$0xff]
    %v272 = vld [vmem:[%s0 + $0x5f8] sm:$0xff]
    %v465 = vcombine.low %v81, %v105
    %v466 = vcombine.high %v81, %v105
    %v467 = vcombine.low %v129, %v153
    %v468 = vcombine.high %v129, %v153
    %v470 = vunpack.c.l.s4 1983009808
    %v471 = vunpack.c.0.s8 %v470
    %v472 = vlaneseq
    %v473 = vshrl.u32 %v472, 7
    %v474 = vsub.s32 %v471, %v473
    %v475 = vrot.slane %v465, %v474
    %v477 = vunpack.c.l.s4 1983009808
    %v478 = vunpack.c.0.s8 %v477
    %v479 = vlaneseq
    %v480 = vshrl.u32 %v479, 7
    %v481 = vsub.s32 %v478, %v480
    %v482 = vrot.slane %v466, %v481
    %v484 = vunpack.c.l.s4 1983009808
    %v485 = vunpack.c.0.s8 %v484
    %v486 = vlaneseq
    %v487 = vshrl.u32 %v486, 7
    %v488 = vsub.s32 %v485, %v487
    %v489 = vrot.slane %v467, %v488
    %v491 = vunpack.c.l.s4 1983009808
    %v492 = vunpack.c.0.s8 %v491
    %v493 = vlaneseq
    %v494 = vshrl.u32 %v493, 7
    %v495 = vsub.s32 %v492, %v494
    %v496 = vrot.slane %v468, %v495
    %v497 = vcombine.low %v475, %v489
    %v498 = vcombine.high %v475, %v489
    %v499 = vcombine.low %v482, %v496
    %v500 = vcombine.high %v482, %v496
    %v501 = vcombine.low %v82, %v106
    %v502 = vcombine.high %v82, %v106
    %v503 = vcombine.low %v130, %v154
    %v504 = vcombine.high %v130, %v154
    %v506 = vunpack.c.l.s4 1983009808
    %v507 = vunpack.c.0.s8 %v506
    %v508 = vlaneseq
    %v509 = vshrl.u32 %v508, 7
    %v510 = vsub.s32 %v507, %v509
    %v511 = vrot.slane %v501, %v510
    %v513 = vunpack.c.l.s4 1983009808
    %v514 = vunpack.c.0.s8 %v513
    %v515 = vlaneseq
    %v516 = vshrl.u32 %v515, 7
    %v517 = vsub.s32 %v514, %v516
    %v518 = vrot.slane %v502, %v517
    %v520 = vunpack.c.l.s4 1983009808
    %v521 = vunpack.c.0.s8 %v520
    %v522 = vlaneseq
    %v523 = vshrl.u32 %v522, 7
    %v524 = vsub.s32 %v521, %v523
    %v525 = vrot.slane %v503, %v524
    %v527 = vunpack.c.l.s4 1983009808
    %v528 = vunpack.c.0.s8 %v527
    %v529 = vlaneseq
    %v530 = vshrl.u32 %v529, 7
    %v531 = vsub.s32 %v528, %v530
    %v532 = vrot.slane %v504, %v531
    %v533 = vcombine.low %v511, %v525
    %v534 = vcombine.high %v511, %v525
    %v535 = vcombine.low %v518, %v532
    %v536 = vcombine.high %v518, %v532
    %v537 = vcombine.low %v83, %v107
    %v538 = vcombine.high %v83, %v107
    %v539 = vcombine.low %v131, %v155
    %v540 = vcombine.high %v131, %v155
    %v542 = vunpack.c.l.s4 1983009808
    %v543 = vunpack.c.0.s8 %v542
    %v544 = vlaneseq
    %v545 = vshrl.u32 %v544, 7
    %v546 = vsub.s32 %v543, %v545
    %v547 = vrot.slane %v537, %v546
    %v549 = vunpack.c.l.s4 1983009808
    %v550 = vunpack.c.0.s8 %v549
    %v551 = vlaneseq
    %v552 = vshrl.u32 %v551, 7
    %v553 = vsub.s32 %v550, %v552
    %v554 = vrot.slane %v538, %v553
    %v556 = vunpack.c.l.s4 1983009808
    %v557 = vunpack.c.0.s8 %v556
    %v558 = vlaneseq
    %v559 = vshrl.u32 %v558, 7
    %v560 = vsub.s32 %v557, %v559
    %v561 = vrot.slane %v539, %v560
    %v563 = vunpack.c.l.s4 1983009808
    %v564 = vunpack.c.0.s8 %v563
    %v565 = vlaneseq
    %v566 = vshrl.u32 %v565, 7
    %v567 = vsub.s32 %v564, %v566
    %v568 = vrot.slane %v540, %v567
    %v569 = vcombine.low %v547, %v561
    %v570 = vcombine.high %v547, %v561
    %v571 = vcombine.low %v554, %v568
    %v572 = vcombine.high %v554, %v568
    %v573 = vcombine.low %v84, %v108
    %v574 = vcombine.high %v84, %v108
    %v575 = vcombine.low %v132, %v156
    %v576 = vcombine.high %v132, %v156
    %v578 = vunpack.c.l.s4 1983009808
    %v579 = vunpack.c.0.s8 %v578
    %v580 = vlaneseq
    %v581 = vshrl.u32 %v580, 7
    %v582 = vsub.s32 %v579, %v581
    %v583 = vrot.slane %v573, %v582
    %v585 = vunpack.c.l.s4 1983009808
    %v586 = vunpack.c.0.s8 %v585
    %v587 = vlaneseq
    %v588 = vshrl.u32 %v587, 7
    %v589 = vsub.s32 %v586, %v588
    %v590 = vrot.slane %v574, %v589
    %v592 = vunpack.c.l.s4 1983009808
    %v593 = vunpack.c.0.s8 %v592
    %v594 = vlaneseq
    %v595 = vshrl.u32 %v594, 7
    %v596 = vsub.s32 %v593, %v595
    %v597 = vrot.slane %v575, %v596
    %v599 = vunpack.c.l.s4 1983009808
    %v600 = vunpack.c.0.s8 %v599
    %v601 = vlaneseq
    %v602 = vshrl.u32 %v601, 7
    %v603 = vsub.s32 %v600, %v602
    %v604 = vrot.slane %v576, %v603
    %v605 = vcombine.low %v583, %v597
    %v606 = vcombine.high %v583, %v597
    %v607 = vcombine.low %v590, %v604
    %v608 = vcombine.high %v590, %v604
    %v609 = vcombine.low %v85, %v109
    %v610 = vcombine.high %v85, %v109
    %v611 = vcombine.low %v133, %v157
    %v612 = vcombine.high %v133, %v157
    %v614 = vunpack.c.l.s4 1983009808
    %v615 = vunpack.c.0.s8 %v614
    %v616 = vlaneseq
    %v617 = vshrl.u32 %v616, 7
    %v618 = vsub.s32 %v615, %v617
    %v619 = vrot.slane %v609, %v618
    %v621 = vunpack.c.l.s4 1983009808
    %v622 = vunpack.c.0.s8 %v621
    %v623 = vlaneseq
    %v624 = vshrl.u32 %v623, 7
    %v625 = vsub.s32 %v622, %v624
    %v626 = vrot.slane %v610, %v625
    %v628 = vunpack.c.l.s4 1983009808
    %v629 = vunpack.c.0.s8 %v628
    %v630 = vlaneseq
    %v631 = vshrl.u32 %v630, 7
    %v632 = vsub.s32 %v629, %v631
    %v633 = vrot.slane %v611, %v632
    %v635 = vunpack.c.l.s4 1983009808
    %v636 = vunpack.c.0.s8 %v635
    %v637 = vlaneseq
    %v638 = vshrl.u32 %v637, 7
    %v639 = vsub.s32 %v636, %v638
    %v640 = vrot.slane %v612, %v639
    %v641 = vcombine.low %v619, %v633
    %v642 = vcombine.high %v619, %v633
    %v643 = vcombine.low %v626, %v640
    %v644 = vcombine.high %v626, %v640
    %v645 = vcombine.low %v86, %v110
    %v646 = vcombine.high %v86, %v110
    %v647 = vcombine.low %v134, %v158
    %v648 = vcombine.high %v134, %v158
    %v650 = vunpack.c.l.s4 1983009808
    %v651 = vunpack.c.0.s8 %v650
    %v652 = vlaneseq
    %v653 = vshrl.u32 %v652, 7
    %v654 = vsub.s32 %v651, %v653
    %v655 = vrot.slane %v645, %v654
    %v657 = vunpack.c.l.s4 1983009808
    %v658 = vunpack.c.0.s8 %v657
    %v659 = vlaneseq
    %v660 = vshrl.u32 %v659, 7
    %v661 = vsub.s32 %v658, %v660
    %v662 = vrot.slane %v646, %v661
    %v664 = vunpack.c.l.s4 1983009808
    %v665 = vunpack.c.0.s8 %v664
    %v666 = vlaneseq
    %v667 = vshrl.u32 %v666, 7
    %v668 = vsub.s32 %v665, %v667
    %v669 = vrot.slane %v647, %v668
    %v671 = vunpack.c.l.s4 1983009808
    %v672 = vunpack.c.0.s8 %v671
    %v673 = vlaneseq
    %v674 = vshrl.u32 %v673, 7
    %v675 = vsub.s32 %v672, %v674
    %v676 = vrot.slane %v648, %v675
    %v677 = vcombine.low %v655, %v669
    %v678 = vcombine.high %v655, %v669
    %v679 = vcombine.low %v662, %v676
    %v680 = vcombine.high %v662, %v676
    %v681 = vcombine.low %v87, %v111
    %v682 = vcombine.high %v87, %v111
    %v683 = vcombine.low %v135, %v159
    %v684 = vcombine.high %v135, %v159
    %v686 = vunpack.c.l.s4 1983009808
    %v687 = vunpack.c.0.s8 %v686
    %v688 = vlaneseq
    %v689 = vshrl.u32 %v688, 7
    %v690 = vsub.s32 %v687, %v689
    %v691 = vrot.slane %v681, %v690
    %v693 = vunpack.c.l.s4 1983009808
    %v694 = vunpack.c.0.s8 %v693
    %v695 = vlaneseq
    %v696 = vshrl.u32 %v695, 7
    %v697 = vsub.s32 %v694, %v696
    %v698 = vrot.slane %v682, %v697
    %v700 = vunpack.c.l.s4 1983009808
    %v701 = vunpack.c.0.s8 %v700
    %v702 = vlaneseq
    %v703 = vshrl.u32 %v702, 7
    %v704 = vsub.s32 %v701, %v703
    %v705 = vrot.slane %v683, %v704
    %v707 = vunpack.c.l.s4 1983009808
    %v708 = vunpack.c.0.s8 %v707
    %v709 = vlaneseq
    %v710 = vshrl.u32 %v709, 7
    %v711 = vsub.s32 %v708, %v710
    %v712 = vrot.slane %v684, %v711
    %v713 = vcombine.low %v691, %v705
    %v714 = vcombine.high %v691, %v705
    %v715 = vcombine.low %v698, %v712
    %v716 = vcombine.high %v698, %v712
    %v717 = vcombine.low %v88, %v112
    %v718 = vcombine.high %v88, %v112
    %v719 = vcombine.low %v136, %v160
    %v720 = vcombine.high %v136, %v160
    %v722 = vunpack.c.l.s4 1983009808
    %v723 = vunpack.c.0.s8 %v722
    %v724 = vlaneseq
    %v725 = vshrl.u32 %v724, 7
    %v726 = vsub.s32 %v723, %v725
    %v727 = vrot.slane %v717, %v726
    %v729 = vunpack.c.l.s4 1983009808
    %v730 = vunpack.c.0.s8 %v729
    %v731 = vlaneseq
    %v732 = vshrl.u32 %v731, 7
    %v733 = vsub.s32 %v730, %v732
    %v734 = vrot.slane %v718, %v733
    %v736 = vunpack.c.l.s4 1983009808
    %v737 = vunpack.c.0.s8 %v736
    %v738 = vlaneseq
    %v739 = vshrl.u32 %v738, 7
    %v740 = vsub.s32 %v737, %v739
    %v741 = vrot.slane %v719, %v740
    %v743 = vunpack.c.l.s4 1983009808
    %v744 = vunpack.c.0.s8 %v743
    %v745 = vlaneseq
    %v746 = vshrl.u32 %v745, 7
    %v747 = vsub.s32 %v744, %v746
    %v748 = vrot.slane %v720, %v747
    %v749 = vcombine.low %v727, %v741
    %v750 = vcombine.high %v727, %v741
    %v751 = vcombine.low %v734, %v748
    %v752 = vcombine.high %v734, %v748
    %v753 = vcombine.low %v89, %v113
    %v754 = vcombine.high %v89, %v113
    %v755 = vcombine.low %v137, %v161
    %v756 = vcombine.high %v137, %v161
    %v758 = vunpack.c.l.s4 1983009808
    %v759 = vunpack.c.0.s8 %v758
    %v760 = vlaneseq
    %v761 = vshrl.u32 %v760, 7
    %v762 = vsub.s32 %v759, %v761
    %v763 = vrot.slane %v753, %v762
    %v765 = vunpack.c.l.s4 1983009808
    %v766 = vunpack.c.0.s8 %v765
    %v767 = vlaneseq
    %v768 = vshrl.u32 %v767, 7
    %v769 = vsub.s32 %v766, %v768
    %v770 = vrot.slane %v754, %v769
    %v772 = vunpack.c.l.s4 1983009808
    %v773 = vunpack.c.0.s8 %v772
    %v774 = vlaneseq
    %v775 = vshrl.u32 %v774, 7
    %v776 = vsub.s32 %v773, %v775
    %v777 = vrot.slane %v755, %v776
    %v779 = vunpack.c.l.s4 1983009808
    %v780 = vunpack.c.0.s8 %v779
    %v781 = vlaneseq
    %v782 = vshrl.u32 %v781, 7
    %v783 = vsub.s32 %v780, %v782
    %v784 = vrot.slane %v756, %v783
    %v785 = vcombine.low %v763, %v777
    %v786 = vcombine.high %v763, %v777
    %v787 = vcombine.low %v770, %v784
    %v788 = vcombine.high %v770, %v784
    %v789 = vcombine.low %v90, %v114
    %v790 = vcombine.high %v90, %v114
    %v791 = vcombine.low %v138, %v162
    %v792 = vcombine.high %v138, %v162
    %v794 = vunpack.c.l.s4 1983009808
    %v795 = vunpack.c.0.s8 %v794
    %v796 = vlaneseq
    %v797 = vshrl.u32 %v796, 7
    %v798 = vsub.s32 %v795, %v797
    %v799 = vrot.slane %v789, %v798
    %v801 = vunpack.c.l.s4 1983009808
    %v802 = vunpack.c.0.s8 %v801
    %v803 = vlaneseq
    %v804 = vshrl.u32 %v803, 7
    %v805 = vsub.s32 %v802, %v804
    %v806 = vrot.slane %v790, %v805
    %v808 = vunpack.c.l.s4 1983009808
    %v809 = vunpack.c.0.s8 %v808
    %v810 = vlaneseq
    %v811 = vshrl.u32 %v810, 7
    %v812 = vsub.s32 %v809, %v811
    %v813 = vrot.slane %v791, %v812
    %v815 = vunpack.c.l.s4 1983009808
    %v816 = vunpack.c.0.s8 %v815
    %v817 = vlaneseq
    %v818 = vshrl.u32 %v817, 7
    %v819 = vsub.s32 %v816, %v818
    %v820 = vrot.slane %v792, %v819
    %v821 = vcombine.low %v799, %v813
    %v822 = vcombine.high %v799, %v813
    %v823 = vcombine.low %v806, %v820
    %v824 = vcombine.high %v806, %v820
    %v825 = vcombine.low %v91, %v115
    %v826 = vcombine.high %v91, %v115
    %v827 = vcombine.low %v139, %v163
    %v828 = vcombine.high %v139, %v163
    %v830 = vunpack.c.l.s4 1983009808
    %v831 = vunpack.c.0.s8 %v830
    %v832 = vlaneseq
    %v833 = vshrl.u32 %v832, 7
    %v834 = vsub.s32 %v831, %v833
    %v835 = vrot.slane %v825, %v834
    %v837 = vunpack.c.l.s4 1983009808
    %v838 = vunpack.c.0.s8 %v837
    %v839 = vlaneseq
    %v840 = vshrl.u32 %v839, 7
    %v841 = vsub.s32 %v838, %v840
    %v842 = vrot.slane %v826, %v841
    %v844 = vunpack.c.l.s4 1983009808
    %v845 = vunpack.c.0.s8 %v844
    %v846 = vlaneseq
    %v847 = vshrl.u32 %v846, 7
    %v848 = vsub.s32 %v845, %v847
    %v849 = vrot.slane %v827, %v848
    %v851 = vunpack.c.l.s4 1983009808
    %v852 = vunpack.c.0.s8 %v851
    %v853 = vlaneseq
    %v854 = vshrl.u32 %v853, 7
    %v855 = vsub.s32 %v852, %v854
    %v856 = vrot.slane %v828, %v855
    %v857 = vcombine.low %v835, %v849
    %v858 = vcombine.high %v835, %v849
    %v859 = vcombine.low %v842, %v856
    %v860 = vcombine.high %v842, %v856
    %v861 = vcombine.low %v92, %v116
    %v862 = vcombine.high %v92, %v116
    %v863 = vcombine.low %v140, %v164
    %v864 = vcombine.high %v140, %v164
    %v866 = vunpack.c.l.s4 1983009808
    %v867 = vunpack.c.0.s8 %v866
    %v868 = vlaneseq
    %v869 = vshrl.u32 %v868, 7
    %v870 = vsub.s32 %v867, %v869
    %v871 = vrot.slane %v861, %v870
    %v873 = vunpack.c.l.s4 1983009808
    %v874 = vunpack.c.0.s8 %v873
    %v875 = vlaneseq
    %v876 = vshrl.u32 %v875, 7
    %v877 = vsub.s32 %v874, %v876
    %v878 = vrot.slane %v862, %v877
    %v880 = vunpack.c.l.s4 1983009808
    %v881 = vunpack.c.0.s8 %v880
    %v882 = vlaneseq
    %v883 = vshrl.u32 %v882, 7
    %v884 = vsub.s32 %v881, %v883
    %v885 = vrot.slane %v863, %v884
    %v887 = vunpack.c.l.s4 1983009808
    %v888 = vunpack.c.0.s8 %v887
    %v889 = vlaneseq
    %v890 = vshrl.u32 %v889, 7
    %v891 = vsub.s32 %v888, %v890
    %v892 = vrot.slane %v864, %v891
    %v893 = vcombine.low %v871, %v885
    %v894 = vcombine.high %v871, %v885
    %v895 = vcombine.low %v878, %v892
    %v896 = vcombine.high %v878, %v892
    %v897 = vcombine.low %v93, %v117
    %v898 = vcombine.high %v93, %v117
    %v899 = vcombine.low %v141, %v165
    %v900 = vcombine.high %v141, %v165
    %v902 = vunpack.c.l.s4 1983009808
    %v903 = vunpack.c.0.s8 %v902
    %v904 = vlaneseq
    %v905 = vshrl.u32 %v904, 7
    %v906 = vsub.s32 %v903, %v905
    %v907 = vrot.slane %v897, %v906
    %v909 = vunpack.c.l.s4 1983009808
    %v910 = vunpack.c.0.s8 %v909
    %v911 = vlaneseq
    %v912 = vshrl.u32 %v911, 7
    %v913 = vsub.s32 %v910, %v912
    %v914 = vrot.slane %v898, %v913
    %v916 = vunpack.c.l.s4 1983009808
    %v917 = vunpack.c.0.s8 %v916
    %v918 = vlaneseq
    %v919 = vshrl.u32 %v918, 7
    %v920 = vsub.s32 %v917, %v919
    %v921 = vrot.slane %v899, %v920
    %v923 = vunpack.c.l.s4 1983009808
    %v924 = vunpack.c.0.s8 %v923
    %v925 = vlaneseq
    %v926 = vshrl.u32 %v925, 7
    %v927 = vsub.s32 %v924, %v926
    %v928 = vrot.slane %v900, %v927
    %v929 = vcombine.low %v907, %v921
    %v930 = vcombine.high %v907, %v921
    %v931 = vcombine.low %v914, %v928
    %v932 = vcombine.high %v914, %v928
    %v933 = vcombine.low %v94, %v118
    %v934 = vcombine.high %v94, %v118
    %v935 = vcombine.low %v142, %v166
    %v936 = vcombine.high %v142, %v166
    %v938 = vunpack.c.l.s4 1983009808
    %v939 = vunpack.c.0.s8 %v938
    %v940 = vlaneseq
    %v941 = vshrl.u32 %v940, 7
    %v942 = vsub.s32 %v939, %v941
    %v943 = vrot.slane %v933, %v942
    %v945 = vunpack.c.l.s4 1983009808
    %v946 = vunpack.c.0.s8 %v945
    %v947 = vlaneseq
    %v948 = vshrl.u32 %v947, 7
    %v949 = vsub.s32 %v946, %v948
    %v950 = vrot.slane %v934, %v949
    %v952 = vunpack.c.l.s4 1983009808
    %v953 = vunpack.c.0.s8 %v952
    %v954 = vlaneseq
    %v955 = vshrl.u32 %v954, 7
    %v956 = vsub.s32 %v953, %v955
    %v957 = vrot.slane %v935, %v956
    %v959 = vunpack.c.l.s4 1983009808
    %v960 = vunpack.c.0.s8 %v959
    %v961 = vlaneseq
    %v962 = vshrl.u32 %v961, 7
    %v963 = vsub.s32 %v960, %v962
    %v964 = vrot.slane %v936, %v963
    %v965 = vcombine.low %v943, %v957
    %v966 = vcombine.high %v943, %v957
    %v967 = vcombine.low %v950, %v964
    %v968 = vcombine.high %v950, %v964
    %v969 = vcombine.low %v95, %v119
    %v970 = vcombine.high %v95, %v119
    %v971 = vcombine.low %v143, %v167
    %v972 = vcombine.high %v143, %v167
    %v974 = vunpack.c.l.s4 1983009808
    %v975 = vunpack.c.0.s8 %v974
    %v976 = vlaneseq
    %v977 = vshrl.u32 %v976, 7
    %v978 = vsub.s32 %v975, %v977
    %v979 = vrot.slane %v969, %v978
    %v981 = vunpack.c.l.s4 1983009808
    %v982 = vunpack.c.0.s8 %v981
    %v983 = vlaneseq
    %v984 = vshrl.u32 %v983, 7
    %v985 = vsub.s32 %v982, %v984
    %v986 = vrot.slane %v970, %v985
    %v988 = vunpack.c.l.s4 1983009808
    %v989 = vunpack.c.0.s8 %v988
    %v990 = vlaneseq
    %v991 = vshrl.u32 %v990, 7
    %v992 = vsub.s32 %v989, %v991
    %v993 = vrot.slane %v971, %v992
    %v995 = vunpack.c.l.s4 1983009808
    %v996 = vunpack.c.0.s8 %v995
    %v997 = vlaneseq
    %v998 = vshrl.u32 %v997, 7
    %v999 = vsub.s32 %v996, %v998
    %v1000 = vrot.slane %v972, %v999
    %v1001 = vcombine.low %v979, %v993
    %v1002 = vcombine.high %v979, %v993
    %v1003 = vcombine.low %v986, %v1000
    %v1004 = vcombine.high %v986, %v1000
    %v1005 = vcombine.low %v96, %v120
    %v1006 = vcombine.high %v96, %v120
    %v1007 = vcombine.low %v144, %v168
    %v1008 = vcombine.high %v144, %v168
    %v1010 = vunpack.c.l.s4 1983009808
    %v1011 = vunpack.c.0.s8 %v1010
    %v1012 = vlaneseq
    %v1013 = vshrl.u32 %v1012, 7
    %v1014 = vsub.s32 %v1011, %v1013
    %v1015 = vrot.slane %v1005, %v1014
    %v1017 = vunpack.c.l.s4 1983009808
    %v1018 = vunpack.c.0.s8 %v1017
    %v1019 = vlaneseq
    %v1020 = vshrl.u32 %v1019, 7
    %v1021 = vsub.s32 %v1018, %v1020
    %v1022 = vrot.slane %v1006, %v1021
    %v1024 = vunpack.c.l.s4 1983009808
    %v1025 = vunpack.c.0.s8 %v1024
    %v1026 = vlaneseq
    %v1027 = vshrl.u32 %v1026, 7
    %v1028 = vsub.s32 %v1025, %v1027
    %v1029 = vrot.slane %v1007, %v1028
    %v1031 = vunpack.c.l.s4 1983009808
    %v1032 = vunpack.c.0.s8 %v1031
    %v1033 = vlaneseq
    %v1034 = vshrl.u32 %v1033, 7
    %v1035 = vsub.s32 %v1032, %v1034
    %v1036 = vrot.slane %v1008, %v1035
    %v1037 = vcombine.low %v1015, %v1029
    %v1038 = vcombine.high %v1015, %v1029
    %v1039 = vcombine.low %v1022, %v1036
    %v1040 = vcombine.high %v1022, %v1036
    %v1041 = vcombine.low %v97, %v121
    %v1042 = vcombine.high %v97, %v121
    %v1043 = vcombine.low %v145, %v169
    %v1044 = vcombine.high %v145, %v169
    %v1046 = vunpack.c.l.s4 1983009808
    %v1047 = vunpack.c.0.s8 %v1046
    %v1048 = vlaneseq
    %v1049 = vshrl.u32 %v1048, 7
    %v1050 = vsub.s32 %v1047, %v1049
    %v1051 = vrot.slane %v1041, %v1050
    %v1053 = vunpack.c.l.s4 1983009808
    %v1054 = vunpack.c.0.s8 %v1053
    %v1055 = vlaneseq
    %v1056 = vshrl.u32 %v1055, 7
    %v1057 = vsub.s32 %v1054, %v1056
    %v1058 = vrot.slane %v1042, %v1057
    %v1060 = vunpack.c.l.s4 1983009808
    %v1061 = vunpack.c.0.s8 %v1060
    %v1062 = vlaneseq
    %v1063 = vshrl.u32 %v1062, 7
    %v1064 = vsub.s32 %v1061, %v1063
    %v1065 = vrot.slane %v1043, %v1064
    %v1067 = vunpack.c.l.s4 1983009808
    %v1068 = vunpack.c.0.s8 %v1067
    %v1069 = vlaneseq
    %v1070 = vshrl.u32 %v1069, 7
    %v1071 = vsub.s32 %v1068, %v1070
    %v1072 = vrot.slane %v1044, %v1071
    %v1073 = vcombine.low %v1051, %v1065
    %v1074 = vcombine.high %v1051, %v1065
    %v1075 = vcombine.low %v1058, %v1072
    %v1076 = vcombine.high %v1058, %v1072
    %v1077 = vcombine.low %v98, %v122
    %v1078 = vcombine.high %v98, %v122
    %v1079 = vcombine.low %v146, %v170
    %v1080 = vcombine.high %v146, %v170
    %v1082 = vunpack.c.l.s4 1983009808
    %v1083 = vunpack.c.0.s8 %v1082
    %v1084 = vlaneseq
    %v1085 = vshrl.u32 %v1084, 7
    %v1086 = vsub.s32 %v1083, %v1085
    %v1087 = vrot.slane %v1077, %v1086
    %v1089 = vunpack.c.l.s4 1983009808
    %v1090 = vunpack.c.0.s8 %v1089
    %v1091 = vlaneseq
    %v1092 = vshrl.u32 %v1091, 7
    %v1093 = vsub.s32 %v1090, %v1092
    %v1094 = vrot.slane %v1078, %v1093
    %v1096 = vunpack.c.l.s4 1983009808
    %v1097 = vunpack.c.0.s8 %v1096
    %v1098 = vlaneseq
    %v1099 = vshrl.u32 %v1098, 7
    %v1100 = vsub.s32 %v1097, %v1099
    %v1101 = vrot.slane %v1079, %v1100
    %v1103 = vunpack.c.l.s4 1983009808
    %v1104 = vunpack.c.0.s8 %v1103
    %v1105 = vlaneseq
    %v1106 = vshrl.u32 %v1105, 7
    %v1107 = vsub.s32 %v1104, %v1106
    %v1108 = vrot.slane %v1080, %v1107
    %v1109 = vcombine.low %v1087, %v1101
    %v1110 = vcombine.high %v1087, %v1101
    %v1111 = vcombine.low %v1094, %v1108
    %v1112 = vcombine.high %v1094, %v1108
    %v1113 = vcombine.low %v99, %v123
    %v1114 = vcombine.high %v99, %v123
    %v1115 = vcombine.low %v147, %v171
    %v1116 = vcombine.high %v147, %v171
    %v1118 = vunpack.c.l.s4 1983009808
    %v1119 = vunpack.c.0.s8 %v1118
    %v1120 = vlaneseq
    %v1121 = vshrl.u32 %v1120, 7
    %v1122 = vsub.s32 %v1119, %v1121
    %v1123 = vrot.slane %v1113, %v1122
    %v1125 = vunpack.c.l.s4 1983009808
    %v1126 = vunpack.c.0.s8 %v1125
    %v1127 = vlaneseq
    %v1128 = vshrl.u32 %v1127, 7
    %v1129 = vsub.s32 %v1126, %v1128
    %v1130 = vrot.slane %v1114, %v1129
    %v1132 = vunpack.c.l.s4 1983009808
    %v1133 = vunpack.c.0.s8 %v1132
    %v1134 = vlaneseq
    %v1135 = vshrl.u32 %v1134, 7
    %v1136 = vsub.s32 %v1133, %v1135
    %v1137 = vrot.slane %v1115, %v1136
    %v1139 = vunpack.c.l.s4 1983009808
    %v1140 = vunpack.c.0.s8 %v1139
    %v1141 = vlaneseq
    %v1142 = vshrl.u32 %v1141, 7
    %v1143 = vsub.s32 %v1140, %v1142
    %v1144 = vrot.slane %v1116, %v1143
    %v1145 = vcombine.low %v1123, %v1137
    %v1146 = vcombine.high %v1123, %v1137
    %v1147 = vcombine.low %v1130, %v1144
    %v1148 = vcombine.high %v1130, %v1144
    %v1149 = vcombine.low %v100, %v124
    %v1150 = vcombine.high %v100, %v124
    %v1151 = vcombine.low %v148, %v172
    %v1152 = vcombine.high %v148, %v172
    %v1154 = vunpack.c.l.s4 1983009808
    %v1155 = vunpack.c.0.s8 %v1154
    %v1156 = vlaneseq
    %v1157 = vshrl.u32 %v1156, 7
    %v1158 = vsub.s32 %v1155, %v1157
    %v1159 = vrot.slane %v1149, %v1158
    %v1161 = vunpack.c.l.s4 1983009808
    %v1162 = vunpack.c.0.s8 %v1161
    %v1163 = vlaneseq
    %v1164 = vshrl.u32 %v1163, 7
    %v1165 = vsub.s32 %v1162, %v1164
    %v1166 = vrot.slane %v1150, %v1165
    %v1168 = vunpack.c.l.s4 1983009808
    %v1169 = vunpack.c.0.s8 %v1168
    %v1170 = vlaneseq
    %v1171 = vshrl.u32 %v1170, 7
    %v1172 = vsub.s32 %v1169, %v1171
    %v1173 = vrot.slane %v1151, %v1172
    %v1175 = vunpack.c.l.s4 1983009808
    %v1176 = vunpack.c.0.s8 %v1175
    %v1177 = vlaneseq
    %v1178 = vshrl.u32 %v1177, 7
    %v1179 = vsub.s32 %v1176, %v1178
    %v1180 = vrot.slane %v1152, %v1179
    %v1181 = vcombine.low %v1159, %v1173
    %v1182 = vcombine.high %v1159, %v1173
    %v1183 = vcombine.low %v1166, %v1180
    %v1184 = vcombine.high %v1166, %v1180
    %v1185 = vcombine.low %v101, %v125
    %v1186 = vcombine.high %v101, %v125
    %v1187 = vcombine.low %v149, %v173
    %v1188 = vcombine.high %v149, %v173
    %v1190 = vunpack.c.l.s4 1983009808
    %v1191 = vunpack.c.0.s8 %v1190
    %v1192 = vlaneseq
    %v1193 = vshrl.u32 %v1192, 7
    %v1194 = vsub.s32 %v1191, %v1193
    %v1195 = vrot.slane %v1185, %v1194
    %v1197 = vunpack.c.l.s4 1983009808
    %v1198 = vunpack.c.0.s8 %v1197
    %v1199 = vlaneseq
    %v1200 = vshrl.u32 %v1199, 7
    %v1201 = vsub.s32 %v1198, %v1200
    %v1202 = vrot.slane %v1186, %v1201
    %v1204 = vunpack.c.l.s4 1983009808
    %v1205 = vunpack.c.0.s8 %v1204
    %v1206 = vlaneseq
    %v1207 = vshrl.u32 %v1206, 7
    %v1208 = vsub.s32 %v1205, %v1207
    %v1209 = vrot.slane %v1187, %v1208
    %v1211 = vunpack.c.l.s4 1983009808
    %v1212 = vunpack.c.0.s8 %v1211
    %v1213 = vlaneseq
    %v1214 = vshrl.u32 %v1213, 7
    %v1215 = vsub.s32 %v1212, %v1214
    %v1216 = vrot.slane %v1188, %v1215
    %v1217 = vcombine.low %v1195, %v1209
    %v1218 = vcombine.high %v1195, %v1209
    %v1219 = vcombine.low %v1202, %v1216
    %v1220 = vcombine.high %v1202, %v1216
    %v1221 = vcombine.low %v102, %v126
    %v1222 = vcombine.high %v102, %v126
    %v1223 = vcombine.low %v150, %v174
    %v1224 = vcombine.high %v150, %v174
    %v1226 = vunpack.c.l.s4 1983009808
    %v1227 = vunpack.c.0.s8 %v1226
    %v1228 = vlaneseq
    %v1229 = vshrl.u32 %v1228, 7
    %v1230 = vsub.s32 %v1227, %v1229
    %v1231 = vrot.slane %v1221, %v1230
    %v1233 = vunpack.c.l.s4 1983009808
    %v1234 = vunpack.c.0.s8 %v1233
    %v1235 = vlaneseq
    %v1236 = vshrl.u32 %v1235, 7
    %v1237 = vsub.s32 %v1234, %v1236
    %v1238 = vrot.slane %v1222, %v1237
    %v1240 = vunpack.c.l.s4 1983009808
    %v1241 = vunpack.c.0.s8 %v1240
    %v1242 = vlaneseq
    %v1243 = vshrl.u32 %v1242, 7
    %v1244 = vsub.s32 %v1241, %v1243
    %v1245 = vrot.slane %v1223, %v1244
    %v1247 = vunpack.c.l.s4 1983009808
    %v1248 = vunpack.c.0.s8 %v1247
    %v1249 = vlaneseq
    %v1250 = vshrl.u32 %v1249, 7
    %v1251 = vsub.s32 %v1248, %v1250
    %v1252 = vrot.slane %v1224, %v1251
    %v1253 = vcombine.low %v1231, %v1245
    %v1254 = vcombine.high %v1231, %v1245
    %v1255 = vcombine.low %v1238, %v1252
    %v1256 = vcombine.high %v1238, %v1252
    %v1257 = vcombine.low %v103, %v127
    %v1258 = vcombine.high %v103, %v127
    %v1259 = vcombine.low %v151, %v175
    %v1260 = vcombine.high %v151, %v175
    %v1262 = vunpack.c.l.s4 1983009808
    %v1263 = vunpack.c.0.s8 %v1262
    %v1264 = vlaneseq
    %v1265 = vshrl.u32 %v1264, 7
    %v1266 = vsub.s32 %v1263, %v1265
    %v1267 = vrot.slane %v1257, %v1266
    %v1269 = vunpack.c.l.s4 1983009808
    %v1270 = vunpack.c.0.s8 %v1269
    %v1271 = vlaneseq
    %v1272 = vshrl.u32 %v1271, 7
    %v1273 = vsub.s32 %v1270, %v1272
    %v1274 = vrot.slane %v1258, %v1273
    %v1276 = vunpack.c.l.s4 1983009808
    %v1277 = vunpack.c.0.s8 %v1276
    %v1278 = vlaneseq
    %v1279 = vshrl.u32 %v1278, 7
    %v1280 = vsub.s32 %v1277, %v1279
    %v1281 = vrot.slane %v1259, %v1280
    %v1283 = vunpack.c.l.s4 1983009808
    %v1284 = vunpack.c.0.s8 %v1283
    %v1285 = vlaneseq
    %v1286 = vshrl.u32 %v1285, 7
    %v1287 = vsub.s32 %v1284, %v1286
    %v1288 = vrot.slane %v1260, %v1287
    %v1289 = vcombine.low %v1267, %v1281
    %v1290 = vcombine.high %v1267, %v1281
    %v1291 = vcombine.low %v1274, %v1288
    %v1292 = vcombine.high %v1274, %v1288
    %v1293 = vcombine.low %v104, %v128
    %v1294 = vcombine.high %v104, %v128
    %v1295 = vcombine.low %v152, %v176
    %v1296 = vcombine.high %v152, %v176
    %v1298 = vunpack.c.l.s4 1983009808
    %v1299 = vunpack.c.0.s8 %v1298
    %v1300 = vlaneseq
    %v1301 = vshrl.u32 %v1300, 7
    %v1302 = vsub.s32 %v1299, %v1301
    %v1303 = vrot.slane %v1293, %v1302
    %v1305 = vunpack.c.l.s4 1983009808
    %v1306 = vunpack.c.0.s8 %v1305
    %v1307 = vlaneseq
    %v1308 = vshrl.u32 %v1307, 7
    %v1309 = vsub.s32 %v1306, %v1308
    %v1310 = vrot.slane %v1294, %v1309
    %v1312 = vunpack.c.l.s4 1983009808
    %v1313 = vunpack.c.0.s8 %v1312
    %v1314 = vlaneseq
    %v1315 = vshrl.u32 %v1314, 7
    %v1316 = vsub.s32 %v1313, %v1315
    %v1317 = vrot.slane %v1295, %v1316
    %v1319 = vunpack.c.l.s4 1983009808
    %v1320 = vunpack.c.0.s8 %v1319
    %v1321 = vlaneseq
    %v1322 = vshrl.u32 %v1321, 7
    %v1323 = vsub.s32 %v1320, %v1322
    %v1324 = vrot.slane %v1296, %v1323
    %v1325 = vcombine.low %v1303, %v1317
    %v1326 = vcombine.high %v1303, %v1317
    %v1327 = vcombine.low %v1310, %v1324
    %v1328 = vcombine.high %v1310, %v1324
    %v1329 = vcombine.low %v177, %v201
    %v1330 = vcombine.high %v177, %v201
    %v1331 = vcombine.low %v225, %v249
    %v1332 = vcombine.high %v225, %v249
    %v1334 = vunpack.c.l.s4 1983009808
    %v1335 = vunpack.c.0.s8 %v1334
    %v1336 = vlaneseq
    %v1337 = vshrl.u32 %v1336, 7
    %v1338 = vsub.s32 %v1335, %v1337
    %v1339 = vrot.slane %v1329, %v1338
    %v1341 = vunpack.c.l.s4 1983009808
    %v1342 = vunpack.c.0.s8 %v1341
    %v1343 = vlaneseq
    %v1344 = vshrl.u32 %v1343, 7
    %v1345 = vsub.s32 %v1342, %v1344
    %v1346 = vrot.slane %v1330, %v1345
    %v1348 = vunpack.c.l.s4 1983009808
    %v1349 = vunpack.c.0.s8 %v1348
    %v1350 = vlaneseq
    %v1351 = vshrl.u32 %v1350, 7
    %v1352 = vsub.s32 %v1349, %v1351
    %v1353 = vrot.slane %v1331, %v1352
    %v1355 = vunpack.c.l.s4 1983009808
    %v1356 = vunpack.c.0.s8 %v1355
    %v1357 = vlaneseq
    %v1358 = vshrl.u32 %v1357, 7
    %v1359 = vsub.s32 %v1356, %v1358
    %v1360 = vrot.slane %v1332, %v1359
    %v1361 = vcombine.low %v1339, %v1353
    %v1362 = vcombine.high %v1339, %v1353
    %v1363 = vcombine.low %v1346, %v1360
    %v1364 = vcombine.high %v1346, %v1360
    %v1365 = vcombine.low %v178, %v202
    %v1366 = vcombine.high %v178, %v202
    %v1367 = vcombine.low %v226, %v250
    %v1368 = vcombine.high %v226, %v250
    %v1370 = vunpack.c.l.s4 1983009808
    %v1371 = vunpack.c.0.s8 %v1370
    %v1372 = vlaneseq
    %v1373 = vshrl.u32 %v1372, 7
    %v1374 = vsub.s32 %v1371, %v1373
    %v1375 = vrot.slane %v1365, %v1374
    %v1377 = vunpack.c.l.s4 1983009808
    %v1378 = vunpack.c.0.s8 %v1377
    %v1379 = vlaneseq
    %v1380 = vshrl.u32 %v1379, 7
    %v1381 = vsub.s32 %v1378, %v1380
    %v1382 = vrot.slane %v1366, %v1381
    %v1384 = vunpack.c.l.s4 1983009808
    %v1385 = vunpack.c.0.s8 %v1384
    %v1386 = vlaneseq
    %v1387 = vshrl.u32 %v1386, 7
    %v1388 = vsub.s32 %v1385, %v1387
    %v1389 = vrot.slane %v1367, %v1388
    %v1391 = vunpack.c.l.s4 1983009808
    %v1392 = vunpack.c.0.s8 %v1391
    %v1393 = vlaneseq
    %v1394 = vshrl.u32 %v1393, 7
    %v1395 = vsub.s32 %v1392, %v1394
    %v1396 = vrot.slane %v1368, %v1395
    %v1397 = vcombine.low %v1375, %v1389
    %v1398 = vcombine.high %v1375, %v1389
    %v1399 = vcombine.low %v1382, %v1396
    %v1400 = vcombine.high %v1382, %v1396
    %v1401 = vcombine.low %v179, %v203
    %v1402 = vcombine.high %v179, %v203
    %v1403 = vcombine.low %v227, %v251
    %v1404 = vcombine.high %v227, %v251
    %v1406 = vunpack.c.l.s4 1983009808
    %v1407 = vunpack.c.0.s8 %v1406
    %v1408 = vlaneseq
    %v1409 = vshrl.u32 %v1408, 7
    %v1410 = vsub.s32 %v1407, %v1409
    %v1411 = vrot.slane %v1401, %v1410
    %v1413 = vunpack.c.l.s4 1983009808
    %v1414 = vunpack.c.0.s8 %v1413
    %v1415 = vlaneseq
    %v1416 = vshrl.u32 %v1415, 7
    %v1417 = vsub.s32 %v1414, %v1416
    %v1418 = vrot.slane %v1402, %v1417
    %v1420 = vunpack.c.l.s4 1983009808
    %v1421 = vunpack.c.0.s8 %v1420
    %v1422 = vlaneseq
    %v1423 = vshrl.u32 %v1422, 7
    %v1424 = vsub.s32 %v1421, %v1423
    %v1425 = vrot.slane %v1403, %v1424
    %v1427 = vunpack.c.l.s4 1983009808
    %v1428 = vunpack.c.0.s8 %v1427
    %v1429 = vlaneseq
    %v1430 = vshrl.u32 %v1429, 7
    %v1431 = vsub.s32 %v1428, %v1430
    %v1432 = vrot.slane %v1404, %v1431
    %v1433 = vcombine.low %v1411, %v1425
    %v1434 = vcombine.high %v1411, %v1425
    %v1435 = vcombine.low %v1418, %v1432
    %v1436 = vcombine.high %v1418, %v1432
    %v1437 = vcombine.low %v180, %v204
    %v1438 = vcombine.high %v180, %v204
    %v1439 = vcombine.low %v228, %v252
    %v1440 = vcombine.high %v228, %v252
    %v1442 = vunpack.c.l.s4 1983009808
    %v1443 = vunpack.c.0.s8 %v1442
    %v1444 = vlaneseq
    %v1445 = vshrl.u32 %v1444, 7
    %v1446 = vsub.s32 %v1443, %v1445
    %v1447 = vrot.slane %v1437, %v1446
    %v1449 = vunpack.c.l.s4 1983009808
    %v1450 = vunpack.c.0.s8 %v1449
    %v1451 = vlaneseq
    %v1452 = vshrl.u32 %v1451, 7
    %v1453 = vsub.s32 %v1450, %v1452
    %v1454 = vrot.slane %v1438, %v1453
    %v1456 = vunpack.c.l.s4 1983009808
    %v1457 = vunpack.c.0.s8 %v1456
    %v1458 = vlaneseq
    %v1459 = vshrl.u32 %v1458, 7
    %v1460 = vsub.s32 %v1457, %v1459
    %v1461 = vrot.slane %v1439, %v1460
    %v1463 = vunpack.c.l.s4 1983009808
    %v1464 = vunpack.c.0.s8 %v1463
    %v1465 = vlaneseq
    %v1466 = vshrl.u32 %v1465, 7
    %v1467 = vsub.s32 %v1464, %v1466
    %v1468 = vrot.slane %v1440, %v1467
    %v1469 = vcombine.low %v1447, %v1461
    %v1470 = vcombine.high %v1447, %v1461
    %v1471 = vcombine.low %v1454, %v1468
    %v1472 = vcombine.high %v1454, %v1468
    %v1473 = vcombine.low %v181, %v205
    %v1474 = vcombine.high %v181, %v205
    %v1475 = vcombine.low %v229, %v253
    %v1476 = vcombine.high %v229, %v253
    %v1478 = vunpack.c.l.s4 1983009808
    %v1479 = vunpack.c.0.s8 %v1478
    %v1480 = vlaneseq
    %v1481 = vshrl.u32 %v1480, 7
    %v1482 = vsub.s32 %v1479, %v1481
    %v1483 = vrot.slane %v1473, %v1482
    %v1485 = vunpack.c.l.s4 1983009808
    %v1486 = vunpack.c.0.s8 %v1485
    %v1487 = vlaneseq
    %v1488 = vshrl.u32 %v1487, 7
    %v1489 = vsub.s32 %v1486, %v1488
    %v1490 = vrot.slane %v1474, %v1489
    %v1492 = vunpack.c.l.s4 1983009808
    %v1493 = vunpack.c.0.s8 %v1492
    %v1494 = vlaneseq
    %v1495 = vshrl.u32 %v1494, 7
    %v1496 = vsub.s32 %v1493, %v1495
    %v1497 = vrot.slane %v1475, %v1496
    %v1499 = vunpack.c.l.s4 1983009808
    %v1500 = vunpack.c.0.s8 %v1499
    %v1501 = vlaneseq
    %v1502 = vshrl.u32 %v1501, 7
    %v1503 = vsub.s32 %v1500, %v1502
    %v1504 = vrot.slane %v1476, %v1503
    %v1505 = vcombine.low %v1483, %v1497
    %v1506 = vcombine.high %v1483, %v1497
    %v1507 = vcombine.low %v1490, %v1504
    %v1508 = vcombine.high %v1490, %v1504
    %v1509 = vcombine.low %v182, %v206
    %v1510 = vcombine.high %v182, %v206
    %v1511 = vcombine.low %v230, %v254
    %v1512 = vcombine.high %v230, %v254
    %v1514 = vunpack.c.l.s4 1983009808
    %v1515 = vunpack.c.0.s8 %v1514
    %v1516 = vlaneseq
    %v1517 = vshrl.u32 %v1516, 7
    %v1518 = vsub.s32 %v1515, %v1517
    %v1519 = vrot.slane %v1509, %v1518
    %v1521 = vunpack.c.l.s4 1983009808
    %v1522 = vunpack.c.0.s8 %v1521
    %v1523 = vlaneseq
    %v1524 = vshrl.u32 %v1523, 7
    %v1525 = vsub.s32 %v1522, %v1524
    %v1526 = vrot.slane %v1510, %v1525
    %v1528 = vunpack.c.l.s4 1983009808
    %v1529 = vunpack.c.0.s8 %v1528
    %v1530 = vlaneseq
    %v1531 = vshrl.u32 %v1530, 7
    %v1532 = vsub.s32 %v1529, %v1531
    %v1533 = vrot.slane %v1511, %v1532
    %v1535 = vunpack.c.l.s4 1983009808
    %v1536 = vunpack.c.0.s8 %v1535
    %v1537 = vlaneseq
    %v1538 = vshrl.u32 %v1537, 7
    %v1539 = vsub.s32 %v1536, %v1538
    %v1540 = vrot.slane %v1512, %v1539
    %v1541 = vcombine.low %v1519, %v1533
    %v1542 = vcombine.high %v1519, %v1533
    %v1543 = vcombine.low %v1526, %v1540
    %v1544 = vcombine.high %v1526, %v1540
    %v1545 = vcombine.low %v183, %v207
    %v1546 = vcombine.high %v183, %v207
    %v1547 = vcombine.low %v231, %v255
    %v1548 = vcombine.high %v231, %v255
    %v1550 = vunpack.c.l.s4 1983009808
    %v1551 = vunpack.c.0.s8 %v1550
    %v1552 = vlaneseq
    %v1553 = vshrl.u32 %v1552, 7
    %v1554 = vsub.s32 %v1551, %v1553
    %v1555 = vrot.slane %v1545, %v1554
    %v1557 = vunpack.c.l.s4 1983009808
    %v1558 = vunpack.c.0.s8 %v1557
    %v1559 = vlaneseq
    %v1560 = vshrl.u32 %v1559, 7
    %v1561 = vsub.s32 %v1558, %v1560
    %v1562 = vrot.slane %v1546, %v1561
    %v1564 = vunpack.c.l.s4 1983009808
    %v1565 = vunpack.c.0.s8 %v1564
    %v1566 = vlaneseq
    %v1567 = vshrl.u32 %v1566, 7
    %v1568 = vsub.s32 %v1565, %v1567
    %v1569 = vrot.slane %v1547, %v1568
    %v1571 = vunpack.c.l.s4 1983009808
    %v1572 = vunpack.c.0.s8 %v1571
    %v1573 = vlaneseq
    %v1574 = vshrl.u32 %v1573, 7
    %v1575 = vsub.s32 %v1572, %v1574
    %v1576 = vrot.slane %v1548, %v1575
    %v1577 = vcombine.low %v1555, %v1569
    %v1578 = vcombine.high %v1555, %v1569
    %v1579 = vcombine.low %v1562, %v1576
    %v1580 = vcombine.high %v1562, %v1576
    %v1581 = vcombine.low %v184, %v208
    %v1582 = vcombine.high %v184, %v208
    %v1583 = vcombine.low %v232, %v256
    %v1584 = vcombine.high %v232, %v256
    %v1586 = vunpack.c.l.s4 1983009808
    %v1587 = vunpack.c.0.s8 %v1586
    %v1588 = vlaneseq
    %v1589 = vshrl.u32 %v1588, 7
    %v1590 = vsub.s32 %v1587, %v1589
    %v1591 = vrot.slane %v1581, %v1590
    %v1593 = vunpack.c.l.s4 1983009808
    %v1594 = vunpack.c.0.s8 %v1593
    %v1595 = vlaneseq
    %v1596 = vshrl.u32 %v1595, 7
    %v1597 = vsub.s32 %v1594, %v1596
    %v1598 = vrot.slane %v1582, %v1597
    %v1600 = vunpack.c.l.s4 1983009808
    %v1601 = vunpack.c.0.s8 %v1600
    %v1602 = vlaneseq
    %v1603 = vshrl.u32 %v1602, 7
    %v1604 = vsub.s32 %v1601, %v1603
    %v1605 = vrot.slane %v1583, %v1604
    %v1607 = vunpack.c.l.s4 1983009808
    %v1608 = vunpack.c.0.s8 %v1607
    %v1609 = vlaneseq
    %v1610 = vshrl.u32 %v1609, 7
    %v1611 = vsub.s32 %v1608, %v1610
    %v1612 = vrot.slane %v1584, %v1611
    %v1613 = vcombine.low %v1591, %v1605
    %v1614 = vcombine.high %v1591, %v1605
    %v1615 = vcombine.low %v1598, %v1612
    %v1616 = vcombine.high %v1598, %v1612
    %v1617 = vcombine.low %v185, %v209
    %v1618 = vcombine.high %v185, %v209
    %v1619 = vcombine.low %v233, %v257
    %v1620 = vcombine.high %v233, %v257
    %v1622 = vunpack.c.l.s4 1983009808
    %v1623 = vunpack.c.0.s8 %v1622
    %v1624 = vlaneseq
    %v1625 = vshrl.u32 %v1624, 7
    %v1626 = vsub.s32 %v1623, %v1625
    %v1627 = vrot.slane %v1617, %v1626
    %v1629 = vunpack.c.l.s4 1983009808
    %v1630 = vunpack.c.0.s8 %v1629
    %v1631 = vlaneseq
    %v1632 = vshrl.u32 %v1631, 7
    %v1633 = vsub.s32 %v1630, %v1632
    %v1634 = vrot.slane %v1618, %v1633
    %v1636 = vunpack.c.l.s4 1983009808
    %v1637 = vunpack.c.0.s8 %v1636
    %v1638 = vlaneseq
    %v1639 = vshrl.u32 %v1638, 7
    %v1640 = vsub.s32 %v1637, %v1639
    %v1641 = vrot.slane %v1619, %v1640
    %v1643 = vunpack.c.l.s4 1983009808
    %v1644 = vunpack.c.0.s8 %v1643
    %v1645 = vlaneseq
    %v1646 = vshrl.u32 %v1645, 7
    %v1647 = vsub.s32 %v1644, %v1646
    %v1648 = vrot.slane %v1620, %v1647
    %v1649 = vcombine.low %v1627, %v1641
    %v1650 = vcombine.high %v1627, %v1641
    %v1651 = vcombine.low %v1634, %v1648
    %v1652 = vcombine.high %v1634, %v1648
    %v1653 = vcombine.low %v186, %v210
    %v1654 = vcombine.high %v186, %v210
    %v1655 = vcombine.low %v234, %v258
    %v1656 = vcombine.high %v234, %v258
    %v1658 = vunpack.c.l.s4 1983009808
    %v1659 = vunpack.c.0.s8 %v1658
    %v1660 = vlaneseq
    %v1661 = vshrl.u32 %v1660, 7
    %v1662 = vsub.s32 %v1659, %v1661
    %v1663 = vrot.slane %v1653, %v1662
    %v1665 = vunpack.c.l.s4 1983009808
    %v1666 = vunpack.c.0.s8 %v1665
    %v1667 = vlaneseq
    %v1668 = vshrl.u32 %v1667, 7
    %v1669 = vsub.s32 %v1666, %v1668
    %v1670 = vrot.slane %v1654, %v1669
    %v1672 = vunpack.c.l.s4 1983009808
    %v1673 = vunpack.c.0.s8 %v1672
    %v1674 = vlaneseq
    %v1675 = vshrl.u32 %v1674, 7
    %v1676 = vsub.s32 %v1673, %v1675
    %v1677 = vrot.slane %v1655, %v1676
    %v1679 = vunpack.c.l.s4 1983009808
    %v1680 = vunpack.c.0.s8 %v1679
    %v1681 = vlaneseq
    %v1682 = vshrl.u32 %v1681, 7
    %v1683 = vsub.s32 %v1680, %v1682
    %v1684 = vrot.slane %v1656, %v1683
    %v1685 = vcombine.low %v1663, %v1677
    %v1686 = vcombine.high %v1663, %v1677
    %v1687 = vcombine.low %v1670, %v1684
    %v1688 = vcombine.high %v1670, %v1684
    %v1689 = vcombine.low %v187, %v211
    %v1690 = vcombine.high %v187, %v211
    %v1691 = vcombine.low %v235, %v259
    %v1692 = vcombine.high %v235, %v259
    %v1694 = vunpack.c.l.s4 1983009808
    %v1695 = vunpack.c.0.s8 %v1694
    %v1696 = vlaneseq
    %v1697 = vshrl.u32 %v1696, 7
    %v1698 = vsub.s32 %v1695, %v1697
    %v1699 = vrot.slane %v1689, %v1698
    %v1701 = vunpack.c.l.s4 1983009808
    %v1702 = vunpack.c.0.s8 %v1701
    %v1703 = vlaneseq
    %v1704 = vshrl.u32 %v1703, 7
    %v1705 = vsub.s32 %v1702, %v1704
    %v1706 = vrot.slane %v1690, %v1705
    %v1708 = vunpack.c.l.s4 1983009808
    %v1709 = vunpack.c.0.s8 %v1708
    %v1710 = vlaneseq
    %v1711 = vshrl.u32 %v1710, 7
    %v1712 = vsub.s32 %v1709, %v1711
    %v1713 = vrot.slane %v1691, %v1712
    %v1715 = vunpack.c.l.s4 1983009808
    %v1716 = vunpack.c.0.s8 %v1715
    %v1717 = vlaneseq
    %v1718 = vshrl.u32 %v1717, 7
    %v1719 = vsub.s32 %v1716, %v1718
    %v1720 = vrot.slane %v1692, %v1719
    %v1721 = vcombine.low %v1699, %v1713
    %v1722 = vcombine.high %v1699, %v1713
    %v1723 = vcombine.low %v1706, %v1720
    %v1724 = vcombine.high %v1706, %v1720
    %v1725 = vcombine.low %v188, %v212
    %v1726 = vcombine.high %v188, %v212
    %v1727 = vcombine.low %v236, %v260
    %v1728 = vcombine.high %v236, %v260
    %v1730 = vunpack.c.l.s4 1983009808
    %v1731 = vunpack.c.0.s8 %v1730
    %v1732 = vlaneseq
    %v1733 = vshrl.u32 %v1732, 7
    %v1734 = vsub.s32 %v1731, %v1733
    %v1735 = vrot.slane %v1725, %v1734
    %v1737 = vunpack.c.l.s4 1983009808
    %v1738 = vunpack.c.0.s8 %v1737
    %v1739 = vlaneseq
    %v1740 = vshrl.u32 %v1739, 7
    %v1741 = vsub.s32 %v1738, %v1740
    %v1742 = vrot.slane %v1726, %v1741
    %v1744 = vunpack.c.l.s4 1983009808
    %v1745 = vunpack.c.0.s8 %v1744
    %v1746 = vlaneseq
    %v1747 = vshrl.u32 %v1746, 7
    %v1748 = vsub.s32 %v1745, %v1747
    %v1749 = vrot.slane %v1727, %v1748
    %v1751 = vunpack.c.l.s4 1983009808
    %v1752 = vunpack.c.0.s8 %v1751
    %v1753 = vlaneseq
    %v1754 = vshrl.u32 %v1753, 7
    %v1755 = vsub.s32 %v1752, %v1754
    %v1756 = vrot.slane %v1728, %v1755
    %v1757 = vcombine.low %v1735, %v1749
    %v1758 = vcombine.high %v1735, %v1749
    %v1759 = vcombine.low %v1742, %v1756
    %v1760 = vcombine.high %v1742, %v1756
    %v1761 = vcombine.low %v189, %v213
    %v1762 = vcombine.high %v189, %v213
    %v1763 = vcombine.low %v237, %v261
    %v1764 = vcombine.high %v237, %v261
    %v1766 = vunpack.c.l.s4 1983009808
    %v1767 = vunpack.c.0.s8 %v1766
    %v1768 = vlaneseq
    %v1769 = vshrl.u32 %v1768, 7
    %v1770 = vsub.s32 %v1767, %v1769
    %v1771 = vrot.slane %v1761, %v1770
    %v1773 = vunpack.c.l.s4 1983009808
    %v1774 = vunpack.c.0.s8 %v1773
    %v1775 = vlaneseq
    %v1776 = vshrl.u32 %v1775, 7
    %v1777 = vsub.s32 %v1774, %v1776
    %v1778 = vrot.slane %v1762, %v1777
    %v1780 = vunpack.c.l.s4 1983009808
    %v1781 = vunpack.c.0.s8 %v1780
    %v1782 = vlaneseq
    %v1783 = vshrl.u32 %v1782, 7
    %v1784 = vsub.s32 %v1781, %v1783
    %v1785 = vrot.slane %v1763, %v1784
    %v1787 = vunpack.c.l.s4 1983009808
    %v1788 = vunpack.c.0.s8 %v1787
    %v1789 = vlaneseq
    %v1790 = vshrl.u32 %v1789, 7
    %v1791 = vsub.s32 %v1788, %v1790
    %v1792 = vrot.slane %v1764, %v1791
    %v1793 = vcombine.low %v1771, %v1785
    %v1794 = vcombine.high %v1771, %v1785
    %v1795 = vcombine.low %v1778, %v1792
    %v1796 = vcombine.high %v1778, %v1792
    %v1797 = vcombine.low %v190, %v214
    %v1798 = vcombine.high %v190, %v214
    %v1799 = vcombine.low %v238, %v262
    %v1800 = vcombine.high %v238, %v262
    %v1802 = vunpack.c.l.s4 1983009808
    %v1803 = vunpack.c.0.s8 %v1802
    %v1804 = vlaneseq
    %v1805 = vshrl.u32 %v1804, 7
    %v1806 = vsub.s32 %v1803, %v1805
    %v1807 = vrot.slane %v1797, %v1806
    %v1809 = vunpack.c.l.s4 1983009808
    %v1810 = vunpack.c.0.s8 %v1809
    %v1811 = vlaneseq
    %v1812 = vshrl.u32 %v1811, 7
    %v1813 = vsub.s32 %v1810, %v1812
    %v1814 = vrot.slane %v1798, %v1813
    %v1816 = vunpack.c.l.s4 1983009808
    %v1817 = vunpack.c.0.s8 %v1816
    %v1818 = vlaneseq
    %v1819 = vshrl.u32 %v1818, 7
    %v1820 = vsub.s32 %v1817, %v1819
    %v1821 = vrot.slane %v1799, %v1820
    %v1823 = vunpack.c.l.s4 1983009808
    %v1824 = vunpack.c.0.s8 %v1823
    %v1825 = vlaneseq
    %v1826 = vshrl.u32 %v1825, 7
    %v1827 = vsub.s32 %v1824, %v1826
    %v1828 = vrot.slane %v1800, %v1827
    %v1829 = vcombine.low %v1807, %v1821
    %v1830 = vcombine.high %v1807, %v1821
    %v1831 = vcombine.low %v1814, %v1828
    %v1832 = vcombine.high %v1814, %v1828
    %v1833 = vcombine.low %v191, %v215
    %v1834 = vcombine.high %v191, %v215
    %v1835 = vcombine.low %v239, %v263
    %v1836 = vcombine.high %v239, %v263
    %v1838 = vunpack.c.l.s4 1983009808
    %v1839 = vunpack.c.0.s8 %v1838
    %v1840 = vlaneseq
    %v1841 = vshrl.u32 %v1840, 7
    %v1842 = vsub.s32 %v1839, %v1841
    %v1843 = vrot.slane %v1833, %v1842
    %v1845 = vunpack.c.l.s4 1983009808
    %v1846 = vunpack.c.0.s8 %v1845
    %v1847 = vlaneseq
    %v1848 = vshrl.u32 %v1847, 7
    %v1849 = vsub.s32 %v1846, %v1848
    %v1850 = vrot.slane %v1834, %v1849
    %v1852 = vunpack.c.l.s4 1983009808
    %v1853 = vunpack.c.0.s8 %v1852
    %v1854 = vlaneseq
    %v1855 = vshrl.u32 %v1854, 7
    %v1856 = vsub.s32 %v1853, %v1855
    %v1857 = vrot.slane %v1835, %v1856
    %v1859 = vunpack.c.l.s4 1983009808
    %v1860 = vunpack.c.0.s8 %v1859
    %v1861 = vlaneseq
    %v1862 = vshrl.u32 %v1861, 7
    %v1863 = vsub.s32 %v1860, %v1862
    %v1864 = vrot.slane %v1836, %v1863
    %v1865 = vcombine.low %v1843, %v1857
    %v1866 = vcombine.high %v1843, %v1857
    %v1867 = vcombine.low %v1850, %v1864
    %v1868 = vcombine.high %v1850, %v1864
    %v1869 = vcombine.low %v192, %v216
    %v1870 = vcombine.high %v192, %v216
    %v1871 = vcombine.low %v240, %v264
    %v1872 = vcombine.high %v240, %v264
    %v1874 = vunpack.c.l.s4 1983009808
    %v1875 = vunpack.c.0.s8 %v1874
    %v1876 = vlaneseq
    %v1877 = vshrl.u32 %v1876, 7
    %v1878 = vsub.s32 %v1875, %v1877
    %v1879 = vrot.slane %v1869, %v1878
    %v1881 = vunpack.c.l.s4 1983009808
    %v1882 = vunpack.c.0.s8 %v1881
    %v1883 = vlaneseq
    %v1884 = vshrl.u32 %v1883, 7
    %v1885 = vsub.s32 %v1882, %v1884
    %v1886 = vrot.slane %v1870, %v1885
    %v1888 = vunpack.c.l.s4 1983009808
    %v1889 = vunpack.c.0.s8 %v1888
    %v1890 = vlaneseq
    %v1891 = vshrl.u32 %v1890, 7
    %v1892 = vsub.s32 %v1889, %v1891
    %v1893 = vrot.slane %v1871, %v1892
    %v1895 = vunpack.c.l.s4 1983009808
    %v1896 = vunpack.c.0.s8 %v1895
    %v1897 = vlaneseq
    %v1898 = vshrl.u32 %v1897, 7
    %v1899 = vsub.s32 %v1896, %v1898
    %v1900 = vrot.slane %v1872, %v1899
    %v1901 = vcombine.low %v1879, %v1893
    %v1902 = vcombine.high %v1879, %v1893
    %v1903 = vcombine.low %v1886, %v1900
    %v1904 = vcombine.high %v1886, %v1900
    %v1905 = vcombine.low %v193, %v217
    %v1906 = vcombine.high %v193, %v217
    %v1907 = vcombine.low %v241, %v265
    %v1908 = vcombine.high %v241, %v265
    %v1910 = vunpack.c.l.s4 1983009808
    %v1911 = vunpack.c.0.s8 %v1910
    %v1912 = vlaneseq
    %v1913 = vshrl.u32 %v1912, 7
    %v1914 = vsub.s32 %v1911, %v1913
    %v1915 = vrot.slane %v1905, %v1914
    %v1917 = vunpack.c.l.s4 1983009808
    %v1918 = vunpack.c.0.s8 %v1917
    %v1919 = vlaneseq
    %v1920 = vshrl.u32 %v1919, 7
    %v1921 = vsub.s32 %v1918, %v1920
    %v1922 = vrot.slane %v1906, %v1921
    %v1924 = vunpack.c.l.s4 1983009808
    %v1925 = vunpack.c.0.s8 %v1924
    %v1926 = vlaneseq
    %v1927 = vshrl.u32 %v1926, 7
    %v1928 = vsub.s32 %v1925, %v1927
    %v1929 = vrot.slane %v1907, %v1928
    %v1931 = vunpack.c.l.s4 1983009808
    %v1932 = vunpack.c.0.s8 %v1931
    %v1933 = vlaneseq
    %v1934 = vshrl.u32 %v1933, 7
    %v1935 = vsub.s32 %v1932, %v1934
    %v1936 = vrot.slane %v1908, %v1935
    %v1937 = vcombine.low %v1915, %v1929
    %v1938 = vcombine.high %v1915, %v1929
    %v1939 = vcombine.low %v1922, %v1936
    %v1940 = vcombine.high %v1922, %v1936
    %v1941 = vcombine.low %v194, %v218
    %v1942 = vcombine.high %v194, %v218
    %v1943 = vcombine.low %v242, %v266
    %v1944 = vcombine.high %v242, %v266
    %v1946 = vunpack.c.l.s4 1983009808
    %v1947 = vunpack.c.0.s8 %v1946
    %v1948 = vlaneseq
    %v1949 = vshrl.u32 %v1948, 7
    %v1950 = vsub.s32 %v1947, %v1949
    %v1951 = vrot.slane %v1941, %v1950
    %v1953 = vunpack.c.l.s4 1983009808
    %v1954 = vunpack.c.0.s8 %v1953
    %v1955 = vlaneseq
    %v1956 = vshrl.u32 %v1955, 7
    %v1957 = vsub.s32 %v1954, %v1956
    %v1958 = vrot.slane %v1942, %v1957
    %v1960 = vunpack.c.l.s4 1983009808
    %v1961 = vunpack.c.0.s8 %v1960
    %v1962 = vlaneseq
    %v1963 = vshrl.u32 %v1962, 7
    %v1964 = vsub.s32 %v1961, %v1963
    %v1965 = vrot.slane %v1943, %v1964
    %v1967 = vunpack.c.l.s4 1983009808
    %v1968 = vunpack.c.0.s8 %v1967
    %v1969 = vlaneseq
    %v1970 = vshrl.u32 %v1969, 7
    %v1971 = vsub.s32 %v1968, %v1970
    %v1972 = vrot.slane %v1944, %v1971
    %v1973 = vcombine.low %v1951, %v1965
    %v1974 = vcombine.high %v1951, %v1965
    %v1975 = vcombine.low %v1958, %v1972
    %v1976 = vcombine.high %v1958, %v1972
    %v1977 = vcombine.low %v195, %v219
    %v1978 = vcombine.high %v195, %v219
    %v1979 = vcombine.low %v243, %v267
    %v1980 = vcombine.high %v243, %v267
    %v1982 = vunpack.c.l.s4 1983009808
    %v1983 = vunpack.c.0.s8 %v1982
    %v1984 = vlaneseq
    %v1985 = vshrl.u32 %v1984, 7
    %v1986 = vsub.s32 %v1983, %v1985
    %v1987 = vrot.slane %v1977, %v1986
    %v1989 = vunpack.c.l.s4 1983009808
    %v1990 = vunpack.c.0.s8 %v1989
    %v1991 = vlaneseq
    %v1992 = vshrl.u32 %v1991, 7
    %v1993 = vsub.s32 %v1990, %v1992
    %v1994 = vrot.slane %v1978, %v1993
    %v1996 = vunpack.c.l.s4 1983009808
    %v1997 = vunpack.c.0.s8 %v1996
    %v1998 = vlaneseq
    %v1999 = vshrl.u32 %v1998, 7
    %v2000 = vsub.s32 %v1997, %v1999
    %v2001 = vrot.slane %v1979, %v2000
    %v2003 = vunpack.c.l.s4 1983009808
    %v2004 = vunpack.c.0.s8 %v2003
    %v2005 = vlaneseq
    %v2006 = vshrl.u32 %v2005, 7
    %v2007 = vsub.s32 %v2004, %v2006
    %v2008 = vrot.slane %v1980, %v2007
    %v2009 = vcombine.low %v1987, %v2001
    %v2010 = vcombine.high %v1987, %v2001
    %v2011 = vcombine.low %v1994, %v2008
    %v2012 = vcombine.high %v1994, %v2008
    %v2013 = vcombine.low %v196, %v220
    %v2014 = vcombine.high %v196, %v220
    %v2015 = vcombine.low %v244, %v268
    %v2016 = vcombine.high %v244, %v268
    %v2018 = vunpack.c.l.s4 1983009808
    %v2019 = vunpack.c.0.s8 %v2018
    %v2020 = vlaneseq
    %v2021 = vshrl.u32 %v2020, 7
    %v2022 = vsub.s32 %v2019, %v2021
    %v2023 = vrot.slane %v2013, %v2022
    %v2025 = vunpack.c.l.s4 1983009808
    %v2026 = vunpack.c.0.s8 %v2025
    %v2027 = vlaneseq
    %v2028 = vshrl.u32 %v2027, 7
    %v2029 = vsub.s32 %v2026, %v2028
    %v2030 = vrot.slane %v2014, %v2029
    %v2032 = vunpack.c.l.s4 1983009808
    %v2033 = vunpack.c.0.s8 %v2032
    %v2034 = vlaneseq
    %v2035 = vshrl.u32 %v2034, 7
    %v2036 = vsub.s32 %v2033, %v2035
    %v2037 = vrot.slane %v2015, %v2036
    %v2039 = vunpack.c.l.s4 1983009808
    %v2040 = vunpack.c.0.s8 %v2039
    %v2041 = vlaneseq
    %v2042 = vshrl.u32 %v2041, 7
    %v2043 = vsub.s32 %v2040, %v2042
    %v2044 = vrot.slane %v2016, %v2043
    %v2045 = vcombine.low %v2023, %v2037
    %v2046 = vcombine.high %v2023, %v2037
    %v2047 = vcombine.low %v2030, %v2044
    %v2048 = vcombine.high %v2030, %v2044
    %v2049 = vcombine.low %v197, %v221
    %v2050 = vcombine.high %v197, %v221
    %v2051 = vcombine.low %v245, %v269
    %v2052 = vcombine.high %v245, %v269
    %v2054 = vunpack.c.l.s4 1983009808
    %v2055 = vunpack.c.0.s8 %v2054
    %v2056 = vlaneseq
    %v2057 = vshrl.u32 %v2056, 7
    %v2058 = vsub.s32 %v2055, %v2057
    %v2059 = vrot.slane %v2049, %v2058
    %v2061 = vunpack.c.l.s4 1983009808
    %v2062 = vunpack.c.0.s8 %v2061
    %v2063 = vlaneseq
    %v2064 = vshrl.u32 %v2063, 7
    %v2065 = vsub.s32 %v2062, %v2064
    %v2066 = vrot.slane %v2050, %v2065
    %v2068 = vunpack.c.l.s4 1983009808
    %v2069 = vunpack.c.0.s8 %v2068
    %v2070 = vlaneseq
    %v2071 = vshrl.u32 %v2070, 7
    %v2072 = vsub.s32 %v2069, %v2071
    %v2073 = vrot.slane %v2051, %v2072
    %v2075 = vunpack.c.l.s4 1983009808
    %v2076 = vunpack.c.0.s8 %v2075
    %v2077 = vlaneseq
    %v2078 = vshrl.u32 %v2077, 7
    %v2079 = vsub.s32 %v2076, %v2078
    %v2080 = vrot.slane %v2052, %v2079
    %v2081 = vcombine.low %v2059, %v2073
    %v2082 = vcombine.high %v2059, %v2073
    %v2083 = vcombine.low %v2066, %v2080
    %v2084 = vcombine.high %v2066, %v2080
    %v2085 = vcombine.low %v198, %v222
    %v2086 = vcombine.high %v198, %v222
    %v2087 = vcombine.low %v246, %v270
    %v2088 = vcombine.high %v246, %v270
    %v2090 = vunpack.c.l.s4 1983009808
    %v2091 = vunpack.c.0.s8 %v2090
    %v2092 = vlaneseq
    %v2093 = vshrl.u32 %v2092, 7
    %v2094 = vsub.s32 %v2091, %v2093
    %v2095 = vrot.slane %v2085, %v2094
    %v2097 = vunpack.c.l.s4 1983009808
    %v2098 = vunpack.c.0.s8 %v2097
    %v2099 = vlaneseq
    %v2100 = vshrl.u32 %v2099, 7
    %v2101 = vsub.s32 %v2098, %v2100
    %v2102 = vrot.slane %v2086, %v2101
    %v2104 = vunpack.c.l.s4 1983009808
    %v2105 = vunpack.c.0.s8 %v2104
    %v2106 = vlaneseq
    %v2107 = vshrl.u32 %v2106, 7
    %v2108 = vsub.s32 %v2105, %v2107
    %v2109 = vrot.slane %v2087, %v2108
    %v2111 = vunpack.c.l.s4 1983009808
    %v2112 = vunpack.c.0.s8 %v2111
    %v2113 = vlaneseq
    %v2114 = vshrl.u32 %v2113, 7
    %v2115 = vsub.s32 %v2112, %v2114
    %v2116 = vrot.slane %v2088, %v2115
    %v2117 = vcombine.low %v2095, %v2109
    %v2118 = vcombine.high %v2095, %v2109
    %v2119 = vcombine.low %v2102, %v2116
    %v2120 = vcombine.high %v2102, %v2116
    %v2121 = vcombine.low %v199, %v223
    %v2122 = vcombine.high %v199, %v223
    %v2123 = vcombine.low %v247, %v271
    %v2124 = vcombine.high %v247, %v271
    %v2126 = vunpack.c.l.s4 1983009808
    %v2127 = vunpack.c.0.s8 %v2126
    %v2128 = vlaneseq
    %v2129 = vshrl.u32 %v2128, 7
    %v2130 = vsub.s32 %v2127, %v2129
    %v2131 = vrot.slane %v2121, %v2130
    %v2133 = vunpack.c.l.s4 1983009808
    %v2134 = vunpack.c.0.s8 %v2133
    %v2135 = vlaneseq
    %v2136 = vshrl.u32 %v2135, 7
    %v2137 = vsub.s32 %v2134, %v2136
    %v2138 = vrot.slane %v2122, %v2137
    %v2140 = vunpack.c.l.s4 1983009808
    %v2141 = vunpack.c.0.s8 %v2140
    %v2142 = vlaneseq
    %v2143 = vshrl.u32 %v2142, 7
    %v2144 = vsub.s32 %v2141, %v2143
    %v2145 = vrot.slane %v2123, %v2144
    %v2147 = vunpack.c.l.s4 1983009808
    %v2148 = vunpack.c.0.s8 %v2147
    %v2149 = vlaneseq
    %v2150 = vshrl.u32 %v2149, 7
    %v2151 = vsub.s32 %v2148, %v2150
    %v2152 = vrot.slane %v2124, %v2151
    %v2153 = vcombine.low %v2131, %v2145
    %v2154 = vcombine.high %v2131, %v2145
    %v2155 = vcombine.low %v2138, %v2152
    %v2156 = vcombine.high %v2138, %v2152
    %v2157 = vcombine.low %v200, %v224
    %v2158 = vcombine.high %v200, %v224
    %v2159 = vcombine.low %v248, %v272
    %v2160 = vcombine.high %v248, %v272
    %v2162 = vunpack.c.l.s4 1983009808
    %v2163 = vunpack.c.0.s8 %v2162
    %v2164 = vlaneseq
    %v2165 = vshrl.u32 %v2164, 7
    %v2166 = vsub.s32 %v2163, %v2165
    %v2167 = vrot.slane %v2157, %v2166
    %v2169 = vunpack.c.l.s4 1983009808
    %v2170 = vunpack.c.0.s8 %v2169
    %v2171 = vlaneseq
    %v2172 = vshrl.u32 %v2171, 7
    %v2173 = vsub.s32 %v2170, %v2172
    %v2174 = vrot.slane %v2158, %v2173
    %v2176 = vunpack.c.l.s4 1983009808
    %v2177 = vunpack.c.0.s8 %v2176
    %v2178 = vlaneseq
    %v2179 = vshrl.u32 %v2178, 7
    %v2180 = vsub.s32 %v2177, %v2179
    %v2181 = vrot.slane %v2159, %v2180
    %v2183 = vunpack.c.l.s4 1983009808
    %v2184 = vunpack.c.0.s8 %v2183
    %v2185 = vlaneseq
    %v2186 = vshrl.u32 %v2185, 7
    %v2187 = vsub.s32 %v2184, %v2186
    %v2188 = vrot.slane %v2160, %v2187
    %v2189 = vcombine.low %v2167, %v2181
    %v2190 = vcombine.high %v2167, %v2181
    %v2191 = vcombine.low %v2174, %v2188
    %v2192 = vcombine.high %v2174, %v2188
    %v2385 = vpack.c.bf16 %v1361, %v497
    %v2386 = vpack.c.bf16 %v1362, %v498
    %v2387 = vpack.c.bf16 %v1363, %v499
    %v2388 = vpack.c.bf16 %v1364, %v500
    %v2389 = vpack.c.bf16 %v1397, %v533
    %v2390 = vpack.c.bf16 %v1398, %v534
    %v2391 = vpack.c.bf16 %v1399, %v535
    %v2392 = vpack.c.bf16 %v1400, %v536
    %v2393 = vpack.c.bf16 %v1433, %v569
    %v2394 = vpack.c.bf16 %v1434, %v570
    %v2395 = vpack.c.bf16 %v1435, %v571
    %v2396 = vpack.c.bf16 %v1436, %v572
    %v2397 = vpack.c.bf16 %v1469, %v605
    %v2398 = vpack.c.bf16 %v1470, %v606
    %v2399 = vpack.c.bf16 %v1471, %v607
    %v2400 = vpack.c.bf16 %v1472, %v608
    %v2401 = vpack.c.bf16 %v1505, %v641
    %v2402 = vpack.c.bf16 %v1506, %v642
    %v2403 = vpack.c.bf16 %v1507, %v643
    %v2404 = vpack.c.bf16 %v1508, %v644
    %v2405 = vpack.c.bf16 %v1541, %v677
    %v2406 = vpack.c.bf16 %v1542, %v678
    %v2407 = vpack.c.bf16 %v1543, %v679
    %v2408 = vpack.c.bf16 %v1544, %v680
    %v2409 = vpack.c.bf16 %v1577, %v713
    %v2410 = vpack.c.bf16 %v1578, %v714
    %v2411 = vpack.c.bf16 %v1579, %v715
    %v2412 = vpack.c.bf16 %v1580, %v716
    %v2413 = vpack.c.bf16 %v1613, %v749
    %v2414 = vpack.c.bf16 %v1614, %v750
    %v2415 = vpack.c.bf16 %v1615, %v751
    %v2416 = vpack.c.bf16 %v1616, %v752
    %v2417 = vpack.c.bf16 %v1649, %v785
    %v2418 = vpack.c.bf16 %v1650, %v786
    %v2419 = vpack.c.bf16 %v1651, %v787
    %v2420 = vpack.c.bf16 %v1652, %v788
    %v2421 = vpack.c.bf16 %v1685, %v821
    %v2422 = vpack.c.bf16 %v1686, %v822
    %v2423 = vpack.c.bf16 %v1687, %v823
    %v2424 = vpack.c.bf16 %v1688, %v824
    %v2425 = vpack.c.bf16 %v1721, %v857
    %v2426 = vpack.c.bf16 %v1722, %v858
    %v2427 = vpack.c.bf16 %v1723, %v859
    %v2428 = vpack.c.bf16 %v1724, %v860
    %v2429 = vpack.c.bf16 %v1757, %v893
    %v2430 = vpack.c.bf16 %v1758, %v894
    %v2431 = vpack.c.bf16 %v1759, %v895
    %v2432 = vpack.c.bf16 %v1760, %v896
    %v2433 = vpack.c.bf16 %v1793, %v929
    %v2434 = vpack.c.bf16 %v1794, %v930
    %v2435 = vpack.c.bf16 %v1795, %v931
    %v2436 = vpack.c.bf16 %v1796, %v932
    %v2437 = vpack.c.bf16 %v1829, %v965
    %v2438 = vpack.c.bf16 %v1830, %v966
    %v2439 = vpack.c.bf16 %v1831, %v967
    %v2440 = vpack.c.bf16 %v1832, %v968
    %v2441 = vpack.c.bf16 %v1865, %v1001
    %v2442 = vpack.c.bf16 %v1866, %v1002
    %v2443 = vpack.c.bf16 %v1867, %v1003
    %v2444 = vpack.c.bf16 %v1868, %v1004
    %v2445 = vpack.c.bf16 %v1901, %v1037
    %v2446 = vpack.c.bf16 %v1902, %v1038
    %v2447 = vpack.c.bf16 %v1903, %v1039
    %v2448 = vpack.c.bf16 %v1904, %v1040
    %v2449 = vpack.c.bf16 %v1937, %v1073
    %v2450 = vpack.c.bf16 %v1938, %v1074
    %v2451 = vpack.c.bf16 %v1939, %v1075
    %v2452 = vpack.c.bf16 %v1940, %v1076
    %v2453 = vpack.c.bf16 %v1973, %v1109
    %v2454 = vpack.c.bf16 %v1974, %v1110
    %v2455 = vpack.c.bf16 %v1975, %v1111
    %v2456 = vpack.c.bf16 %v1976, %v1112
    %v2457 = vpack.c.bf16 %v2009, %v1145
    %v2458 = vpack.c.bf16 %v2010, %v1146
    %v2459 = vpack.c.bf16 %v2011, %v1147
    %v2460 = vpack.c.bf16 %v2012, %v1148
    %v2461 = vpack.c.bf16 %v2045, %v1181
    %v2462 = vpack.c.bf16 %v2046, %v1182
    %v2463 = vpack.c.bf16 %v2047, %v1183
    %v2464 = vpack.c.bf16 %v2048, %v1184
    %v2465 = vpack.c.bf16 %v2081, %v1217
    %v2466 = vpack.c.bf16 %v2082, %v1218
    %v2467 = vpack.c.bf16 %v2083, %v1219
    %v2468 = vpack.c.bf16 %v2084, %v1220
    %v2469 = vpack.c.bf16 %v2117, %v1253
    %v2470 = vpack.c.bf16 %v2118, %v1254
    %v2471 = vpack.c.bf16 %v2119, %v1255
    %v2472 = vpack.c.bf16 %v2120, %v1256
    %v2473 = vpack.c.bf16 %v2153, %v1289
    %v2474 = vpack.c.bf16 %v2154, %v1290
    %v2475 = vpack.c.bf16 %v2155, %v1291
    %v2476 = vpack.c.bf16 %v2156, %v1292
    %v2477 = vpack.c.bf16 %v2189, %v1325
    %v2478 = vpack.c.bf16 %v2190, %v1326
    %v2479 = vpack.c.bf16 %v2191, %v1327
    %v2480 = vpack.c.bf16 %v2192, %v1328
    %v2481 = vld [vmem:[#allocation2] sm:$0xf]
    %v2482 = vld [vmem:[#allocation2 + $0x4] sm:$0xf]
    %v2483 = vld [vmem:[#allocation2 + $0x8] sm:$0xf]
    %v2484 = vld [vmem:[#allocation2 + $0xc] sm:$0xf]
    %v2485 = vld [vmem:[#allocation2 + $0x10] sm:$0xf]
    %v2486 = vld [vmem:[#allocation2 + $0x14] sm:$0xf]
    %v2487 = vld [vmem:[#allocation2 + $0x18] sm:$0xf]
    %v2488 = vld [vmem:[#allocation2 + $0x1c] sm:$0xf]
    %v2489 = vld [vmem:[#allocation2 + $0x20] sm:$0xf]
    %v2490 = vld [vmem:[#allocation2 + $0x24] sm:$0xf]
    %v2491 = vld [vmem:[#allocation2 + $0x28] sm:$0xf]
    %v2492 = vld [vmem:[#allocation2 + $0x2c] sm:$0xf]
    %v2493 = vld [vmem:[#allocation2 + $0x30] sm:$0xf]
    %v2494 = vld [vmem:[#allocation2 + $0x34] sm:$0xf]
    %v2495 = vld [vmem:[#allocation2 + $0x38] sm:$0xf]
    %v2496 = vld [vmem:[#allocation2 + $0x3c] sm:$0xf]
    %v2497 = vld [vmem:[#allocation2 + $0x40] sm:$0xf]
    %v2498 = vld [vmem:[#allocation2 + $0x44] sm:$0xf]
    %v2499 = vld [vmem:[#allocation2 + $0x48] sm:$0xf]
    %v2500 = vld [vmem:[#allocation2 + $0x4c] sm:$0xf]
    %v2501 = vld [vmem:[#allocation2 + $0x50] sm:$0xf]
    %v2502 = vld [vmem:[#allocation2 + $0x54] sm:$0xf]
    %v2503 = vld [vmem:[#allocation2 + $0x58] sm:$0xf]
    %v2504 = vld [vmem:[#allocation2 + $0x5c] sm:$0xf]
    %v2505 = vld [vmem:[#allocation2 + $0x60] sm:$0xf]
    %v2506 = vld [vmem:[#allocation2 + $0x64] sm:$0xf]
    %v2507 = vld [vmem:[#allocation2 + $0x68] sm:$0xf]
    %v2508 = vld [vmem:[#allocation2 + $0x6c] sm:$0xf]
    %v2509 = vld [vmem:[#allocation2 + $0x70] sm:$0xf]
    %v2510 = vld [vmem:[#allocation2 + $0x74] sm:$0xf]
    %v2511 = vld [vmem:[#allocation2 + $0x78] sm:$0xf]
    %v2512 = vld [vmem:[#allocation2 + $0x7c] sm:$0xf]
    %v2513 = vld [vmem:[#allocation2 + $0x80] sm:$0xf]
    %v2514 = vld [vmem:[#allocation2 + $0x84] sm:$0xf]
    %v2515 = vld [vmem:[#allocation2 + $0x88] sm:$0xf]
    %v2516 = vld [vmem:[#allocation2 + $0x8c] sm:$0xf]
    %v2517 = vld [vmem:[#allocation2 + $0x90] sm:$0xf]
    %v2518 = vld [vmem:[#allocation2 + $0x94] sm:$0xf]
    %v2519 = vld [vmem:[#allocation2 + $0x98] sm:$0xf]
    %v2520 = vld [vmem:[#allocation2 + $0x9c] sm:$0xf]
    %v2521 = vld [vmem:[#allocation2 + $0xa0] sm:$0xf]
    %v2522 = vld [vmem:[#allocation2 + $0xa4] sm:$0xf]
    %v2523 = vld [vmem:[#allocation2 + $0xa8] sm:$0xf]
    %v2524 = vld [vmem:[#allocation2 + $0xac] sm:$0xf]
    %v2525 = vld [vmem:[#allocation2 + $0xb0] sm:$0xf]
    %v2526 = vld [vmem:[#allocation2 + $0xb4] sm:$0xf]
    %v2527 = vld [vmem:[#allocation2 + $0xb8] sm:$0xf]
    %v2528 = vld [vmem:[#allocation2 + $0xbc] sm:$0xf]
    %v2529 = vld [vmem:[#allocation2 + $0xc0] sm:$0xf]
    %v2530 = vld [vmem:[#allocation2 + $0xc4] sm:$0xf]
    %v2531 = vld [vmem:[#allocation2 + $0xc8] sm:$0xf]
    %v2532 = vld [vmem:[#allocation2 + $0xcc] sm:$0xf]
    %v2533 = vld [vmem:[#allocation2 + $0xd0] sm:$0xf]
    %v2534 = vld [vmem:[#allocation2 + $0xd4] sm:$0xf]
    %v2535 = vld [vmem:[#allocation2 + $0xd8] sm:$0xf]
    %v2536 = vld [vmem:[#allocation2 + $0xdc] sm:$0xf]
    %v2537 = vld [vmem:[#allocation2 + $0xe0] sm:$0xf]
    %v2538 = vld [vmem:[#allocation2 + $0xe4] sm:$0xf]
    %v2539 = vld [vmem:[#allocation2 + $0xe8] sm:$0xf]
    %v2540 = vld [vmem:[#allocation2 + $0xec] sm:$0xf]
    %v2541 = vld [vmem:[#allocation2 + $0xf0] sm:$0xf]
    %v2542 = vld [vmem:[#allocation2 + $0xf4] sm:$0xf]
    %v2543 = vld [vmem:[#allocation2 + $0xf8] sm:$0xf]
    %v2544 = vld [vmem:[#allocation2 + $0xfc] sm:$0xf]
    %v2545 = vld [vmem:[#allocation2 + $0x100] sm:$0xf]
    %v2546 = vld [vmem:[#allocation2 + $0x104] sm:$0xf]
    %v2547 = vld [vmem:[#allocation2 + $0x108] sm:$0xf]
    %v2548 = vld [vmem:[#allocation2 + $0x10c] sm:$0xf]
    %v2549 = vld [vmem:[#allocation2 + $0x110] sm:$0xf]
    %v2550 = vld [vmem:[#allocation2 + $0x114] sm:$0xf]
    %v2551 = vld [vmem:[#allocation2 + $0x118] sm:$0xf]
    %v2552 = vld [vmem:[#allocation2 + $0x11c] sm:$0xf]
    %v2553 = vld [vmem:[#allocation2 + $0x120] sm:$0xf]
    %v2554 = vld [vmem:[#allocation2 + $0x124] sm:$0xf]
    %v2555 = vld [vmem:[#allocation2 + $0x128] sm:$0xf]
    %v2556 = vld [vmem:[#allocation2 + $0x12c] sm:$0xf]
    %v2557 = vld [vmem:[#allocation2 + $0x130] sm:$0xf]
    %v2558 = vld [vmem:[#allocation2 + $0x134] sm:$0xf]
    %v2559 = vld [vmem:[#allocation2 + $0x138] sm:$0xf]
    %v2560 = vld [vmem:[#allocation2 + $0x13c] sm:$0xf]
    %v2561 = vld [vmem:[#allocation2 + $0x140] sm:$0xf]
    %v2562 = vld [vmem:[#allocation2 + $0x144] sm:$0xf]
    %v2563 = vld [vmem:[#allocation2 + $0x148] sm:$0xf]
    %v2564 = vld [vmem:[#allocation2 + $0x14c] sm:$0xf]
    %v2565 = vld [vmem:[#allocation2 + $0x150] sm:$0xf]
    %v2566 = vld [vmem:[#allocation2 + $0x154] sm:$0xf]
    %v2567 = vld [vmem:[#allocation2 + $0x158] sm:$0xf]
    %v2568 = vld [vmem:[#allocation2 + $0x15c] sm:$0xf]
    %v2569 = vld [vmem:[#allocation2 + $0x160] sm:$0xf]
    %v2570 = vld [vmem:[#allocation2 + $0x164] sm:$0xf]
    %v2571 = vld [vmem:[#allocation2 + $0x168] sm:$0xf]
    %v2572 = vld [vmem:[#allocation2 + $0x16c] sm:$0xf]
    %v2573 = vld [vmem:[#allocation2 + $0x170] sm:$0xf]
    %v2574 = vld [vmem:[#allocation2 + $0x174] sm:$0xf]
    %v2575 = vld [vmem:[#allocation2 + $0x178] sm:$0xf]
    %v2576 = vld [vmem:[#allocation2 + $0x17c] sm:$0xf]
    %v2577 = vld [vmem:[#allocation2 + $0x180] sm:$0xf]
    %v2578 = vld [vmem:[#allocation2 + $0x184] sm:$0xf]
    %v2579 = vld [vmem:[#allocation2 + $0x188] sm:$0xf]
    %v2580 = vld [vmem:[#allocation2 + $0x18c] sm:$0xf]
    %v2581 = vld [vmem:[#allocation2 + $0x190] sm:$0xf]
    %v2582 = vld [vmem:[#allocation2 + $0x194] sm:$0xf]
    %v2583 = vld [vmem:[#allocation2 + $0x198] sm:$0xf]
    %v2584 = vld [vmem:[#allocation2 + $0x19c] sm:$0xf]
    %v2585 = vld [vmem:[#allocation2 + $0x1a0] sm:$0xf]
    %v2586 = vld [vmem:[#allocation2 + $0x1a4] sm:$0xf]
    %v2587 = vld [vmem:[#allocation2 + $0x1a8] sm:$0xf]
    %v2588 = vld [vmem:[#allocation2 + $0x1ac] sm:$0xf]
    %v2589 = vld [vmem:[#allocation2 + $0x1b0] sm:$0xf]
    %v2590 = vld [vmem:[#allocation2 + $0x1b4] sm:$0xf]
    %v2591 = vld [vmem:[#allocation2 + $0x1b8] sm:$0xf]
    %v2592 = vld [vmem:[#allocation2 + $0x1bc] sm:$0xf]
    %v2593 = vld [vmem:[#allocation2 + $0x1c0] sm:$0xf]
    %v2594 = vld [vmem:[#allocation2 + $0x1c4] sm:$0xf]
    %v2595 = vld [vmem:[#allocation2 + $0x1c8] sm:$0xf]
    %v2596 = vld [vmem:[#allocation2 + $0x1cc] sm:$0xf]
    %v2597 = vld [vmem:[#allocation2 + $0x1d0] sm:$0xf]
    %v2598 = vld [vmem:[#allocation2 + $0x1d4] sm:$0xf]
    %v2599 = vld [vmem:[#allocation2 + $0x1d8] sm:$0xf]
    %v2600 = vld [vmem:[#allocation2 + $0x1dc] sm:$0xf]
    %v2601 = vld [vmem:[#allocation2 + $0x1e0] sm:$0xf]
    %v2602 = vld [vmem:[#allocation2 + $0x1e4] sm:$0xf]
    %v2603 = vld [vmem:[#allocation2 + $0x1e8] sm:$0xf]
    %v2604 = vld [vmem:[#allocation2 + $0x1ec] sm:$0xf]
    %v2605 = vld [vmem:[#allocation2 + $0x1f0] sm:$0xf]
    %v2606 = vld [vmem:[#allocation2 + $0x1f4] sm:$0xf]
    %v2607 = vld [vmem:[#allocation2 + $0x1f8] sm:$0xf]
    %v2608 = vld [vmem:[#allocation2 + $0x1fc] sm:$0xf]
    %v2609 = vld [vmem:[#allocation2 + $0x200] sm:$0xf]
    %v2610 = vld [vmem:[#allocation2 + $0x204] sm:$0xf]
    %v2611 = vld [vmem:[#allocation2 + $0x208] sm:$0xf]
    %v2612 = vld [vmem:[#allocation2 + $0x20c] sm:$0xf]
    %v2613 = vld [vmem:[#allocation2 + $0x210] sm:$0xf]
    %v2614 = vld [vmem:[#allocation2 + $0x214] sm:$0xf]
    %v2615 = vld [vmem:[#allocation2 + $0x218] sm:$0xf]
    %v2616 = vld [vmem:[#allocation2 + $0x21c] sm:$0xf]
    %v2617 = vld [vmem:[#allocation2 + $0x220] sm:$0xf]
    %v2618 = vld [vmem:[#allocation2 + $0x224] sm:$0xf]
    %v2619 = vld [vmem:[#allocation2 + $0x228] sm:$0xf]
    %v2620 = vld [vmem:[#allocation2 + $0x22c] sm:$0xf]
    %v2621 = vld [vmem:[#allocation2 + $0x230] sm:$0xf]
    %v2622 = vld [vmem:[#allocation2 + $0x234] sm:$0xf]
    %v2623 = vld [vmem:[#allocation2 + $0x238] sm:$0xf]
    %v2624 = vld [vmem:[#allocation2 + $0x23c] sm:$0xf]
    %v2625 = vld [vmem:[#allocation2 + $0x240] sm:$0xf]
    %v2626 = vld [vmem:[#allocation2 + $0x244] sm:$0xf]
    %v2627 = vld [vmem:[#allocation2 + $0x248] sm:$0xf]
    %v2628 = vld [vmem:[#allocation2 + $0x24c] sm:$0xf]
    %v2629 = vld [vmem:[#allocation2 + $0x250] sm:$0xf]
    %v2630 = vld [vmem:[#allocation2 + $0x254] sm:$0xf]
    %v2631 = vld [vmem:[#allocation2 + $0x258] sm:$0xf]
    %v2632 = vld [vmem:[#allocation2 + $0x25c] sm:$0xf]
    %v2633 = vld [vmem:[#allocation2 + $0x260] sm:$0xf]
    %v2634 = vld [vmem:[#allocation2 + $0x264] sm:$0xf]
    %v2635 = vld [vmem:[#allocation2 + $0x268] sm:$0xf]
    %v2636 = vld [vmem:[#allocation2 + $0x26c] sm:$0xf]
    %v2637 = vld [vmem:[#allocation2 + $0x270] sm:$0xf]
    %v2638 = vld [vmem:[#allocation2 + $0x274] sm:$0xf]
    %v2639 = vld [vmem:[#allocation2 + $0x278] sm:$0xf]
    %v2640 = vld [vmem:[#allocation2 + $0x27c] sm:$0xf]
    %v2641 = vld [vmem:[#allocation2 + $0x280] sm:$0xf]
    %v2642 = vld [vmem:[#allocation2 + $0x284] sm:$0xf]
    %v2643 = vld [vmem:[#allocation2 + $0x288] sm:$0xf]
    %v2644 = vld [vmem:[#allocation2 + $0x28c] sm:$0xf]
    %v2645 = vld [vmem:[#allocation2 + $0x290] sm:$0xf]
    %v2646 = vld [vmem:[#allocation2 + $0x294] sm:$0xf]
    %v2647 = vld [vmem:[#allocation2 + $0x298] sm:$0xf]
    %v2648 = vld [vmem:[#allocation2 + $0x29c] sm:$0xf]
    %v2649 = vld [vmem:[#allocation2 + $0x2a0] sm:$0xf]
    %v2650 = vld [vmem:[#allocation2 + $0x2a4] sm:$0xf]
    %v2651 = vld [vmem:[#allocation2 + $0x2a8] sm:$0xf]
    %v2652 = vld [vmem:[#allocation2 + $0x2ac] sm:$0xf]
    %v2653 = vld [vmem:[#allocation2 + $0x2b0] sm:$0xf]
    %v2654 = vld [vmem:[#allocation2 + $0x2b4] sm:$0xf]
    %v2655 = vld [vmem:[#allocation2 + $0x2b8] sm:$0xf]
    %v2656 = vld [vmem:[#allocation2 + $0x2bc] sm:$0xf]
    %v2657 = vld [vmem:[#allocation2 + $0x2c0] sm:$0xf]
    %v2658 = vld [vmem:[#allocation2 + $0x2c4] sm:$0xf]
    %v2659 = vld [vmem:[#allocation2 + $0x2c8] sm:$0xf]
    %v2660 = vld [vmem:[#allocation2 + $0x2cc] sm:$0xf]
    %v2661 = vld [vmem:[#allocation2 + $0x2d0] sm:$0xf]
    %v2662 = vld [vmem:[#allocation2 + $0x2d4] sm:$0xf]
    %v2663 = vld [vmem:[#allocation2 + $0x2d8] sm:$0xf]
    %v2664 = vld [vmem:[#allocation2 + $0x2dc] sm:$0xf]
    %v2665 = vld [vmem:[#allocation2 + $0x2e0] sm:$0xf]
    %v2666 = vld [vmem:[#allocation2 + $0x2e4] sm:$0xf]
    %v2667 = vld [vmem:[#allocation2 + $0x2e8] sm:$0xf]
    %v2668 = vld [vmem:[#allocation2 + $0x2ec] sm:$0xf]
    %v2669 = vld [vmem:[#allocation2 + $0x2f0] sm:$0xf]
    %v2670 = vld [vmem:[#allocation2 + $0x2f4] sm:$0xf]
    %v2671 = vld [vmem:[#allocation2 + $0x2f8] sm:$0xf]
    %v2672 = vld [vmem:[#allocation2 + $0x2fc] sm:$0xf]
    %v2673 = vld [vmem:[#allocation2 + $0x300] sm:$0xf]
    %v2674 = vld [vmem:[#allocation2 + $0x304] sm:$0xf]
    %v2675 = vld [vmem:[#allocation2 + $0x308] sm:$0xf]
    %v2676 = vld [vmem:[#allocation2 + $0x30c] sm:$0xf]
    %v2677 = vld [vmem:[#allocation2 + $0x310] sm:$0xf]
    %v2678 = vld [vmem:[#allocation2 + $0x314] sm:$0xf]
    %v2679 = vld [vmem:[#allocation2 + $0x318] sm:$0xf]
    %v2680 = vld [vmem:[#allocation2 + $0x31c] sm:$0xf]
    %v2681 = vld [vmem:[#allocation2 + $0x320] sm:$0xf]
    %v2682 = vld [vmem:[#allocation2 + $0x324] sm:$0xf]
    %v2683 = vld [vmem:[#allocation2 + $0x328] sm:$0xf]
    %v2684 = vld [vmem:[#allocation2 + $0x32c] sm:$0xf]
    %v2685 = vld [vmem:[#allocation2 + $0x330] sm:$0xf]
    %v2686 = vld [vmem:[#allocation2 + $0x334] sm:$0xf]
    %v2687 = vld [vmem:[#allocation2 + $0x338] sm:$0xf]
    %v2688 = vld [vmem:[#allocation2 + $0x33c] sm:$0xf]
    %v2689 = vld [vmem:[#allocation2 + $0x340] sm:$0xf]
    %v2690 = vld [vmem:[#allocation2 + $0x344] sm:$0xf]
    %v2691 = vld [vmem:[#allocation2 + $0x348] sm:$0xf]
    %v2692 = vld [vmem:[#allocation2 + $0x34c] sm:$0xf]
    %v2693 = vld [vmem:[#allocation2 + $0x350] sm:$0xf]
    %v2694 = vld [vmem:[#allocation2 + $0x354] sm:$0xf]
    %v2695 = vld [vmem:[#allocation2 + $0x358] sm:$0xf]
    %v2696 = vld [vmem:[#allocation2 + $0x35c] sm:$0xf]
    %v2697 = vld [vmem:[#allocation2 + $0x360] sm:$0xf]
    %v2698 = vld [vmem:[#allocation2 + $0x364] sm:$0xf]
    %v2699 = vld [vmem:[#allocation2 + $0x368] sm:$0xf]
    %v2700 = vld [vmem:[#allocation2 + $0x36c] sm:$0xf]
    %v2701 = vld [vmem:[#allocation2 + $0x370] sm:$0xf]
    %v2702 = vld [vmem:[#allocation2 + $0x374] sm:$0xf]
    %v2703 = vld [vmem:[#allocation2 + $0x378] sm:$0xf]
    %v2704 = vld [vmem:[#allocation2 + $0x37c] sm:$0xf]
    %v2705 = vld [vmem:[#allocation2 + $0x380] sm:$0xf]
    %v2706 = vld [vmem:[#allocation2 + $0x384] sm:$0xf]
    %v2707 = vld [vmem:[#allocation2 + $0x388] sm:$0xf]
    %v2708 = vld [vmem:[#allocation2 + $0x38c] sm:$0xf]
    %v2709 = vld [vmem:[#allocation2 + $0x390] sm:$0xf]
    %v2710 = vld [vmem:[#allocation2 + $0x394] sm:$0xf]
    %v2711 = vld [vmem:[#allocation2 + $0x398] sm:$0xf]
    %v2712 = vld [vmem:[#allocation2 + $0x39c] sm:$0xf]
    %v2713 = vld [vmem:[#allocation2 + $0x3a0] sm:$0xf]
    %v2714 = vld [vmem:[#allocation2 + $0x3a4] sm:$0xf]
    %v2715 = vld [vmem:[#allocation2 + $0x3a8] sm:$0xf]
    %v2716 = vld [vmem:[#allocation2 + $0x3ac] sm:$0xf]
    %v2717 = vld [vmem:[#allocation2 + $0x3b0] sm:$0xf]
    %v2718 = vld [vmem:[#allocation2 + $0x3b4] sm:$0xf]
    %v2719 = vld [vmem:[#allocation2 + $0x3b8] sm:$0xf]
    %v2720 = vld [vmem:[#allocation2 + $0x3bc] sm:$0xf]
    %v2721 = vld [vmem:[#allocation2 + $0x3c0] sm:$0xf]
    %v2722 = vld [vmem:[#allocation2 + $0x3c4] sm:$0xf]
    %v2723 = vld [vmem:[#allocation2 + $0x3c8] sm:$0xf]
    %v2724 = vld [vmem:[#allocation2 + $0x3cc] sm:$0xf]
    %v2725 = vld [vmem:[#allocation2 + $0x3d0] sm:$0xf]
    %v2726 = vld [vmem:[#allocation2 + $0x3d4] sm:$0xf]
    %v2727 = vld [vmem:[#allocation2 + $0x3d8] sm:$0xf]
    %v2728 = vld [vmem:[#allocation2 + $0x3dc] sm:$0xf]
    %v2729 = vld [vmem:[#allocation2 + $0x3e0] sm:$0xf]
    %v2730 = vld [vmem:[#allocation2 + $0x3e4] sm:$0xf]
    %v2731 = vld [vmem:[#allocation2 + $0x3e8] sm:$0xf]
    %v2732 = vld [vmem:[#allocation2 + $0x3ec] sm:$0xf]
    %v2733 = vld [vmem:[#allocation2 + $0x3f0] sm:$0xf]
    %v2734 = vld [vmem:[#allocation2 + $0x3f4] sm:$0xf]
    %v2735 = vld [vmem:[#allocation2 + $0x3f8] sm:$0xf]
    %v2736 = vld [vmem:[#allocation2 + $0x3fc] sm:$0xf]
    %v2737 = vld [vmem:[#allocation2 + $0x400] sm:$0xf]
    %v2738 = vld [vmem:[#allocation2 + $0x404] sm:$0xf]
    %v2739 = vld [vmem:[#allocation2 + $0x408] sm:$0xf]
    %v2740 = vld [vmem:[#allocation2 + $0x40c] sm:$0xf]
    %v2741 = vld [vmem:[#allocation2 + $0x410] sm:$0xf]
    %v2742 = vld [vmem:[#allocation2 + $0x414] sm:$0xf]
    %v2743 = vld [vmem:[#allocation2 + $0x418] sm:$0xf]
    %v2744 = vld [vmem:[#allocation2 + $0x41c] sm:$0xf]
    %v2745 = vld [vmem:[#allocation2 + $0x420] sm:$0xf]
    %v2746 = vld [vmem:[#allocation2 + $0x424] sm:$0xf]
    %v2747 = vld [vmem:[#allocation2 + $0x428] sm:$0xf]
    %v2748 = vld [vmem:[#allocation2 + $0x42c] sm:$0xf]
    %v2749 = vld [vmem:[#allocation2 + $0x430] sm:$0xf]
    %v2750 = vld [vmem:[#allocation2 + $0x434] sm:$0xf]
    %v2751 = vld [vmem:[#allocation2 + $0x438] sm:$0xf]
    %v2752 = vld [vmem:[#allocation2 + $0x43c] sm:$0xf]
    %v2753 = vld [vmem:[#allocation2 + $0x440] sm:$0xf]
    %v2754 = vld [vmem:[#allocation2 + $0x444] sm:$0xf]
    %v2755 = vld [vmem:[#allocation2 + $0x448] sm:$0xf]
    %v2756 = vld [vmem:[#allocation2 + $0x44c] sm:$0xf]
    %v2757 = vld [vmem:[#allocation2 + $0x450] sm:$0xf]
    %v2758 = vld [vmem:[#allocation2 + $0x454] sm:$0xf]
    %v2759 = vld [vmem:[#allocation2 + $0x458] sm:$0xf]
    %v2760 = vld [vmem:[#allocation2 + $0x45c] sm:$0xf]
    %v2761 = vld [vmem:[#allocation2 + $0x460] sm:$0xf]
    %v2762 = vld [vmem:[#allocation2 + $0x464] sm:$0xf]
    %v2763 = vld [vmem:[#allocation2 + $0x468] sm:$0xf]
    %v2764 = vld [vmem:[#allocation2 + $0x46c] sm:$0xf]
    %v2765 = vld [vmem:[#allocation2 + $0x470] sm:$0xf]
    %v2766 = vld [vmem:[#allocation2 + $0x474] sm:$0xf]
    %v2767 = vld [vmem:[#allocation2 + $0x478] sm:$0xf]
    %v2768 = vld [vmem:[#allocation2 + $0x47c] sm:$0xf]
    %v2769 = vld [vmem:[#allocation2 + $0x480] sm:$0xf]
    %v2770 = vld [vmem:[#allocation2 + $0x484] sm:$0xf]
    %v2771 = vld [vmem:[#allocation2 + $0x488] sm:$0xf]
    %v2772 = vld [vmem:[#allocation2 + $0x48c] sm:$0xf]
    %v2773 = vld [vmem:[#allocation2 + $0x490] sm:$0xf]
    %v2774 = vld [vmem:[#allocation2 + $0x494] sm:$0xf]
    %v2775 = vld [vmem:[#allocation2 + $0x498] sm:$0xf]
    %v2776 = vld [vmem:[#allocation2 + $0x49c] sm:$0xf]
    %v2777 = vld [vmem:[#allocation2 + $0x4a0] sm:$0xf]
    %v2778 = vld [vmem:[#allocation2 + $0x4a4] sm:$0xf]
    %v2779 = vld [vmem:[#allocation2 + $0x4a8] sm:$0xf]
    %v2780 = vld [vmem:[#allocation2 + $0x4ac] sm:$0xf]
    %v2781 = vld [vmem:[#allocation2 + $0x4b0] sm:$0xf]
    %v2782 = vld [vmem:[#allocation2 + $0x4b4] sm:$0xf]
    %v2783 = vld [vmem:[#allocation2 + $0x4b8] sm:$0xf]
    %v2784 = vld [vmem:[#allocation2 + $0x4bc] sm:$0xf]
    %v2785 = vld [vmem:[#allocation2 + $0x4c0] sm:$0xf]
    %v2786 = vld [vmem:[#allocation2 + $0x4c4] sm:$0xf]
    %v2787 = vld [vmem:[#allocation2 + $0x4c8] sm:$0xf]
    %v2788 = vld [vmem:[#allocation2 + $0x4cc] sm:$0xf]
    %v2789 = vld [vmem:[#allocation2 + $0x4d0] sm:$0xf]
    %v2790 = vld [vmem:[#allocation2 + $0x4d4] sm:$0xf]
    %v2791 = vld [vmem:[#allocation2 + $0x4d8] sm:$0xf]
    %v2792 = vld [vmem:[#allocation2 + $0x4dc] sm:$0xf]
    %v2793 = vld [vmem:[#allocation2 + $0x4e0] sm:$0xf]
    %v2794 = vld [vmem:[#allocation2 + $0x4e4] sm:$0xf]
    %v2795 = vld [vmem:[#allocation2 + $0x4e8] sm:$0xf]
    %v2796 = vld [vmem:[#allocation2 + $0x4ec] sm:$0xf]
    %v2797 = vld [vmem:[#allocation2 + $0x4f0] sm:$0xf]
    %v2798 = vld [vmem:[#allocation2 + $0x4f4] sm:$0xf]
    %v2799 = vld [vmem:[#allocation2 + $0x4f8] sm:$0xf]
    %v2800 = vld [vmem:[#allocation2 + $0x4fc] sm:$0xf]
    %v2801 = vld [vmem:[#allocation2 + $0x500] sm:$0xf]
    %v2802 = vld [vmem:[#allocation2 + $0x504] sm:$0xf]
    %v2803 = vld [vmem:[#allocation2 + $0x508] sm:$0xf]
    %v2804 = vld [vmem:[#allocation2 + $0x50c] sm:$0xf]
    %v2805 = vld [vmem:[#allocation2 + $0x510] sm:$0xf]
    %v2806 = vld [vmem:[#allocation2 + $0x514] sm:$0xf]
    %v2807 = vld [vmem:[#allocation2 + $0x518] sm:$0xf]
    %v2808 = vld [vmem:[#allocation2 + $0x51c] sm:$0xf]
    %v2809 = vld [vmem:[#allocation2 + $0x520] sm:$0xf]
    %v2810 = vld [vmem:[#allocation2 + $0x524] sm:$0xf]
    %v2811 = vld [vmem:[#allocation2 + $0x528] sm:$0xf]
    %v2812 = vld [vmem:[#allocation2 + $0x52c] sm:$0xf]
    %v2813 = vld [vmem:[#allocation2 + $0x530] sm:$0xf]
    %v2814 = vld [vmem:[#allocation2 + $0x534] sm:$0xf]
    %v2815 = vld [vmem:[#allocation2 + $0x538] sm:$0xf]
    %v2816 = vld [vmem:[#allocation2 + $0x53c] sm:$0xf]
    %v2817 = vld [vmem:[#allocation2 + $0x540] sm:$0xf]
    %v2818 = vld [vmem:[#allocation2 + $0x544] sm:$0xf]
    %v2819 = vld [vmem:[#allocation2 + $0x548] sm:$0xf]
    %v2820 = vld [vmem:[#allocation2 + $0x54c] sm:$0xf]
    %v2821 = vld [vmem:[#allocation2 + $0x550] sm:$0xf]
    %v2822 = vld [vmem:[#allocation2 + $0x554] sm:$0xf]
    %v2823 = vld [vmem:[#allocation2 + $0x558] sm:$0xf]
    %v2824 = vld [vmem:[#allocation2 + $0x55c] sm:$0xf]
    %v2825 = vld [vmem:[#allocation2 + $0x560] sm:$0xf]
    %v2826 = vld [vmem:[#allocation2 + $0x564] sm:$0xf]
    %v2827 = vld [vmem:[#allocation2 + $0x568] sm:$0xf]
    %v2828 = vld [vmem:[#allocation2 + $0x56c] sm:$0xf]
    %v2829 = vld [vmem:[#allocation2 + $0x570] sm:$0xf]
    %v2830 = vld [vmem:[#allocation2 + $0x574] sm:$0xf]
    %v2831 = vld [vmem:[#allocation2 + $0x578] sm:$0xf]
    %v2832 = vld [vmem:[#allocation2 + $0x57c] sm:$0xf]
    %v2833 = vld [vmem:[#allocation2 + $0x580] sm:$0xf]
    %v2834 = vld [vmem:[#allocation2 + $0x584] sm:$0xf]
    %v2835 = vld [vmem:[#allocation2 + $0x588] sm:$0xf]
    %v2836 = vld [vmem:[#allocation2 + $0x58c] sm:$0xf]
    %v2837 = vld [vmem:[#allocation2 + $0x590] sm:$0xf]
    %v2838 = vld [vmem:[#allocation2 + $0x594] sm:$0xf]
    %v2839 = vld [vmem:[#allocation2 + $0x598] sm:$0xf]
    %v2840 = vld [vmem:[#allocation2 + $0x59c] sm:$0xf]
    %v2841 = vld [vmem:[#allocation2 + $0x5a0] sm:$0xf]
    %v2842 = vld [vmem:[#allocation2 + $0x5a4] sm:$0xf]
    %v2843 = vld [vmem:[#allocation2 + $0x5a8] sm:$0xf]
    %v2844 = vld [vmem:[#allocation2 + $0x5ac] sm:$0xf]
    %v2845 = vld [vmem:[#allocation2 + $0x5b0] sm:$0xf]
    %v2846 = vld [vmem:[#allocation2 + $0x5b4] sm:$0xf]
    %v2847 = vld [vmem:[#allocation2 + $0x5b8] sm:$0xf]
    %v2848 = vld [vmem:[#allocation2 + $0x5bc] sm:$0xf]
    %v2849 = vld [vmem:[#allocation2 + $0x5c0] sm:$0xf]
    %v2850 = vld [vmem:[#allocation2 + $0x5c4] sm:$0xf]
    %v2851 = vld [vmem:[#allocation2 + $0x5c8] sm:$0xf]
    %v2852 = vld [vmem:[#allocation2 + $0x5cc] sm:$0xf]
    %v2853 = vld [vmem:[#allocation2 + $0x5d0] sm:$0xf]
    %v2854 = vld [vmem:[#allocation2 + $0x5d4] sm:$0xf]
    %v2855 = vld [vmem:[#allocation2 + $0x5d8] sm:$0xf]
    %v2856 = vld [vmem:[#allocation2 + $0x5dc] sm:$0xf]
    %v2857 = vld [vmem:[#allocation2 + $0x5e0] sm:$0xf]
    %v2858 = vld [vmem:[#allocation2 + $0x5e4] sm:$0xf]
    %v2859 = vld [vmem:[#allocation2 + $0x5e8] sm:$0xf]
    %v2860 = vld [vmem:[#allocation2 + $0x5ec] sm:$0xf]
    %v2861 = vld [vmem:[#allocation2 + $0x5f0] sm:$0xf]
    %v2862 = vld [vmem:[#allocation2 + $0x5f4] sm:$0xf]
    %v2863 = vld [vmem:[#allocation2 + $0x5f8] sm:$0xf]
    %v2864 = vld [vmem:[#allocation2 + $0x5fc] sm:$0xf]
    %v2865 = vld [vmem:[#allocation2 + $0x600] sm:$0xf]
    %v2866 = vld [vmem:[#allocation2 + $0x604] sm:$0xf]
    %v2867 = vld [vmem:[#allocation2 + $0x608] sm:$0xf]
    %v2868 = vld [vmem:[#allocation2 + $0x60c] sm:$0xf]
    %v2869 = vld [vmem:[#allocation2 + $0x610] sm:$0xf]
    %v2870 = vld [vmem:[#allocation2 + $0x614] sm:$0xf]
    %v2871 = vld [vmem:[#allocation2 + $0x618] sm:$0xf]
    %v2872 = vld [vmem:[#allocation2 + $0x61c] sm:$0xf]
    %v2873 = vld [vmem:[#allocation2 + $0x620] sm:$0xf]
    %v2874 = vld [vmem:[#allocation2 + $0x624] sm:$0xf]
    %v2875 = vld [vmem:[#allocation2 + $0x628] sm:$0xf]
    %v2876 = vld [vmem:[#allocation2 + $0x62c] sm:$0xf]
    %v2877 = vld [vmem:[#allocation2 + $0x630] sm:$0xf]
    %v2878 = vld [vmem:[#allocation2 + $0x634] sm:$0xf]
    %v2879 = vld [vmem:[#allocation2 + $0x638] sm:$0xf]
    %v2880 = vld [vmem:[#allocation2 + $0x63c] sm:$0xf]
    %v2881 = vld [vmem:[#allocation2 + $0x640] sm:$0xf]
    %v2882 = vld [vmem:[#allocation2 + $0x644] sm:$0xf]
    %v2883 = vld [vmem:[#allocation2 + $0x648] sm:$0xf]
    %v2884 = vld [vmem:[#allocation2 + $0x64c] sm:$0xf]
    %v2885 = vld [vmem:[#allocation2 + $0x650] sm:$0xf]
    %v2886 = vld [vmem:[#allocation2 + $0x654] sm:$0xf]
    %v2887 = vld [vmem:[#allocation2 + $0x658] sm:$0xf]
    %v2888 = vld [vmem:[#allocation2 + $0x65c] sm:$0xf]
    %v2889 = vld [vmem:[#allocation2 + $0x660] sm:$0xf]
    %v2890 = vld [vmem:[#allocation2 + $0x664] sm:$0xf]
    %v2891 = vld [vmem:[#allocation2 + $0x668] sm:$0xf]
    %v2892 = vld [vmem:[#allocation2 + $0x66c] sm:$0xf]
    %v2893 = vld [vmem:[#allocation2 + $0x670] sm:$0xf]
    %v2894 = vld [vmem:[#allocation2 + $0x674] sm:$0xf]
    %v2895 = vld [vmem:[#allocation2 + $0x678] sm:$0xf]
    %v2896 = vld [vmem:[#allocation2 + $0x67c] sm:$0xf]
    %v2897 = vld [vmem:[#allocation2 + $0x680] sm:$0xf]
    %v2898 = vld [vmem:[#allocation2 + $0x684] sm:$0xf]
    %v2899 = vld [vmem:[#allocation2 + $0x688] sm:$0xf]
    %v2900 = vld [vmem:[#allocation2 + $0x68c] sm:$0xf]
    %v2901 = vld [vmem:[#allocation2 + $0x690] sm:$0xf]
    %v2902 = vld [vmem:[#allocation2 + $0x694] sm:$0xf]
    %v2903 = vld [vmem:[#allocation2 + $0x698] sm:$0xf]
    %v2904 = vld [vmem:[#allocation2 + $0x69c] sm:$0xf]
    %v2905 = vld [vmem:[#allocation2 + $0x6a0] sm:$0xf]
    %v2906 = vld [vmem:[#allocation2 + $0x6a4] sm:$0xf]
    %v2907 = vld [vmem:[#allocation2 + $0x6a8] sm:$0xf]
    %v2908 = vld [vmem:[#allocation2 + $0x6ac] sm:$0xf]
    %v2909 = vld [vmem:[#allocation2 + $0x6b0] sm:$0xf]
    %v2910 = vld [vmem:[#allocation2 + $0x6b4] sm:$0xf]
    %v2911 = vld [vmem:[#allocation2 + $0x6b8] sm:$0xf]
    %v2912 = vld [vmem:[#allocation2 + $0x6bc] sm:$0xf]
    %v2913 = vld [vmem:[#allocation2 + $0x6c0] sm:$0xf]
    %v2914 = vld [vmem:[#allocation2 + $0x6c4] sm:$0xf]
    %v2915 = vld [vmem:[#allocation2 + $0x6c8] sm:$0xf]
    %v2916 = vld [vmem:[#allocation2 + $0x6cc] sm:$0xf]
    %v2917 = vld [vmem:[#allocation2 + $0x6d0] sm:$0xf]
    %v2918 = vld [vmem:[#allocation2 + $0x6d4] sm:$0xf]
    %v2919 = vld [vmem:[#allocation2 + $0x6d8] sm:$0xf]
    %v2920 = vld [vmem:[#allocation2 + $0x6dc] sm:$0xf]
    %v2921 = vld [vmem:[#allocation2 + $0x6e0] sm:$0xf]
    %v2922 = vld [vmem:[#allocation2 + $0x6e4] sm:$0xf]
    %v2923 = vld [vmem:[#allocation2 + $0x6e8] sm:$0xf]
    %v2924 = vld [vmem:[#allocation2 + $0x6ec] sm:$0xf]
    %v2925 = vld [vmem:[#allocation2 + $0x6f0] sm:$0xf]
    %v2926 = vld [vmem:[#allocation2 + $0x6f4] sm:$0xf]
    %v2927 = vld [vmem:[#allocation2 + $0x6f8] sm:$0xf]
    %v2928 = vld [vmem:[#allocation2 + $0x6fc] sm:$0xf]
    %v2929 = vld [vmem:[#allocation2 + $0x700] sm:$0xf]
    %v2930 = vld [vmem:[#allocation2 + $0x704] sm:$0xf]
    %v2931 = vld [vmem:[#allocation2 + $0x708] sm:$0xf]
    %v2932 = vld [vmem:[#allocation2 + $0x70c] sm:$0xf]
    %v2933 = vld [vmem:[#allocation2 + $0x710] sm:$0xf]
    %v2934 = vld [vmem:[#allocation2 + $0x714] sm:$0xf]
    %v2935 = vld [vmem:[#allocation2 + $0x718] sm:$0xf]
    %v2936 = vld [vmem:[#allocation2 + $0x71c] sm:$0xf]
    %v2937 = vld [vmem:[#allocation2 + $0x720] sm:$0xf]
    %v2938 = vld [vmem:[#allocation2 + $0x724] sm:$0xf]
    %v2939 = vld [vmem:[#allocation2 + $0x728] sm:$0xf]
    %v2940 = vld [vmem:[#allocation2 + $0x72c] sm:$0xf]
    %v2941 = vld [vmem:[#allocation2 + $0x730] sm:$0xf]
    %v2942 = vld [vmem:[#allocation2 + $0x734] sm:$0xf]
    %v2943 = vld [vmem:[#allocation2 + $0x738] sm:$0xf]
    %v2944 = vld [vmem:[#allocation2 + $0x73c] sm:$0xf]
    %v2945 = vld [vmem:[#allocation2 + $0x740] sm:$0xf]
    %v2946 = vld [vmem:[#allocation2 + $0x744] sm:$0xf]
    %v2947 = vld [vmem:[#allocation2 + $0x748] sm:$0xf]
    %v2948 = vld [vmem:[#allocation2 + $0x74c] sm:$0xf]
    %v2949 = vld [vmem:[#allocation2 + $0x750] sm:$0xf]
    %v2950 = vld [vmem:[#allocation2 + $0x754] sm:$0xf]
    %v2951 = vld [vmem:[#allocation2 + $0x758] sm:$0xf]
    %v2952 = vld [vmem:[#allocation2 + $0x75c] sm:$0xf]
    %v2953 = vld [vmem:[#allocation2 + $0x760] sm:$0xf]
    %v2954 = vld [vmem:[#allocation2 + $0x764] sm:$0xf]
    %v2955 = vld [vmem:[#allocation2 + $0x768] sm:$0xf]
    %v2956 = vld [vmem:[#allocation2 + $0x76c] sm:$0xf]
    %v2957 = vld [vmem:[#allocation2 + $0x770] sm:$0xf]
    %v2958 = vld [vmem:[#allocation2 + $0x774] sm:$0xf]
    %v2959 = vld [vmem:[#allocation2 + $0x778] sm:$0xf]
    %v2960 = vld [vmem:[#allocation2 + $0x77c] sm:$0xf]
    %v2961 = vld [vmem:[#allocation2 + $0x780] sm:$0xf]
    %v2962 = vld [vmem:[#allocation2 + $0x784] sm:$0xf]
    %v2963 = vld [vmem:[#allocation2 + $0x788] sm:$0xf]
    %v2964 = vld [vmem:[#allocation2 + $0x78c] sm:$0xf]
    %v2965 = vld [vmem:[#allocation2 + $0x790] sm:$0xf]
    %v2966 = vld [vmem:[#allocation2 + $0x794] sm:$0xf]
    %v2967 = vld [vmem:[#allocation2 + $0x798] sm:$0xf]
    %v2968 = vld [vmem:[#allocation2 + $0x79c] sm:$0xf]
    %v2969 = vld [vmem:[#allocation2 + $0x7a0] sm:$0xf]
    %v2970 = vld [vmem:[#allocation2 + $0x7a4] sm:$0xf]
    %v2971 = vld [vmem:[#allocation2 + $0x7a8] sm:$0xf]
    %v2972 = vld [vmem:[#allocation2 + $0x7ac] sm:$0xf]
    %v2973 = vld [vmem:[#allocation2 + $0x7b0] sm:$0xf]
    %v2974 = vld [vmem:[#allocation2 + $0x7b4] sm:$0xf]
    %v2975 = vld [vmem:[#allocation2 + $0x7b8] sm:$0xf]
    %v2976 = vld [vmem:[#allocation2 + $0x7bc] sm:$0xf]
    %v2977 = vld [vmem:[#allocation2 + $0x7c0] sm:$0xf]
    %v2978 = vld [vmem:[#allocation2 + $0x7c4] sm:$0xf]
    %v2979 = vld [vmem:[#allocation2 + $0x7c8] sm:$0xf]
    %v2980 = vld [vmem:[#allocation2 + $0x7cc] sm:$0xf]
    %v2981 = vld [vmem:[#allocation2 + $0x7d0] sm:$0xf]
    %v2982 = vld [vmem:[#allocation2 + $0x7d4] sm:$0xf]
    %v2983 = vld [vmem:[#allocation2 + $0x7d8] sm:$0xf]
    %v2984 = vld [vmem:[#allocation2 + $0x7dc] sm:$0xf]
    %v2985 = vld [vmem:[#allocation2 + $0x7e0] sm:$0xf]
    %v2986 = vld [vmem:[#allocation2 + $0x7e4] sm:$0xf]
    %v2987 = vld [vmem:[#allocation2 + $0x7e8] sm:$0xf]
    %v2988 = vld [vmem:[#allocation2 + $0x7ec] sm:$0xf]
    %v2989 = vld [vmem:[#allocation2 + $0x7f0] sm:$0xf]
    %v2990 = vld [vmem:[#allocation2 + $0x7f4] sm:$0xf]
    %v2991 = vld [vmem:[#allocation2 + $0x7f8] sm:$0xf]
    %v2992 = vld [vmem:[#allocation2 + $0x7fc] sm:$0xf]
    %v2993 = vld [vmem:[#allocation2 + $0x800] sm:$0xf]
    %v2994 = vld [vmem:[#allocation2 + $0x804] sm:$0xf]
    %v2995 = vld [vmem:[#allocation2 + $0x808] sm:$0xf]
    %v2996 = vld [vmem:[#allocation2 + $0x80c] sm:$0xf]
    %v2997 = vld [vmem:[#allocation2 + $0x810] sm:$0xf]
    %v2998 = vld [vmem:[#allocation2 + $0x814] sm:$0xf]
    %v2999 = vld [vmem:[#allocation2 + $0x818] sm:$0xf]
    %v3000 = vld [vmem:[#allocation2 + $0x81c] sm:$0xf]
    %v3001 = vld [vmem:[#allocation2 + $0x820] sm:$0xf]
    %v3002 = vld [vmem:[#allocation2 + $0x824] sm:$0xf]
    %v3003 = vld [vmem:[#allocation2 + $0x828] sm:$0xf]
    %v3004 = vld [vmem:[#allocation2 + $0x82c] sm:$0xf]
    %v3005 = vld [vmem:[#allocation2 + $0x830] sm:$0xf]
    %v3006 = vld [vmem:[#allocation2 + $0x834] sm:$0xf]
    %v3007 = vld [vmem:[#allocation2 + $0x838] sm:$0xf]
    %v3008 = vld [vmem:[#allocation2 + $0x83c] sm:$0xf]
    %v3009 = vld [vmem:[#allocation2 + $0x840] sm:$0xf]
    %v3010 = vld [vmem:[#allocation2 + $0x844] sm:$0xf]
    %v3011 = vld [vmem:[#allocation2 + $0x848] sm:$0xf]
    %v3012 = vld [vmem:[#allocation2 + $0x84c] sm:$0xf]
    %v3013 = vld [vmem:[#allocation2 + $0x850] sm:$0xf]
    %v3014 = vld [vmem:[#allocation2 + $0x854] sm:$0xf]
    %v3015 = vld [vmem:[#allocation2 + $0x858] sm:$0xf]
    %v3016 = vld [vmem:[#allocation2 + $0x85c] sm:$0xf]
    %v3017 = vld [vmem:[#allocation2 + $0x860] sm:$0xf]
    %v3018 = vld [vmem:[#allocation2 + $0x864] sm:$0xf]
    %v3019 = vld [vmem:[#allocation2 + $0x868] sm:$0xf]
    %v3020 = vld [vmem:[#allocation2 + $0x86c] sm:$0xf]
    %v3021 = vld [vmem:[#allocation2 + $0x870] sm:$0xf]
    %v3022 = vld [vmem:[#allocation2 + $0x874] sm:$0xf]
    %v3023 = vld [vmem:[#allocation2 + $0x878] sm:$0xf]
    %v3024 = vld [vmem:[#allocation2 + $0x87c] sm:$0xf]
    %v3025 = vld [vmem:[#allocation2 + $0x880] sm:$0xf]
    %v3026 = vld [vmem:[#allocation2 + $0x884] sm:$0xf]
    %v3027 = vld [vmem:[#allocation2 + $0x888] sm:$0xf]
    %v3028 = vld [vmem:[#allocation2 + $0x88c] sm:$0xf]
    %v3029 = vld [vmem:[#allocation2 + $0x890] sm:$0xf]
    %v3030 = vld [vmem:[#allocation2 + $0x894] sm:$0xf]
    %v3031 = vld [vmem:[#allocation2 + $0x898] sm:$0xf]
    %v3032 = vld [vmem:[#allocation2 + $0x89c] sm:$0xf]
    %v3033 = vld [vmem:[#allocation2 + $0x8a0] sm:$0xf]
    %v3034 = vld [vmem:[#allocation2 + $0x8a4] sm:$0xf]
    %v3035 = vld [vmem:[#allocation2 + $0x8a8] sm:$0xf]
    %v3036 = vld [vmem:[#allocation2 + $0x8ac] sm:$0xf]
    %v3037 = vld [vmem:[#allocation2 + $0x8b0] sm:$0xf]
    %v3038 = vld [vmem:[#allocation2 + $0x8b4] sm:$0xf]
    %v3039 = vld [vmem:[#allocation2 + $0x8b8] sm:$0xf]
    %v3040 = vld [vmem:[#allocation2 + $0x8bc] sm:$0xf]
    %v3041 = vld [vmem:[#allocation2 + $0x8c0] sm:$0xf]
    %v3042 = vld [vmem:[#allocation2 + $0x8c4] sm:$0xf]
    %v3043 = vld [vmem:[#allocation2 + $0x8c8] sm:$0xf]
    %v3044 = vld [vmem:[#allocation2 + $0x8cc] sm:$0xf]
    %v3045 = vld [vmem:[#allocation2 + $0x8d0] sm:$0xf]
    %v3046 = vld [vmem:[#allocation2 + $0x8d4] sm:$0xf]
    %v3047 = vld [vmem:[#allocation2 + $0x8d8] sm:$0xf]
    %v3048 = vld [vmem:[#allocation2 + $0x8dc] sm:$0xf]
    %v3049 = vld [vmem:[#allocation2 + $0x8e0] sm:$0xf]
    %v3050 = vld [vmem:[#allocation2 + $0x8e4] sm:$0xf]
    %v3051 = vld [vmem:[#allocation2 + $0x8e8] sm:$0xf]
    %v3052 = vld [vmem:[#allocation2 + $0x8ec] sm:$0xf]
    %v3053 = vld [vmem:[#allocation2 + $0x8f0] sm:$0xf]
    %v3054 = vld [vmem:[#allocation2 + $0x8f4] sm:$0xf]
    %v3055 = vld [vmem:[#allocation2 + $0x8f8] sm:$0xf]
    %v3056 = vld [vmem:[#allocation2 + $0x8fc] sm:$0xf]
    %v3057 = vld [vmem:[#allocation2 + $0x900] sm:$0xf]
    %v3058 = vld [vmem:[#allocation2 + $0x904] sm:$0xf]
    %v3059 = vld [vmem:[#allocation2 + $0x908] sm:$0xf]
    %v3060 = vld [vmem:[#allocation2 + $0x90c] sm:$0xf]
    %v3061 = vld [vmem:[#allocation2 + $0x910] sm:$0xf]
    %v3062 = vld [vmem:[#allocation2 + $0x914] sm:$0xf]
    %v3063 = vld [vmem:[#allocation2 + $0x918] sm:$0xf]
    %v3064 = vld [vmem:[#allocation2 + $0x91c] sm:$0xf]
    %v3065 = vld [vmem:[#allocation2 + $0x920] sm:$0xf]
    %v3066 = vld [vmem:[#allocation2 + $0x924] sm:$0xf]
    %v3067 = vld [vmem:[#allocation2 + $0x928] sm:$0xf]
    %v3068 = vld [vmem:[#allocation2 + $0x92c] sm:$0xf]
    %v3069 = vld [vmem:[#allocation2 + $0x930] sm:$0xf]
    %v3070 = vld [vmem:[#allocation2 + $0x934] sm:$0xf]
    %v3071 = vld [vmem:[#allocation2 + $0x938] sm:$0xf]
    %v3072 = vld [vmem:[#allocation2 + $0x93c] sm:$0xf]
    %v3073 = vld [vmem:[#allocation2 + $0x940] sm:$0xf]
    %v3074 = vld [vmem:[#allocation2 + $0x944] sm:$0xf]
    %v3075 = vld [vmem:[#allocation2 + $0x948] sm:$0xf]
    %v3076 = vld [vmem:[#allocation2 + $0x94c] sm:$0xf]
    %v3077 = vld [vmem:[#allocation2 + $0x950] sm:$0xf]
    %v3078 = vld [vmem:[#allocation2 + $0x954] sm:$0xf]
    %v3079 = vld [vmem:[#allocation2 + $0x958] sm:$0xf]
    %v3080 = vld [vmem:[#allocation2 + $0x95c] sm:$0xf]
    %v3081 = vld [vmem:[#allocation2 + $0x960] sm:$0xf]
    %v3082 = vld [vmem:[#allocation2 + $0x964] sm:$0xf]
    %v3083 = vld [vmem:[#allocation2 + $0x968] sm:$0xf]
    %v3084 = vld [vmem:[#allocation2 + $0x96c] sm:$0xf]
    %v3085 = vld [vmem:[#allocation2 + $0x970] sm:$0xf]
    %v3086 = vld [vmem:[#allocation2 + $0x974] sm:$0xf]
    %v3087 = vld [vmem:[#allocation2 + $0x978] sm:$0xf]
    %v3088 = vld [vmem:[#allocation2 + $0x97c] sm:$0xf]
    %v3089 = vld [vmem:[#allocation2 + $0x980] sm:$0xf]
    %v3090 = vld [vmem:[#allocation2 + $0x984] sm:$0xf]
    %v3091 = vld [vmem:[#allocation2 + $0x988] sm:$0xf]
    %v3092 = vld [vmem:[#allocation2 + $0x98c] sm:$0xf]
    %v3093 = vld [vmem:[#allocation2 + $0x990] sm:$0xf]
    %v3094 = vld [vmem:[#allocation2 + $0x994] sm:$0xf]
    %v3095 = vld [vmem:[#allocation2 + $0x998] sm:$0xf]
    %v3096 = vld [vmem:[#allocation2 + $0x99c] sm:$0xf]
    %v3097 = vld [vmem:[#allocation2 + $0x9a0] sm:$0xf]
    %v3098 = vld [vmem:[#allocation2 + $0x9a4] sm:$0xf]
    %v3099 = vld [vmem:[#allocation2 + $0x9a8] sm:$0xf]
    %v3100 = vld [vmem:[#allocation2 + $0x9ac] sm:$0xf]
    %v3101 = vld [vmem:[#allocation2 + $0x9b0] sm:$0xf]
    %v3102 = vld [vmem:[#allocation2 + $0x9b4] sm:$0xf]
    %v3103 = vld [vmem:[#allocation2 + $0x9b8] sm:$0xf]
    %v3104 = vld [vmem:[#allocation2 + $0x9bc] sm:$0xf]
    %v3105 = vld [vmem:[#allocation2 + $0x9c0] sm:$0xf]
    %v3106 = vld [vmem:[#allocation2 + $0x9c4] sm:$0xf]
    %v3107 = vld [vmem:[#allocation2 + $0x9c8] sm:$0xf]
    %v3108 = vld [vmem:[#allocation2 + $0x9cc] sm:$0xf]
    %v3109 = vld [vmem:[#allocation2 + $0x9d0] sm:$0xf]
    %v3110 = vld [vmem:[#allocation2 + $0x9d4] sm:$0xf]
    %v3111 = vld [vmem:[#allocation2 + $0x9d8] sm:$0xf]
    %v3112 = vld [vmem:[#allocation2 + $0x9dc] sm:$0xf]
    %v3113 = vld [vmem:[#allocation2 + $0x9e0] sm:$0xf]
    %v3114 = vld [vmem:[#allocation2 + $0x9e4] sm:$0xf]
    %v3115 = vld [vmem:[#allocation2 + $0x9e8] sm:$0xf]
    %v3116 = vld [vmem:[#allocation2 + $0x9ec] sm:$0xf]
    %v3117 = vld [vmem:[#allocation2 + $0x9f0] sm:$0xf]
    %v3118 = vld [vmem:[#allocation2 + $0x9f4] sm:$0xf]
    %v3119 = vld [vmem:[#allocation2 + $0x9f8] sm:$0xf]
    %v3120 = vld [vmem:[#allocation2 + $0x9fc] sm:$0xf]
    %v3121 = vld [vmem:[#allocation2 + $0xa00] sm:$0xf]
    %v3122 = vld [vmem:[#allocation2 + $0xa04] sm:$0xf]
    %v3123 = vld [vmem:[#allocation2 + $0xa08] sm:$0xf]
    %v3124 = vld [vmem:[#allocation2 + $0xa0c] sm:$0xf]
    %v3125 = vld [vmem:[#allocation2 + $0xa10] sm:$0xf]
    %v3126 = vld [vmem:[#allocation2 + $0xa14] sm:$0xf]
    %v3127 = vld [vmem:[#allocation2 + $0xa18] sm:$0xf]
    %v3128 = vld [vmem:[#allocation2 + $0xa1c] sm:$0xf]
    %v3129 = vld [vmem:[#allocation2 + $0xa20] sm:$0xf]
    %v3130 = vld [vmem:[#allocation2 + $0xa24] sm:$0xf]
    %v3131 = vld [vmem:[#allocation2 + $0xa28] sm:$0xf]
    %v3132 = vld [vmem:[#allocation2 + $0xa2c] sm:$0xf]
    %v3133 = vld [vmem:[#allocation2 + $0xa30] sm:$0xf]
    %v3134 = vld [vmem:[#allocation2 + $0xa34] sm:$0xf]
    %v3135 = vld [vmem:[#allocation2 + $0xa38] sm:$0xf]
    %v3136 = vld [vmem:[#allocation2 + $0xa3c] sm:$0xf]
    %v3137 = vld [vmem:[#allocation2 + $0xa40] sm:$0xf]
    %v3138 = vld [vmem:[#allocation2 + $0xa44] sm:$0xf]
    %v3139 = vld [vmem:[#allocation2 + $0xa48] sm:$0xf]
    %v3140 = vld [vmem:[#allocation2 + $0xa4c] sm:$0xf]
    %v3141 = vld [vmem:[#allocation2 + $0xa50] sm:$0xf]
    %v3142 = vld [vmem:[#allocation2 + $0xa54] sm:$0xf]
    %v3143 = vld [vmem:[#allocation2 + $0xa58] sm:$0xf]
    %v3144 = vld [vmem:[#allocation2 + $0xa5c] sm:$0xf]
    %v3145 = vld [vmem:[#allocation2 + $0xa60] sm:$0xf]
    %v3146 = vld [vmem:[#allocation2 + $0xa64] sm:$0xf]
    %v3147 = vld [vmem:[#allocation2 + $0xa68] sm:$0xf]
    %v3148 = vld [vmem:[#allocation2 + $0xa6c] sm:$0xf]
    %v3149 = vld [vmem:[#allocation2 + $0xa70] sm:$0xf]
    %v3150 = vld [vmem:[#allocation2 + $0xa74] sm:$0xf]
    %v3151 = vld [vmem:[#allocation2 + $0xa78] sm:$0xf]
    %v3152 = vld [vmem:[#allocation2 + $0xa7c] sm:$0xf]
    %v3153 = vld [vmem:[#allocation2 + $0xa80] sm:$0xf]
    %v3154 = vld [vmem:[#allocation2 + $0xa84] sm:$0xf]
    %v3155 = vld [vmem:[#allocation2 + $0xa88] sm:$0xf]
    %v3156 = vld [vmem:[#allocation2 + $0xa8c] sm:$0xf]
    %v3157 = vld [vmem:[#allocation2 + $0xa90] sm:$0xf]
    %v3158 = vld [vmem:[#allocation2 + $0xa94] sm:$0xf]
    %v3159 = vld [vmem:[#allocation2 + $0xa98] sm:$0xf]
    %v3160 = vld [vmem:[#allocation2 + $0xa9c] sm:$0xf]
    %v3161 = vld [vmem:[#allocation2 + $0xaa0] sm:$0xf]
    %v3162 = vld [vmem:[#allocation2 + $0xaa4] sm:$0xf]
    %v3163 = vld [vmem:[#allocation2 + $0xaa8] sm:$0xf]
    %v3164 = vld [vmem:[#allocation2 + $0xaac] sm:$0xf]
    %v3165 = vld [vmem:[#allocation2 + $0xab0] sm:$0xf]
    %v3166 = vld [vmem:[#allocation2 + $0xab4] sm:$0xf]
    %v3167 = vld [vmem:[#allocation2 + $0xab8] sm:$0xf]
    %v3168 = vld [vmem:[#allocation2 + $0xabc] sm:$0xf]
    %v3169 = vld [vmem:[#allocation2 + $0xac0] sm:$0xf]
    %v3170 = vld [vmem:[#allocation2 + $0xac4] sm:$0xf]
    %v3171 = vld [vmem:[#allocation2 + $0xac8] sm:$0xf]
    %v3172 = vld [vmem:[#allocation2 + $0xacc] sm:$0xf]
    %v3173 = vld [vmem:[#allocation2 + $0xad0] sm:$0xf]
    %v3174 = vld [vmem:[#allocation2 + $0xad4] sm:$0xf]
    %v3175 = vld [vmem:[#allocation2 + $0xad8] sm:$0xf]
    %v3176 = vld [vmem:[#allocation2 + $0xadc] sm:$0xf]
    %v3177 = vld [vmem:[#allocation2 + $0xae0] sm:$0xf]
    %v3178 = vld [vmem:[#allocation2 + $0xae4] sm:$0xf]
    %v3179 = vld [vmem:[#allocation2 + $0xae8] sm:$0xf]
    %v3180 = vld [vmem:[#allocation2 + $0xaec] sm:$0xf]
    %v3181 = vld [vmem:[#allocation2 + $0xaf0] sm:$0xf]
    %v3182 = vld [vmem:[#allocation2 + $0xaf4] sm:$0xf]
    %v3183 = vld [vmem:[#allocation2 + $0xaf8] sm:$0xf]
    %v3184 = vld [vmem:[#allocation2 + $0xafc] sm:$0xf]
    %v3185 = vld [vmem:[#allocation2 + $0xb00] sm:$0xf]
    %v3186 = vld [vmem:[#allocation2 + $0xb04] sm:$0xf]
    %v3187 = vld [vmem:[#allocation2 + $0xb08] sm:$0xf]
    %v3188 = vld [vmem:[#allocation2 + $0xb0c] sm:$0xf]
    %v3189 = vld [vmem:[#allocation2 + $0xb10] sm:$0xf]
    %v3190 = vld [vmem:[#allocation2 + $0xb14] sm:$0xf]
    %v3191 = vld [vmem:[#allocation2 + $0xb18] sm:$0xf]
    %v3192 = vld [vmem:[#allocation2 + $0xb1c] sm:$0xf]
    %v3193 = vld [vmem:[#allocation2 + $0xb20] sm:$0xf]
    %v3194 = vld [vmem:[#allocation2 + $0xb24] sm:$0xf]
    %v3195 = vld [vmem:[#allocation2 + $0xb28] sm:$0xf]
    %v3196 = vld [vmem:[#allocation2 + $0xb2c] sm:$0xf]
    %v3197 = vld [vmem:[#allocation2 + $0xb30] sm:$0xf]
    %v3198 = vld [vmem:[#allocation2 + $0xb34] sm:$0xf]
    %v3199 = vld [vmem:[#allocation2 + $0xb38] sm:$0xf]
    %v3200 = vld [vmem:[#allocation2 + $0xb3c] sm:$0xf]
    %v3201 = vld [vmem:[#allocation2 + $0xb40] sm:$0xf]
    %v3202 = vld [vmem:[#allocation2 + $0xb44] sm:$0xf]
    %v3203 = vld [vmem:[#allocation2 + $0xb48] sm:$0xf]
    %v3204 = vld [vmem:[#allocation2 + $0xb4c] sm:$0xf]
    %v3205 = vld [vmem:[#allocation2 + $0xb50] sm:$0xf]
    %v3206 = vld [vmem:[#allocation2 + $0xb54] sm:$0xf]
    %v3207 = vld [vmem:[#allocation2 + $0xb58] sm:$0xf]
    %v3208 = vld [vmem:[#allocation2 + $0xb5c] sm:$0xf]
    %v3209 = vld [vmem:[#allocation2 + $0xb60] sm:$0xf]
    %v3210 = vld [vmem:[#allocation2 + $0xb64] sm:$0xf]
    %v3211 = vld [vmem:[#allocation2 + $0xb68] sm:$0xf]
    %v3212 = vld [vmem:[#allocation2 + $0xb6c] sm:$0xf]
    %v3213 = vld [vmem:[#allocation2 + $0xb70] sm:$0xf]
    %v3214 = vld [vmem:[#allocation2 + $0xb74] sm:$0xf]
    %v3215 = vld [vmem:[#allocation2 + $0xb78] sm:$0xf]
    %v3216 = vld [vmem:[#allocation2 + $0xb7c] sm:$0xf]
    %v3217 = vld [vmem:[#allocation2 + $0xb80] sm:$0xf]
    %v3218 = vld [vmem:[#allocation2 + $0xb84] sm:$0xf]
    %v3219 = vld [vmem:[#allocation2 + $0xb88] sm:$0xf]
    %v3220 = vld [vmem:[#allocation2 + $0xb8c] sm:$0xf]
    %v3221 = vld [vmem:[#allocation2 + $0xb90] sm:$0xf]
    %v3222 = vld [vmem:[#allocation2 + $0xb94] sm:$0xf]
    %v3223 = vld [vmem:[#allocation2 + $0xb98] sm:$0xf]
    %v3224 = vld [vmem:[#allocation2 + $0xb9c] sm:$0xf]
    %v3225 = vld [vmem:[#allocation2 + $0xba0] sm:$0xf]
    %v3226 = vld [vmem:[#allocation2 + $0xba4] sm:$0xf]
    %v3227 = vld [vmem:[#allocation2 + $0xba8] sm:$0xf]
    %v3228 = vld [vmem:[#allocation2 + $0xbac] sm:$0xf]
    %v3229 = vld [vmem:[#allocation2 + $0xbb0] sm:$0xf]
    %v3230 = vld [vmem:[#allocation2 + $0xbb4] sm:$0xf]
    %v3231 = vld [vmem:[#allocation2 + $0xbb8] sm:$0xf]
    %v3232 = vld [vmem:[#allocation2 + $0xbbc] sm:$0xf]
    %v3233 = vld [vmem:[#allocation2 + $0xbc0] sm:$0xf]
    %v3234 = vld [vmem:[#allocation2 + $0xbc4] sm:$0xf]
    %v3235 = vld [vmem:[#allocation2 + $0xbc8] sm:$0xf]
    %v3236 = vld [vmem:[#allocation2 + $0xbcc] sm:$0xf]
    %v3237 = vld [vmem:[#allocation2 + $0xbd0] sm:$0xf]
    %v3238 = vld [vmem:[#allocation2 + $0xbd4] sm:$0xf]
    %v3239 = vld [vmem:[#allocation2 + $0xbd8] sm:$0xf]
    %v3240 = vld [vmem:[#allocation2 + $0xbdc] sm:$0xf]
    %v3241 = vld [vmem:[#allocation2 + $0xbe0] sm:$0xf]
    %v3242 = vld [vmem:[#allocation2 + $0xbe4] sm:$0xf]
    %v3243 = vld [vmem:[#allocation2 + $0xbe8] sm:$0xf]
    %v3244 = vld [vmem:[#allocation2 + $0xbec] sm:$0xf]
    %v3245 = vld [vmem:[#allocation2 + $0xbf0] sm:$0xf]
    %v3246 = vld [vmem:[#allocation2 + $0xbf4] sm:$0xf]
    %v3247 = vld [vmem:[#allocation2 + $0xbf8] sm:$0xf]
    %v3248 = vld [vmem:[#allocation2 + $0xbfc] sm:$0xf]
    %v3249 = vld [vmem:[#allocation2 + $0xc00] sm:$0xf]
    %v3250 = vld [vmem:[#allocation2 + $0xc04] sm:$0xf]
    %v3251 = vld [vmem:[#allocation2 + $0xc08] sm:$0xf]
    %v3252 = vld [vmem:[#allocation2 + $0xc0c] sm:$0xf]
    %v3253 = vld [vmem:[#allocation2 + $0xc10] sm:$0xf]
    %v3254 = vld [vmem:[#allocation2 + $0xc14] sm:$0xf]
    %v3255 = vld [vmem:[#allocation2 + $0xc18] sm:$0xf]
    %v3256 = vld [vmem:[#allocation2 + $0xc1c] sm:$0xf]
    %v3257 = vld [vmem:[#allocation2 + $0xc20] sm:$0xf]
    %v3258 = vld [vmem:[#allocation2 + $0xc24] sm:$0xf]
    %v3259 = vld [vmem:[#allocation2 + $0xc28] sm:$0xf]
    %v3260 = vld [vmem:[#allocation2 + $0xc2c] sm:$0xf]
    %v3261 = vld [vmem:[#allocation2 + $0xc30] sm:$0xf]
    %v3262 = vld [vmem:[#allocation2 + $0xc34] sm:$0xf]
    %v3263 = vld [vmem:[#allocation2 + $0xc38] sm:$0xf]
    %v3264 = vld [vmem:[#allocation2 + $0xc3c] sm:$0xf]
    %v3265 = vld [vmem:[#allocation2 + $0xc40] sm:$0xf]
    %v3266 = vld [vmem:[#allocation2 + $0xc44] sm:$0xf]
    %v3267 = vld [vmem:[#allocation2 + $0xc48] sm:$0xf]
    %v3268 = vld [vmem:[#allocation2 + $0xc4c] sm:$0xf]
    %v3269 = vld [vmem:[#allocation2 + $0xc50] sm:$0xf]
    %v3270 = vld [vmem:[#allocation2 + $0xc54] sm:$0xf]
    %v3271 = vld [vmem:[#allocation2 + $0xc58] sm:$0xf]
    %v3272 = vld [vmem:[#allocation2 + $0xc5c] sm:$0xf]
    %v3273 = vld [vmem:[#allocation2 + $0xc60] sm:$0xf]
    %v3274 = vld [vmem:[#allocation2 + $0xc64] sm:$0xf]
    %v3275 = vld [vmem:[#allocation2 + $0xc68] sm:$0xf]
    %v3276 = vld [vmem:[#allocation2 + $0xc6c] sm:$0xf]
    %v3277 = vld [vmem:[#allocation2 + $0xc70] sm:$0xf]
    %v3278 = vld [vmem:[#allocation2 + $0xc74] sm:$0xf]
    %v3279 = vld [vmem:[#allocation2 + $0xc78] sm:$0xf]
    %v3280 = vld [vmem:[#allocation2 + $0xc7c] sm:$0xf]
    %v3281 = vld [vmem:[#allocation2 + $0xc80] sm:$0xf]
    %v3282 = vld [vmem:[#allocation2 + $0xc84] sm:$0xf]
    %v3283 = vld [vmem:[#allocation2 + $0xc88] sm:$0xf]
    %v3284 = vld [vmem:[#allocation2 + $0xc8c] sm:$0xf]
    %v3285 = vld [vmem:[#allocation2 + $0xc90] sm:$0xf]
    %v3286 = vld [vmem:[#allocation2 + $0xc94] sm:$0xf]
    %v3287 = vld [vmem:[#allocation2 + $0xc98] sm:$0xf]
    %v3288 = vld [vmem:[#allocation2 + $0xc9c] sm:$0xf]
    %v3289 = vld [vmem:[#allocation2 + $0xca0] sm:$0xf]
    %v3290 = vld [vmem:[#allocation2 + $0xca4] sm:$0xf]
    %v3291 = vld [vmem:[#allocation2 + $0xca8] sm:$0xf]
    %v3292 = vld [vmem:[#allocation2 + $0xcac] sm:$0xf]
    %v3293 = vld [vmem:[#allocation2 + $0xcb0] sm:$0xf]
    %v3294 = vld [vmem:[#allocation2 + $0xcb4] sm:$0xf]
    %v3295 = vld [vmem:[#allocation2 + $0xcb8] sm:$0xf]
    %v3296 = vld [vmem:[#allocation2 + $0xcbc] sm:$0xf]
    %v3297 = vld [vmem:[#allocation2 + $0xcc0] sm:$0xf]
    %v3298 = vld [vmem:[#allocation2 + $0xcc4] sm:$0xf]
    %v3299 = vld [vmem:[#allocation2 + $0xcc8] sm:$0xf]
    %v3300 = vld [vmem:[#allocation2 + $0xccc] sm:$0xf]
    %v3301 = vld [vmem:[#allocation2 + $0xcd0] sm:$0xf]
    %v3302 = vld [vmem:[#allocation2 + $0xcd4] sm:$0xf]
    %v3303 = vld [vmem:[#allocation2 + $0xcd8] sm:$0xf]
    %v3304 = vld [vmem:[#allocation2 + $0xcdc] sm:$0xf]
    %v3305 = vld [vmem:[#allocation2 + $0xce0] sm:$0xf]
    %v3306 = vld [vmem:[#allocation2 + $0xce4] sm:$0xf]
    %v3307 = vld [vmem:[#allocation2 + $0xce8] sm:$0xf]
    %v3308 = vld [vmem:[#allocation2 + $0xcec] sm:$0xf]
    %v3309 = vld [vmem:[#allocation2 + $0xcf0] sm:$0xf]
    %v3310 = vld [vmem:[#allocation2 + $0xcf4] sm:$0xf]
    %v3311 = vld [vmem:[#allocation2 + $0xcf8] sm:$0xf]
    %v3312 = vld [vmem:[#allocation2 + $0xcfc] sm:$0xf]
    %v3313 = vld [vmem:[#allocation2 + $0xd00] sm:$0xf]
    %v3314 = vld [vmem:[#allocation2 + $0xd04] sm:$0xf]
    %v3315 = vld [vmem:[#allocation2 + $0xd08] sm:$0xf]
    %v3316 = vld [vmem:[#allocation2 + $0xd0c] sm:$0xf]
    %v3317 = vld [vmem:[#allocation2 + $0xd10] sm:$0xf]
    %v3318 = vld [vmem:[#allocation2 + $0xd14] sm:$0xf]
    %v3319 = vld [vmem:[#allocation2 + $0xd18] sm:$0xf]
    %v3320 = vld [vmem:[#allocation2 + $0xd1c] sm:$0xf]
    %v3321 = vld [vmem:[#allocation2 + $0xd20] sm:$0xf]
    %v3322 = vld [vmem:[#allocation2 + $0xd24] sm:$0xf]
    %v3323 = vld [vmem:[#allocation2 + $0xd28] sm:$0xf]
    %v3324 = vld [vmem:[#allocation2 + $0xd2c] sm:$0xf]
    %v3325 = vld [vmem:[#allocation2 + $0xd30] sm:$0xf]
    %v3326 = vld [vmem:[#allocation2 + $0xd34] sm:$0xf]
    %v3327 = vld [vmem:[#allocation2 + $0xd38] sm:$0xf]
    %v3328 = vld [vmem:[#allocation2 + $0xd3c] sm:$0xf]
    %v3329 = vld [vmem:[#allocation2 + $0xd40] sm:$0xf]
    %v3330 = vld [vmem:[#allocation2 + $0xd44] sm:$0xf]
    %v3331 = vld [vmem:[#allocation2 + $0xd48] sm:$0xf]
    %v3332 = vld [vmem:[#allocation2 + $0xd4c] sm:$0xf]
    %v3333 = vld [vmem:[#allocation2 + $0xd50] sm:$0xf]
    %v3334 = vld [vmem:[#allocation2 + $0xd54] sm:$0xf]
    %v3335 = vld [vmem:[#allocation2 + $0xd58] sm:$0xf]
    %v3336 = vld [vmem:[#allocation2 + $0xd5c] sm:$0xf]
    %v3337 = vld [vmem:[#allocation2 + $0xd60] sm:$0xf]
    %v3338 = vld [vmem:[#allocation2 + $0xd64] sm:$0xf]
    %v3339 = vld [vmem:[#allocation2 + $0xd68] sm:$0xf]
    %v3340 = vld [vmem:[#allocation2 + $0xd6c] sm:$0xf]
    %v3341 = vld [vmem:[#allocation2 + $0xd70] sm:$0xf]
    %v3342 = vld [vmem:[#allocation2 + $0xd74] sm:$0xf]
    %v3343 = vld [vmem:[#allocation2 + $0xd78] sm:$0xf]
    %v3344 = vld [vmem:[#allocation2 + $0xd7c] sm:$0xf]
    %v3345 = vld [vmem:[#allocation2 + $0xd80] sm:$0xf]
    %v3346 = vld [vmem:[#allocation2 + $0xd84] sm:$0xf]
    %v3347 = vld [vmem:[#allocation2 + $0xd88] sm:$0xf]
    %v3348 = vld [vmem:[#allocation2 + $0xd8c] sm:$0xf]
    %v3349 = vld [vmem:[#allocation2 + $0xd90] sm:$0xf]
    %v3350 = vld [vmem:[#allocation2 + $0xd94] sm:$0xf]
    %v3351 = vld [vmem:[#allocation2 + $0xd98] sm:$0xf]
    %v3352 = vld [vmem:[#allocation2 + $0xd9c] sm:$0xf]
    %v3353 = vld [vmem:[#allocation2 + $0xda0] sm:$0xf]
    %v3354 = vld [vmem:[#allocation2 + $0xda4] sm:$0xf]
    %v3355 = vld [vmem:[#allocation2 + $0xda8] sm:$0xf]
    %v3356 = vld [vmem:[#allocation2 + $0xdac] sm:$0xf]
    %v3357 = vld [vmem:[#allocation2 + $0xdb0] sm:$0xf]
    %v3358 = vld [vmem:[#allocation2 + $0xdb4] sm:$0xf]
    %v3359 = vld [vmem:[#allocation2 + $0xdb8] sm:$0xf]
    %v3360 = vld [vmem:[#allocation2 + $0xdbc] sm:$0xf]
    %v3361 = vld [vmem:[#allocation2 + $0xdc0] sm:$0xf]
    %v3362 = vld [vmem:[#allocation2 + $0xdc4] sm:$0xf]
    %v3363 = vld [vmem:[#allocation2 + $0xdc8] sm:$0xf]
    %v3364 = vld [vmem:[#allocation2 + $0xdcc] sm:$0xf]
    %v3365 = vld [vmem:[#allocation2 + $0xdd0] sm:$0xf]
    %v3366 = vld [vmem:[#allocation2 + $0xdd4] sm:$0xf]
    %v3367 = vld [vmem:[#allocation2 + $0xdd8] sm:$0xf]
    %v3368 = vld [vmem:[#allocation2 + $0xddc] sm:$0xf]
    %v3369 = vld [vmem:[#allocation2 + $0xde0] sm:$0xf]
    %v3370 = vld [vmem:[#allocation2 + $0xde4] sm:$0xf]
    %v3371 = vld [vmem:[#allocation2 + $0xde8] sm:$0xf]
    %v3372 = vld [vmem:[#allocation2 + $0xdec] sm:$0xf]
    %v3373 = vld [vmem:[#allocation2 + $0xdf0] sm:$0xf]
    %v3374 = vld [vmem:[#allocation2 + $0xdf4] sm:$0xf]
    %v3375 = vld [vmem:[#allocation2 + $0xdf8] sm:$0xf]
    %v3376 = vld [vmem:[#allocation2 + $0xdfc] sm:$0xf]
    %v3377 = vld [vmem:[#allocation2 + $0xe00] sm:$0xf]
    %v3378 = vld [vmem:[#allocation2 + $0xe04] sm:$0xf]
    %v3379 = vld [vmem:[#allocation2 + $0xe08] sm:$0xf]
    %v3380 = vld [vmem:[#allocation2 + $0xe0c] sm:$0xf]
    %v3381 = vld [vmem:[#allocation2 + $0xe10] sm:$0xf]
    %v3382 = vld [vmem:[#allocation2 + $0xe14] sm:$0xf]
    %v3383 = vld [vmem:[#allocation2 + $0xe18] sm:$0xf]
    %v3384 = vld [vmem:[#allocation2 + $0xe1c] sm:$0xf]
    %v3385 = vld [vmem:[#allocation2 + $0xe20] sm:$0xf]
    %v3386 = vld [vmem:[#allocation2 + $0xe24] sm:$0xf]
    %v3387 = vld [vmem:[#allocation2 + $0xe28] sm:$0xf]
    %v3388 = vld [vmem:[#allocation2 + $0xe2c] sm:$0xf]
    %v3389 = vld [vmem:[#allocation2 + $0xe30] sm:$0xf]
    %v3390 = vld [vmem:[#allocation2 + $0xe34] sm:$0xf]
    %v3391 = vld [vmem:[#allocation2 + $0xe38] sm:$0xf]
    %v3392 = vld [vmem:[#allocation2 + $0xe3c] sm:$0xf]
    %v3393 = vld [vmem:[#allocation2 + $0xe40] sm:$0xf]
    %v3394 = vld [vmem:[#allocation2 + $0xe44] sm:$0xf]
    %v3395 = vld [vmem:[#allocation2 + $0xe48] sm:$0xf]
    %v3396 = vld [vmem:[#allocation2 + $0xe4c] sm:$0xf]
    %v3397 = vld [vmem:[#allocation2 + $0xe50] sm:$0xf]
    %v3398 = vld [vmem:[#allocation2 + $0xe54] sm:$0xf]
    %v3399 = vld [vmem:[#allocation2 + $0xe58] sm:$0xf]
    %v3400 = vld [vmem:[#allocation2 + $0xe5c] sm:$0xf]
    %v3401 = vld [vmem:[#allocation2 + $0xe60] sm:$0xf]
    %v3402 = vld [vmem:[#allocation2 + $0xe64] sm:$0xf]
    %v3403 = vld [vmem:[#allocation2 + $0xe68] sm:$0xf]
    %v3404 = vld [vmem:[#allocation2 + $0xe6c] sm:$0xf]
    %v3405 = vld [vmem:[#allocation2 + $0xe70] sm:$0xf]
    %v3406 = vld [vmem:[#allocation2 + $0xe74] sm:$0xf]
    %v3407 = vld [vmem:[#allocation2 + $0xe78] sm:$0xf]
    %v3408 = vld [vmem:[#allocation2 + $0xe7c] sm:$0xf]
    %v3409 = vld [vmem:[#allocation2 + $0xe80] sm:$0xf]
    %v3410 = vld [vmem:[#allocation2 + $0xe84] sm:$0xf]
    %v3411 = vld [vmem:[#allocation2 + $0xe88] sm:$0xf]
    %v3412 = vld [vmem:[#allocation2 + $0xe8c] sm:$0xf]
    %v3413 = vld [vmem:[#allocation2 + $0xe90] sm:$0xf]
    %v3414 = vld [vmem:[#allocation2 + $0xe94] sm:$0xf]
    %v3415 = vld [vmem:[#allocation2 + $0xe98] sm:$0xf]
    %v3416 = vld [vmem:[#allocation2 + $0xe9c] sm:$0xf]
    %v3417 = vld [vmem:[#allocation2 + $0xea0] sm:$0xf]
    %v3418 = vld [vmem:[#allocation2 + $0xea4] sm:$0xf]
    %v3419 = vld [vmem:[#allocation2 + $0xea8] sm:$0xf]
    %v3420 = vld [vmem:[#allocation2 + $0xeac] sm:$0xf]
    %v3421 = vld [vmem:[#allocation2 + $0xeb0] sm:$0xf]
    %v3422 = vld [vmem:[#allocation2 + $0xeb4] sm:$0xf]
    %v3423 = vld [vmem:[#allocation2 + $0xeb8] sm:$0xf]
    %v3424 = vld [vmem:[#allocation2 + $0xebc] sm:$0xf]
    %v3425 = vld [vmem:[#allocation2 + $0xec0] sm:$0xf]
    %v3426 = vld [vmem:[#allocation2 + $0xec4] sm:$0xf]
    %v3427 = vld [vmem:[#allocation2 + $0xec8] sm:$0xf]
    %v3428 = vld [vmem:[#allocation2 + $0xecc] sm:$0xf]
    %v3429 = vld [vmem:[#allocation2 + $0xed0] sm:$0xf]
    %v3430 = vld [vmem:[#allocation2 + $0xed4] sm:$0xf]
    %v3431 = vld [vmem:[#allocation2 + $0xed8] sm:$0xf]
    %v3432 = vld [vmem:[#allocation2 + $0xedc] sm:$0xf]
    %v3433 = vld [vmem:[#allocation2 + $0xee0] sm:$0xf]
    %v3434 = vld [vmem:[#allocation2 + $0xee4] sm:$0xf]
    %v3435 = vld [vmem:[#allocation2 + $0xee8] sm:$0xf]
    %v3436 = vld [vmem:[#allocation2 + $0xeec] sm:$0xf]
    %v3437 = vld [vmem:[#allocation2 + $0xef0] sm:$0xf]
    %v3438 = vld [vmem:[#allocation2 + $0xef4] sm:$0xf]
    %v3439 = vld [vmem:[#allocation2 + $0xef8] sm:$0xf]
    %v3440 = vld [vmem:[#allocation2 + $0xefc] sm:$0xf]
    %v3441 = vld [vmem:[#allocation2 + $0xf00] sm:$0xf]
    %v3442 = vld [vmem:[#allocation2 + $0xf04] sm:$0xf]
    %v3443 = vld [vmem:[#allocation2 + $0xf08] sm:$0xf]
    %v3444 = vld [vmem:[#allocation2 + $0xf0c] sm:$0xf]
    %v3445 = vld [vmem:[#allocation2 + $0xf10] sm:$0xf]
    %v3446 = vld [vmem:[#allocation2 + $0xf14] sm:$0xf]
    %v3447 = vld [vmem:[#allocation2 + $0xf18] sm:$0xf]
    %v3448 = vld [vmem:[#allocation2 + $0xf1c] sm:$0xf]
    %v3449 = vld [vmem:[#allocation2 + $0xf20] sm:$0xf]
    %v3450 = vld [vmem:[#allocation2 + $0xf24] sm:$0xf]
    %v3451 = vld [vmem:[#allocation2 + $0xf28] sm:$0xf]
    %v3452 = vld [vmem:[#allocation2 + $0xf2c] sm:$0xf]
    %v3453 = vld [vmem:[#allocation2 + $0xf30] sm:$0xf]
    %v3454 = vld [vmem:[#allocation2 + $0xf34] sm:$0xf]
    %v3455 = vld [vmem:[#allocation2 + $0xf38] sm:$0xf]
    %v3456 = vld [vmem:[#allocation2 + $0xf3c] sm:$0xf]
    %v3457 = vld [vmem:[#allocation2 + $0xf40] sm:$0xf]
    %v3458 = vld [vmem:[#allocation2 + $0xf44] sm:$0xf]
    %v3459 = vld [vmem:[#allocation2 + $0xf48] sm:$0xf]
    %v3460 = vld [vmem:[#allocation2 + $0xf4c] sm:$0xf]
    %v3461 = vld [vmem:[#allocation2 + $0xf50] sm:$0xf]
    %v3462 = vld [vmem:[#allocation2 + $0xf54] sm:$0xf]
    %v3463 = vld [vmem:[#allocation2 + $0xf58] sm:$0xf]
    %v3464 = vld [vmem:[#allocation2 + $0xf5c] sm:$0xf]
    %v3465 = vld [vmem:[#allocation2 + $0xf60] sm:$0xf]
    %v3466 = vld [vmem:[#allocation2 + $0xf64] sm:$0xf]
    %v3467 = vld [vmem:[#allocation2 + $0xf68] sm:$0xf]
    %v3468 = vld [vmem:[#allocation2 + $0xf6c] sm:$0xf]
    %v3469 = vld [vmem:[#allocation2 + $0xf70] sm:$0xf]
    %v3470 = vld [vmem:[#allocation2 + $0xf74] sm:$0xf]
    %v3471 = vld [vmem:[#allocation2 + $0xf78] sm:$0xf]
    %v3472 = vld [vmem:[#allocation2 + $0xf7c] sm:$0xf]
    %v3473 = vld [vmem:[#allocation2 + $0xf80] sm:$0xf]
    %v3474 = vld [vmem:[#allocation2 + $0xf84] sm:$0xf]
    %v3475 = vld [vmem:[#allocation2 + $0xf88] sm:$0xf]
    %v3476 = vld [vmem:[#allocation2 + $0xf8c] sm:$0xf]
    %v3477 = vld [vmem:[#allocation2 + $0xf90] sm:$0xf]
    %v3478 = vld [vmem:[#allocation2 + $0xf94] sm:$0xf]
    %v3479 = vld [vmem:[#allocation2 + $0xf98] sm:$0xf]
    %v3480 = vld [vmem:[#allocation2 + $0xf9c] sm:$0xf]
    %v3481 = vld [vmem:[#allocation2 + $0xfa0] sm:$0xf]
    %v3482 = vld [vmem:[#allocation2 + $0xfa4] sm:$0xf]
    %v3483 = vld [vmem:[#allocation2 + $0xfa8] sm:$0xf]
    %v3484 = vld [vmem:[#allocation2 + $0xfac] sm:$0xf]
    %v3485 = vld [vmem:[#allocation2 + $0xfb0] sm:$0xf]
    %v3486 = vld [vmem:[#allocation2 + $0xfb4] sm:$0xf]
    %v3487 = vld [vmem:[#allocation2 + $0xfb8] sm:$0xf]
    %v3488 = vld [vmem:[#allocation2 + $0xfbc] sm:$0xf]
    %v3489 = vld [vmem:[#allocation2 + $0xfc0] sm:$0xf]
    %v3490 = vld [vmem:[#allocation2 + $0xfc4] sm:$0xf]
    %v3491 = vld [vmem:[#allocation2 + $0xfc8] sm:$0xf]
    %v3492 = vld [vmem:[#allocation2 + $0xfcc] sm:$0xf]
    %v3493 = vld [vmem:[#allocation2 + $0xfd0] sm:$0xf]
    %v3494 = vld [vmem:[#allocation2 + $0xfd4] sm:$0xf]
    %v3495 = vld [vmem:[#allocation2 + $0xfd8] sm:$0xf]
    %v3496 = vld [vmem:[#allocation2 + $0xfdc] sm:$0xf]
    %v3497 = vld [vmem:[#allocation2 + $0xfe0] sm:$0xf]
    %v3498 = vld [vmem:[#allocation2 + $0xfe4] sm:$0xf]
    %v3499 = vld [vmem:[#allocation2 + $0xfe8] sm:$0xf]
    %v3500 = vld [vmem:[#allocation2 + $0xfec] sm:$0xf]
    %v3501 = vld [vmem:[#allocation2 + $0xff0] sm:$0xf]
    %v3502 = vld [vmem:[#allocation2 + $0xff4] sm:$0xf]
    %v3503 = vld [vmem:[#allocation2 + $0xff8] sm:$0xf]
    %v3504 = vld [vmem:[#allocation2 + $0xffc] sm:$0xf]
    %v3505 = vld [vmem:[#allocation2 + $0x1000] sm:$0xf]
    %v3506 = vld [vmem:[#allocation2 + $0x1004] sm:$0xf]
    %v3507 = vld [vmem:[#allocation2 + $0x1008] sm:$0xf]
    %v3508 = vld [vmem:[#allocation2 + $0x100c] sm:$0xf]
    %v3509 = vld [vmem:[#allocation2 + $0x1010] sm:$0xf]
    %v3510 = vld [vmem:[#allocation2 + $0x1014] sm:$0xf]
    %v3511 = vld [vmem:[#allocation2 + $0x1018] sm:$0xf]
    %v3512 = vld [vmem:[#allocation2 + $0x101c] sm:$0xf]
    %v3513 = vld [vmem:[#allocation2 + $0x1020] sm:$0xf]
    %v3514 = vld [vmem:[#allocation2 + $0x1024] sm:$0xf]
    %v3515 = vld [vmem:[#allocation2 + $0x1028] sm:$0xf]
    %v3516 = vld [vmem:[#allocation2 + $0x102c] sm:$0xf]
    %v3517 = vld [vmem:[#allocation2 + $0x1030] sm:$0xf]
    %v3518 = vld [vmem:[#allocation2 + $0x1034] sm:$0xf]
    %v3519 = vld [vmem:[#allocation2 + $0x1038] sm:$0xf]
    %v3520 = vld [vmem:[#allocation2 + $0x103c] sm:$0xf]
    %v3521 = vld [vmem:[#allocation2 + $0x1040] sm:$0xf]
    %v3522 = vld [vmem:[#allocation2 + $0x1044] sm:$0xf]
    %v3523 = vld [vmem:[#allocation2 + $0x1048] sm:$0xf]
    %v3524 = vld [vmem:[#allocation2 + $0x104c] sm:$0xf]
    %v3525 = vld [vmem:[#allocation2 + $0x1050] sm:$0xf]
    %v3526 = vld [vmem:[#allocation2 + $0x1054] sm:$0xf]
    %v3527 = vld [vmem:[#allocation2 + $0x1058] sm:$0xf]
    %v3528 = vld [vmem:[#allocation2 + $0x105c] sm:$0xf]
    %v3529 = vld [vmem:[#allocation2 + $0x1060] sm:$0xf]
    %v3530 = vld [vmem:[#allocation2 + $0x1064] sm:$0xf]
    %v3531 = vld [vmem:[#allocation2 + $0x1068] sm:$0xf]
    %v3532 = vld [vmem:[#allocation2 + $0x106c] sm:$0xf]
    %v3533 = vld [vmem:[#allocation2 + $0x1070] sm:$0xf]
    %v3534 = vld [vmem:[#allocation2 + $0x1074] sm:$0xf]
    %v3535 = vld [vmem:[#allocation2 + $0x1078] sm:$0xf]
    %v3536 = vld [vmem:[#allocation2 + $0x107c] sm:$0xf]
    %v3537 = vld [vmem:[#allocation2 + $0x1080] sm:$0xf]
    %v3538 = vld [vmem:[#allocation2 + $0x1084] sm:$0xf]
    %v3539 = vld [vmem:[#allocation2 + $0x1088] sm:$0xf]
    %v3540 = vld [vmem:[#allocation2 + $0x108c] sm:$0xf]
    %v3541 = vld [vmem:[#allocation2 + $0x1090] sm:$0xf]
    %v3542 = vld [vmem:[#allocation2 + $0x1094] sm:$0xf]
    %v3543 = vld [vmem:[#allocation2 + $0x1098] sm:$0xf]
    %v3544 = vld [vmem:[#allocation2 + $0x109c] sm:$0xf]
    %v3545 = vld [vmem:[#allocation2 + $0x10a0] sm:$0xf]
    %v3546 = vld [vmem:[#allocation2 + $0x10a4] sm:$0xf]
    %v3547 = vld [vmem:[#allocation2 + $0x10a8] sm:$0xf]
    %v3548 = vld [vmem:[#allocation2 + $0x10ac] sm:$0xf]
    %v3549 = vld [vmem:[#allocation2 + $0x10b0] sm:$0xf]
    %v3550 = vld [vmem:[#allocation2 + $0x10b4] sm:$0xf]
    %v3551 = vld [vmem:[#allocation2 + $0x10b8] sm:$0xf]
    %v3552 = vld [vmem:[#allocation2 + $0x10bc] sm:$0xf]
    %v3553 = vld [vmem:[#allocation2 + $0x10c0] sm:$0xf]
    %v3554 = vld [vmem:[#allocation2 + $0x10c4] sm:$0xf]
    %v3555 = vld [vmem:[#allocation2 + $0x10c8] sm:$0xf]
    %v3556 = vld [vmem:[#allocation2 + $0x10cc] sm:$0xf]
    %v3557 = vld [vmem:[#allocation2 + $0x10d0] sm:$0xf]
    %v3558 = vld [vmem:[#allocation2 + $0x10d4] sm:$0xf]
    %v3559 = vld [vmem:[#allocation2 + $0x10d8] sm:$0xf]
    %v3560 = vld [vmem:[#allocation2 + $0x10dc] sm:$0xf]
    %v3561 = vld [vmem:[#allocation2 + $0x10e0] sm:$0xf]
    %v3562 = vld [vmem:[#allocation2 + $0x10e4] sm:$0xf]
    %v3563 = vld [vmem:[#allocation2 + $0x10e8] sm:$0xf]
    %v3564 = vld [vmem:[#allocation2 + $0x10ec] sm:$0xf]
    %v3565 = vld [vmem:[#allocation2 + $0x10f0] sm:$0xf]
    %v3566 = vld [vmem:[#allocation2 + $0x10f4] sm:$0xf]
    %v3567 = vld [vmem:[#allocation2 + $0x10f8] sm:$0xf]
    %v3568 = vld [vmem:[#allocation2 + $0x10fc] sm:$0xf]
    %v3569 = vld [vmem:[#allocation2 + $0x1100] sm:$0xf]
    %v3570 = vld [vmem:[#allocation2 + $0x1104] sm:$0xf]
    %v3571 = vld [vmem:[#allocation2 + $0x1108] sm:$0xf]
    %v3572 = vld [vmem:[#allocation2 + $0x110c] sm:$0xf]
    %v3573 = vld [vmem:[#allocation2 + $0x1110] sm:$0xf]
    %v3574 = vld [vmem:[#allocation2 + $0x1114] sm:$0xf]
    %v3575 = vld [vmem:[#allocation2 + $0x1118] sm:$0xf]
    %v3576 = vld [vmem:[#allocation2 + $0x111c] sm:$0xf]
    %v3577 = vld [vmem:[#allocation2 + $0x1120] sm:$0xf]
    %v3578 = vld [vmem:[#allocation2 + $0x1124] sm:$0xf]
    %v3579 = vld [vmem:[#allocation2 + $0x1128] sm:$0xf]
    %v3580 = vld [vmem:[#allocation2 + $0x112c] sm:$0xf]
    %v3581 = vld [vmem:[#allocation2 + $0x1130] sm:$0xf]
    %v3582 = vld [vmem:[#allocation2 + $0x1134] sm:$0xf]
    %v3583 = vld [vmem:[#allocation2 + $0x1138] sm:$0xf]
    %v3584 = vld [vmem:[#allocation2 + $0x113c] sm:$0xf]
    %v3585 = vld [vmem:[#allocation2 + $0x1140] sm:$0xf]
    %v3586 = vld [vmem:[#allocation2 + $0x1144] sm:$0xf]
    %v3587 = vld [vmem:[#allocation2 + $0x1148] sm:$0xf]
    %v3588 = vld [vmem:[#allocation2 + $0x114c] sm:$0xf]
    %v3589 = vld [vmem:[#allocation2 + $0x1150] sm:$0xf]
    %v3590 = vld [vmem:[#allocation2 + $0x1154] sm:$0xf]
    %v3591 = vld [vmem:[#allocation2 + $0x1158] sm:$0xf]
    %v3592 = vld [vmem:[#allocation2 + $0x115c] sm:$0xf]
    %v3593 = vld [vmem:[#allocation2 + $0x1160] sm:$0xf]
    %v3594 = vld [vmem:[#allocation2 + $0x1164] sm:$0xf]
    %v3595 = vld [vmem:[#allocation2 + $0x1168] sm:$0xf]
    %v3596 = vld [vmem:[#allocation2 + $0x116c] sm:$0xf]
    %v3597 = vld [vmem:[#allocation2 + $0x1170] sm:$0xf]
    %v3598 = vld [vmem:[#allocation2 + $0x1174] sm:$0xf]
    %v3599 = vld [vmem:[#allocation2 + $0x1178] sm:$0xf]
    %v3600 = vld [vmem:[#allocation2 + $0x117c] sm:$0xf]
    %v3601 = vld [vmem:[#allocation2 + $0x1180] sm:$0xf]
    %v3602 = vld [vmem:[#allocation2 + $0x1184] sm:$0xf]
    %v3603 = vld [vmem:[#allocation2 + $0x1188] sm:$0xf]
    %v3604 = vld [vmem:[#allocation2 + $0x118c] sm:$0xf]
    %v3605 = vld [vmem:[#allocation2 + $0x1190] sm:$0xf]
    %v3606 = vld [vmem:[#allocation2 + $0x1194] sm:$0xf]
    %v3607 = vld [vmem:[#allocation2 + $0x1198] sm:$0xf]
    %v3608 = vld [vmem:[#allocation2 + $0x119c] sm:$0xf]
    %v3609 = vld [vmem:[#allocation2 + $0x11a0] sm:$0xf]
    %v3610 = vld [vmem:[#allocation2 + $0x11a4] sm:$0xf]
    %v3611 = vld [vmem:[#allocation2 + $0x11a8] sm:$0xf]
    %v3612 = vld [vmem:[#allocation2 + $0x11ac] sm:$0xf]
    %v3613 = vld [vmem:[#allocation2 + $0x11b0] sm:$0xf]
    %v3614 = vld [vmem:[#allocation2 + $0x11b4] sm:$0xf]
    %v3615 = vld [vmem:[#allocation2 + $0x11b8] sm:$0xf]
    %v3616 = vld [vmem:[#allocation2 + $0x11bc] sm:$0xf]
    %v3617 = vld [vmem:[#allocation2 + $0x11c0] sm:$0xf]
    %v3618 = vld [vmem:[#allocation2 + $0x11c4] sm:$0xf]
    %v3619 = vld [vmem:[#allocation2 + $0x11c8] sm:$0xf]
    %v3620 = vld [vmem:[#allocation2 + $0x11cc] sm:$0xf]
    %v3621 = vld [vmem:[#allocation2 + $0x11d0] sm:$0xf]
    %v3622 = vld [vmem:[#allocation2 + $0x11d4] sm:$0xf]
    %v3623 = vld [vmem:[#allocation2 + $0x11d8] sm:$0xf]
    %v3624 = vld [vmem:[#allocation2 + $0x11dc] sm:$0xf]
    %v3625 = vld [vmem:[#allocation2 + $0x11e0] sm:$0xf]
    %v3626 = vld [vmem:[#allocation2 + $0x11e4] sm:$0xf]
    %v3627 = vld [vmem:[#allocation2 + $0x11e8] sm:$0xf]
    %v3628 = vld [vmem:[#allocation2 + $0x11ec] sm:$0xf]
    %v3629 = vld [vmem:[#allocation2 + $0x11f0] sm:$0xf]
    %v3630 = vld [vmem:[#allocation2 + $0x11f4] sm:$0xf]
    %v3631 = vld [vmem:[#allocation2 + $0x11f8] sm:$0xf]
    %v3632 = vld [vmem:[#allocation2 + $0x11fc] sm:$0xf]
    %v3633 = vld [vmem:[#allocation2 + $0x1200] sm:$0xf]
    %v3634 = vld [vmem:[#allocation2 + $0x1204] sm:$0xf]
    %v3635 = vld [vmem:[#allocation2 + $0x1208] sm:$0xf]
    %v3636 = vld [vmem:[#allocation2 + $0x120c] sm:$0xf]
    %v3637 = vld [vmem:[#allocation2 + $0x1210] sm:$0xf]
    %v3638 = vld [vmem:[#allocation2 + $0x1214] sm:$0xf]
    %v3639 = vld [vmem:[#allocation2 + $0x1218] sm:$0xf]
    %v3640 = vld [vmem:[#allocation2 + $0x121c] sm:$0xf]
    %v3641 = vld [vmem:[#allocation2 + $0x1220] sm:$0xf]
    %v3642 = vld [vmem:[#allocation2 + $0x1224] sm:$0xf]
    %v3643 = vld [vmem:[#allocation2 + $0x1228] sm:$0xf]
    %v3644 = vld [vmem:[#allocation2 + $0x122c] sm:$0xf]
    %v3645 = vld [vmem:[#allocation2 + $0x1230] sm:$0xf]
    %v3646 = vld [vmem:[#allocation2 + $0x1234] sm:$0xf]
    %v3647 = vld [vmem:[#allocation2 + $0x1238] sm:$0xf]
    %v3648 = vld [vmem:[#allocation2 + $0x123c] sm:$0xf]
    %v3649 = vld [vmem:[#allocation2 + $0x1240] sm:$0xf]
    %v3650 = vld [vmem:[#allocation2 + $0x1244] sm:$0xf]
    %v3651 = vld [vmem:[#allocation2 + $0x1248] sm:$0xf]
    %v3652 = vld [vmem:[#allocation2 + $0x124c] sm:$0xf]
    %v3653 = vld [vmem:[#allocation2 + $0x1250] sm:$0xf]
    %v3654 = vld [vmem:[#allocation2 + $0x1254] sm:$0xf]
    %v3655 = vld [vmem:[#allocation2 + $0x1258] sm:$0xf]
    %v3656 = vld [vmem:[#allocation2 + $0x125c] sm:$0xf]
    %v3657 = vld [vmem:[#allocation2 + $0x1260] sm:$0xf]
    %v3658 = vld [vmem:[#allocation2 + $0x1264] sm:$0xf]
    %v3659 = vld [vmem:[#allocation2 + $0x1268] sm:$0xf]
    %v3660 = vld [vmem:[#allocation2 + $0x126c] sm:$0xf]
    %v3661 = vld [vmem:[#allocation2 + $0x1270] sm:$0xf]
    %v3662 = vld [vmem:[#allocation2 + $0x1274] sm:$0xf]
    %v3663 = vld [vmem:[#allocation2 + $0x1278] sm:$0xf]
    %v3664 = vld [vmem:[#allocation2 + $0x127c] sm:$0xf]
    %v3665 = vld [vmem:[#allocation2 + $0x1280] sm:$0xf]
    %v3666 = vld [vmem:[#allocation2 + $0x1284] sm:$0xf]
    %v3667 = vld [vmem:[#allocation2 + $0x1288] sm:$0xf]
    %v3668 = vld [vmem:[#allocation2 + $0x128c] sm:$0xf]
    %v3669 = vld [vmem:[#allocation2 + $0x1290] sm:$0xf]
    %v3670 = vld [vmem:[#allocation2 + $0x1294] sm:$0xf]
    %v3671 = vld [vmem:[#allocation2 + $0x1298] sm:$0xf]
    %v3672 = vld [vmem:[#allocation2 + $0x129c] sm:$0xf]
    %v3673 = vld [vmem:[#allocation2 + $0x12a0] sm:$0xf]
    %v3674 = vld [vmem:[#allocation2 + $0x12a4] sm:$0xf]
    %v3675 = vld [vmem:[#allocation2 + $0x12a8] sm:$0xf]
    %v3676 = vld [vmem:[#allocation2 + $0x12ac] sm:$0xf]
    %v3677 = vld [vmem:[#allocation2 + $0x12b0] sm:$0xf]
    %v3678 = vld [vmem:[#allocation2 + $0x12b4] sm:$0xf]
    %v3679 = vld [vmem:[#allocation2 + $0x12b8] sm:$0xf]
    %v3680 = vld [vmem:[#allocation2 + $0x12bc] sm:$0xf]
    %v3681 = vld [vmem:[#allocation2 + $0x12c0] sm:$0xf]
    %v3682 = vld [vmem:[#allocation2 + $0x12c4] sm:$0xf]
    %v3683 = vld [vmem:[#allocation2 + $0x12c8] sm:$0xf]
    %v3684 = vld [vmem:[#allocation2 + $0x12cc] sm:$0xf]
    %v3685 = vld [vmem:[#allocation2 + $0x12d0] sm:$0xf]
    %v3686 = vld [vmem:[#allocation2 + $0x12d4] sm:$0xf]
    %v3687 = vld [vmem:[#allocation2 + $0x12d8] sm:$0xf]
    %v3688 = vld [vmem:[#allocation2 + $0x12dc] sm:$0xf]
    %v3689 = vld [vmem:[#allocation2 + $0x12e0] sm:$0xf]
    %v3690 = vld [vmem:[#allocation2 + $0x12e4] sm:$0xf]
    %v3691 = vld [vmem:[#allocation2 + $0x12e8] sm:$0xf]
    %v3692 = vld [vmem:[#allocation2 + $0x12ec] sm:$0xf]
    %v3693 = vld [vmem:[#allocation2 + $0x12f0] sm:$0xf]
    %v3694 = vld [vmem:[#allocation2 + $0x12f4] sm:$0xf]
    %v3695 = vld [vmem:[#allocation2 + $0x12f8] sm:$0xf]
    %v3696 = vld [vmem:[#allocation2 + $0x12fc] sm:$0xf]
    %v3697 = vld [vmem:[#allocation2 + $0x1300] sm:$0xf]
    %v3698 = vld [vmem:[#allocation2 + $0x1304] sm:$0xf]
    %v3699 = vld [vmem:[#allocation2 + $0x1308] sm:$0xf]
    %v3700 = vld [vmem:[#allocation2 + $0x130c] sm:$0xf]
    %v3701 = vld [vmem:[#allocation2 + $0x1310] sm:$0xf]
    %v3702 = vld [vmem:[#allocation2 + $0x1314] sm:$0xf]
    %v3703 = vld [vmem:[#allocation2 + $0x1318] sm:$0xf]
    %v3704 = vld [vmem:[#allocation2 + $0x131c] sm:$0xf]
    %v3705 = vld [vmem:[#allocation2 + $0x1320] sm:$0xf]
    %v3706 = vld [vmem:[#allocation2 + $0x1324] sm:$0xf]
    %v3707 = vld [vmem:[#allocation2 + $0x1328] sm:$0xf]
    %v3708 = vld [vmem:[#allocation2 + $0x132c] sm:$0xf]
    %v3709 = vld [vmem:[#allocation2 + $0x1330] sm:$0xf]
    %v3710 = vld [vmem:[#allocation2 + $0x1334] sm:$0xf]
    %v3711 = vld [vmem:[#allocation2 + $0x1338] sm:$0xf]
    %v3712 = vld [vmem:[#allocation2 + $0x133c] sm:$0xf]
    %v3713 = vld [vmem:[#allocation2 + $0x1340] sm:$0xf]
    %v3714 = vld [vmem:[#allocation2 + $0x1344] sm:$0xf]
    %v3715 = vld [vmem:[#allocation2 + $0x1348] sm:$0xf]
    %v3716 = vld [vmem:[#allocation2 + $0x134c] sm:$0xf]
    %v3717 = vld [vmem:[#allocation2 + $0x1350] sm:$0xf]
    %v3718 = vld [vmem:[#allocation2 + $0x1354] sm:$0xf]
    %v3719 = vld [vmem:[#allocation2 + $0x1358] sm:$0xf]
    %v3720 = vld [vmem:[#allocation2 + $0x135c] sm:$0xf]
    %v3721 = vld [vmem:[#allocation2 + $0x1360] sm:$0xf]
    %v3722 = vld [vmem:[#allocation2 + $0x1364] sm:$0xf]
    %v3723 = vld [vmem:[#allocation2 + $0x1368] sm:$0xf]
    %v3724 = vld [vmem:[#allocation2 + $0x136c] sm:$0xf]
    %v3725 = vld [vmem:[#allocation2 + $0x1370] sm:$0xf]
    %v3726 = vld [vmem:[#allocation2 + $0x1374] sm:$0xf]
    %v3727 = vld [vmem:[#allocation2 + $0x1378] sm:$0xf]
    %v3728 = vld [vmem:[#allocation2 + $0x137c] sm:$0xf]
    %v3729 = vld [vmem:[#allocation2 + $0x1380] sm:$0xf]
    %v3730 = vld [vmem:[#allocation2 + $0x1384] sm:$0xf]
    %v3731 = vld [vmem:[#allocation2 + $0x1388] sm:$0xf]
    %v3732 = vld [vmem:[#allocation2 + $0x138c] sm:$0xf]
    %v3733 = vld [vmem:[#allocation2 + $0x1390] sm:$0xf]
    %v3734 = vld [vmem:[#allocation2 + $0x1394] sm:$0xf]
    %v3735 = vld [vmem:[#allocation2 + $0x1398] sm:$0xf]
    %v3736 = vld [vmem:[#allocation2 + $0x139c] sm:$0xf]
    %v3737 = vld [vmem:[#allocation2 + $0x13a0] sm:$0xf]
    %v3738 = vld [vmem:[#allocation2 + $0x13a4] sm:$0xf]
    %v3739 = vld [vmem:[#allocation2 + $0x13a8] sm:$0xf]
    %v3740 = vld [vmem:[#allocation2 + $0x13ac] sm:$0xf]
    %v3741 = vld [vmem:[#allocation2 + $0x13b0] sm:$0xf]
    %v3742 = vld [vmem:[#allocation2 + $0x13b4] sm:$0xf]
    %v3743 = vld [vmem:[#allocation2 + $0x13b8] sm:$0xf]
    %v3744 = vld [vmem:[#allocation2 + $0x13bc] sm:$0xf]
    %v3745 = vld [vmem:[#allocation2 + $0x13c0] sm:$0xf]
    %v3746 = vld [vmem:[#allocation2 + $0x13c4] sm:$0xf]
    %v3747 = vld [vmem:[#allocation2 + $0x13c8] sm:$0xf]
    %v3748 = vld [vmem:[#allocation2 + $0x13cc] sm:$0xf]
    %v3749 = vld [vmem:[#allocation2 + $0x13d0] sm:$0xf]
    %v3750 = vld [vmem:[#allocation2 + $0x13d4] sm:$0xf]
    %v3751 = vld [vmem:[#allocation2 + $0x13d8] sm:$0xf]
    %v3752 = vld [vmem:[#allocation2 + $0x13dc] sm:$0xf]
    %v3753 = vld [vmem:[#allocation2 + $0x13e0] sm:$0xf]
    %v3754 = vld [vmem:[#allocation2 + $0x13e4] sm:$0xf]
    %v3755 = vld [vmem:[#allocation2 + $0x13e8] sm:$0xf]
    %v3756 = vld [vmem:[#allocation2 + $0x13ec] sm:$0xf]
    %v3757 = vld [vmem:[#allocation2 + $0x13f0] sm:$0xf]
    %v3758 = vld [vmem:[#allocation2 + $0x13f4] sm:$0xf]
    %v3759 = vld [vmem:[#allocation2 + $0x13f8] sm:$0xf]
    %v3760 = vld [vmem:[#allocation2 + $0x13fc] sm:$0xf]
    %v3761 = vld [vmem:[#allocation2 + $0x1400] sm:$0xf]
    %v3762 = vld [vmem:[#allocation2 + $0x1404] sm:$0xf]
    %v3763 = vld [vmem:[#allocation2 + $0x1408] sm:$0xf]
    %v3764 = vld [vmem:[#allocation2 + $0x140c] sm:$0xf]
    %v3765 = vld [vmem:[#allocation2 + $0x1410] sm:$0xf]
    %v3766 = vld [vmem:[#allocation2 + $0x1414] sm:$0xf]
    %v3767 = vld [vmem:[#allocation2 + $0x1418] sm:$0xf]
    %v3768 = vld [vmem:[#allocation2 + $0x141c] sm:$0xf]
    %v3769 = vld [vmem:[#allocation2 + $0x1420] sm:$0xf]
    %v3770 = vld [vmem:[#allocation2 + $0x1424] sm:$0xf]
    %v3771 = vld [vmem:[#allocation2 + $0x1428] sm:$0xf]
    %v3772 = vld [vmem:[#allocation2 + $0x142c] sm:$0xf]
    %v3773 = vld [vmem:[#allocation2 + $0x1430] sm:$0xf]
    %v3774 = vld [vmem:[#allocation2 + $0x1434] sm:$0xf]
    %v3775 = vld [vmem:[#allocation2 + $0x1438] sm:$0xf]
    %v3776 = vld [vmem:[#allocation2 + $0x143c] sm:$0xf]
    %v3777 = vld [vmem:[#allocation2 + $0x1440] sm:$0xf]
    %v3778 = vld [vmem:[#allocation2 + $0x1444] sm:$0xf]
    %v3779 = vld [vmem:[#allocation2 + $0x1448] sm:$0xf]
    %v3780 = vld [vmem:[#allocation2 + $0x144c] sm:$0xf]
    %v3781 = vld [vmem:[#allocation2 + $0x1450] sm:$0xf]
    %v3782 = vld [vmem:[#allocation2 + $0x1454] sm:$0xf]
    %v3783 = vld [vmem:[#allocation2 + $0x1458] sm:$0xf]
    %v3784 = vld [vmem:[#allocation2 + $0x145c] sm:$0xf]
    %v3785 = vld [vmem:[#allocation2 + $0x1460] sm:$0xf]
    %v3786 = vld [vmem:[#allocation2 + $0x1464] sm:$0xf]
    %v3787 = vld [vmem:[#allocation2 + $0x1468] sm:$0xf]
    %v3788 = vld [vmem:[#allocation2 + $0x146c] sm:$0xf]
    %v3789 = vld [vmem:[#allocation2 + $0x1470] sm:$0xf]
    %v3790 = vld [vmem:[#allocation2 + $0x1474] sm:$0xf]
    %v3791 = vld [vmem:[#allocation2 + $0x1478] sm:$0xf]
    %v3792 = vld [vmem:[#allocation2 + $0x147c] sm:$0xf]
    %v3793 = vld [vmem:[#allocation2 + $0x1480] sm:$0xf]
    %v3794 = vld [vmem:[#allocation2 + $0x1484] sm:$0xf]
    %v3795 = vld [vmem:[#allocation2 + $0x1488] sm:$0xf]
    %v3796 = vld [vmem:[#allocation2 + $0x148c] sm:$0xf]
    %v3797 = vld [vmem:[#allocation2 + $0x1490] sm:$0xf]
    %v3798 = vld [vmem:[#allocation2 + $0x1494] sm:$0xf]
    %v3799 = vld [vmem:[#allocation2 + $0x1498] sm:$0xf]
    %v3800 = vld [vmem:[#allocation2 + $0x149c] sm:$0xf]
    %v3801 = vld [vmem:[#allocation2 + $0x14a0] sm:$0xf]
    %v3802 = vld [vmem:[#allocation2 + $0x14a4] sm:$0xf]
    %v3803 = vld [vmem:[#allocation2 + $0x14a8] sm:$0xf]
    %v3804 = vld [vmem:[#allocation2 + $0x14ac] sm:$0xf]
    %v3805 = vld [vmem:[#allocation2 + $0x14b0] sm:$0xf]
    %v3806 = vld [vmem:[#allocation2 + $0x14b4] sm:$0xf]
    %v3807 = vld [vmem:[#allocation2 + $0x14b8] sm:$0xf]
    %v3808 = vld [vmem:[#allocation2 + $0x14bc] sm:$0xf]
    %v3809 = vld [vmem:[#allocation2 + $0x14c0] sm:$0xf]
    %v3810 = vld [vmem:[#allocation2 + $0x14c4] sm:$0xf]
    %v3811 = vld [vmem:[#allocation2 + $0x14c8] sm:$0xf]
    %v3812 = vld [vmem:[#allocation2 + $0x14cc] sm:$0xf]
    %v3813 = vld [vmem:[#allocation2 + $0x14d0] sm:$0xf]
    %v3814 = vld [vmem:[#allocation2 + $0x14d4] sm:$0xf]
    %v3815 = vld [vmem:[#allocation2 + $0x14d8] sm:$0xf]
    %v3816 = vld [vmem:[#allocation2 + $0x14dc] sm:$0xf]
    %v3817 = vld [vmem:[#allocation2 + $0x14e0] sm:$0xf]
    %v3818 = vld [vmem:[#allocation2 + $0x14e4] sm:$0xf]
    %v3819 = vld [vmem:[#allocation2 + $0x14e8] sm:$0xf]
    %v3820 = vld [vmem:[#allocation2 + $0x14ec] sm:$0xf]
    %v3821 = vld [vmem:[#allocation2 + $0x14f0] sm:$0xf]
    %v3822 = vld [vmem:[#allocation2 + $0x14f4] sm:$0xf]
    %v3823 = vld [vmem:[#allocation2 + $0x14f8] sm:$0xf]
    %v3824 = vld [vmem:[#allocation2 + $0x14fc] sm:$0xf]
    %v3825 = vld [vmem:[#allocation2 + $0x1500] sm:$0xf]
    %v3826 = vld [vmem:[#allocation2 + $0x1504] sm:$0xf]
    %v3827 = vld [vmem:[#allocation2 + $0x1508] sm:$0xf]
    %v3828 = vld [vmem:[#allocation2 + $0x150c] sm:$0xf]
    %v3829 = vld [vmem:[#allocation2 + $0x1510] sm:$0xf]
    %v3830 = vld [vmem:[#allocation2 + $0x1514] sm:$0xf]
    %v3831 = vld [vmem:[#allocation2 + $0x1518] sm:$0xf]
    %v3832 = vld [vmem:[#allocation2 + $0x151c] sm:$0xf]
    %v3833 = vld [vmem:[#allocation2 + $0x1520] sm:$0xf]
    %v3834 = vld [vmem:[#allocation2 + $0x1524] sm:$0xf]
    %v3835 = vld [vmem:[#allocation2 + $0x1528] sm:$0xf]
    %v3836 = vld [vmem:[#allocation2 + $0x152c] sm:$0xf]
    %v3837 = vld [vmem:[#allocation2 + $0x1530] sm:$0xf]
    %v3838 = vld [vmem:[#allocation2 + $0x1534] sm:$0xf]
    %v3839 = vld [vmem:[#allocation2 + $0x1538] sm:$0xf]
    %v3840 = vld [vmem:[#allocation2 + $0x153c] sm:$0xf]
    %v3841 = vld [vmem:[#allocation2 + $0x1540] sm:$0xf]
    %v3842 = vld [vmem:[#allocation2 + $0x1544] sm:$0xf]
    %v3843 = vld [vmem:[#allocation2 + $0x1548] sm:$0xf]
    %v3844 = vld [vmem:[#allocation2 + $0x154c] sm:$0xf]
    %v3845 = vld [vmem:[#allocation2 + $0x1550] sm:$0xf]
    %v3846 = vld [vmem:[#allocation2 + $0x1554] sm:$0xf]
    %v3847 = vld [vmem:[#allocation2 + $0x1558] sm:$0xf]
    %v3848 = vld [vmem:[#allocation2 + $0x155c] sm:$0xf]
    %v3849 = vld [vmem:[#allocation2 + $0x1560] sm:$0xf]
    %v3850 = vld [vmem:[#allocation2 + $0x1564] sm:$0xf]
    %v3851 = vld [vmem:[#allocation2 + $0x1568] sm:$0xf]
    %v3852 = vld [vmem:[#allocation2 + $0x156c] sm:$0xf]
    %v3853 = vld [vmem:[#allocation2 + $0x1570] sm:$0xf]
    %v3854 = vld [vmem:[#allocation2 + $0x1574] sm:$0xf]
    %v3855 = vld [vmem:[#allocation2 + $0x1578] sm:$0xf]
    %v3856 = vld [vmem:[#allocation2 + $0x157c] sm:$0xf]
    %v3857 = vld [vmem:[#allocation2 + $0x1580] sm:$0xf]
    %v3858 = vld [vmem:[#allocation2 + $0x1584] sm:$0xf]
    %v3859 = vld [vmem:[#allocation2 + $0x1588] sm:$0xf]
    %v3860 = vld [vmem:[#allocation2 + $0x158c] sm:$0xf]
    %v3861 = vld [vmem:[#allocation2 + $0x1590] sm:$0xf]
    %v3862 = vld [vmem:[#allocation2 + $0x1594] sm:$0xf]
    %v3863 = vld [vmem:[#allocation2 + $0x1598] sm:$0xf]
    %v3864 = vld [vmem:[#allocation2 + $0x159c] sm:$0xf]
    %v3865 = vld [vmem:[#allocation2 + $0x15a0] sm:$0xf]
    %v3866 = vld [vmem:[#allocation2 + $0x15a4] sm:$0xf]
    %v3867 = vld [vmem:[#allocation2 + $0x15a8] sm:$0xf]
    %v3868 = vld [vmem:[#allocation2 + $0x15ac] sm:$0xf]
    %v3869 = vld [vmem:[#allocation2 + $0x15b0] sm:$0xf]
    %v3870 = vld [vmem:[#allocation2 + $0x15b4] sm:$0xf]
    %v3871 = vld [vmem:[#allocation2 + $0x15b8] sm:$0xf]
    %v3872 = vld [vmem:[#allocation2 + $0x15bc] sm:$0xf]
    %v3873 = vld [vmem:[#allocation2 + $0x15c0] sm:$0xf]
    %v3874 = vld [vmem:[#allocation2 + $0x15c4] sm:$0xf]
    %v3875 = vld [vmem:[#allocation2 + $0x15c8] sm:$0xf]
    %v3876 = vld [vmem:[#allocation2 + $0x15cc] sm:$0xf]
    %v3877 = vld [vmem:[#allocation2 + $0x15d0] sm:$0xf]
    %v3878 = vld [vmem:[#allocation2 + $0x15d4] sm:$0xf]
    %v3879 = vld [vmem:[#allocation2 + $0x15d8] sm:$0xf]
    %v3880 = vld [vmem:[#allocation2 + $0x15dc] sm:$0xf]
    %v3881 = vld [vmem:[#allocation2 + $0x15e0] sm:$0xf]
    %v3882 = vld [vmem:[#allocation2 + $0x15e4] sm:$0xf]
    %v3883 = vld [vmem:[#allocation2 + $0x15e8] sm:$0xf]
    %v3884 = vld [vmem:[#allocation2 + $0x15ec] sm:$0xf]
    %v3885 = vld [vmem:[#allocation2 + $0x15f0] sm:$0xf]
    %v3886 = vld [vmem:[#allocation2 + $0x15f4] sm:$0xf]
    %v3887 = vld [vmem:[#allocation2 + $0x15f8] sm:$0xf]
    %v3888 = vld [vmem:[#allocation2 + $0x15fc] sm:$0xf]
    %v3889 = vld [vmem:[#allocation2 + $0x1600] sm:$0xf]
    %v3890 = vld [vmem:[#allocation2 + $0x1604] sm:$0xf]
    %v3891 = vld [vmem:[#allocation2 + $0x1608] sm:$0xf]
    %v3892 = vld [vmem:[#allocation2 + $0x160c] sm:$0xf]
    %v3893 = vld [vmem:[#allocation2 + $0x1610] sm:$0xf]
    %v3894 = vld [vmem:[#allocation2 + $0x1614] sm:$0xf]
    %v3895 = vld [vmem:[#allocation2 + $0x1618] sm:$0xf]
    %v3896 = vld [vmem:[#allocation2 + $0x161c] sm:$0xf]
    %v3897 = vld [vmem:[#allocation2 + $0x1620] sm:$0xf]
    %v3898 = vld [vmem:[#allocation2 + $0x1624] sm:$0xf]
    %v3899 = vld [vmem:[#allocation2 + $0x1628] sm:$0xf]
    %v3900 = vld [vmem:[#allocation2 + $0x162c] sm:$0xf]
    %v3901 = vld [vmem:[#allocation2 + $0x1630] sm:$0xf]
    %v3902 = vld [vmem:[#allocation2 + $0x1634] sm:$0xf]
    %v3903 = vld [vmem:[#allocation2 + $0x1638] sm:$0xf]
    %v3904 = vld [vmem:[#allocation2 + $0x163c] sm:$0xf]
    %v3905 = vld [vmem:[#allocation2 + $0x1640] sm:$0xf]
    %v3906 = vld [vmem:[#allocation2 + $0x1644] sm:$0xf]
    %v3907 = vld [vmem:[#allocation2 + $0x1648] sm:$0xf]
    %v3908 = vld [vmem:[#allocation2 + $0x164c] sm:$0xf]
    %v3909 = vld [vmem:[#allocation2 + $0x1650] sm:$0xf]
    %v3910 = vld [vmem:[#allocation2 + $0x1654] sm:$0xf]
    %v3911 = vld [vmem:[#allocation2 + $0x1658] sm:$0xf]
    %v3912 = vld [vmem:[#allocation2 + $0x165c] sm:$0xf]
    %v3913 = vld [vmem:[#allocation2 + $0x1660] sm:$0xf]
    %v3914 = vld [vmem:[#allocation2 + $0x1664] sm:$0xf]
    %v3915 = vld [vmem:[#allocation2 + $0x1668] sm:$0xf]
    %v3916 = vld [vmem:[#allocation2 + $0x166c] sm:$0xf]
    %v3917 = vld [vmem:[#allocation2 + $0x1670] sm:$0xf]
    %v3918 = vld [vmem:[#allocation2 + $0x1674] sm:$0xf]
    %v3919 = vld [vmem:[#allocation2 + $0x1678] sm:$0xf]
    %v3920 = vld [vmem:[#allocation2 + $0x167c] sm:$0xf]
    %v3921 = vld [vmem:[#allocation2 + $0x1680] sm:$0xf]
    %v3922 = vld [vmem:[#allocation2 + $0x1684] sm:$0xf]
    %v3923 = vld [vmem:[#allocation2 + $0x1688] sm:$0xf]
    %v3924 = vld [vmem:[#allocation2 + $0x168c] sm:$0xf]
    %v3925 = vld [vmem:[#allocation2 + $0x1690] sm:$0xf]
    %v3926 = vld [vmem:[#allocation2 + $0x1694] sm:$0xf]
    %v3927 = vld [vmem:[#allocation2 + $0x1698] sm:$0xf]
    %v3928 = vld [vmem:[#allocation2 + $0x169c] sm:$0xf]
    %v3929 = vld [vmem:[#allocation2 + $0x16a0] sm:$0xf]
    %v3930 = vld [vmem:[#allocation2 + $0x16a4] sm:$0xf]
    %v3931 = vld [vmem:[#allocation2 + $0x16a8] sm:$0xf]
    %v3932 = vld [vmem:[#allocation2 + $0x16ac] sm:$0xf]
    %v3933 = vld [vmem:[#allocation2 + $0x16b0] sm:$0xf]
    %v3934 = vld [vmem:[#allocation2 + $0x16b4] sm:$0xf]
    %v3935 = vld [vmem:[#allocation2 + $0x16b8] sm:$0xf]
    %v3936 = vld [vmem:[#allocation2 + $0x16bc] sm:$0xf]
    %v3937 = vld [vmem:[#allocation2 + $0x16c0] sm:$0xf]
    %v3938 = vld [vmem:[#allocation2 + $0x16c4] sm:$0xf]
    %v3939 = vld [vmem:[#allocation2 + $0x16c8] sm:$0xf]
    %v3940 = vld [vmem:[#allocation2 + $0x16cc] sm:$0xf]
    %v3941 = vld [vmem:[#allocation2 + $0x16d0] sm:$0xf]
    %v3942 = vld [vmem:[#allocation2 + $0x16d4] sm:$0xf]
    %v3943 = vld [vmem:[#allocation2 + $0x16d8] sm:$0xf]
    %v3944 = vld [vmem:[#allocation2 + $0x16dc] sm:$0xf]
    %v3945 = vld [vmem:[#allocation2 + $0x16e0] sm:$0xf]
    %v3946 = vld [vmem:[#allocation2 + $0x16e4] sm:$0xf]
    %v3947 = vld [vmem:[#allocation2 + $0x16e8] sm:$0xf]
    %v3948 = vld [vmem:[#allocation2 + $0x16ec] sm:$0xf]
    %v3949 = vld [vmem:[#allocation2 + $0x16f0] sm:$0xf]
    %v3950 = vld [vmem:[#allocation2 + $0x16f4] sm:$0xf]
    %v3951 = vld [vmem:[#allocation2 + $0x16f8] sm:$0xf]
    %v3952 = vld [vmem:[#allocation2 + $0x16fc] sm:$0xf]
    %v3953 = vld [vmem:[#allocation2 + $0x1700] sm:$0xf]
    %v3954 = vld [vmem:[#allocation2 + $0x1704] sm:$0xf]
    %v3955 = vld [vmem:[#allocation2 + $0x1708] sm:$0xf]
    %v3956 = vld [vmem:[#allocation2 + $0x170c] sm:$0xf]
    %v3957 = vld [vmem:[#allocation2 + $0x1710] sm:$0xf]
    %v3958 = vld [vmem:[#allocation2 + $0x1714] sm:$0xf]
    %v3959 = vld [vmem:[#allocation2 + $0x1718] sm:$0xf]
    %v3960 = vld [vmem:[#allocation2 + $0x171c] sm:$0xf]
    %v3961 = vld [vmem:[#allocation2 + $0x1720] sm:$0xf]
    %v3962 = vld [vmem:[#allocation2 + $0x1724] sm:$0xf]
    %v3963 = vld [vmem:[#allocation2 + $0x1728] sm:$0xf]
    %v3964 = vld [vmem:[#allocation2 + $0x172c] sm:$0xf]
    %v3965 = vld [vmem:[#allocation2 + $0x1730] sm:$0xf]
    %v3966 = vld [vmem:[#allocation2 + $0x1734] sm:$0xf]
    %v3967 = vld [vmem:[#allocation2 + $0x1738] sm:$0xf]
    %v3968 = vld [vmem:[#allocation2 + $0x173c] sm:$0xf]
    %v3969 = vld [vmem:[#allocation2 + $0x1740] sm:$0xf]
    %v3970 = vld [vmem:[#allocation2 + $0x1744] sm:$0xf]
    %v3971 = vld [vmem:[#allocation2 + $0x1748] sm:$0xf]
    %v3972 = vld [vmem:[#allocation2 + $0x174c] sm:$0xf]
    %v3973 = vld [vmem:[#allocation2 + $0x1750] sm:$0xf]
    %v3974 = vld [vmem:[#allocation2 + $0x1754] sm:$0xf]
    %v3975 = vld [vmem:[#allocation2 + $0x1758] sm:$0xf]
    %v3976 = vld [vmem:[#allocation2 + $0x175c] sm:$0xf]
    %v3977 = vld [vmem:[#allocation2 + $0x1760] sm:$0xf]
    %v3978 = vld [vmem:[#allocation2 + $0x1764] sm:$0xf]
    %v3979 = vld [vmem:[#allocation2 + $0x1768] sm:$0xf]
    %v3980 = vld [vmem:[#allocation2 + $0x176c] sm:$0xf]
    %v3981 = vld [vmem:[#allocation2 + $0x1770] sm:$0xf]
    %v3982 = vld [vmem:[#allocation2 + $0x1774] sm:$0xf]
    %v3983 = vld [vmem:[#allocation2 + $0x1778] sm:$0xf]
    %v3984 = vld [vmem:[#allocation2 + $0x177c] sm:$0xf]
    %v3985 = vld [vmem:[#allocation2 + $0x1780] sm:$0xf]
    %v3986 = vld [vmem:[#allocation2 + $0x1784] sm:$0xf]
    %v3987 = vld [vmem:[#allocation2 + $0x1788] sm:$0xf]
    %v3988 = vld [vmem:[#allocation2 + $0x178c] sm:$0xf]
    %v3989 = vld [vmem:[#allocation2 + $0x1790] sm:$0xf]
    %v3990 = vld [vmem:[#allocation2 + $0x1794] sm:$0xf]
    %v3991 = vld [vmem:[#allocation2 + $0x1798] sm:$0xf]
    %v3992 = vld [vmem:[#allocation2 + $0x179c] sm:$0xf]
    %v3993 = vld [vmem:[#allocation2 + $0x17a0] sm:$0xf]
    %v3994 = vld [vmem:[#allocation2 + $0x17a4] sm:$0xf]
    %v3995 = vld [vmem:[#allocation2 + $0x17a8] sm:$0xf]
    %v3996 = vld [vmem:[#allocation2 + $0x17ac] sm:$0xf]
    %v3997 = vld [vmem:[#allocation2 + $0x17b0] sm:$0xf]
    %v3998 = vld [vmem:[#allocation2 + $0x17b4] sm:$0xf]
    %v3999 = vld [vmem:[#allocation2 + $0x17b8] sm:$0xf]
    %v4000 = vld [vmem:[#allocation2 + $0x17bc] sm:$0xf]
    %v4001 = vld [vmem:[#allocation2 + $0x17c0] sm:$0xf]
    %v4002 = vld [vmem:[#allocation2 + $0x17c4] sm:$0xf]
    %v4003 = vld [vmem:[#allocation2 + $0x17c8] sm:$0xf]
    %v4004 = vld [vmem:[#allocation2 + $0x17cc] sm:$0xf]
    %v4005 = vld [vmem:[#allocation2 + $0x17d0] sm:$0xf]
    %v4006 = vld [vmem:[#allocation2 + $0x17d4] sm:$0xf]
    %v4007 = vld [vmem:[#allocation2 + $0x17d8] sm:$0xf]
    %v4008 = vld [vmem:[#allocation2 + $0x17dc] sm:$0xf]
    %v4009 = vld [vmem:[#allocation2 + $0x17e0] sm:$0xf]
    %v4010 = vld [vmem:[#allocation2 + $0x17e4] sm:$0xf]
    %v4011 = vld [vmem:[#allocation2 + $0x17e8] sm:$0xf]
    %v4012 = vld [vmem:[#allocation2 + $0x17ec] sm:$0xf]
    %v4013 = vld [vmem:[#allocation2 + $0x17f0] sm:$0xf]
    %v4014 = vld [vmem:[#allocation2 + $0x17f4] sm:$0xf]
    %v4015 = vld [vmem:[#allocation2 + $0x17f8] sm:$0xf]
    %v4016 = vld [vmem:[#allocation2 + $0x17fc] sm:$0xf]
    %v5553 = vunpack.c.l.b16 %v2481
    %v5554 = vunpack.c.l.b16 %v2482
    %v5555 = vunpack.c.l.b16 %v2483
    %v5556 = vunpack.c.l.b16 %v2484
    %v5557 = vunpack.c.l.b16 %v2485
    %v5558 = vunpack.c.l.b16 %v2486
    %v5559 = vunpack.c.l.b16 %v2487
    %v5560 = vunpack.c.l.b16 %v2488
    %v5561 = vunpack.c.l.b16 %v2489
    %v5562 = vunpack.c.l.b16 %v2490
    %v5563 = vunpack.c.l.b16 %v2491
    %v5564 = vunpack.c.l.b16 %v2492
    %v5565 = vunpack.c.l.b16 %v2493
    %v5566 = vunpack.c.l.b16 %v2494
    %v5567 = vunpack.c.l.b16 %v2495
    %v5568 = vunpack.c.l.b16 %v2496
    %v5569 = vunpack.c.l.b16 %v2497
    %v5570 = vunpack.c.l.b16 %v2498
    %v5571 = vunpack.c.l.b16 %v2499
    %v5572 = vunpack.c.l.b16 %v2500
    %v5573 = vunpack.c.l.b16 %v2501
    %v5574 = vunpack.c.l.b16 %v2502
    %v5575 = vunpack.c.l.b16 %v2503
    %v5576 = vunpack.c.l.b16 %v2504
    %v5577 = vunpack.c.l.b16 %v2505
    %v5578 = vunpack.c.l.b16 %v2506
    %v5579 = vunpack.c.l.b16 %v2507
    %v5580 = vunpack.c.l.b16 %v2508
    %v5581 = vunpack.c.l.b16 %v2509
    %v5582 = vunpack.c.l.b16 %v2510
    %v5583 = vunpack.c.l.b16 %v2511
    %v5584 = vunpack.c.l.b16 %v2512
    %v5585 = vunpack.c.l.b16 %v2513
    %v5586 = vunpack.c.l.b16 %v2514
    %v5587 = vunpack.c.l.b16 %v2515
    %v5588 = vunpack.c.l.b16 %v2516
    %v5589 = vunpack.c.l.b16 %v2517
    %v5590 = vunpack.c.l.b16 %v2518
    %v5591 = vunpack.c.l.b16 %v2519
    %v5592 = vunpack.c.l.b16 %v2520
    %v5593 = vunpack.c.l.b16 %v2521
    %v5594 = vunpack.c.l.b16 %v2522
    %v5595 = vunpack.c.l.b16 %v2523
    %v5596 = vunpack.c.l.b16 %v2524
    %v5597 = vunpack.c.l.b16 %v2525
    %v5598 = vunpack.c.l.b16 %v2526
    %v5599 = vunpack.c.l.b16 %v2527
    %v5600 = vunpack.c.l.b16 %v2528
    %v5601 = vunpack.c.l.b16 %v2529
    %v5602 = vunpack.c.l.b16 %v2530
    %v5603 = vunpack.c.l.b16 %v2531
    %v5604 = vunpack.c.l.b16 %v2532
    %v5605 = vunpack.c.l.b16 %v2533
    %v5606 = vunpack.c.l.b16 %v2534
    %v5607 = vunpack.c.l.b16 %v2535
    %v5608 = vunpack.c.l.b16 %v2536
    %v5609 = vunpack.c.l.b16 %v2537
    %v5610 = vunpack.c.l.b16 %v2538
    %v5611 = vunpack.c.l.b16 %v2539
    %v5612 = vunpack.c.l.b16 %v2540
    %v5613 = vunpack.c.l.b16 %v2541
    %v5614 = vunpack.c.l.b16 %v2542
    %v5615 = vunpack.c.l.b16 %v2543
    %v5616 = vunpack.c.l.b16 %v2544
    %v5617 = vunpack.c.l.b16 %v2545
    %v5618 = vunpack.c.l.b16 %v2546
    %v5619 = vunpack.c.l.b16 %v2547
    %v5620 = vunpack.c.l.b16 %v2548
    %v5621 = vunpack.c.l.b16 %v2549
    %v5622 = vunpack.c.l.b16 %v2550
    %v5623 = vunpack.c.l.b16 %v2551
    %v5624 = vunpack.c.l.b16 %v2552
    %v5625 = vunpack.c.l.b16 %v2553
    %v5626 = vunpack.c.l.b16 %v2554
    %v5627 = vunpack.c.l.b16 %v2555
    %v5628 = vunpack.c.l.b16 %v2556
    %v5629 = vunpack.c.l.b16 %v2557
    %v5630 = vunpack.c.l.b16 %v2558
    %v5631 = vunpack.c.l.b16 %v2559
    %v5632 = vunpack.c.l.b16 %v2560
    %v5633 = vunpack.c.l.b16 %v2561
    %v5634 = vunpack.c.l.b16 %v2562
    %v5635 = vunpack.c.l.b16 %v2563
    %v5636 = vunpack.c.l.b16 %v2564
    %v5637 = vunpack.c.l.b16 %v2565
    %v5638 = vunpack.c.l.b16 %v2566
    %v5639 = vunpack.c.l.b16 %v2567
    %v5640 = vunpack.c.l.b16 %v2568
    %v5641 = vunpack.c.l.b16 %v2569
    %v5642 = vunpack.c.l.b16 %v2570
    %v5643 = vunpack.c.l.b16 %v2571
    %v5644 = vunpack.c.l.b16 %v2572
    %v5645 = vunpack.c.l.b16 %v2573
    %v5646 = vunpack.c.l.b16 %v2574
    %v5647 = vunpack.c.l.b16 %v2575
    %v5648 = vunpack.c.l.b16 %v2576
    %v5649 = vunpack.c.l.b16 %v2577
    %v5650 = vunpack.c.l.b16 %v2578
    %v5651 = vunpack.c.l.b16 %v2579
    %v5652 = vunpack.c.l.b16 %v2580
    %v5653 = vunpack.c.l.b16 %v2581
    %v5654 = vunpack.c.l.b16 %v2582
    %v5655 = vunpack.c.l.b16 %v2583
    %v5656 = vunpack.c.l.b16 %v2584
    %v5657 = vunpack.c.l.b16 %v2585
    %v5658 = vunpack.c.l.b16 %v2586
    %v5659 = vunpack.c.l.b16 %v2587
    %v5660 = vunpack.c.l.b16 %v2588
    %v5661 = vunpack.c.l.b16 %v2589
    %v5662 = vunpack.c.l.b16 %v2590
    %v5663 = vunpack.c.l.b16 %v2591
    %v5664 = vunpack.c.l.b16 %v2592
    %v5665 = vunpack.c.l.b16 %v2593
    %v5666 = vunpack.c.l.b16 %v2594
    %v5667 = vunpack.c.l.b16 %v2595
    %v5668 = vunpack.c.l.b16 %v2596
    %v5669 = vunpack.c.l.b16 %v2597
    %v5670 = vunpack.c.l.b16 %v2598
    %v5671 = vunpack.c.l.b16 %v2599
    %v5672 = vunpack.c.l.b16 %v2600
    %v5673 = vunpack.c.l.b16 %v2601
    %v5674 = vunpack.c.l.b16 %v2602
    %v5675 = vunpack.c.l.b16 %v2603
    %v5676 = vunpack.c.l.b16 %v2604
    %v5677 = vunpack.c.l.b16 %v2605
    %v5678 = vunpack.c.l.b16 %v2606
    %v5679 = vunpack.c.l.b16 %v2607
    %v5680 = vunpack.c.l.b16 %v2608
    %v5681 = vunpack.c.l.b16 %v2609
    %v5682 = vunpack.c.l.b16 %v2610
    %v5683 = vunpack.c.l.b16 %v2611
    %v5684 = vunpack.c.l.b16 %v2612
    %v5685 = vunpack.c.l.b16 %v2613
    %v5686 = vunpack.c.l.b16 %v2614
    %v5687 = vunpack.c.l.b16 %v2615
    %v5688 = vunpack.c.l.b16 %v2616
    %v5689 = vunpack.c.l.b16 %v2617
    %v5690 = vunpack.c.l.b16 %v2618
    %v5691 = vunpack.c.l.b16 %v2619
    %v5692 = vunpack.c.l.b16 %v2620
    %v5693 = vunpack.c.l.b16 %v2621
    %v5694 = vunpack.c.l.b16 %v2622
    %v5695 = vunpack.c.l.b16 %v2623
    %v5696 = vunpack.c.l.b16 %v2624
    %v5697 = vunpack.c.l.b16 %v2625
    %v5698 = vunpack.c.l.b16 %v2626
    %v5699 = vunpack.c.l.b16 %v2627
    %v5700 = vunpack.c.l.b16 %v2628
    %v5701 = vunpack.c.l.b16 %v2629
    %v5702 = vunpack.c.l.b16 %v2630
    %v5703 = vunpack.c.l.b16 %v2631
    %v5704 = vunpack.c.l.b16 %v2632
    %v5705 = vunpack.c.l.b16 %v2633
    %v5706 = vunpack.c.l.b16 %v2634
    %v5707 = vunpack.c.l.b16 %v2635
    %v5708 = vunpack.c.l.b16 %v2636
    %v5709 = vunpack.c.l.b16 %v2637
    %v5710 = vunpack.c.l.b16 %v2638
    %v5711 = vunpack.c.l.b16 %v2639
    %v5712 = vunpack.c.l.b16 %v2640
    %v5713 = vunpack.c.l.b16 %v2641
    %v5714 = vunpack.c.l.b16 %v2642
    %v5715 = vunpack.c.l.b16 %v2643
    %v5716 = vunpack.c.l.b16 %v2644
    %v5717 = vunpack.c.l.b16 %v2645
    %v5718 = vunpack.c.l.b16 %v2646
    %v5719 = vunpack.c.l.b16 %v2647
    %v5720 = vunpack.c.l.b16 %v2648
    %v5721 = vunpack.c.l.b16 %v2649
    %v5722 = vunpack.c.l.b16 %v2650
    %v5723 = vunpack.c.l.b16 %v2651
    %v5724 = vunpack.c.l.b16 %v2652
    %v5725 = vunpack.c.l.b16 %v2653
    %v5726 = vunpack.c.l.b16 %v2654
    %v5727 = vunpack.c.l.b16 %v2655
    %v5728 = vunpack.c.l.b16 %v2656
    %v5729 = vunpack.c.l.b16 %v2657
    %v5730 = vunpack.c.l.b16 %v2658
    %v5731 = vunpack.c.l.b16 %v2659
    %v5732 = vunpack.c.l.b16 %v2660
    %v5733 = vunpack.c.l.b16 %v2661
    %v5734 = vunpack.c.l.b16 %v2662
    %v5735 = vunpack.c.l.b16 %v2663
    %v5736 = vunpack.c.l.b16 %v2664
    %v5737 = vunpack.c.l.b16 %v2665
    %v5738 = vunpack.c.l.b16 %v2666
    %v5739 = vunpack.c.l.b16 %v2667
    %v5740 = vunpack.c.l.b16 %v2668
    %v5741 = vunpack.c.l.b16 %v2669
    %v5742 = vunpack.c.l.b16 %v2670
    %v5743 = vunpack.c.l.b16 %v2671
    %v5744 = vunpack.c.l.b16 %v2672
    %v5745 = vunpack.c.l.b16 %v2673
    %v5746 = vunpack.c.l.b16 %v2674
    %v5747 = vunpack.c.l.b16 %v2675
    %v5748 = vunpack.c.l.b16 %v2676
    %v5749 = vunpack.c.l.b16 %v2677
    %v5750 = vunpack.c.l.b16 %v2678
    %v5751 = vunpack.c.l.b16 %v2679
    %v5752 = vunpack.c.l.b16 %v2680
    %v5753 = vunpack.c.l.b16 %v2681
    %v5754 = vunpack.c.l.b16 %v2682
    %v5755 = vunpack.c.l.b16 %v2683
    %v5756 = vunpack.c.l.b16 %v2684
    %v5757 = vunpack.c.l.b16 %v2685
    %v5758 = vunpack.c.l.b16 %v2686
    %v5759 = vunpack.c.l.b16 %v2687
    %v5760 = vunpack.c.l.b16 %v2688
    %v5761 = vunpack.c.l.b16 %v2689
    %v5762 = vunpack.c.l.b16 %v2690
    %v5763 = vunpack.c.l.b16 %v2691
    %v5764 = vunpack.c.l.b16 %v2692
    %v5765 = vunpack.c.l.b16 %v2693
    %v5766 = vunpack.c.l.b16 %v2694
    %v5767 = vunpack.c.l.b16 %v2695
    %v5768 = vunpack.c.l.b16 %v2696
    %v5769 = vunpack.c.l.b16 %v2697
    %v5770 = vunpack.c.l.b16 %v2698
    %v5771 = vunpack.c.l.b16 %v2699
    %v5772 = vunpack.c.l.b16 %v2700
    %v5773 = vunpack.c.l.b16 %v2701
    %v5774 = vunpack.c.l.b16 %v2702
    %v5775 = vunpack.c.l.b16 %v2703
    %v5776 = vunpack.c.l.b16 %v2704
    %v5777 = vunpack.c.l.b16 %v2705
    %v5778 = vunpack.c.l.b16 %v2706
    %v5779 = vunpack.c.l.b16 %v2707
    %v5780 = vunpack.c.l.b16 %v2708
    %v5781 = vunpack.c.l.b16 %v2709
    %v5782 = vunpack.c.l.b16 %v2710
    %v5783 = vunpack.c.l.b16 %v2711
    %v5784 = vunpack.c.l.b16 %v2712
    %v5785 = vunpack.c.l.b16 %v2713
    %v5786 = vunpack.c.l.b16 %v2714
    %v5787 = vunpack.c.l.b16 %v2715
    %v5788 = vunpack.c.l.b16 %v2716
    %v5789 = vunpack.c.l.b16 %v2717
    %v5790 = vunpack.c.l.b16 %v2718
    %v5791 = vunpack.c.l.b16 %v2719
    %v5792 = vunpack.c.l.b16 %v2720
    %v5793 = vunpack.c.l.b16 %v2721
    %v5794 = vunpack.c.l.b16 %v2722
    %v5795 = vunpack.c.l.b16 %v2723
    %v5796 = vunpack.c.l.b16 %v2724
    %v5797 = vunpack.c.l.b16 %v2725
    %v5798 = vunpack.c.l.b16 %v2726
    %v5799 = vunpack.c.l.b16 %v2727
    %v5800 = vunpack.c.l.b16 %v2728
    %v5801 = vunpack.c.l.b16 %v2729
    %v5802 = vunpack.c.l.b16 %v2730
    %v5803 = vunpack.c.l.b16 %v2731
    %v5804 = vunpack.c.l.b16 %v2732
    %v5805 = vunpack.c.l.b16 %v2733
    %v5806 = vunpack.c.l.b16 %v2734
    %v5807 = vunpack.c.l.b16 %v2735
    %v5808 = vunpack.c.l.b16 %v2736
    %v5809 = vunpack.c.l.b16 %v2737
    %v5810 = vunpack.c.l.b16 %v2738
    %v5811 = vunpack.c.l.b16 %v2739
    %v5812 = vunpack.c.l.b16 %v2740
    %v5813 = vunpack.c.l.b16 %v2741
    %v5814 = vunpack.c.l.b16 %v2742
    %v5815 = vunpack.c.l.b16 %v2743
    %v5816 = vunpack.c.l.b16 %v2744
    %v5817 = vunpack.c.l.b16 %v2745
    %v5818 = vunpack.c.l.b16 %v2746
    %v5819 = vunpack.c.l.b16 %v2747
    %v5820 = vunpack.c.l.b16 %v2748
    %v5821 = vunpack.c.l.b16 %v2749
    %v5822 = vunpack.c.l.b16 %v2750
    %v5823 = vunpack.c.l.b16 %v2751
    %v5824 = vunpack.c.l.b16 %v2752
    %v5825 = vunpack.c.l.b16 %v2753
    %v5826 = vunpack.c.l.b16 %v2754
    %v5827 = vunpack.c.l.b16 %v2755
    %v5828 = vunpack.c.l.b16 %v2756
    %v5829 = vunpack.c.l.b16 %v2757
    %v5830 = vunpack.c.l.b16 %v2758
    %v5831 = vunpack.c.l.b16 %v2759
    %v5832 = vunpack.c.l.b16 %v2760
    %v5833 = vunpack.c.l.b16 %v2761
    %v5834 = vunpack.c.l.b16 %v2762
    %v5835 = vunpack.c.l.b16 %v2763
    %v5836 = vunpack.c.l.b16 %v2764
    %v5837 = vunpack.c.l.b16 %v2765
    %v5838 = vunpack.c.l.b16 %v2766
    %v5839 = vunpack.c.l.b16 %v2767
    %v5840 = vunpack.c.l.b16 %v2768
    %v5841 = vunpack.c.l.b16 %v2769
    %v5842 = vunpack.c.l.b16 %v2770
    %v5843 = vunpack.c.l.b16 %v2771
    %v5844 = vunpack.c.l.b16 %v2772
    %v5845 = vunpack.c.l.b16 %v2773
    %v5846 = vunpack.c.l.b16 %v2774
    %v5847 = vunpack.c.l.b16 %v2775
    %v5848 = vunpack.c.l.b16 %v2776
    %v5849 = vunpack.c.l.b16 %v2777
    %v5850 = vunpack.c.l.b16 %v2778
    %v5851 = vunpack.c.l.b16 %v2779
    %v5852 = vunpack.c.l.b16 %v2780
    %v5853 = vunpack.c.l.b16 %v2781
    %v5854 = vunpack.c.l.b16 %v2782
    %v5855 = vunpack.c.l.b16 %v2783
    %v5856 = vunpack.c.l.b16 %v2784
    %v5857 = vunpack.c.l.b16 %v2785
    %v5858 = vunpack.c.l.b16 %v2786
    %v5859 = vunpack.c.l.b16 %v2787
    %v5860 = vunpack.c.l.b16 %v2788
    %v5861 = vunpack.c.l.b16 %v2789
    %v5862 = vunpack.c.l.b16 %v2790
    %v5863 = vunpack.c.l.b16 %v2791
    %v5864 = vunpack.c.l.b16 %v2792
    %v5865 = vunpack.c.l.b16 %v2793
    %v5866 = vunpack.c.l.b16 %v2794
    %v5867 = vunpack.c.l.b16 %v2795
    %v5868 = vunpack.c.l.b16 %v2796
    %v5869 = vunpack.c.l.b16 %v2797
    %v5870 = vunpack.c.l.b16 %v2798
    %v5871 = vunpack.c.l.b16 %v2799
    %v5872 = vunpack.c.l.b16 %v2800
    %v5873 = vunpack.c.l.b16 %v2801
    %v5874 = vunpack.c.l.b16 %v2802
    %v5875 = vunpack.c.l.b16 %v2803
    %v5876 = vunpack.c.l.b16 %v2804
    %v5877 = vunpack.c.l.b16 %v2805
    %v5878 = vunpack.c.l.b16 %v2806
    %v5879 = vunpack.c.l.b16 %v2807
    %v5880 = vunpack.c.l.b16 %v2808
    %v5881 = vunpack.c.l.b16 %v2809
    %v5882 = vunpack.c.l.b16 %v2810
    %v5883 = vunpack.c.l.b16 %v2811
    %v5884 = vunpack.c.l.b16 %v2812
    %v5885 = vunpack.c.l.b16 %v2813
    %v5886 = vunpack.c.l.b16 %v2814
    %v5887 = vunpack.c.l.b16 %v2815
    %v5888 = vunpack.c.l.b16 %v2816
    %v5889 = vunpack.c.l.b16 %v2817
    %v5890 = vunpack.c.l.b16 %v2818
    %v5891 = vunpack.c.l.b16 %v2819
    %v5892 = vunpack.c.l.b16 %v2820
    %v5893 = vunpack.c.l.b16 %v2821
    %v5894 = vunpack.c.l.b16 %v2822
    %v5895 = vunpack.c.l.b16 %v2823
    %v5896 = vunpack.c.l.b16 %v2824
    %v5897 = vunpack.c.l.b16 %v2825
    %v5898 = vunpack.c.l.b16 %v2826
    %v5899 = vunpack.c.l.b16 %v2827
    %v5900 = vunpack.c.l.b16 %v2828
    %v5901 = vunpack.c.l.b16 %v2829
    %v5902 = vunpack.c.l.b16 %v2830
    %v5903 = vunpack.c.l.b16 %v2831
    %v5904 = vunpack.c.l.b16 %v2832
    %v5905 = vunpack.c.l.b16 %v2833
    %v5906 = vunpack.c.l.b16 %v2834
    %v5907 = vunpack.c.l.b16 %v2835
    %v5908 = vunpack.c.l.b16 %v2836
    %v5909 = vunpack.c.l.b16 %v2837
    %v5910 = vunpack.c.l.b16 %v2838
    %v5911 = vunpack.c.l.b16 %v2839
    %v5912 = vunpack.c.l.b16 %v2840
    %v5913 = vunpack.c.l.b16 %v2841
    %v5914 = vunpack.c.l.b16 %v2842
    %v5915 = vunpack.c.l.b16 %v2843
    %v5916 = vunpack.c.l.b16 %v2844
    %v5917 = vunpack.c.l.b16 %v2845
    %v5918 = vunpack.c.l.b16 %v2846
    %v5919 = vunpack.c.l.b16 %v2847
    %v5920 = vunpack.c.l.b16 %v2848
    %v5921 = vunpack.c.l.b16 %v2849
    %v5922 = vunpack.c.l.b16 %v2850
    %v5923 = vunpack.c.l.b16 %v2851
    %v5924 = vunpack.c.l.b16 %v2852
    %v5925 = vunpack.c.l.b16 %v2853
    %v5926 = vunpack.c.l.b16 %v2854
    %v5927 = vunpack.c.l.b16 %v2855
    %v5928 = vunpack.c.l.b16 %v2856
    %v5929 = vunpack.c.l.b16 %v2857
    %v5930 = vunpack.c.l.b16 %v2858
    %v5931 = vunpack.c.l.b16 %v2859
    %v5932 = vunpack.c.l.b16 %v2860
    %v5933 = vunpack.c.l.b16 %v2861
    %v5934 = vunpack.c.l.b16 %v2862
    %v5935 = vunpack.c.l.b16 %v2863
    %v5936 = vunpack.c.l.b16 %v2864
    %v5937 = vunpack.c.l.b16 %v2865
    %v5938 = vunpack.c.l.b16 %v2866
    %v5939 = vunpack.c.l.b16 %v2867
    %v5940 = vunpack.c.l.b16 %v2868
    %v5941 = vunpack.c.l.b16 %v2869
    %v5942 = vunpack.c.l.b16 %v2870
    %v5943 = vunpack.c.l.b16 %v2871
    %v5944 = vunpack.c.l.b16 %v2872
    %v5945 = vunpack.c.l.b16 %v2873
    %v5946 = vunpack.c.l.b16 %v2874
    %v5947 = vunpack.c.l.b16 %v2875
    %v5948 = vunpack.c.l.b16 %v2876
    %v5949 = vunpack.c.l.b16 %v2877
    %v5950 = vunpack.c.l.b16 %v2878
    %v5951 = vunpack.c.l.b16 %v2879
    %v5952 = vunpack.c.l.b16 %v2880
    %v5953 = vunpack.c.l.b16 %v2881
    %v5954 = vunpack.c.l.b16 %v2882
    %v5955 = vunpack.c.l.b16 %v2883
    %v5956 = vunpack.c.l.b16 %v2884
    %v5957 = vunpack.c.l.b16 %v2885
    %v5958 = vunpack.c.l.b16 %v2886
    %v5959 = vunpack.c.l.b16 %v2887
    %v5960 = vunpack.c.l.b16 %v2888
    %v5961 = vunpack.c.l.b16 %v2889
    %v5962 = vunpack.c.l.b16 %v2890
    %v5963 = vunpack.c.l.b16 %v2891
    %v5964 = vunpack.c.l.b16 %v2892
    %v5965 = vunpack.c.l.b16 %v2893
    %v5966 = vunpack.c.l.b16 %v2894
    %v5967 = vunpack.c.l.b16 %v2895
    %v5968 = vunpack.c.l.b16 %v2896
    %v5969 = vunpack.c.l.b16 %v2897
    %v5970 = vunpack.c.l.b16 %v2898
    %v5971 = vunpack.c.l.b16 %v2899
    %v5972 = vunpack.c.l.b16 %v2900
    %v5973 = vunpack.c.l.b16 %v2901
    %v5974 = vunpack.c.l.b16 %v2902
    %v5975 = vunpack.c.l.b16 %v2903
    %v5976 = vunpack.c.l.b16 %v2904
    %v5977 = vunpack.c.l.b16 %v2905
    %v5978 = vunpack.c.l.b16 %v2906
    %v5979 = vunpack.c.l.b16 %v2907
    %v5980 = vunpack.c.l.b16 %v2908
    %v5981 = vunpack.c.l.b16 %v2909
    %v5982 = vunpack.c.l.b16 %v2910
    %v5983 = vunpack.c.l.b16 %v2911
    %v5984 = vunpack.c.l.b16 %v2912
    %v5985 = vunpack.c.l.b16 %v2913
    %v5986 = vunpack.c.l.b16 %v2914
    %v5987 = vunpack.c.l.b16 %v2915
    %v5988 = vunpack.c.l.b16 %v2916
    %v5989 = vunpack.c.l.b16 %v2917
    %v5990 = vunpack.c.l.b16 %v2918
    %v5991 = vunpack.c.l.b16 %v2919
    %v5992 = vunpack.c.l.b16 %v2920
    %v5993 = vunpack.c.l.b16 %v2921
    %v5994 = vunpack.c.l.b16 %v2922
    %v5995 = vunpack.c.l.b16 %v2923
    %v5996 = vunpack.c.l.b16 %v2924
    %v5997 = vunpack.c.l.b16 %v2925
    %v5998 = vunpack.c.l.b16 %v2926
    %v5999 = vunpack.c.l.b16 %v2927
    %v6000 = vunpack.c.l.b16 %v2928
    %v6001 = vunpack.c.l.b16 %v2929
    %v6002 = vunpack.c.l.b16 %v2930
    %v6003 = vunpack.c.l.b16 %v2931
    %v6004 = vunpack.c.l.b16 %v2932
    %v6005 = vunpack.c.l.b16 %v2933
    %v6006 = vunpack.c.l.b16 %v2934
    %v6007 = vunpack.c.l.b16 %v2935
    %v6008 = vunpack.c.l.b16 %v2936
    %v6009 = vunpack.c.l.b16 %v2937
    %v6010 = vunpack.c.l.b16 %v2938
    %v6011 = vunpack.c.l.b16 %v2939
    %v6012 = vunpack.c.l.b16 %v2940
    %v6013 = vunpack.c.l.b16 %v2941
    %v6014 = vunpack.c.l.b16 %v2942
    %v6015 = vunpack.c.l.b16 %v2943
    %v6016 = vunpack.c.l.b16 %v2944
    %v6017 = vunpack.c.l.b16 %v2945
    %v6018 = vunpack.c.l.b16 %v2946
    %v6019 = vunpack.c.l.b16 %v2947
    %v6020 = vunpack.c.l.b16 %v2948
    %v6021 = vunpack.c.l.b16 %v2949
    %v6022 = vunpack.c.l.b16 %v2950
    %v6023 = vunpack.c.l.b16 %v2951
    %v6024 = vunpack.c.l.b16 %v2952
    %v6025 = vunpack.c.l.b16 %v2953
    %v6026 = vunpack.c.l.b16 %v2954
    %v6027 = vunpack.c.l.b16 %v2955
    %v6028 = vunpack.c.l.b16 %v2956
    %v6029 = vunpack.c.l.b16 %v2957
    %v6030 = vunpack.c.l.b16 %v2958
    %v6031 = vunpack.c.l.b16 %v2959
    %v6032 = vunpack.c.l.b16 %v2960
    %v6033 = vunpack.c.l.b16 %v2961
    %v6034 = vunpack.c.l.b16 %v2962
    %v6035 = vunpack.c.l.b16 %v2963
    %v6036 = vunpack.c.l.b16 %v2964
    %v6037 = vunpack.c.l.b16 %v2965
    %v6038 = vunpack.c.l.b16 %v2966
    %v6039 = vunpack.c.l.b16 %v2967
    %v6040 = vunpack.c.l.b16 %v2968
    %v6041 = vunpack.c.l.b16 %v2969
    %v6042 = vunpack.c.l.b16 %v2970
    %v6043 = vunpack.c.l.b16 %v2971
    %v6044 = vunpack.c.l.b16 %v2972
    %v6045 = vunpack.c.l.b16 %v2973
    %v6046 = vunpack.c.l.b16 %v2974
    %v6047 = vunpack.c.l.b16 %v2975
    %v6048 = vunpack.c.l.b16 %v2976
    %v6049 = vunpack.c.l.b16 %v2977
    %v6050 = vunpack.c.l.b16 %v2978
    %v6051 = vunpack.c.l.b16 %v2979
    %v6052 = vunpack.c.l.b16 %v2980
    %v6053 = vunpack.c.l.b16 %v2981
    %v6054 = vunpack.c.l.b16 %v2982
    %v6055 = vunpack.c.l.b16 %v2983
    %v6056 = vunpack.c.l.b16 %v2984
    %v6057 = vunpack.c.l.b16 %v2985
    %v6058 = vunpack.c.l.b16 %v2986
    %v6059 = vunpack.c.l.b16 %v2987
    %v6060 = vunpack.c.l.b16 %v2988
    %v6061 = vunpack.c.l.b16 %v2989
    %v6062 = vunpack.c.l.b16 %v2990
    %v6063 = vunpack.c.l.b16 %v2991
    %v6064 = vunpack.c.l.b16 %v2992
    %v6065 = vunpack.c.l.b16 %v2993
    %v6066 = vunpack.c.l.b16 %v2994
    %v6067 = vunpack.c.l.b16 %v2995
    %v6068 = vunpack.c.l.b16 %v2996
    %v6069 = vunpack.c.l.b16 %v2997
    %v6070 = vunpack.c.l.b16 %v2998
    %v6071 = vunpack.c.l.b16 %v2999
    %v6072 = vunpack.c.l.b16 %v3000
    %v6073 = vunpack.c.l.b16 %v3001
    %v6074 = vunpack.c.l.b16 %v3002
    %v6075 = vunpack.c.l.b16 %v3003
    %v6076 = vunpack.c.l.b16 %v3004
    %v6077 = vunpack.c.l.b16 %v3005
    %v6078 = vunpack.c.l.b16 %v3006
    %v6079 = vunpack.c.l.b16 %v3007
    %v6080 = vunpack.c.l.b16 %v3008
    %v6081 = vunpack.c.l.b16 %v3009
    %v6082 = vunpack.c.l.b16 %v3010
    %v6083 = vunpack.c.l.b16 %v3011
    %v6084 = vunpack.c.l.b16 %v3012
    %v6085 = vunpack.c.l.b16 %v3013
    %v6086 = vunpack.c.l.b16 %v3014
    %v6087 = vunpack.c.l.b16 %v3015
    %v6088 = vunpack.c.l.b16 %v3016
    %v6089 = vunpack.c.l.b16 %v3017
    %v6090 = vunpack.c.l.b16 %v3018
    %v6091 = vunpack.c.l.b16 %v3019
    %v6092 = vunpack.c.l.b16 %v3020
    %v6093 = vunpack.c.l.b16 %v3021
    %v6094 = vunpack.c.l.b16 %v3022
    %v6095 = vunpack.c.l.b16 %v3023
    %v6096 = vunpack.c.l.b16 %v3024
    %v6097 = vunpack.c.l.b16 %v3025
    %v6098 = vunpack.c.l.b16 %v3026
    %v6099 = vunpack.c.l.b16 %v3027
    %v6100 = vunpack.c.l.b16 %v3028
    %v6101 = vunpack.c.l.b16 %v3029
    %v6102 = vunpack.c.l.b16 %v3030
    %v6103 = vunpack.c.l.b16 %v3031
    %v6104 = vunpack.c.l.b16 %v3032
    %v6105 = vunpack.c.l.b16 %v3033
    %v6106 = vunpack.c.l.b16 %v3034
    %v6107 = vunpack.c.l.b16 %v3035
    %v6108 = vunpack.c.l.b16 %v3036
    %v6109 = vunpack.c.l.b16 %v3037
    %v6110 = vunpack.c.l.b16 %v3038
    %v6111 = vunpack.c.l.b16 %v3039
    %v6112 = vunpack.c.l.b16 %v3040
    %v6113 = vunpack.c.l.b16 %v3041
    %v6114 = vunpack.c.l.b16 %v3042
    %v6115 = vunpack.c.l.b16 %v3043
    %v6116 = vunpack.c.l.b16 %v3044
    %v6117 = vunpack.c.l.b16 %v3045
    %v6118 = vunpack.c.l.b16 %v3046
    %v6119 = vunpack.c.l.b16 %v3047
    %v6120 = vunpack.c.l.b16 %v3048
    %v6121 = vunpack.c.l.b16 %v3049
    %v6122 = vunpack.c.l.b16 %v3050
    %v6123 = vunpack.c.l.b16 %v3051
    %v6124 = vunpack.c.l.b16 %v3052
    %v6125 = vunpack.c.l.b16 %v3053
    %v6126 = vunpack.c.l.b16 %v3054
    %v6127 = vunpack.c.l.b16 %v3055
    %v6128 = vunpack.c.l.b16 %v3056
    %v6129 = vunpack.c.l.b16 %v3057
    %v6130 = vunpack.c.l.b16 %v3058
    %v6131 = vunpack.c.l.b16 %v3059
    %v6132 = vunpack.c.l.b16 %v3060
    %v6133 = vunpack.c.l.b16 %v3061
    %v6134 = vunpack.c.l.b16 %v3062
    %v6135 = vunpack.c.l.b16 %v3063
    %v6136 = vunpack.c.l.b16 %v3064
    %v6137 = vunpack.c.l.b16 %v3065
    %v6138 = vunpack.c.l.b16 %v3066
    %v6139 = vunpack.c.l.b16 %v3067
    %v6140 = vunpack.c.l.b16 %v3068
    %v6141 = vunpack.c.l.b16 %v3069
    %v6142 = vunpack.c.l.b16 %v3070
    %v6143 = vunpack.c.l.b16 %v3071
    %v6144 = vunpack.c.l.b16 %v3072
    %v6145 = vunpack.c.l.b16 %v3073
    %v6146 = vunpack.c.l.b16 %v3074
    %v6147 = vunpack.c.l.b16 %v3075
    %v6148 = vunpack.c.l.b16 %v3076
    %v6149 = vunpack.c.l.b16 %v3077
    %v6150 = vunpack.c.l.b16 %v3078
    %v6151 = vunpack.c.l.b16 %v3079
    %v6152 = vunpack.c.l.b16 %v3080
    %v6153 = vunpack.c.l.b16 %v3081
    %v6154 = vunpack.c.l.b16 %v3082
    %v6155 = vunpack.c.l.b16 %v3083
    %v6156 = vunpack.c.l.b16 %v3084
    %v6157 = vunpack.c.l.b16 %v3085
    %v6158 = vunpack.c.l.b16 %v3086
    %v6159 = vunpack.c.l.b16 %v3087
    %v6160 = vunpack.c.l.b16 %v3088
    %v6161 = vunpack.c.l.b16 %v3089
    %v6162 = vunpack.c.l.b16 %v3090
    %v6163 = vunpack.c.l.b16 %v3091
    %v6164 = vunpack.c.l.b16 %v3092
    %v6165 = vunpack.c.l.b16 %v3093
    %v6166 = vunpack.c.l.b16 %v3094
    %v6167 = vunpack.c.l.b16 %v3095
    %v6168 = vunpack.c.l.b16 %v3096
    %v6169 = vunpack.c.l.b16 %v3097
    %v6170 = vunpack.c.l.b16 %v3098
    %v6171 = vunpack.c.l.b16 %v3099
    %v6172 = vunpack.c.l.b16 %v3100
    %v6173 = vunpack.c.l.b16 %v3101
    %v6174 = vunpack.c.l.b16 %v3102
    %v6175 = vunpack.c.l.b16 %v3103
    %v6176 = vunpack.c.l.b16 %v3104
    %v6177 = vunpack.c.l.b16 %v3105
    %v6178 = vunpack.c.l.b16 %v3106
    %v6179 = vunpack.c.l.b16 %v3107
    %v6180 = vunpack.c.l.b16 %v3108
    %v6181 = vunpack.c.l.b16 %v3109
    %v6182 = vunpack.c.l.b16 %v3110
    %v6183 = vunpack.c.l.b16 %v3111
    %v6184 = vunpack.c.l.b16 %v3112
    %v6185 = vunpack.c.l.b16 %v3113
    %v6186 = vunpack.c.l.b16 %v3114
    %v6187 = vunpack.c.l.b16 %v3115
    %v6188 = vunpack.c.l.b16 %v3116
    %v6189 = vunpack.c.l.b16 %v3117
    %v6190 = vunpack.c.l.b16 %v3118
    %v6191 = vunpack.c.l.b16 %v3119
    %v6192 = vunpack.c.l.b16 %v3120
    %v6193 = vunpack.c.l.b16 %v3121
    %v6194 = vunpack.c.l.b16 %v3122
    %v6195 = vunpack.c.l.b16 %v3123
    %v6196 = vunpack.c.l.b16 %v3124
    %v6197 = vunpack.c.l.b16 %v3125
    %v6198 = vunpack.c.l.b16 %v3126
    %v6199 = vunpack.c.l.b16 %v3127
    %v6200 = vunpack.c.l.b16 %v3128
    %v6201 = vunpack.c.l.b16 %v3129
    %v6202 = vunpack.c.l.b16 %v3130
    %v6203 = vunpack.c.l.b16 %v3131
    %v6204 = vunpack.c.l.b16 %v3132
    %v6205 = vunpack.c.l.b16 %v3133
    %v6206 = vunpack.c.l.b16 %v3134
    %v6207 = vunpack.c.l.b16 %v3135
    %v6208 = vunpack.c.l.b16 %v3136
    %v6209 = vunpack.c.l.b16 %v3137
    %v6210 = vunpack.c.l.b16 %v3138
    %v6211 = vunpack.c.l.b16 %v3139
    %v6212 = vunpack.c.l.b16 %v3140
    %v6213 = vunpack.c.l.b16 %v3141
    %v6214 = vunpack.c.l.b16 %v3142
    %v6215 = vunpack.c.l.b16 %v3143
    %v6216 = vunpack.c.l.b16 %v3144
    %v6217 = vunpack.c.l.b16 %v3145
    %v6218 = vunpack.c.l.b16 %v3146
    %v6219 = vunpack.c.l.b16 %v3147
    %v6220 = vunpack.c.l.b16 %v3148
    %v6221 = vunpack.c.l.b16 %v3149
    %v6222 = vunpack.c.l.b16 %v3150
    %v6223 = vunpack.c.l.b16 %v3151
    %v6224 = vunpack.c.l.b16 %v3152
    %v6225 = vunpack.c.l.b16 %v3153
    %v6226 = vunpack.c.l.b16 %v3154
    %v6227 = vunpack.c.l.b16 %v3155
    %v6228 = vunpack.c.l.b16 %v3156
    %v6229 = vunpack.c.l.b16 %v3157
    %v6230 = vunpack.c.l.b16 %v3158
    %v6231 = vunpack.c.l.b16 %v3159
    %v6232 = vunpack.c.l.b16 %v3160
    %v6233 = vunpack.c.l.b16 %v3161
    %v6234 = vunpack.c.l.b16 %v3162
    %v6235 = vunpack.c.l.b16 %v3163
    %v6236 = vunpack.c.l.b16 %v3164
    %v6237 = vunpack.c.l.b16 %v3165
    %v6238 = vunpack.c.l.b16 %v3166
    %v6239 = vunpack.c.l.b16 %v3167
    %v6240 = vunpack.c.l.b16 %v3168
    %v6241 = vunpack.c.l.b16 %v3169
    %v6242 = vunpack.c.l.b16 %v3170
    %v6243 = vunpack.c.l.b16 %v3171
    %v6244 = vunpack.c.l.b16 %v3172
    %v6245 = vunpack.c.l.b16 %v3173
    %v6246 = vunpack.c.l.b16 %v3174
    %v6247 = vunpack.c.l.b16 %v3175
    %v6248 = vunpack.c.l.b16 %v3176
    %v6249 = vunpack.c.l.b16 %v3177
    %v6250 = vunpack.c.l.b16 %v3178
    %v6251 = vunpack.c.l.b16 %v3179
    %v6252 = vunpack.c.l.b16 %v3180
    %v6253 = vunpack.c.l.b16 %v3181
    %v6254 = vunpack.c.l.b16 %v3182
    %v6255 = vunpack.c.l.b16 %v3183
    %v6256 = vunpack.c.l.b16 %v3184
    %v6257 = vunpack.c.l.b16 %v3185
    %v6258 = vunpack.c.l.b16 %v3186
    %v6259 = vunpack.c.l.b16 %v3187
    %v6260 = vunpack.c.l.b16 %v3188
    %v6261 = vunpack.c.l.b16 %v3189
    %v6262 = vunpack.c.l.b16 %v3190
    %v6263 = vunpack.c.l.b16 %v3191
    %v6264 = vunpack.c.l.b16 %v3192
    %v6265 = vunpack.c.l.b16 %v3193
    %v6266 = vunpack.c.l.b16 %v3194
    %v6267 = vunpack.c.l.b16 %v3195
    %v6268 = vunpack.c.l.b16 %v3196
    %v6269 = vunpack.c.l.b16 %v3197
    %v6270 = vunpack.c.l.b16 %v3198
    %v6271 = vunpack.c.l.b16 %v3199
    %v6272 = vunpack.c.l.b16 %v3200
    %v6273 = vunpack.c.l.b16 %v3201
    %v6274 = vunpack.c.l.b16 %v3202
    %v6275 = vunpack.c.l.b16 %v3203
    %v6276 = vunpack.c.l.b16 %v3204
    %v6277 = vunpack.c.l.b16 %v3205
    %v6278 = vunpack.c.l.b16 %v3206
    %v6279 = vunpack.c.l.b16 %v3207
    %v6280 = vunpack.c.l.b16 %v3208
    %v6281 = vunpack.c.l.b16 %v3209
    %v6282 = vunpack.c.l.b16 %v3210
    %v6283 = vunpack.c.l.b16 %v3211
    %v6284 = vunpack.c.l.b16 %v3212
    %v6285 = vunpack.c.l.b16 %v3213
    %v6286 = vunpack.c.l.b16 %v3214
    %v6287 = vunpack.c.l.b16 %v3215
    %v6288 = vunpack.c.l.b16 %v3216
    %v6289 = vunpack.c.l.b16 %v3217
    %v6290 = vunpack.c.l.b16 %v3218
    %v6291 = vunpack.c.l.b16 %v3219
    %v6292 = vunpack.c.l.b16 %v3220
    %v6293 = vunpack.c.l.b16 %v3221
    %v6294 = vunpack.c.l.b16 %v3222
    %v6295 = vunpack.c.l.b16 %v3223
    %v6296 = vunpack.c.l.b16 %v3224
    %v6297 = vunpack.c.l.b16 %v3225
    %v6298 = vunpack.c.l.b16 %v3226
    %v6299 = vunpack.c.l.b16 %v3227
    %v6300 = vunpack.c.l.b16 %v3228
    %v6301 = vunpack.c.l.b16 %v3229
    %v6302 = vunpack.c.l.b16 %v3230
    %v6303 = vunpack.c.l.b16 %v3231
    %v6304 = vunpack.c.l.b16 %v3232
    %v6305 = vunpack.c.l.b16 %v3233
    %v6306 = vunpack.c.l.b16 %v3234
    %v6307 = vunpack.c.l.b16 %v3235
    %v6308 = vunpack.c.l.b16 %v3236
    %v6309 = vunpack.c.l.b16 %v3237
    %v6310 = vunpack.c.l.b16 %v3238
    %v6311 = vunpack.c.l.b16 %v3239
    %v6312 = vunpack.c.l.b16 %v3240
    %v6313 = vunpack.c.l.b16 %v3241
    %v6314 = vunpack.c.l.b16 %v3242
    %v6315 = vunpack.c.l.b16 %v3243
    %v6316 = vunpack.c.l.b16 %v3244
    %v6317 = vunpack.c.l.b16 %v3245
    %v6318 = vunpack.c.l.b16 %v3246
    %v6319 = vunpack.c.l.b16 %v3247
    %v6320 = vunpack.c.l.b16 %v3248
    %v6321 = vunpack.c.l.b16 %v3249
    %v6322 = vunpack.c.l.b16 %v3250
    %v6323 = vunpack.c.l.b16 %v3251
    %v6324 = vunpack.c.l.b16 %v3252
    %v6325 = vunpack.c.l.b16 %v3253
    %v6326 = vunpack.c.l.b16 %v3254
    %v6327 = vunpack.c.l.b16 %v3255
    %v6328 = vunpack.c.l.b16 %v3256
    %v6329 = vunpack.c.l.b16 %v3257
    %v6330 = vunpack.c.l.b16 %v3258
    %v6331 = vunpack.c.l.b16 %v3259
    %v6332 = vunpack.c.l.b16 %v3260
    %v6333 = vunpack.c.l.b16 %v3261
    %v6334 = vunpack.c.l.b16 %v3262
    %v6335 = vunpack.c.l.b16 %v3263
    %v6336 = vunpack.c.l.b16 %v3264
    %v6337 = vunpack.c.l.b16 %v3265
    %v6338 = vunpack.c.l.b16 %v3266
    %v6339 = vunpack.c.l.b16 %v3267
    %v6340 = vunpack.c.l.b16 %v3268
    %v6341 = vunpack.c.l.b16 %v3269
    %v6342 = vunpack.c.l.b16 %v3270
    %v6343 = vunpack.c.l.b16 %v3271
    %v6344 = vunpack.c.l.b16 %v3272
    %v6345 = vunpack.c.l.b16 %v3273
    %v6346 = vunpack.c.l.b16 %v3274
    %v6347 = vunpack.c.l.b16 %v3275
    %v6348 = vunpack.c.l.b16 %v3276
    %v6349 = vunpack.c.l.b16 %v3277
    %v6350 = vunpack.c.l.b16 %v3278
    %v6351 = vunpack.c.l.b16 %v3279
    %v6352 = vunpack.c.l.b16 %v3280
    %v6353 = vunpack.c.l.b16 %v3281
    %v6354 = vunpack.c.l.b16 %v3282
    %v6355 = vunpack.c.l.b16 %v3283
    %v6356 = vunpack.c.l.b16 %v3284
    %v6357 = vunpack.c.l.b16 %v3285
    %v6358 = vunpack.c.l.b16 %v3286
    %v6359 = vunpack.c.l.b16 %v3287
    %v6360 = vunpack.c.l.b16 %v3288
    %v6361 = vunpack.c.l.b16 %v3289
    %v6362 = vunpack.c.l.b16 %v3290
    %v6363 = vunpack.c.l.b16 %v3291
    %v6364 = vunpack.c.l.b16 %v3292
    %v6365 = vunpack.c.l.b16 %v3293
    %v6366 = vunpack.c.l.b16 %v3294
    %v6367 = vunpack.c.l.b16 %v3295
    %v6368 = vunpack.c.l.b16 %v3296
    %v6369 = vunpack.c.l.b16 %v3297
    %v6370 = vunpack.c.l.b16 %v3298
    %v6371 = vunpack.c.l.b16 %v3299
    %v6372 = vunpack.c.l.b16 %v3300
    %v6373 = vunpack.c.l.b16 %v3301
    %v6374 = vunpack.c.l.b16 %v3302
    %v6375 = vunpack.c.l.b16 %v3303
    %v6376 = vunpack.c.l.b16 %v3304
    %v6377 = vunpack.c.l.b16 %v3305
    %v6378 = vunpack.c.l.b16 %v3306
    %v6379 = vunpack.c.l.b16 %v3307
    %v6380 = vunpack.c.l.b16 %v3308
    %v6381 = vunpack.c.l.b16 %v3309
    %v6382 = vunpack.c.l.b16 %v3310
    %v6383 = vunpack.c.l.b16 %v3311
    %v6384 = vunpack.c.l.b16 %v3312
    %v6385 = vunpack.c.l.b16 %v3313
    %v6386 = vunpack.c.l.b16 %v3314
    %v6387 = vunpack.c.l.b16 %v3315
    %v6388 = vunpack.c.l.b16 %v3316
    %v6389 = vunpack.c.l.b16 %v3317
    %v6390 = vunpack.c.l.b16 %v3318
    %v6391 = vunpack.c.l.b16 %v3319
    %v6392 = vunpack.c.l.b16 %v3320
    %v6393 = vunpack.c.l.b16 %v3321
    %v6394 = vunpack.c.l.b16 %v3322
    %v6395 = vunpack.c.l.b16 %v3323
    %v6396 = vunpack.c.l.b16 %v3324
    %v6397 = vunpack.c.l.b16 %v3325
    %v6398 = vunpack.c.l.b16 %v3326
    %v6399 = vunpack.c.l.b16 %v3327
    %v6400 = vunpack.c.l.b16 %v3328
    %v6401 = vunpack.c.l.b16 %v3329
    %v6402 = vunpack.c.l.b16 %v3330
    %v6403 = vunpack.c.l.b16 %v3331
    %v6404 = vunpack.c.l.b16 %v3332
    %v6405 = vunpack.c.l.b16 %v3333
    %v6406 = vunpack.c.l.b16 %v3334
    %v6407 = vunpack.c.l.b16 %v3335
    %v6408 = vunpack.c.l.b16 %v3336
    %v6409 = vunpack.c.l.b16 %v3337
    %v6410 = vunpack.c.l.b16 %v3338
    %v6411 = vunpack.c.l.b16 %v3339
    %v6412 = vunpack.c.l.b16 %v3340
    %v6413 = vunpack.c.l.b16 %v3341
    %v6414 = vunpack.c.l.b16 %v3342
    %v6415 = vunpack.c.l.b16 %v3343
    %v6416 = vunpack.c.l.b16 %v3344
    %v6417 = vunpack.c.l.b16 %v3345
    %v6418 = vunpack.c.l.b16 %v3346
    %v6419 = vunpack.c.l.b16 %v3347
    %v6420 = vunpack.c.l.b16 %v3348
    %v6421 = vunpack.c.l.b16 %v3349
    %v6422 = vunpack.c.l.b16 %v3350
    %v6423 = vunpack.c.l.b16 %v3351
    %v6424 = vunpack.c.l.b16 %v3352
    %v6425 = vunpack.c.l.b16 %v3353
    %v6426 = vunpack.c.l.b16 %v3354
    %v6427 = vunpack.c.l.b16 %v3355
    %v6428 = vunpack.c.l.b16 %v3356
    %v6429 = vunpack.c.l.b16 %v3357
    %v6430 = vunpack.c.l.b16 %v3358
    %v6431 = vunpack.c.l.b16 %v3359
    %v6432 = vunpack.c.l.b16 %v3360
    %v6433 = vunpack.c.l.b16 %v3361
    %v6434 = vunpack.c.l.b16 %v3362
    %v6435 = vunpack.c.l.b16 %v3363
    %v6436 = vunpack.c.l.b16 %v3364
    %v6437 = vunpack.c.l.b16 %v3365
    %v6438 = vunpack.c.l.b16 %v3366
    %v6439 = vunpack.c.l.b16 %v3367
    %v6440 = vunpack.c.l.b16 %v3368
    %v6441 = vunpack.c.l.b16 %v3369
    %v6442 = vunpack.c.l.b16 %v3370
    %v6443 = vunpack.c.l.b16 %v3371
    %v6444 = vunpack.c.l.b16 %v3372
    %v6445 = vunpack.c.l.b16 %v3373
    %v6446 = vunpack.c.l.b16 %v3374
    %v6447 = vunpack.c.l.b16 %v3375
    %v6448 = vunpack.c.l.b16 %v3376
    %v6449 = vunpack.c.l.b16 %v3377
    %v6450 = vunpack.c.l.b16 %v3378
    %v6451 = vunpack.c.l.b16 %v3379
    %v6452 = vunpack.c.l.b16 %v3380
    %v6453 = vunpack.c.l.b16 %v3381
    %v6454 = vunpack.c.l.b16 %v3382
    %v6455 = vunpack.c.l.b16 %v3383
    %v6456 = vunpack.c.l.b16 %v3384
    %v6457 = vunpack.c.l.b16 %v3385
    %v6458 = vunpack.c.l.b16 %v3386
    %v6459 = vunpack.c.l.b16 %v3387
    %v6460 = vunpack.c.l.b16 %v3388
    %v6461 = vunpack.c.l.b16 %v3389
    %v6462 = vunpack.c.l.b16 %v3390
    %v6463 = vunpack.c.l.b16 %v3391
    %v6464 = vunpack.c.l.b16 %v3392
    %v6465 = vunpack.c.l.b16 %v3393
    %v6466 = vunpack.c.l.b16 %v3394
    %v6467 = vunpack.c.l.b16 %v3395
    %v6468 = vunpack.c.l.b16 %v3396
    %v6469 = vunpack.c.l.b16 %v3397
    %v6470 = vunpack.c.l.b16 %v3398
    %v6471 = vunpack.c.l.b16 %v3399
    %v6472 = vunpack.c.l.b16 %v3400
    %v6473 = vunpack.c.l.b16 %v3401
    %v6474 = vunpack.c.l.b16 %v3402
    %v6475 = vunpack.c.l.b16 %v3403
    %v6476 = vunpack.c.l.b16 %v3404
    %v6477 = vunpack.c.l.b16 %v3405
    %v6478 = vunpack.c.l.b16 %v3406
    %v6479 = vunpack.c.l.b16 %v3407
    %v6480 = vunpack.c.l.b16 %v3408
    %v6481 = vunpack.c.l.b16 %v3409
    %v6482 = vunpack.c.l.b16 %v3410
    %v6483 = vunpack.c.l.b16 %v3411
    %v6484 = vunpack.c.l.b16 %v3412
    %v6485 = vunpack.c.l.b16 %v3413
    %v6486 = vunpack.c.l.b16 %v3414
    %v6487 = vunpack.c.l.b16 %v3415
    %v6488 = vunpack.c.l.b16 %v3416
    %v6489 = vunpack.c.l.b16 %v3417
    %v6490 = vunpack.c.l.b16 %v3418
    %v6491 = vunpack.c.l.b16 %v3419
    %v6492 = vunpack.c.l.b16 %v3420
    %v6493 = vunpack.c.l.b16 %v3421
    %v6494 = vunpack.c.l.b16 %v3422
    %v6495 = vunpack.c.l.b16 %v3423
    %v6496 = vunpack.c.l.b16 %v3424
    %v6497 = vunpack.c.l.b16 %v3425
    %v6498 = vunpack.c.l.b16 %v3426
    %v6499 = vunpack.c.l.b16 %v3427
    %v6500 = vunpack.c.l.b16 %v3428
    %v6501 = vunpack.c.l.b16 %v3429
    %v6502 = vunpack.c.l.b16 %v3430
    %v6503 = vunpack.c.l.b16 %v3431
    %v6504 = vunpack.c.l.b16 %v3432
    %v6505 = vunpack.c.l.b16 %v3433
    %v6506 = vunpack.c.l.b16 %v3434
    %v6507 = vunpack.c.l.b16 %v3435
    %v6508 = vunpack.c.l.b16 %v3436
    %v6509 = vunpack.c.l.b16 %v3437
    %v6510 = vunpack.c.l.b16 %v3438
    %v6511 = vunpack.c.l.b16 %v3439
    %v6512 = vunpack.c.l.b16 %v3440
    %v6513 = vunpack.c.l.b16 %v3441
    %v6514 = vunpack.c.l.b16 %v3442
    %v6515 = vunpack.c.l.b16 %v3443
    %v6516 = vunpack.c.l.b16 %v3444
    %v6517 = vunpack.c.l.b16 %v3445
    %v6518 = vunpack.c.l.b16 %v3446
    %v6519 = vunpack.c.l.b16 %v3447
    %v6520 = vunpack.c.l.b16 %v3448
    %v6521 = vunpack.c.l.b16 %v3449
    %v6522 = vunpack.c.l.b16 %v3450
    %v6523 = vunpack.c.l.b16 %v3451
    %v6524 = vunpack.c.l.b16 %v3452
    %v6525 = vunpack.c.l.b16 %v3453
    %v6526 = vunpack.c.l.b16 %v3454
    %v6527 = vunpack.c.l.b16 %v3455
    %v6528 = vunpack.c.l.b16 %v3456
    %v6529 = vunpack.c.l.b16 %v3457
    %v6530 = vunpack.c.l.b16 %v3458
    %v6531 = vunpack.c.l.b16 %v3459
    %v6532 = vunpack.c.l.b16 %v3460
    %v6533 = vunpack.c.l.b16 %v3461
    %v6534 = vunpack.c.l.b16 %v3462
    %v6535 = vunpack.c.l.b16 %v3463
    %v6536 = vunpack.c.l.b16 %v3464
    %v6537 = vunpack.c.l.b16 %v3465
    %v6538 = vunpack.c.l.b16 %v3466
    %v6539 = vunpack.c.l.b16 %v3467
    %v6540 = vunpack.c.l.b16 %v3468
    %v6541 = vunpack.c.l.b16 %v3469
    %v6542 = vunpack.c.l.b16 %v3470
    %v6543 = vunpack.c.l.b16 %v3471
    %v6544 = vunpack.c.l.b16 %v3472
    %v6545 = vunpack.c.l.b16 %v3473
    %v6546 = vunpack.c.l.b16 %v3474
    %v6547 = vunpack.c.l.b16 %v3475
    %v6548 = vunpack.c.l.b16 %v3476
    %v6549 = vunpack.c.l.b16 %v3477
    %v6550 = vunpack.c.l.b16 %v3478
    %v6551 = vunpack.c.l.b16 %v3479
    %v6552 = vunpack.c.l.b16 %v3480
    %v6553 = vunpack.c.l.b16 %v3481
    %v6554 = vunpack.c.l.b16 %v3482
    %v6555 = vunpack.c.l.b16 %v3483
    %v6556 = vunpack.c.l.b16 %v3484
    %v6557 = vunpack.c.l.b16 %v3485
    %v6558 = vunpack.c.l.b16 %v3486
    %v6559 = vunpack.c.l.b16 %v3487
    %v6560 = vunpack.c.l.b16 %v3488
    %v6561 = vunpack.c.l.b16 %v3489
    %v6562 = vunpack.c.l.b16 %v3490
    %v6563 = vunpack.c.l.b16 %v3491
    %v6564 = vunpack.c.l.b16 %v3492
    %v6565 = vunpack.c.l.b16 %v3493
    %v6566 = vunpack.c.l.b16 %v3494
    %v6567 = vunpack.c.l.b16 %v3495
    %v6568 = vunpack.c.l.b16 %v3496
    %v6569 = vunpack.c.l.b16 %v3497
    %v6570 = vunpack.c.l.b16 %v3498
    %v6571 = vunpack.c.l.b16 %v3499
    %v6572 = vunpack.c.l.b16 %v3500
    %v6573 = vunpack.c.l.b16 %v3501
    %v6574 = vunpack.c.l.b16 %v3502
    %v6575 = vunpack.c.l.b16 %v3503
    %v6576 = vunpack.c.l.b16 %v3504
    %v6577 = vunpack.c.l.b16 %v3505
    %v6578 = vunpack.c.l.b16 %v3506
    %v6579 = vunpack.c.l.b16 %v3507
    %v6580 = vunpack.c.l.b16 %v3508
    %v6581 = vunpack.c.l.b16 %v3509
    %v6582 = vunpack.c.l.b16 %v3510
    %v6583 = vunpack.c.l.b16 %v3511
    %v6584 = vunpack.c.l.b16 %v3512
    %v6585 = vunpack.c.l.b16 %v3513
    %v6586 = vunpack.c.l.b16 %v3514
    %v6587 = vunpack.c.l.b16 %v3515
    %v6588 = vunpack.c.l.b16 %v3516
    %v6589 = vunpack.c.l.b16 %v3517
    %v6590 = vunpack.c.l.b16 %v3518
    %v6591 = vunpack.c.l.b16 %v3519
    %v6592 = vunpack.c.l.b16 %v3520
    %v6593 = vunpack.c.l.b16 %v3521
    %v6594 = vunpack.c.l.b16 %v3522
    %v6595 = vunpack.c.l.b16 %v3523
    %v6596 = vunpack.c.l.b16 %v3524
    %v6597 = vunpack.c.l.b16 %v3525
    %v6598 = vunpack.c.l.b16 %v3526
    %v6599 = vunpack.c.l.b16 %v3527
    %v6600 = vunpack.c.l.b16 %v3528
    %v6601 = vunpack.c.l.b16 %v3529
    %v6602 = vunpack.c.l.b16 %v3530
    %v6603 = vunpack.c.l.b16 %v3531
    %v6604 = vunpack.c.l.b16 %v3532
    %v6605 = vunpack.c.l.b16 %v3533
    %v6606 = vunpack.c.l.b16 %v3534
    %v6607 = vunpack.c.l.b16 %v3535
    %v6608 = vunpack.c.l.b16 %v3536
    %v6609 = vunpack.c.l.b16 %v3537
    %v6610 = vunpack.c.l.b16 %v3538
    %v6611 = vunpack.c.l.b16 %v3539
    %v6612 = vunpack.c.l.b16 %v3540
    %v6613 = vunpack.c.l.b16 %v3541
    %v6614 = vunpack.c.l.b16 %v3542
    %v6615 = vunpack.c.l.b16 %v3543
    %v6616 = vunpack.c.l.b16 %v3544
    %v6617 = vunpack.c.l.b16 %v3545
    %v6618 = vunpack.c.l.b16 %v3546
    %v6619 = vunpack.c.l.b16 %v3547
    %v6620 = vunpack.c.l.b16 %v3548
    %v6621 = vunpack.c.l.b16 %v3549
    %v6622 = vunpack.c.l.b16 %v3550
    %v6623 = vunpack.c.l.b16 %v3551
    %v6624 = vunpack.c.l.b16 %v3552
    %v6625 = vunpack.c.l.b16 %v3553
    %v6626 = vunpack.c.l.b16 %v3554
    %v6627 = vunpack.c.l.b16 %v3555
    %v6628 = vunpack.c.l.b16 %v3556
    %v6629 = vunpack.c.l.b16 %v3557
    %v6630 = vunpack.c.l.b16 %v3558
    %v6631 = vunpack.c.l.b16 %v3559
    %v6632 = vunpack.c.l.b16 %v3560
    %v6633 = vunpack.c.l.b16 %v3561
    %v6634 = vunpack.c.l.b16 %v3562
    %v6635 = vunpack.c.l.b16 %v3563
    %v6636 = vunpack.c.l.b16 %v3564
    %v6637 = vunpack.c.l.b16 %v3565
    %v6638 = vunpack.c.l.b16 %v3566
    %v6639 = vunpack.c.l.b16 %v3567
    %v6640 = vunpack.c.l.b16 %v3568
    %v6641 = vunpack.c.l.b16 %v3569
    %v6642 = vunpack.c.l.b16 %v3570
    %v6643 = vunpack.c.l.b16 %v3571
    %v6644 = vunpack.c.l.b16 %v3572
    %v6645 = vunpack.c.l.b16 %v3573
    %v6646 = vunpack.c.l.b16 %v3574
    %v6647 = vunpack.c.l.b16 %v3575
    %v6648 = vunpack.c.l.b16 %v3576
    %v6649 = vunpack.c.l.b16 %v3577
    %v6650 = vunpack.c.l.b16 %v3578
    %v6651 = vunpack.c.l.b16 %v3579
    %v6652 = vunpack.c.l.b16 %v3580
    %v6653 = vunpack.c.l.b16 %v3581
    %v6654 = vunpack.c.l.b16 %v3582
    %v6655 = vunpack.c.l.b16 %v3583
    %v6656 = vunpack.c.l.b16 %v3584
    %v6657 = vunpack.c.l.b16 %v3585
    %v6658 = vunpack.c.l.b16 %v3586
    %v6659 = vunpack.c.l.b16 %v3587
    %v6660 = vunpack.c.l.b16 %v3588
    %v6661 = vunpack.c.l.b16 %v3589
    %v6662 = vunpack.c.l.b16 %v3590
    %v6663 = vunpack.c.l.b16 %v3591
    %v6664 = vunpack.c.l.b16 %v3592
    %v6665 = vunpack.c.l.b16 %v3593
    %v6666 = vunpack.c.l.b16 %v3594
    %v6667 = vunpack.c.l.b16 %v3595
    %v6668 = vunpack.c.l.b16 %v3596
    %v6669 = vunpack.c.l.b16 %v3597
    %v6670 = vunpack.c.l.b16 %v3598
    %v6671 = vunpack.c.l.b16 %v3599
    %v6672 = vunpack.c.l.b16 %v3600
    %v6673 = vunpack.c.l.b16 %v3601
    %v6674 = vunpack.c.l.b16 %v3602
    %v6675 = vunpack.c.l.b16 %v3603
    %v6676 = vunpack.c.l.b16 %v3604
    %v6677 = vunpack.c.l.b16 %v3605
    %v6678 = vunpack.c.l.b16 %v3606
    %v6679 = vunpack.c.l.b16 %v3607
    %v6680 = vunpack.c.l.b16 %v3608
    %v6681 = vunpack.c.l.b16 %v3609
    %v6682 = vunpack.c.l.b16 %v3610
    %v6683 = vunpack.c.l.b16 %v3611
    %v6684 = vunpack.c.l.b16 %v3612
    %v6685 = vunpack.c.l.b16 %v3613
    %v6686 = vunpack.c.l.b16 %v3614
    %v6687 = vunpack.c.l.b16 %v3615
    %v6688 = vunpack.c.l.b16 %v3616
    %v6689 = vunpack.c.l.b16 %v3617
    %v6690 = vunpack.c.l.b16 %v3618
    %v6691 = vunpack.c.l.b16 %v3619
    %v6692 = vunpack.c.l.b16 %v3620
    %v6693 = vunpack.c.l.b16 %v3621
    %v6694 = vunpack.c.l.b16 %v3622
    %v6695 = vunpack.c.l.b16 %v3623
    %v6696 = vunpack.c.l.b16 %v3624
    %v6697 = vunpack.c.l.b16 %v3625
    %v6698 = vunpack.c.l.b16 %v3626
    %v6699 = vunpack.c.l.b16 %v3627
    %v6700 = vunpack.c.l.b16 %v3628
    %v6701 = vunpack.c.l.b16 %v3629
    %v6702 = vunpack.c.l.b16 %v3630
    %v6703 = vunpack.c.l.b16 %v3631
    %v6704 = vunpack.c.l.b16 %v3632
    %v6705 = vunpack.c.l.b16 %v3633
    %v6706 = vunpack.c.l.b16 %v3634
    %v6707 = vunpack.c.l.b16 %v3635
    %v6708 = vunpack.c.l.b16 %v3636
    %v6709 = vunpack.c.l.b16 %v3637
    %v6710 = vunpack.c.l.b16 %v3638
    %v6711 = vunpack.c.l.b16 %v3639
    %v6712 = vunpack.c.l.b16 %v3640
    %v6713 = vunpack.c.l.b16 %v3641
    %v6714 = vunpack.c.l.b16 %v3642
    %v6715 = vunpack.c.l.b16 %v3643
    %v6716 = vunpack.c.l.b16 %v3644
    %v6717 = vunpack.c.l.b16 %v3645
    %v6718 = vunpack.c.l.b16 %v3646
    %v6719 = vunpack.c.l.b16 %v3647
    %v6720 = vunpack.c.l.b16 %v3648
    %v6721 = vunpack.c.l.b16 %v3649
    %v6722 = vunpack.c.l.b16 %v3650
    %v6723 = vunpack.c.l.b16 %v3651
    %v6724 = vunpack.c.l.b16 %v3652
    %v6725 = vunpack.c.l.b16 %v3653
    %v6726 = vunpack.c.l.b16 %v3654
    %v6727 = vunpack.c.l.b16 %v3655
    %v6728 = vunpack.c.l.b16 %v3656
    %v6729 = vunpack.c.l.b16 %v3657
    %v6730 = vunpack.c.l.b16 %v3658
    %v6731 = vunpack.c.l.b16 %v3659
    %v6732 = vunpack.c.l.b16 %v3660
    %v6733 = vunpack.c.l.b16 %v3661
    %v6734 = vunpack.c.l.b16 %v3662
    %v6735 = vunpack.c.l.b16 %v3663
    %v6736 = vunpack.c.l.b16 %v3664
    %v6737 = vunpack.c.l.b16 %v3665
    %v6738 = vunpack.c.l.b16 %v3666
    %v6739 = vunpack.c.l.b16 %v3667
    %v6740 = vunpack.c.l.b16 %v3668
    %v6741 = vunpack.c.l.b16 %v3669
    %v6742 = vunpack.c.l.b16 %v3670
    %v6743 = vunpack.c.l.b16 %v3671
    %v6744 = vunpack.c.l.b16 %v3672
    %v6745 = vunpack.c.l.b16 %v3673
    %v6746 = vunpack.c.l.b16 %v3674
    %v6747 = vunpack.c.l.b16 %v3675
    %v6748 = vunpack.c.l.b16 %v3676
    %v6749 = vunpack.c.l.b16 %v3677
    %v6750 = vunpack.c.l.b16 %v3678
    %v6751 = vunpack.c.l.b16 %v3679
    %v6752 = vunpack.c.l.b16 %v3680
    %v6753 = vunpack.c.l.b16 %v3681
    %v6754 = vunpack.c.l.b16 %v3682
    %v6755 = vunpack.c.l.b16 %v3683
    %v6756 = vunpack.c.l.b16 %v3684
    %v6757 = vunpack.c.l.b16 %v3685
    %v6758 = vunpack.c.l.b16 %v3686
    %v6759 = vunpack.c.l.b16 %v3687
    %v6760 = vunpack.c.l.b16 %v3688
    %v6761 = vunpack.c.l.b16 %v3689
    %v6762 = vunpack.c.l.b16 %v3690
    %v6763 = vunpack.c.l.b16 %v3691
    %v6764 = vunpack.c.l.b16 %v3692
    %v6765 = vunpack.c.l.b16 %v3693
    %v6766 = vunpack.c.l.b16 %v3694
    %v6767 = vunpack.c.l.b16 %v3695
    %v6768 = vunpack.c.l.b16 %v3696
    %v6769 = vunpack.c.l.b16 %v3697
    %v6770 = vunpack.c.l.b16 %v3698
    %v6771 = vunpack.c.l.b16 %v3699
    %v6772 = vunpack.c.l.b16 %v3700
    %v6773 = vunpack.c.l.b16 %v3701
    %v6774 = vunpack.c.l.b16 %v3702
    %v6775 = vunpack.c.l.b16 %v3703
    %v6776 = vunpack.c.l.b16 %v3704
    %v6777 = vunpack.c.l.b16 %v3705
    %v6778 = vunpack.c.l.b16 %v3706
    %v6779 = vunpack.c.l.b16 %v3707
    %v6780 = vunpack.c.l.b16 %v3708
    %v6781 = vunpack.c.l.b16 %v3709
    %v6782 = vunpack.c.l.b16 %v3710
    %v6783 = vunpack.c.l.b16 %v3711
    %v6784 = vunpack.c.l.b16 %v3712
    %v6785 = vunpack.c.l.b16 %v3713
    %v6786 = vunpack.c.l.b16 %v3714
    %v6787 = vunpack.c.l.b16 %v3715
    %v6788 = vunpack.c.l.b16 %v3716
    %v6789 = vunpack.c.l.b16 %v3717
    %v6790 = vunpack.c.l.b16 %v3718
    %v6791 = vunpack.c.l.b16 %v3719
    %v6792 = vunpack.c.l.b16 %v3720
    %v6793 = vunpack.c.l.b16 %v3721
    %v6794 = vunpack.c.l.b16 %v3722
    %v6795 = vunpack.c.l.b16 %v3723
    %v6796 = vunpack.c.l.b16 %v3724
    %v6797 = vunpack.c.l.b16 %v3725
    %v6798 = vunpack.c.l.b16 %v3726
    %v6799 = vunpack.c.l.b16 %v3727
    %v6800 = vunpack.c.l.b16 %v3728
    %v6801 = vunpack.c.l.b16 %v3729
    %v6802 = vunpack.c.l.b16 %v3730
    %v6803 = vunpack.c.l.b16 %v3731
    %v6804 = vunpack.c.l.b16 %v3732
    %v6805 = vunpack.c.l.b16 %v3733
    %v6806 = vunpack.c.l.b16 %v3734
    %v6807 = vunpack.c.l.b16 %v3735
    %v6808 = vunpack.c.l.b16 %v3736
    %v6809 = vunpack.c.l.b16 %v3737
    %v6810 = vunpack.c.l.b16 %v3738
    %v6811 = vunpack.c.l.b16 %v3739
    %v6812 = vunpack.c.l.b16 %v3740
    %v6813 = vunpack.c.l.b16 %v3741
    %v6814 = vunpack.c.l.b16 %v3742
    %v6815 = vunpack.c.l.b16 %v3743
    %v6816 = vunpack.c.l.b16 %v3744
    %v6817 = vunpack.c.l.b16 %v3745
    %v6818 = vunpack.c.l.b16 %v3746
    %v6819 = vunpack.c.l.b16 %v3747
    %v6820 = vunpack.c.l.b16 %v3748
    %v6821 = vunpack.c.l.b16 %v3749
    %v6822 = vunpack.c.l.b16 %v3750
    %v6823 = vunpack.c.l.b16 %v3751
    %v6824 = vunpack.c.l.b16 %v3752
    %v6825 = vunpack.c.l.b16 %v3753
    %v6826 = vunpack.c.l.b16 %v3754
    %v6827 = vunpack.c.l.b16 %v3755
    %v6828 = vunpack.c.l.b16 %v3756
    %v6829 = vunpack.c.l.b16 %v3757
    %v6830 = vunpack.c.l.b16 %v3758
    %v6831 = vunpack.c.l.b16 %v3759
    %v6832 = vunpack.c.l.b16 %v3760
    %v6833 = vunpack.c.l.b16 %v3761
    %v6834 = vunpack.c.l.b16 %v3762
    %v6835 = vunpack.c.l.b16 %v3763
    %v6836 = vunpack.c.l.b16 %v3764
    %v6837 = vunpack.c.l.b16 %v3765
    %v6838 = vunpack.c.l.b16 %v3766
    %v6839 = vunpack.c.l.b16 %v3767
    %v6840 = vunpack.c.l.b16 %v3768
    %v6841 = vunpack.c.l.b16 %v3769
    %v6842 = vunpack.c.l.b16 %v3770
    %v6843 = vunpack.c.l.b16 %v3771
    %v6844 = vunpack.c.l.b16 %v3772
    %v6845 = vunpack.c.l.b16 %v3773
    %v6846 = vunpack.c.l.b16 %v3774
    %v6847 = vunpack.c.l.b16 %v3775
    %v6848 = vunpack.c.l.b16 %v3776
    %v6849 = vunpack.c.l.b16 %v3777
    %v6850 = vunpack.c.l.b16 %v3778
    %v6851 = vunpack.c.l.b16 %v3779
    %v6852 = vunpack.c.l.b16 %v3780
    %v6853 = vunpack.c.l.b16 %v3781
    %v6854 = vunpack.c.l.b16 %v3782
    %v6855 = vunpack.c.l.b16 %v3783
    %v6856 = vunpack.c.l.b16 %v3784
    %v6857 = vunpack.c.l.b16 %v3785
    %v6858 = vunpack.c.l.b16 %v3786
    %v6859 = vunpack.c.l.b16 %v3787
    %v6860 = vunpack.c.l.b16 %v3788
    %v6861 = vunpack.c.l.b16 %v3789
    %v6862 = vunpack.c.l.b16 %v3790
    %v6863 = vunpack.c.l.b16 %v3791
    %v6864 = vunpack.c.l.b16 %v3792
    %v6865 = vunpack.c.l.b16 %v3793
    %v6866 = vunpack.c.l.b16 %v3794
    %v6867 = vunpack.c.l.b16 %v3795
    %v6868 = vunpack.c.l.b16 %v3796
    %v6869 = vunpack.c.l.b16 %v3797
    %v6870 = vunpack.c.l.b16 %v3798
    %v6871 = vunpack.c.l.b16 %v3799
    %v6872 = vunpack.c.l.b16 %v3800
    %v6873 = vunpack.c.l.b16 %v3801
    %v6874 = vunpack.c.l.b16 %v3802
    %v6875 = vunpack.c.l.b16 %v3803
    %v6876 = vunpack.c.l.b16 %v3804
    %v6877 = vunpack.c.l.b16 %v3805
    %v6878 = vunpack.c.l.b16 %v3806
    %v6879 = vunpack.c.l.b16 %v3807
    %v6880 = vunpack.c.l.b16 %v3808
    %v6881 = vunpack.c.l.b16 %v3809
    %v6882 = vunpack.c.l.b16 %v3810
    %v6883 = vunpack.c.l.b16 %v3811
    %v6884 = vunpack.c.l.b16 %v3812
    %v6885 = vunpack.c.l.b16 %v3813
    %v6886 = vunpack.c.l.b16 %v3814
    %v6887 = vunpack.c.l.b16 %v3815
    %v6888 = vunpack.c.l.b16 %v3816
    %v6889 = vunpack.c.l.b16 %v3817
    %v6890 = vunpack.c.l.b16 %v3818
    %v6891 = vunpack.c.l.b16 %v3819
    %v6892 = vunpack.c.l.b16 %v3820
    %v6893 = vunpack.c.l.b16 %v3821
    %v6894 = vunpack.c.l.b16 %v3822
    %v6895 = vunpack.c.l.b16 %v3823
    %v6896 = vunpack.c.l.b16 %v3824
    %v6897 = vunpack.c.l.b16 %v3825
    %v6898 = vunpack.c.l.b16 %v3826
    %v6899 = vunpack.c.l.b16 %v3827
    %v6900 = vunpack.c.l.b16 %v3828
    %v6901 = vunpack.c.l.b16 %v3829
    %v6902 = vunpack.c.l.b16 %v3830
    %v6903 = vunpack.c.l.b16 %v3831
    %v6904 = vunpack.c.l.b16 %v3832
    %v6905 = vunpack.c.l.b16 %v3833
    %v6906 = vunpack.c.l.b16 %v3834
    %v6907 = vunpack.c.l.b16 %v3835
    %v6908 = vunpack.c.l.b16 %v3836
    %v6909 = vunpack.c.l.b16 %v3837
    %v6910 = vunpack.c.l.b16 %v3838
    %v6911 = vunpack.c.l.b16 %v3839
    %v6912 = vunpack.c.l.b16 %v3840
    %v6913 = vunpack.c.l.b16 %v3841
    %v6914 = vunpack.c.l.b16 %v3842
    %v6915 = vunpack.c.l.b16 %v3843
    %v6916 = vunpack.c.l.b16 %v3844
    %v6917 = vunpack.c.l.b16 %v3845
    %v6918 = vunpack.c.l.b16 %v3846
    %v6919 = vunpack.c.l.b16 %v3847
    %v6920 = vunpack.c.l.b16 %v3848
    %v6921 = vunpack.c.l.b16 %v3849
    %v6922 = vunpack.c.l.b16 %v3850
    %v6923 = vunpack.c.l.b16 %v3851
    %v6924 = vunpack.c.l.b16 %v3852
    %v6925 = vunpack.c.l.b16 %v3853
    %v6926 = vunpack.c.l.b16 %v3854
    %v6927 = vunpack.c.l.b16 %v3855
    %v6928 = vunpack.c.l.b16 %v3856
    %v6929 = vunpack.c.l.b16 %v3857
    %v6930 = vunpack.c.l.b16 %v3858
    %v6931 = vunpack.c.l.b16 %v3859
    %v6932 = vunpack.c.l.b16 %v3860
    %v6933 = vunpack.c.l.b16 %v3861
    %v6934 = vunpack.c.l.b16 %v3862
    %v6935 = vunpack.c.l.b16 %v3863
    %v6936 = vunpack.c.l.b16 %v3864
    %v6937 = vunpack.c.l.b16 %v3865
    %v6938 = vunpack.c.l.b16 %v3866
    %v6939 = vunpack.c.l.b16 %v3867
    %v6940 = vunpack.c.l.b16 %v3868
    %v6941 = vunpack.c.l.b16 %v3869
    %v6942 = vunpack.c.l.b16 %v3870
    %v6943 = vunpack.c.l.b16 %v3871
    %v6944 = vunpack.c.l.b16 %v3872
    %v6945 = vunpack.c.l.b16 %v3873
    %v6946 = vunpack.c.l.b16 %v3874
    %v6947 = vunpack.c.l.b16 %v3875
    %v6948 = vunpack.c.l.b16 %v3876
    %v6949 = vunpack.c.l.b16 %v3877
    %v6950 = vunpack.c.l.b16 %v3878
    %v6951 = vunpack.c.l.b16 %v3879
    %v6952 = vunpack.c.l.b16 %v3880
    %v6953 = vunpack.c.l.b16 %v3881
    %v6954 = vunpack.c.l.b16 %v3882
    %v6955 = vunpack.c.l.b16 %v3883
    %v6956 = vunpack.c.l.b16 %v3884
    %v6957 = vunpack.c.l.b16 %v3885
    %v6958 = vunpack.c.l.b16 %v3886
    %v6959 = vunpack.c.l.b16 %v3887
    %v6960 = vunpack.c.l.b16 %v3888
    %v6961 = vunpack.c.l.b16 %v3889
    %v6962 = vunpack.c.l.b16 %v3890
    %v6963 = vunpack.c.l.b16 %v3891
    %v6964 = vunpack.c.l.b16 %v3892
    %v6965 = vunpack.c.l.b16 %v3893
    %v6966 = vunpack.c.l.b16 %v3894
    %v6967 = vunpack.c.l.b16 %v3895
    %v6968 = vunpack.c.l.b16 %v3896
    %v6969 = vunpack.c.l.b16 %v3897
    %v6970 = vunpack.c.l.b16 %v3898
    %v6971 = vunpack.c.l.b16 %v3899
    %v6972 = vunpack.c.l.b16 %v3900
    %v6973 = vunpack.c.l.b16 %v3901
    %v6974 = vunpack.c.l.b16 %v3902
    %v6975 = vunpack.c.l.b16 %v3903
    %v6976 = vunpack.c.l.b16 %v3904
    %v6977 = vunpack.c.l.b16 %v3905
    %v6978 = vunpack.c.l.b16 %v3906
    %v6979 = vunpack.c.l.b16 %v3907
    %v6980 = vunpack.c.l.b16 %v3908
    %v6981 = vunpack.c.l.b16 %v3909
    %v6982 = vunpack.c.l.b16 %v3910
    %v6983 = vunpack.c.l.b16 %v3911
    %v6984 = vunpack.c.l.b16 %v3912
    %v6985 = vunpack.c.l.b16 %v3913
    %v6986 = vunpack.c.l.b16 %v3914
    %v6987 = vunpack.c.l.b16 %v3915
    %v6988 = vunpack.c.l.b16 %v3916
    %v6989 = vunpack.c.l.b16 %v3917
    %v6990 = vunpack.c.l.b16 %v3918
    %v6991 = vunpack.c.l.b16 %v3919
    %v6992 = vunpack.c.l.b16 %v3920
    %v6993 = vunpack.c.l.b16 %v3921
    %v6994 = vunpack.c.l.b16 %v3922
    %v6995 = vunpack.c.l.b16 %v3923
    %v6996 = vunpack.c.l.b16 %v3924
    %v6997 = vunpack.c.l.b16 %v3925
    %v6998 = vunpack.c.l.b16 %v3926
    %v6999 = vunpack.c.l.b16 %v3927
    %v7000 = vunpack.c.l.b16 %v3928
    %v7001 = vunpack.c.l.b16 %v3929
    %v7002 = vunpack.c.l.b16 %v3930
    %v7003 = vunpack.c.l.b16 %v3931
    %v7004 = vunpack.c.l.b16 %v3932
    %v7005 = vunpack.c.l.b16 %v3933
    %v7006 = vunpack.c.l.b16 %v3934
    %v7007 = vunpack.c.l.b16 %v3935
    %v7008 = vunpack.c.l.b16 %v3936
    %v7009 = vunpack.c.l.b16 %v3937
    %v7010 = vunpack.c.l.b16 %v3938
    %v7011 = vunpack.c.l.b16 %v3939
    %v7012 = vunpack.c.l.b16 %v3940
    %v7013 = vunpack.c.l.b16 %v3941
    %v7014 = vunpack.c.l.b16 %v3942
    %v7015 = vunpack.c.l.b16 %v3943
    %v7016 = vunpack.c.l.b16 %v3944
    %v7017 = vunpack.c.l.b16 %v3945
    %v7018 = vunpack.c.l.b16 %v3946
    %v7019 = vunpack.c.l.b16 %v3947
    %v7020 = vunpack.c.l.b16 %v3948
    %v7021 = vunpack.c.l.b16 %v3949
    %v7022 = vunpack.c.l.b16 %v3950
    %v7023 = vunpack.c.l.b16 %v3951
    %v7024 = vunpack.c.l.b16 %v3952
    %v7025 = vunpack.c.l.b16 %v3953
    %v7026 = vunpack.c.l.b16 %v3954
    %v7027 = vunpack.c.l.b16 %v3955
    %v7028 = vunpack.c.l.b16 %v3956
    %v7029 = vunpack.c.l.b16 %v3957
    %v7030 = vunpack.c.l.b16 %v3958
    %v7031 = vunpack.c.l.b16 %v3959
    %v7032 = vunpack.c.l.b16 %v3960
    %v7033 = vunpack.c.l.b16 %v3961
    %v7034 = vunpack.c.l.b16 %v3962
    %v7035 = vunpack.c.l.b16 %v3963
    %v7036 = vunpack.c.l.b16 %v3964
    %v7037 = vunpack.c.l.b16 %v3965
    %v7038 = vunpack.c.l.b16 %v3966
    %v7039 = vunpack.c.l.b16 %v3967
    %v7040 = vunpack.c.l.b16 %v3968
    %v7041 = vunpack.c.l.b16 %v3969
    %v7042 = vunpack.c.l.b16 %v3970
    %v7043 = vunpack.c.l.b16 %v3971
    %v7044 = vunpack.c.l.b16 %v3972
    %v7045 = vunpack.c.l.b16 %v3973
    %v7046 = vunpack.c.l.b16 %v3974
    %v7047 = vunpack.c.l.b16 %v3975
    %v7048 = vunpack.c.l.b16 %v3976
    %v7049 = vunpack.c.l.b16 %v3977
    %v7050 = vunpack.c.l.b16 %v3978
    %v7051 = vunpack.c.l.b16 %v3979
    %v7052 = vunpack.c.l.b16 %v3980
    %v7053 = vunpack.c.l.b16 %v3981
    %v7054 = vunpack.c.l.b16 %v3982
    %v7055 = vunpack.c.l.b16 %v3983
    %v7056 = vunpack.c.l.b16 %v3984
    %v7057 = vunpack.c.l.b16 %v3985
    %v7058 = vunpack.c.l.b16 %v3986
    %v7059 = vunpack.c.l.b16 %v3987
    %v7060 = vunpack.c.l.b16 %v3988
    %v7061 = vunpack.c.l.b16 %v3989
    %v7062 = vunpack.c.l.b16 %v3990
    %v7063 = vunpack.c.l.b16 %v3991
    %v7064 = vunpack.c.l.b16 %v3992
    %v7065 = vunpack.c.l.b16 %v3993
    %v7066 = vunpack.c.l.b16 %v3994
    %v7067 = vunpack.c.l.b16 %v3995
    %v7068 = vunpack.c.l.b16 %v3996
    %v7069 = vunpack.c.l.b16 %v3997
    %v7070 = vunpack.c.l.b16 %v3998
    %v7071 = vunpack.c.l.b16 %v3999
    %v7072 = vunpack.c.l.b16 %v4000
    %v7073 = vunpack.c.l.b16 %v4001
    %v7074 = vunpack.c.l.b16 %v4002
    %v7075 = vunpack.c.l.b16 %v4003
    %v7076 = vunpack.c.l.b16 %v4004
    %v7077 = vunpack.c.l.b16 %v4005
    %v7078 = vunpack.c.l.b16 %v4006
    %v7079 = vunpack.c.l.b16 %v4007
    %v7080 = vunpack.c.l.b16 %v4008
    %v7081 = vunpack.c.l.b16 %v4009
    %v7082 = vunpack.c.l.b16 %v4010
    %v7083 = vunpack.c.l.b16 %v4011
    %v7084 = vunpack.c.l.b16 %v4012
    %v7085 = vunpack.c.l.b16 %v4013
    %v7086 = vunpack.c.l.b16 %v4014
    %v7087 = vunpack.c.l.b16 %v4015
    %v7088 = vunpack.c.l.b16 %v4016
    %v7089 = vpack.c.b16 %v5554, %v5553
    %v7090 = vpack.c.b16 %v5556, %v5555
    %v7091 = vpack.c.b16 %v5558, %v5557
    %v7092 = vpack.c.b16 %v5560, %v5559
    %v7093 = vpack.c.b16 %v5562, %v5561
    %v7094 = vpack.c.b16 %v5564, %v5563
    %v7095 = vpack.c.b16 %v5566, %v5565
    %v7096 = vpack.c.b16 %v5568, %v5567
    %v7097 = vpack.c.b16 %v5570, %v5569
    %v7098 = vpack.c.b16 %v5572, %v5571
    %v7099 = vpack.c.b16 %v5574, %v5573
    %v7100 = vpack.c.b16 %v5576, %v5575
    %v7101 = vpack.c.b16 %v5578, %v5577
    %v7102 = vpack.c.b16 %v5580, %v5579
    %v7103 = vpack.c.b16 %v5582, %v5581
    %v7104 = vpack.c.b16 %v5584, %v5583
    %v7105 = vpack.c.b16 %v5586, %v5585
    %v7106 = vpack.c.b16 %v5588, %v5587
    %v7107 = vpack.c.b16 %v5590, %v5589
    %v7108 = vpack.c.b16 %v5592, %v5591
    %v7109 = vpack.c.b16 %v5594, %v5593
    %v7110 = vpack.c.b16 %v5596, %v5595
    %v7111 = vpack.c.b16 %v5598, %v5597
    %v7112 = vpack.c.b16 %v5600, %v5599
    %v7113 = vpack.c.b16 %v5602, %v5601
    %v7114 = vpack.c.b16 %v5604, %v5603
    %v7115 = vpack.c.b16 %v5606, %v5605
    %v7116 = vpack.c.b16 %v5608, %v5607
    %v7117 = vpack.c.b16 %v5610, %v5609
    %v7118 = vpack.c.b16 %v5612, %v5611
    %v7119 = vpack.c.b16 %v5614, %v5613
    %v7120 = vpack.c.b16 %v5616, %v5615
    %v7121 = vpack.c.b16 %v5618, %v5617
    %v7122 = vpack.c.b16 %v5620, %v5619
    %v7123 = vpack.c.b16 %v5622, %v5621
    %v7124 = vpack.c.b16 %v5624, %v5623
    %v7125 = vpack.c.b16 %v5626, %v5625
    %v7126 = vpack.c.b16 %v5628, %v5627
    %v7127 = vpack.c.b16 %v5630, %v5629
    %v7128 = vpack.c.b16 %v5632, %v5631
    %v7129 = vpack.c.b16 %v5634, %v5633
    %v7130 = vpack.c.b16 %v5636, %v5635
    %v7131 = vpack.c.b16 %v5638, %v5637
    %v7132 = vpack.c.b16 %v5640, %v5639
    %v7133 = vpack.c.b16 %v5642, %v5641
    %v7134 = vpack.c.b16 %v5644, %v5643
    %v7135 = vpack.c.b16 %v5646, %v5645
    %v7136 = vpack.c.b16 %v5648, %v5647
    %v7137 = vpack.c.b16 %v5650, %v5649
    %v7138 = vpack.c.b16 %v5652, %v5651
    %v7139 = vpack.c.b16 %v5654, %v5653
    %v7140 = vpack.c.b16 %v5656, %v5655
    %v7141 = vpack.c.b16 %v5658, %v5657
    %v7142 = vpack.c.b16 %v5660, %v5659
    %v7143 = vpack.c.b16 %v5662, %v5661
    %v7144 = vpack.c.b16 %v5664, %v5663
    %v7145 = vpack.c.b16 %v5666, %v5665
    %v7146 = vpack.c.b16 %v5668, %v5667
    %v7147 = vpack.c.b16 %v5670, %v5669
    %v7148 = vpack.c.b16 %v5672, %v5671
    %v7149 = vpack.c.b16 %v5674, %v5673
    %v7150 = vpack.c.b16 %v5676, %v5675
    %v7151 = vpack.c.b16 %v5678, %v5677
    %v7152 = vpack.c.b16 %v5680, %v5679
    %v7153 = vpack.c.b16 %v5682, %v5681
    %v7154 = vpack.c.b16 %v5684, %v5683
    %v7155 = vpack.c.b16 %v5686, %v5685
    %v7156 = vpack.c.b16 %v5688, %v5687
    %v7157 = vpack.c.b16 %v5690, %v5689
    %v7158 = vpack.c.b16 %v5692, %v5691
    %v7159 = vpack.c.b16 %v5694, %v5693
    %v7160 = vpack.c.b16 %v5696, %v5695
    %v7161 = vpack.c.b16 %v5698, %v5697
    %v7162 = vpack.c.b16 %v5700, %v5699
    %v7163 = vpack.c.b16 %v5702, %v5701
    %v7164 = vpack.c.b16 %v5704, %v5703
    %v7165 = vpack.c.b16 %v5706, %v5705
    %v7166 = vpack.c.b16 %v5708, %v5707
    %v7167 = vpack.c.b16 %v5710, %v5709
    %v7168 = vpack.c.b16 %v5712, %v5711
    %v7169 = vpack.c.b16 %v5714, %v5713
    %v7170 = vpack.c.b16 %v5716, %v5715
    %v7171 = vpack.c.b16 %v5718, %v5717
    %v7172 = vpack.c.b16 %v5720, %v5719
    %v7173 = vpack.c.b16 %v5722, %v5721
    %v7174 = vpack.c.b16 %v5724, %v5723
    %v7175 = vpack.c.b16 %v5726, %v5725
    %v7176 = vpack.c.b16 %v5728, %v5727
    %v7177 = vpack.c.b16 %v5730, %v5729
    %v7178 = vpack.c.b16 %v5732, %v5731
    %v7179 = vpack.c.b16 %v5734, %v5733
    %v7180 = vpack.c.b16 %v5736, %v5735
    %v7181 = vpack.c.b16 %v5738, %v5737
    %v7182 = vpack.c.b16 %v5740, %v5739
    %v7183 = vpack.c.b16 %v5742, %v5741
    %v7184 = vpack.c.b16 %v5744, %v5743
    %v7185 = vpack.c.b16 %v5746, %v5745
    %v7186 = vpack.c.b16 %v5748, %v5747
    %v7187 = vpack.c.b16 %v5750, %v5749
    %v7188 = vpack.c.b16 %v5752, %v5751
    %v7189 = vpack.c.b16 %v5754, %v5753
    %v7190 = vpack.c.b16 %v5756, %v5755
    %v7191 = vpack.c.b16 %v5758, %v5757
    %v7192 = vpack.c.b16 %v5760, %v5759
    %v7193 = vpack.c.b16 %v5762, %v5761
    %v7194 = vpack.c.b16 %v5764, %v5763
    %v7195 = vpack.c.b16 %v5766, %v5765
    %v7196 = vpack.c.b16 %v5768, %v5767
    %v7197 = vpack.c.b16 %v5770, %v5769
    %v7198 = vpack.c.b16 %v5772, %v5771
    %v7199 = vpack.c.b16 %v5774, %v5773
    %v7200 = vpack.c.b16 %v5776, %v5775
    %v7201 = vpack.c.b16 %v5778, %v5777
    %v7202 = vpack.c.b16 %v5780, %v5779
    %v7203 = vpack.c.b16 %v5782, %v5781
    %v7204 = vpack.c.b16 %v5784, %v5783
    %v7205 = vpack.c.b16 %v5786, %v5785
    %v7206 = vpack.c.b16 %v5788, %v5787
    %v7207 = vpack.c.b16 %v5790, %v5789
    %v7208 = vpack.c.b16 %v5792, %v5791
    %v7209 = vpack.c.b16 %v5794, %v5793
    %v7210 = vpack.c.b16 %v5796, %v5795
    %v7211 = vpack.c.b16 %v5798, %v5797
    %v7212 = vpack.c.b16 %v5800, %v5799
    %v7213 = vpack.c.b16 %v5802, %v5801
    %v7214 = vpack.c.b16 %v5804, %v5803
    %v7215 = vpack.c.b16 %v5806, %v5805
    %v7216 = vpack.c.b16 %v5808, %v5807
    %v7217 = vpack.c.b16 %v5810, %v5809
    %v7218 = vpack.c.b16 %v5812, %v5811
    %v7219 = vpack.c.b16 %v5814, %v5813
    %v7220 = vpack.c.b16 %v5816, %v5815
    %v7221 = vpack.c.b16 %v5818, %v5817
    %v7222 = vpack.c.b16 %v5820, %v5819
    %v7223 = vpack.c.b16 %v5822, %v5821
    %v7224 = vpack.c.b16 %v5824, %v5823
    %v7225 = vpack.c.b16 %v5826, %v5825
    %v7226 = vpack.c.b16 %v5828, %v5827
    %v7227 = vpack.c.b16 %v5830, %v5829
    %v7228 = vpack.c.b16 %v5832, %v5831
    %v7229 = vpack.c.b16 %v5834, %v5833
    %v7230 = vpack.c.b16 %v5836, %v5835
    %v7231 = vpack.c.b16 %v5838, %v5837
    %v7232 = vpack.c.b16 %v5840, %v5839
    %v7233 = vpack.c.b16 %v5842, %v5841
    %v7234 = vpack.c.b16 %v5844, %v5843
    %v7235 = vpack.c.b16 %v5846, %v5845
    %v7236 = vpack.c.b16 %v5848, %v5847
    %v7237 = vpack.c.b16 %v5850, %v5849
    %v7238 = vpack.c.b16 %v5852, %v5851
    %v7239 = vpack.c.b16 %v5854, %v5853
    %v7240 = vpack.c.b16 %v5856, %v5855
    %v7241 = vpack.c.b16 %v5858, %v5857
    %v7242 = vpack.c.b16 %v5860, %v5859
    %v7243 = vpack.c.b16 %v5862, %v5861
    %v7244 = vpack.c.b16 %v5864, %v5863
    %v7245 = vpack.c.b16 %v5866, %v5865
    %v7246 = vpack.c.b16 %v5868, %v5867
    %v7247 = vpack.c.b16 %v5870, %v5869
    %v7248 = vpack.c.b16 %v5872, %v5871
    %v7249 = vpack.c.b16 %v5874, %v5873
    %v7250 = vpack.c.b16 %v5876, %v5875
    %v7251 = vpack.c.b16 %v5878, %v5877
    %v7252 = vpack.c.b16 %v5880, %v5879
    %v7253 = vpack.c.b16 %v5882, %v5881
    %v7254 = vpack.c.b16 %v5884, %v5883
    %v7255 = vpack.c.b16 %v5886, %v5885
    %v7256 = vpack.c.b16 %v5888, %v5887
    %v7257 = vpack.c.b16 %v5890, %v5889
    %v7258 = vpack.c.b16 %v5892, %v5891
    %v7259 = vpack.c.b16 %v5894, %v5893
    %v7260 = vpack.c.b16 %v5896, %v5895
    %v7261 = vpack.c.b16 %v5898, %v5897
    %v7262 = vpack.c.b16 %v5900, %v5899
    %v7263 = vpack.c.b16 %v5902, %v5901
    %v7264 = vpack.c.b16 %v5904, %v5903
    %v7265 = vpack.c.b16 %v5906, %v5905
    %v7266 = vpack.c.b16 %v5908, %v5907
    %v7267 = vpack.c.b16 %v5910, %v5909
    %v7268 = vpack.c.b16 %v5912, %v5911
    %v7269 = vpack.c.b16 %v5914, %v5913
    %v7270 = vpack.c.b16 %v5916, %v5915
    %v7271 = vpack.c.b16 %v5918, %v5917
    %v7272 = vpack.c.b16 %v5920, %v5919
    %v7273 = vpack.c.b16 %v5922, %v5921
    %v7274 = vpack.c.b16 %v5924, %v5923
    %v7275 = vpack.c.b16 %v5926, %v5925
    %v7276 = vpack.c.b16 %v5928, %v5927
    %v7277 = vpack.c.b16 %v5930, %v5929
    %v7278 = vpack.c.b16 %v5932, %v5931
    %v7279 = vpack.c.b16 %v5934, %v5933
    %v7280 = vpack.c.b16 %v5936, %v5935
    %v7281 = vpack.c.b16 %v5938, %v5937
    %v7282 = vpack.c.b16 %v5940, %v5939
    %v7283 = vpack.c.b16 %v5942, %v5941
    %v7284 = vpack.c.b16 %v5944, %v5943
    %v7285 = vpack.c.b16 %v5946, %v5945
    %v7286 = vpack.c.b16 %v5948, %v5947
    %v7287 = vpack.c.b16 %v5950, %v5949
    %v7288 = vpack.c.b16 %v5952, %v5951
    %v7289 = vpack.c.b16 %v5954, %v5953
    %v7290 = vpack.c.b16 %v5956, %v5955
    %v7291 = vpack.c.b16 %v5958, %v5957
    %v7292 = vpack.c.b16 %v5960, %v5959
    %v7293 = vpack.c.b16 %v5962, %v5961
    %v7294 = vpack.c.b16 %v5964, %v5963
    %v7295 = vpack.c.b16 %v5966, %v5965
    %v7296 = vpack.c.b16 %v5968, %v5967
    %v7297 = vpack.c.b16 %v5970, %v5969
    %v7298 = vpack.c.b16 %v5972, %v5971
    %v7299 = vpack.c.b16 %v5974, %v5973
    %v7300 = vpack.c.b16 %v5976, %v5975
    %v7301 = vpack.c.b16 %v5978, %v5977
    %v7302 = vpack.c.b16 %v5980, %v5979
    %v7303 = vpack.c.b16 %v5982, %v5981
    %v7304 = vpack.c.b16 %v5984, %v5983
    %v7305 = vpack.c.b16 %v5986, %v5985
    %v7306 = vpack.c.b16 %v5988, %v5987
    %v7307 = vpack.c.b16 %v5990, %v5989
    %v7308 = vpack.c.b16 %v5992, %v5991
    %v7309 = vpack.c.b16 %v5994, %v5993
    %v7310 = vpack.c.b16 %v5996, %v5995
    %v7311 = vpack.c.b16 %v5998, %v5997
    %v7312 = vpack.c.b16 %v6000, %v5999
    %v7313 = vpack.c.b16 %v6002, %v6001
    %v7314 = vpack.c.b16 %v6004, %v6003
    %v7315 = vpack.c.b16 %v6006, %v6005
    %v7316 = vpack.c.b16 %v6008, %v6007
    %v7317 = vpack.c.b16 %v6010, %v6009
    %v7318 = vpack.c.b16 %v6012, %v6011
    %v7319 = vpack.c.b16 %v6014, %v6013
    %v7320 = vpack.c.b16 %v6016, %v6015
    %v7321 = vpack.c.b16 %v6018, %v6017
    %v7322 = vpack.c.b16 %v6020, %v6019
    %v7323 = vpack.c.b16 %v6022, %v6021
    %v7324 = vpack.c.b16 %v6024, %v6023
    %v7325 = vpack.c.b16 %v6026, %v6025
    %v7326 = vpack.c.b16 %v6028, %v6027
    %v7327 = vpack.c.b16 %v6030, %v6029
    %v7328 = vpack.c.b16 %v6032, %v6031
    %v7329 = vpack.c.b16 %v6034, %v6033
    %v7330 = vpack.c.b16 %v6036, %v6035
    %v7331 = vpack.c.b16 %v6038, %v6037
    %v7332 = vpack.c.b16 %v6040, %v6039
    %v7333 = vpack.c.b16 %v6042, %v6041
    %v7334 = vpack.c.b16 %v6044, %v6043
    %v7335 = vpack.c.b16 %v6046, %v6045
    %v7336 = vpack.c.b16 %v6048, %v6047
    %v7337 = vpack.c.b16 %v6050, %v6049
    %v7338 = vpack.c.b16 %v6052, %v6051
    %v7339 = vpack.c.b16 %v6054, %v6053
    %v7340 = vpack.c.b16 %v6056, %v6055
    %v7341 = vpack.c.b16 %v6058, %v6057
    %v7342 = vpack.c.b16 %v6060, %v6059
    %v7343 = vpack.c.b16 %v6062, %v6061
    %v7344 = vpack.c.b16 %v6064, %v6063
    %v7345 = vpack.c.b16 %v6066, %v6065
    %v7346 = vpack.c.b16 %v6068, %v6067
    %v7347 = vpack.c.b16 %v6070, %v6069
    %v7348 = vpack.c.b16 %v6072, %v6071
    %v7349 = vpack.c.b16 %v6074, %v6073
    %v7350 = vpack.c.b16 %v6076, %v6075
    %v7351 = vpack.c.b16 %v6078, %v6077
    %v7352 = vpack.c.b16 %v6080, %v6079
    %v7353 = vpack.c.b16 %v6082, %v6081
    %v7354 = vpack.c.b16 %v6084, %v6083
    %v7355 = vpack.c.b16 %v6086, %v6085
    %v7356 = vpack.c.b16 %v6088, %v6087
    %v7357 = vpack.c.b16 %v6090, %v6089
    %v7358 = vpack.c.b16 %v6092, %v6091
    %v7359 = vpack.c.b16 %v6094, %v6093
    %v7360 = vpack.c.b16 %v6096, %v6095
    %v7361 = vpack.c.b16 %v6098, %v6097
    %v7362 = vpack.c.b16 %v6100, %v6099
    %v7363 = vpack.c.b16 %v6102, %v6101
    %v7364 = vpack.c.b16 %v6104, %v6103
    %v7365 = vpack.c.b16 %v6106, %v6105
    %v7366 = vpack.c.b16 %v6108, %v6107
    %v7367 = vpack.c.b16 %v6110, %v6109
    %v7368 = vpack.c.b16 %v6112, %v6111
    %v7369 = vpack.c.b16 %v6114, %v6113
    %v7370 = vpack.c.b16 %v6116, %v6115
    %v7371 = vpack.c.b16 %v6118, %v6117
    %v7372 = vpack.c.b16 %v6120, %v6119
    %v7373 = vpack.c.b16 %v6122, %v6121
    %v7374 = vpack.c.b16 %v6124, %v6123
    %v7375 = vpack.c.b16 %v6126, %v6125
    %v7376 = vpack.c.b16 %v6128, %v6127
    %v7377 = vpack.c.b16 %v6130, %v6129
    %v7378 = vpack.c.b16 %v6132, %v6131
    %v7379 = vpack.c.b16 %v6134, %v6133
    %v7380 = vpack.c.b16 %v6136, %v6135
    %v7381 = vpack.c.b16 %v6138, %v6137
    %v7382 = vpack.c.b16 %v6140, %v6139
    %v7383 = vpack.c.b16 %v6142, %v6141
    %v7384 = vpack.c.b16 %v6144, %v6143
    %v7385 = vpack.c.b16 %v6146, %v6145
    %v7386 = vpack.c.b16 %v6148, %v6147
    %v7387 = vpack.c.b16 %v6150, %v6149
    %v7388 = vpack.c.b16 %v6152, %v6151
    %v7389 = vpack.c.b16 %v6154, %v6153
    %v7390 = vpack.c.b16 %v6156, %v6155
    %v7391 = vpack.c.b16 %v6158, %v6157
    %v7392 = vpack.c.b16 %v6160, %v6159
    %v7393 = vpack.c.b16 %v6162, %v6161
    %v7394 = vpack.c.b16 %v6164, %v6163
    %v7395 = vpack.c.b16 %v6166, %v6165
    %v7396 = vpack.c.b16 %v6168, %v6167
    %v7397 = vpack.c.b16 %v6170, %v6169
    %v7398 = vpack.c.b16 %v6172, %v6171
    %v7399 = vpack.c.b16 %v6174, %v6173
    %v7400 = vpack.c.b16 %v6176, %v6175
    %v7401 = vpack.c.b16 %v6178, %v6177
    %v7402 = vpack.c.b16 %v6180, %v6179
    %v7403 = vpack.c.b16 %v6182, %v6181
    %v7404 = vpack.c.b16 %v6184, %v6183
    %v7405 = vpack.c.b16 %v6186, %v6185
    %v7406 = vpack.c.b16 %v6188, %v6187
    %v7407 = vpack.c.b16 %v6190, %v6189
    %v7408 = vpack.c.b16 %v6192, %v6191
    %v7409 = vpack.c.b16 %v6194, %v6193
    %v7410 = vpack.c.b16 %v6196, %v6195
    %v7411 = vpack.c.b16 %v6198, %v6197
    %v7412 = vpack.c.b16 %v6200, %v6199
    %v7413 = vpack.c.b16 %v6202, %v6201
    %v7414 = vpack.c.b16 %v6204, %v6203
    %v7415 = vpack.c.b16 %v6206, %v6205
    %v7416 = vpack.c.b16 %v6208, %v6207
    %v7417 = vpack.c.b16 %v6210, %v6209
    %v7418 = vpack.c.b16 %v6212, %v6211
    %v7419 = vpack.c.b16 %v6214, %v6213
    %v7420 = vpack.c.b16 %v6216, %v6215
    %v7421 = vpack.c.b16 %v6218, %v6217
    %v7422 = vpack.c.b16 %v6220, %v6219
    %v7423 = vpack.c.b16 %v6222, %v6221
    %v7424 = vpack.c.b16 %v6224, %v6223
    %v7425 = vpack.c.b16 %v6226, %v6225
    %v7426 = vpack.c.b16 %v6228, %v6227
    %v7427 = vpack.c.b16 %v6230, %v6229
    %v7428 = vpack.c.b16 %v6232, %v6231
    %v7429 = vpack.c.b16 %v6234, %v6233
    %v7430 = vpack.c.b16 %v6236, %v6235
    %v7431 = vpack.c.b16 %v6238, %v6237
    %v7432 = vpack.c.b16 %v6240, %v6239
    %v7433 = vpack.c.b16 %v6242, %v6241
    %v7434 = vpack.c.b16 %v6244, %v6243
    %v7435 = vpack.c.b16 %v6246, %v6245
    %v7436 = vpack.c.b16 %v6248, %v6247
    %v7437 = vpack.c.b16 %v6250, %v6249
    %v7438 = vpack.c.b16 %v6252, %v6251
    %v7439 = vpack.c.b16 %v6254, %v6253
    %v7440 = vpack.c.b16 %v6256, %v6255
    %v7441 = vpack.c.b16 %v6258, %v6257
    %v7442 = vpack.c.b16 %v6260, %v6259
    %v7443 = vpack.c.b16 %v6262, %v6261
    %v7444 = vpack.c.b16 %v6264, %v6263
    %v7445 = vpack.c.b16 %v6266, %v6265
    %v7446 = vpack.c.b16 %v6268, %v6267
    %v7447 = vpack.c.b16 %v6270, %v6269
    %v7448 = vpack.c.b16 %v6272, %v6271
    %v7449 = vpack.c.b16 %v6274, %v6273
    %v7450 = vpack.c.b16 %v6276, %v6275
    %v7451 = vpack.c.b16 %v6278, %v6277
    %v7452 = vpack.c.b16 %v6280, %v6279
    %v7453 = vpack.c.b16 %v6282, %v6281
    %v7454 = vpack.c.b16 %v6284, %v6283
    %v7455 = vpack.c.b16 %v6286, %v6285
    %v7456 = vpack.c.b16 %v6288, %v6287
    %v7457 = vpack.c.b16 %v6290, %v6289
    %v7458 = vpack.c.b16 %v6292, %v6291
    %v7459 = vpack.c.b16 %v6294, %v6293
    %v7460 = vpack.c.b16 %v6296, %v6295
    %v7461 = vpack.c.b16 %v6298, %v6297
    %v7462 = vpack.c.b16 %v6300, %v6299
    %v7463 = vpack.c.b16 %v6302, %v6301
    %v7464 = vpack.c.b16 %v6304, %v6303
    %v7465 = vpack.c.b16 %v6306, %v6305
    %v7466 = vpack.c.b16 %v6308, %v6307
    %v7467 = vpack.c.b16 %v6310, %v6309
    %v7468 = vpack.c.b16 %v6312, %v6311
    %v7469 = vpack.c.b16 %v6314, %v6313
    %v7470 = vpack.c.b16 %v6316, %v6315
    %v7471 = vpack.c.b16 %v6318, %v6317
    %v7472 = vpack.c.b16 %v6320, %v6319
    %v7473 = vpack.c.b16 %v6322, %v6321
    %v7474 = vpack.c.b16 %v6324, %v6323
    %v7475 = vpack.c.b16 %v6326, %v6325
    %v7476 = vpack.c.b16 %v6328, %v6327
    %v7477 = vpack.c.b16 %v6330, %v6329
    %v7478 = vpack.c.b16 %v6332, %v6331
    %v7479 = vpack.c.b16 %v6334, %v6333
    %v7480 = vpack.c.b16 %v6336, %v6335
    %v7481 = vpack.c.b16 %v6338, %v6337
    %v7482 = vpack.c.b16 %v6340, %v6339
    %v7483 = vpack.c.b16 %v6342, %v6341
    %v7484 = vpack.c.b16 %v6344, %v6343
    %v7485 = vpack.c.b16 %v6346, %v6345
    %v7486 = vpack.c.b16 %v6348, %v6347
    %v7487 = vpack.c.b16 %v6350, %v6349
    %v7488 = vpack.c.b16 %v6352, %v6351
    %v7489 = vpack.c.b16 %v6354, %v6353
    %v7490 = vpack.c.b16 %v6356, %v6355
    %v7491 = vpack.c.b16 %v6358, %v6357
    %v7492 = vpack.c.b16 %v6360, %v6359
    %v7493 = vpack.c.b16 %v6362, %v6361
    %v7494 = vpack.c.b16 %v6364, %v6363
    %v7495 = vpack.c.b16 %v6366, %v6365
    %v7496 = vpack.c.b16 %v6368, %v6367
    %v7497 = vpack.c.b16 %v6370, %v6369
    %v7498 = vpack.c.b16 %v6372, %v6371
    %v7499 = vpack.c.b16 %v6374, %v6373
    %v7500 = vpack.c.b16 %v6376, %v6375
    %v7501 = vpack.c.b16 %v6378, %v6377
    %v7502 = vpack.c.b16 %v6380, %v6379
    %v7503 = vpack.c.b16 %v6382, %v6381
    %v7504 = vpack.c.b16 %v6384, %v6383
    %v7505 = vpack.c.b16 %v6386, %v6385
    %v7506 = vpack.c.b16 %v6388, %v6387
    %v7507 = vpack.c.b16 %v6390, %v6389
    %v7508 = vpack.c.b16 %v6392, %v6391
    %v7509 = vpack.c.b16 %v6394, %v6393
    %v7510 = vpack.c.b16 %v6396, %v6395
    %v7511 = vpack.c.b16 %v6398, %v6397
    %v7512 = vpack.c.b16 %v6400, %v6399
    %v7513 = vpack.c.b16 %v6402, %v6401
    %v7514 = vpack.c.b16 %v6404, %v6403
    %v7515 = vpack.c.b16 %v6406, %v6405
    %v7516 = vpack.c.b16 %v6408, %v6407
    %v7517 = vpack.c.b16 %v6410, %v6409
    %v7518 = vpack.c.b16 %v6412, %v6411
    %v7519 = vpack.c.b16 %v6414, %v6413
    %v7520 = vpack.c.b16 %v6416, %v6415
    %v7521 = vpack.c.b16 %v6418, %v6417
    %v7522 = vpack.c.b16 %v6420, %v6419
    %v7523 = vpack.c.b16 %v6422, %v6421
    %v7524 = vpack.c.b16 %v6424, %v6423
    %v7525 = vpack.c.b16 %v6426, %v6425
    %v7526 = vpack.c.b16 %v6428, %v6427
    %v7527 = vpack.c.b16 %v6430, %v6429
    %v7528 = vpack.c.b16 %v6432, %v6431
    %v7529 = vpack.c.b16 %v6434, %v6433
    %v7530 = vpack.c.b16 %v6436, %v6435
    %v7531 = vpack.c.b16 %v6438, %v6437
    %v7532 = vpack.c.b16 %v6440, %v6439
    %v7533 = vpack.c.b16 %v6442, %v6441
    %v7534 = vpack.c.b16 %v6444, %v6443
    %v7535 = vpack.c.b16 %v6446, %v6445
    %v7536 = vpack.c.b16 %v6448, %v6447
    %v7537 = vpack.c.b16 %v6450, %v6449
    %v7538 = vpack.c.b16 %v6452, %v6451
    %v7539 = vpack.c.b16 %v6454, %v6453
    %v7540 = vpack.c.b16 %v6456, %v6455
    %v7541 = vpack.c.b16 %v6458, %v6457
    %v7542 = vpack.c.b16 %v6460, %v6459
    %v7543 = vpack.c.b16 %v6462, %v6461
    %v7544 = vpack.c.b16 %v6464, %v6463
    %v7545 = vpack.c.b16 %v6466, %v6465
    %v7546 = vpack.c.b16 %v6468, %v6467
    %v7547 = vpack.c.b16 %v6470, %v6469
    %v7548 = vpack.c.b16 %v6472, %v6471
    %v7549 = vpack.c.b16 %v6474, %v6473
    %v7550 = vpack.c.b16 %v6476, %v6475
    %v7551 = vpack.c.b16 %v6478, %v6477
    %v7552 = vpack.c.b16 %v6480, %v6479
    %v7553 = vpack.c.b16 %v6482, %v6481
    %v7554 = vpack.c.b16 %v6484, %v6483
    %v7555 = vpack.c.b16 %v6486, %v6485
    %v7556 = vpack.c.b16 %v6488, %v6487
    %v7557 = vpack.c.b16 %v6490, %v6489
    %v7558 = vpack.c.b16 %v6492, %v6491
    %v7559 = vpack.c.b16 %v6494, %v6493
    %v7560 = vpack.c.b16 %v6496, %v6495
    %v7561 = vpack.c.b16 %v6498, %v6497
    %v7562 = vpack.c.b16 %v6500, %v6499
    %v7563 = vpack.c.b16 %v6502, %v6501
    %v7564 = vpack.c.b16 %v6504, %v6503
    %v7565 = vpack.c.b16 %v6506, %v6505
    %v7566 = vpack.c.b16 %v6508, %v6507
    %v7567 = vpack.c.b16 %v6510, %v6509
    %v7568 = vpack.c.b16 %v6512, %v6511
    %v7569 = vpack.c.b16 %v6514, %v6513
    %v7570 = vpack.c.b16 %v6516, %v6515
    %v7571 = vpack.c.b16 %v6518, %v6517
    %v7572 = vpack.c.b16 %v6520, %v6519
    %v7573 = vpack.c.b16 %v6522, %v6521
    %v7574 = vpack.c.b16 %v6524, %v6523
    %v7575 = vpack.c.b16 %v6526, %v6525
    %v7576 = vpack.c.b16 %v6528, %v6527
    %v7577 = vpack.c.b16 %v6530, %v6529
    %v7578 = vpack.c.b16 %v6532, %v6531
    %v7579 = vpack.c.b16 %v6534, %v6533
    %v7580 = vpack.c.b16 %v6536, %v6535
    %v7581 = vpack.c.b16 %v6538, %v6537
    %v7582 = vpack.c.b16 %v6540, %v6539
    %v7583 = vpack.c.b16 %v6542, %v6541
    %v7584 = vpack.c.b16 %v6544, %v6543
    %v7585 = vpack.c.b16 %v6546, %v6545
    %v7586 = vpack.c.b16 %v6548, %v6547
    %v7587 = vpack.c.b16 %v6550, %v6549
    %v7588 = vpack.c.b16 %v6552, %v6551
    %v7589 = vpack.c.b16 %v6554, %v6553
    %v7590 = vpack.c.b16 %v6556, %v6555
    %v7591 = vpack.c.b16 %v6558, %v6557
    %v7592 = vpack.c.b16 %v6560, %v6559
    %v7593 = vpack.c.b16 %v6562, %v6561
    %v7594 = vpack.c.b16 %v6564, %v6563
    %v7595 = vpack.c.b16 %v6566, %v6565
    %v7596 = vpack.c.b16 %v6568, %v6567
    %v7597 = vpack.c.b16 %v6570, %v6569
    %v7598 = vpack.c.b16 %v6572, %v6571
    %v7599 = vpack.c.b16 %v6574, %v6573
    %v7600 = vpack.c.b16 %v6576, %v6575
    %v7601 = vpack.c.b16 %v6578, %v6577
    %v7602 = vpack.c.b16 %v6580, %v6579
    %v7603 = vpack.c.b16 %v6582, %v6581
    %v7604 = vpack.c.b16 %v6584, %v6583
    %v7605 = vpack.c.b16 %v6586, %v6585
    %v7606 = vpack.c.b16 %v6588, %v6587
    %v7607 = vpack.c.b16 %v6590, %v6589
    %v7608 = vpack.c.b16 %v6592, %v6591
    %v7609 = vpack.c.b16 %v6594, %v6593
    %v7610 = vpack.c.b16 %v6596, %v6595
    %v7611 = vpack.c.b16 %v6598, %v6597
    %v7612 = vpack.c.b16 %v6600, %v6599
    %v7613 = vpack.c.b16 %v6602, %v6601
    %v7614 = vpack.c.b16 %v6604, %v6603
    %v7615 = vpack.c.b16 %v6606, %v6605
    %v7616 = vpack.c.b16 %v6608, %v6607
    %v7617 = vpack.c.b16 %v6610, %v6609
    %v7618 = vpack.c.b16 %v6612, %v6611
    %v7619 = vpack.c.b16 %v6614, %v6613
    %v7620 = vpack.c.b16 %v6616, %v6615
    %v7621 = vpack.c.b16 %v6618, %v6617
    %v7622 = vpack.c.b16 %v6620, %v6619
    %v7623 = vpack.c.b16 %v6622, %v6621
    %v7624 = vpack.c.b16 %v6624, %v6623
    %v7625 = vpack.c.b16 %v6626, %v6625
    %v7626 = vpack.c.b16 %v6628, %v6627
    %v7627 = vpack.c.b16 %v6630, %v6629
    %v7628 = vpack.c.b16 %v6632, %v6631
    %v7629 = vpack.c.b16 %v6634, %v6633
    %v7630 = vpack.c.b16 %v6636, %v6635
    %v7631 = vpack.c.b16 %v6638, %v6637
    %v7632 = vpack.c.b16 %v6640, %v6639
    %v7633 = vpack.c.b16 %v6642, %v6641
    %v7634 = vpack.c.b16 %v6644, %v6643
    %v7635 = vpack.c.b16 %v6646, %v6645
    %v7636 = vpack.c.b16 %v6648, %v6647
    %v7637 = vpack.c.b16 %v6650, %v6649
    %v7638 = vpack.c.b16 %v6652, %v6651
    %v7639 = vpack.c.b16 %v6654, %v6653
    %v7640 = vpack.c.b16 %v6656, %v6655
    %v7641 = vpack.c.b16 %v6658, %v6657
    %v7642 = vpack.c.b16 %v6660, %v6659
    %v7643 = vpack.c.b16 %v6662, %v6661
    %v7644 = vpack.c.b16 %v6664, %v6663
    %v7645 = vpack.c.b16 %v6666, %v6665
    %v7646 = vpack.c.b16 %v6668, %v6667
    %v7647 = vpack.c.b16 %v6670, %v6669
    %v7648 = vpack.c.b16 %v6672, %v6671
    %v7649 = vpack.c.b16 %v6674, %v6673
    %v7650 = vpack.c.b16 %v6676, %v6675
    %v7651 = vpack.c.b16 %v6678, %v6677
    %v7652 = vpack.c.b16 %v6680, %v6679
    %v7653 = vpack.c.b16 %v6682, %v6681
    %v7654 = vpack.c.b16 %v6684, %v6683
    %v7655 = vpack.c.b16 %v6686, %v6685
    %v7656 = vpack.c.b16 %v6688, %v6687
    %v7657 = vpack.c.b16 %v6690, %v6689
    %v7658 = vpack.c.b16 %v6692, %v6691
    %v7659 = vpack.c.b16 %v6694, %v6693
    %v7660 = vpack.c.b16 %v6696, %v6695
    %v7661 = vpack.c.b16 %v6698, %v6697
    %v7662 = vpack.c.b16 %v6700, %v6699
    %v7663 = vpack.c.b16 %v6702, %v6701
    %v7664 = vpack.c.b16 %v6704, %v6703
    %v7665 = vpack.c.b16 %v6706, %v6705
    %v7666 = vpack.c.b16 %v6708, %v6707
    %v7667 = vpack.c.b16 %v6710, %v6709
    %v7668 = vpack.c.b16 %v6712, %v6711
    %v7669 = vpack.c.b16 %v6714, %v6713
    %v7670 = vpack.c.b16 %v6716, %v6715
    %v7671 = vpack.c.b16 %v6718, %v6717
    %v7672 = vpack.c.b16 %v6720, %v6719
    %v7673 = vpack.c.b16 %v6722, %v6721
    %v7674 = vpack.c.b16 %v6724, %v6723
    %v7675 = vpack.c.b16 %v6726, %v6725
    %v7676 = vpack.c.b16 %v6728, %v6727
    %v7677 = vpack.c.b16 %v6730, %v6729
    %v7678 = vpack.c.b16 %v6732, %v6731
    %v7679 = vpack.c.b16 %v6734, %v6733
    %v7680 = vpack.c.b16 %v6736, %v6735
    %v7681 = vpack.c.b16 %v6738, %v6737
    %v7682 = vpack.c.b16 %v6740, %v6739
    %v7683 = vpack.c.b16 %v6742, %v6741
    %v7684 = vpack.c.b16 %v6744, %v6743
    %v7685 = vpack.c.b16 %v6746, %v6745
    %v7686 = vpack.c.b16 %v6748, %v6747
    %v7687 = vpack.c.b16 %v6750, %v6749
    %v7688 = vpack.c.b16 %v6752, %v6751
    %v7689 = vpack.c.b16 %v6754, %v6753
    %v7690 = vpack.c.b16 %v6756, %v6755
    %v7691 = vpack.c.b16 %v6758, %v6757
    %v7692 = vpack.c.b16 %v6760, %v6759
    %v7693 = vpack.c.b16 %v6762, %v6761
    %v7694 = vpack.c.b16 %v6764, %v6763
    %v7695 = vpack.c.b16 %v6766, %v6765
    %v7696 = vpack.c.b16 %v6768, %v6767
    %v7697 = vpack.c.b16 %v6770, %v6769
    %v7698 = vpack.c.b16 %v6772, %v6771
    %v7699 = vpack.c.b16 %v6774, %v6773
    %v7700 = vpack.c.b16 %v6776, %v6775
    %v7701 = vpack.c.b16 %v6778, %v6777
    %v7702 = vpack.c.b16 %v6780, %v6779
    %v7703 = vpack.c.b16 %v6782, %v6781
    %v7704 = vpack.c.b16 %v6784, %v6783
    %v7705 = vpack.c.b16 %v6786, %v6785
    %v7706 = vpack.c.b16 %v6788, %v6787
    %v7707 = vpack.c.b16 %v6790, %v6789
    %v7708 = vpack.c.b16 %v6792, %v6791
    %v7709 = vpack.c.b16 %v6794, %v6793
    %v7710 = vpack.c.b16 %v6796, %v6795
    %v7711 = vpack.c.b16 %v6798, %v6797
    %v7712 = vpack.c.b16 %v6800, %v6799
    %v7713 = vpack.c.b16 %v6802, %v6801
    %v7714 = vpack.c.b16 %v6804, %v6803
    %v7715 = vpack.c.b16 %v6806, %v6805
    %v7716 = vpack.c.b16 %v6808, %v6807
    %v7717 = vpack.c.b16 %v6810, %v6809
    %v7718 = vpack.c.b16 %v6812, %v6811
    %v7719 = vpack.c.b16 %v6814, %v6813
    %v7720 = vpack.c.b16 %v6816, %v6815
    %v7721 = vpack.c.b16 %v6818, %v6817
    %v7722 = vpack.c.b16 %v6820, %v6819
    %v7723 = vpack.c.b16 %v6822, %v6821
    %v7724 = vpack.c.b16 %v6824, %v6823
    %v7725 = vpack.c.b16 %v6826, %v6825
    %v7726 = vpack.c.b16 %v6828, %v6827
    %v7727 = vpack.c.b16 %v6830, %v6829
    %v7728 = vpack.c.b16 %v6832, %v6831
    %v7729 = vpack.c.b16 %v6834, %v6833
    %v7730 = vpack.c.b16 %v6836, %v6835
    %v7731 = vpack.c.b16 %v6838, %v6837
    %v7732 = vpack.c.b16 %v6840, %v6839
    %v7733 = vpack.c.b16 %v6842, %v6841
    %v7734 = vpack.c.b16 %v6844, %v6843
    %v7735 = vpack.c.b16 %v6846, %v6845
    %v7736 = vpack.c.b16 %v6848, %v6847
    %v7737 = vpack.c.b16 %v6850, %v6849
    %v7738 = vpack.c.b16 %v6852, %v6851
    %v7739 = vpack.c.b16 %v6854, %v6853
    %v7740 = vpack.c.b16 %v6856, %v6855
    %v7741 = vpack.c.b16 %v6858, %v6857
    %v7742 = vpack.c.b16 %v6860, %v6859
    %v7743 = vpack.c.b16 %v6862, %v6861
    %v7744 = vpack.c.b16 %v6864, %v6863
    %v7745 = vpack.c.b16 %v6866, %v6865
    %v7746 = vpack.c.b16 %v6868, %v6867
    %v7747 = vpack.c.b16 %v6870, %v6869
    %v7748 = vpack.c.b16 %v6872, %v6871
    %v7749 = vpack.c.b16 %v6874, %v6873
    %v7750 = vpack.c.b16 %v6876, %v6875
    %v7751 = vpack.c.b16 %v6878, %v6877
    %v7752 = vpack.c.b16 %v6880, %v6879
    %v7753 = vpack.c.b16 %v6882, %v6881
    %v7754 = vpack.c.b16 %v6884, %v6883
    %v7755 = vpack.c.b16 %v6886, %v6885
    %v7756 = vpack.c.b16 %v6888, %v6887
    %v7757 = vpack.c.b16 %v6890, %v6889
    %v7758 = vpack.c.b16 %v6892, %v6891
    %v7759 = vpack.c.b16 %v6894, %v6893
    %v7760 = vpack.c.b16 %v6896, %v6895
    %v7761 = vpack.c.b16 %v6898, %v6897
    %v7762 = vpack.c.b16 %v6900, %v6899
    %v7763 = vpack.c.b16 %v6902, %v6901
    %v7764 = vpack.c.b16 %v6904, %v6903
    %v7765 = vpack.c.b16 %v6906, %v6905
    %v7766 = vpack.c.b16 %v6908, %v6907
    %v7767 = vpack.c.b16 %v6910, %v6909
    %v7768 = vpack.c.b16 %v6912, %v6911
    %v7769 = vpack.c.b16 %v6914, %v6913
    %v7770 = vpack.c.b16 %v6916, %v6915
    %v7771 = vpack.c.b16 %v6918, %v6917
    %v7772 = vpack.c.b16 %v6920, %v6919
    %v7773 = vpack.c.b16 %v6922, %v6921
    %v7774 = vpack.c.b16 %v6924, %v6923
    %v7775 = vpack.c.b16 %v6926, %v6925
    %v7776 = vpack.c.b16 %v6928, %v6927
    %v7777 = vpack.c.b16 %v6930, %v6929
    %v7778 = vpack.c.b16 %v6932, %v6931
    %v7779 = vpack.c.b16 %v6934, %v6933
    %v7780 = vpack.c.b16 %v6936, %v6935
    %v7781 = vpack.c.b16 %v6938, %v6937
    %v7782 = vpack.c.b16 %v6940, %v6939
    %v7783 = vpack.c.b16 %v6942, %v6941
    %v7784 = vpack.c.b16 %v6944, %v6943
    %v7785 = vpack.c.b16 %v6946, %v6945
    %v7786 = vpack.c.b16 %v6948, %v6947
    %v7787 = vpack.c.b16 %v6950, %v6949
    %v7788 = vpack.c.b16 %v6952, %v6951
    %v7789 = vpack.c.b16 %v6954, %v6953
    %v7790 = vpack.c.b16 %v6956, %v6955
    %v7791 = vpack.c.b16 %v6958, %v6957
    %v7792 = vpack.c.b16 %v6960, %v6959
    %v7793 = vpack.c.b16 %v6962, %v6961
    %v7794 = vpack.c.b16 %v6964, %v6963
    %v7795 = vpack.c.b16 %v6966, %v6965
    %v7796 = vpack.c.b16 %v6968, %v6967
    %v7797 = vpack.c.b16 %v6970, %v6969
    %v7798 = vpack.c.b16 %v6972, %v6971
    %v7799 = vpack.c.b16 %v6974, %v6973
    %v7800 = vpack.c.b16 %v6976, %v6975
    %v7801 = vpack.c.b16 %v6978, %v6977
    %v7802 = vpack.c.b16 %v6980, %v6979
    %v7803 = vpack.c.b16 %v6982, %v6981
    %v7804 = vpack.c.b16 %v6984, %v6983
    %v7805 = vpack.c.b16 %v6986, %v6985
    %v7806 = vpack.c.b16 %v6988, %v6987
    %v7807 = vpack.c.b16 %v6990, %v6989
    %v7808 = vpack.c.b16 %v6992, %v6991
    %v7809 = vpack.c.b16 %v6994, %v6993
    %v7810 = vpack.c.b16 %v6996, %v6995
    %v7811 = vpack.c.b16 %v6998, %v6997
    %v7812 = vpack.c.b16 %v7000, %v6999
    %v7813 = vpack.c.b16 %v7002, %v7001
    %v7814 = vpack.c.b16 %v7004, %v7003
    %v7815 = vpack.c.b16 %v7006, %v7005
    %v7816 = vpack.c.b16 %v7008, %v7007
    %v7817 = vpack.c.b16 %v7010, %v7009
    %v7818 = vpack.c.b16 %v7012, %v7011
    %v7819 = vpack.c.b16 %v7014, %v7013
    %v7820 = vpack.c.b16 %v7016, %v7015
    %v7821 = vpack.c.b16 %v7018, %v7017
    %v7822 = vpack.c.b16 %v7020, %v7019
    %v7823 = vpack.c.b16 %v7022, %v7021
    %v7824 = vpack.c.b16 %v7024, %v7023
    %v7825 = vpack.c.b16 %v7026, %v7025
    %v7826 = vpack.c.b16 %v7028, %v7027
    %v7827 = vpack.c.b16 %v7030, %v7029
    %v7828 = vpack.c.b16 %v7032, %v7031
    %v7829 = vpack.c.b16 %v7034, %v7033
    %v7830 = vpack.c.b16 %v7036, %v7035
    %v7831 = vpack.c.b16 %v7038, %v7037
    %v7832 = vpack.c.b16 %v7040, %v7039
    %v7833 = vpack.c.b16 %v7042, %v7041
    %v7834 = vpack.c.b16 %v7044, %v7043
    %v7835 = vpack.c.b16 %v7046, %v7045
    %v7836 = vpack.c.b16 %v7048, %v7047
    %v7837 = vpack.c.b16 %v7050, %v7049
    %v7838 = vpack.c.b16 %v7052, %v7051
    %v7839 = vpack.c.b16 %v7054, %v7053
    %v7840 = vpack.c.b16 %v7056, %v7055
    %v7841 = vpack.c.b16 %v7058, %v7057
    %v7842 = vpack.c.b16 %v7060, %v7059
    %v7843 = vpack.c.b16 %v7062, %v7061
    %v7844 = vpack.c.b16 %v7064, %v7063
    %v7845 = vpack.c.b16 %v7066, %v7065
    %v7846 = vpack.c.b16 %v7068, %v7067
    %v7847 = vpack.c.b16 %v7070, %v7069
    %v7848 = vpack.c.b16 %v7072, %v7071
    %v7849 = vpack.c.b16 %v7074, %v7073
    %v7850 = vpack.c.b16 %v7076, %v7075
    %v7851 = vpack.c.b16 %v7078, %v7077
    %v7852 = vpack.c.b16 %v7080, %v7079
    %v7853 = vpack.c.b16 %v7082, %v7081
    %v7854 = vpack.c.b16 %v7084, %v7083
    %v7855 = vpack.c.b16 %v7086, %v7085
    %v7856 = vpack.c.b16 %v7088, %v7087
    %8625 = vmatprep.subr.bf16.mxu0 0
    %8626 = vmatpush1.bf16.msra.mxu0 %v7089
    %8627 = vmatprep.subr.bf16.mxu0 0
    %8628 = vmatpush1.bf16.msra.mxu0 %v7090
    %8629 = vmatprep.subr.bf16.mxu0 0
    %8630 = vmatpush1.bf16.msra.mxu0 %v7091
    %8631 = vmatprep.subr.bf16.mxu0 0
    %8632 = vmatpush1.bf16.msra.mxu0 %v7092
    %8633 = vmatprep.subr.bf16.mxu0 0
    %8634 = vmatpush1.bf16.msra.mxu0 %v7093
    %8635 = vmatprep.subr.bf16.mxu0 0
    %8636 = vmatpush1.bf16.msra.mxu0 %v7094
    %8637 = vmatprep.subr.bf16.mxu0 0
    %8638 = vmatpush1.bf16.msra.mxu0 %v7095
    %8639 = vmatprep.subr.bf16.mxu0 0
    %8640 = vmatpush1.bf16.msra.mxu0 %v7096
    %8641 = vmatprep.subr.bf16.mxu0 0
    %8642 = vmatpush1.bf16.msra.mxu0 %v7097
    %8643 = vmatprep.subr.bf16.mxu0 0
    %8644 = vmatpush1.bf16.msra.mxu0 %v7098
    %8645 = vmatprep.subr.bf16.mxu0 0
    %8646 = vmatpush1.bf16.msra.mxu0 %v7099
    %8647 = vmatprep.subr.bf16.mxu0 0
    %8648 = vmatpush1.bf16.msra.mxu0 %v7100
    %8649 = vmatprep.subr.bf16.mxu0 0
    %8650 = vmatpush1.bf16.msra.mxu0 %v7101
    %8651 = vmatprep.subr.bf16.mxu0 0
    %8652 = vmatpush1.bf16.msra.mxu0 %v7102
    %8653 = vmatprep.subr.bf16.mxu0 0
    %8654 = vmatpush1.bf16.msra.mxu0 %v7103
    %8655 = vmatprep.subr.bf16.mxu0 0
    %8656 = vmatpush1.bf16.msra.mxu0 %v7104
    %8657 = vmatprep.mubr.bf16.mxu0 %v2386
    %8658 = vmatmul.mubr.bf16.gmra.mrb[0].mxu0 %v2385
    %v8659 = vpop.f32.mrb[0].mxu0
    %v8660 = vadd.f32 0.0, %v8659
    %v8661 = vpop.f32.mrb[0].mxu0
    %v8662 = vpop.f32.mrb[0].mxu0
    %v8663 = vadd.f32 0.0, %v8662
    %v8664 = vpop.f32.mrb[0].mxu0
    %8665 = vdwg.mxu0
    %8666 = vmatprep.subr.bf16.mxu0 0
    %8667 = vmatpush1.bf16.msra.mxu0 %v7105
    %8668 = vmatprep.subr.bf16.mxu0 0
    %8669 = vmatpush1.bf16.msra.mxu0 %v7106
    %8670 = vmatprep.subr.bf16.mxu0 0
    %8671 = vmatpush1.bf16.msra.mxu0 %v7107
    %8672 = vmatprep.subr.bf16.mxu0 0
    %8673 = vmatpush1.bf16.msra.mxu0 %v7108
    %8674 = vmatprep.subr.bf16.mxu0 0
    %8675 = vmatpush1.bf16.msra.mxu0 %v7109
    %8676 = vmatprep.subr.bf16.mxu0 0
    %8677 = vmatpush1.bf16.msra.mxu0 %v7110
    %8678 = vmatprep.subr.bf16.mxu0 0
    %8679 = vmatpush1.bf16.msra.mxu0 %v7111
    %8680 = vmatprep.subr.bf16.mxu0 0
    %8681 = vmatpush1.bf16.msra.mxu0 %v7112
    %8682 = vmatprep.subr.bf16.mxu0 0
    %8683 = vmatpush1.bf16.msra.mxu0 %v7113
    %8684 = vmatprep.subr.bf16.mxu0 0
    %8685 = vmatpush1.bf16.msra.mxu0 %v7114
    %8686 = vmatprep.subr.bf16.mxu0 0
    %8687 = vmatpush1.bf16.msra.mxu0 %v7115
    %8688 = vmatprep.subr.bf16.mxu0 0
    %8689 = vmatpush1.bf16.msra.mxu0 %v7116
    %8690 = vmatprep.subr.bf16.mxu0 0
    %8691 = vmatpush1.bf16.msra.mxu0 %v7117
    %8692 = vmatprep.subr.bf16.mxu0 0
    %8693 = vmatpush1.bf16.msra.mxu0 %v7118
    %8694 = vmatprep.subr.bf16.mxu0 0
    %8695 = vmatpush1.bf16.msra.mxu0 %v7119
    %8696 = vmatprep.subr.bf16.mxu0 0
    %8697 = vmatpush1.bf16.msra.mxu0 %v7120
    %8698 = vmatprep.mubr.bf16.mxu0 %v2388
    %8699 = vmatmul.mubr.bf16.gmra.mrb[0].mxu0 %v2387
    %v8700 = vpop.f32.mrb[0].mxu0
    %v8701 = vadd.f32 %v8660, %v8700
    %v8702 = vpop.f32.mrb[0].mxu0
    %v8703 = vpop.f32.mrb[0].mxu0
    %v8704 = vadd.f32 %v8663, %v8703
    %v8705 = vpop.f32.mrb[0].mxu0
    %8706 = vdwg.mxu0
    %8707 = vmatprep.subr.bf16.mxu0 0
    %8708 = vmatpush1.bf16.msra.mxu0 %v7121
    %8709 = vmatprep.subr.bf16.mxu0 0
    %8710 = vmatpush1.bf16.msra.mxu0 %v7122
    %8711 = vmatprep.subr.bf16.mxu0 0
    %8712 = vmatpush1.bf16.msra.mxu0 %v7123
    %8713 = vmatprep.subr.bf16.mxu0 0
    %8714 = vmatpush1.bf16.msra.mxu0 %v7124
    %8715 = vmatprep.subr.bf16.mxu0 0
    %8716 = vmatpush1.bf16.msra.mxu0 %v7125
    %8717 = vmatprep.subr.bf16.mxu0 0
    %8718 = vmatpush1.bf16.msra.mxu0 %v7126
    %8719 = vmatprep.subr.bf16.mxu0 0
    %8720 = vmatpush1.bf16.msra.mxu0 %v7127
    %8721 = vmatprep.subr.bf16.mxu0 0
    %8722 = vmatpush1.bf16.msra.mxu0 %v7128
    %8723 = vmatprep.subr.bf16.mxu0 0
    %8724 = vmatpush1.bf16.msra.mxu0 %v7129
    %8725 = vmatprep.subr.bf16.mxu0 0
    %8726 = vmatpush1.bf16.msra.mxu0 %v7130
    %8727 = vmatprep.subr.bf16.mxu0 0
    %8728 = vmatpush1.bf16.msra.mxu0 %v7131
    %8729 = vmatprep.subr.bf16.mxu0 0
    %8730 = vmatpush1.bf16.msra.mxu0 %v7132
    %8731 = vmatprep.subr.bf16.mxu0 0
    %8732 = vmatpush1.bf16.msra.mxu0 %v7133
    %8733 = vmatprep.subr.bf16.mxu0 0
    %8734 = vmatpush1.bf16.msra.mxu0 %v7134
    %8735 = vmatprep.subr.bf16.mxu0 0
    %8736 = vmatpush1.bf16.msra.mxu0 %v7135
    %8737 = vmatprep.subr.bf16.mxu0 0
    %8738 = vmatpush1.bf16.msra.mxu0 %v7136
    %8739 = vmatprep.mubr.bf16.mxu0 %v2390
    %8740 = vmatmul.mubr.bf16.gmra.mrb[0].mxu0 %v2389
    %v8741 = vpop.f32.mrb[0].mxu0
    %v8742 = vadd.f32 %v8701, %v8741
    %v8743 = vpop.f32.mrb[0].mxu0
    %v8744 = vpop.f32.mrb[0].mxu0
    %v8745 = vadd.f32 %v8704, %v8744
    %v8746 = vpop.f32.mrb[0].mxu0
    %8747 = vdwg.mxu0
    %8748 = vmatprep.subr.bf16.mxu0 0
    %8749 = vmatpush1.bf16.msra.mxu0 %v7137
    %8750 = vmatprep.subr.bf16.mxu0 0
    %8751 = vmatpush1.bf16.msra.mxu0 %v7138
    %8752 = vmatprep.subr.bf16.mxu0 0
    %8753 = vmatpush1.bf16.msra.mxu0 %v7139
    %8754 = vmatprep.subr.bf16.mxu0 0
    %8755 = vmatpush1.bf16.msra.mxu0 %v7140
    %8756 = vmatprep.subr.bf16.mxu0 0
    %8757 = vmatpush1.bf16.msra.mxu0 %v7141
    %8758 = vmatprep.subr.bf16.mxu0 0
    %8759 = vmatpush1.bf16.msra.mxu0 %v7142
    %8760 = vmatprep.subr.bf16.mxu0 0
    %8761 = vmatpush1.bf16.msra.mxu0 %v7143
    %8762 = vmatprep.subr.bf16.mxu0 0
    %8763 = vmatpush1.bf16.msra.mxu0 %v7144
    %8764 = vmatprep.subr.bf16.mxu0 0
    %8765 = vmatpush1.bf16.msra.mxu0 %v7145
    %8766 = vmatprep.subr.bf16.mxu0 0
    %8767 = vmatpush1.bf16.msra.mxu0 %v7146
    %8768 = vmatprep.subr.bf16.mxu0 0
    %8769 = vmatpush1.bf16.msra.mxu0 %v7147
    %8770 = vmatprep.subr.bf16.mxu0 0
    %8771 = vmatpush1.bf16.msra.mxu0 %v7148
    %8772 = vmatprep.subr.bf16.mxu0 0
    %8773 = vmatpush1.bf16.msra.mxu0 %v7149
    %8774 = vmatprep.subr.bf16.mxu0 0
    %8775 = vmatpush1.bf16.msra.mxu0 %v7150
    %8776 = vmatprep.subr.bf16.mxu0 0
    %8777 = vmatpush1.bf16.msra.mxu0 %v7151
    %8778 = vmatprep.subr.bf16.mxu0 0
    %8779 = vmatpush1.bf16.msra.mxu0 %v7152
    %8780 = vmatprep.mubr.bf16.mxu0 %v2392
    %8781 = vmatmul.mubr.bf16.gmra.mrb[0].mxu0 %v2391
    %v8782 = vpop.f32.mrb[0].mxu0
    %v8783 = vadd.f32 %v8742, %v8782
    %v8784 = vpop.f32.mrb[0].mxu0
    %v8785 = vpop.f32.mrb[0].mxu0
    %v8786 = vadd.f32 %v8745, %v8785
    %v8787 = vpop.f32.mrb[0].mxu0
    %8788 = vdwg.mxu0
    %8789 = vmatprep.subr.bf16.mxu0 0
    %8790 = vmatpush1.bf16.msra.mxu0 %v7153
    %8791 = vmatprep.subr.bf16.mxu0 0
    %8792 = vmatpush1.bf16.msra.mxu0 %v7154
    %8793 = vmatprep.subr.bf16.mxu0 0
    %8794 = vmatpush1.bf16.msra.mxu0 %v7155
    %8795 = vmatprep.subr.bf16.mxu0 0
    %8796 = vmatpush1.bf16.msra.mxu0 %v7156
    %8797 = vmatprep.subr.bf16.mxu0 0
    %8798 = vmatpush1.bf16.msra.mxu0 %v7157
    %8799 = vmatprep.subr.bf16.mxu0 0
    %8800 = vmatpush1.bf16.msra.mxu0 %v7158
    %8801 = vmatprep.subr.bf16.mxu0 0
    %8802 = vmatpush1.bf16.msra.mxu0 %v7159
    %8803 = vmatprep.subr.bf16.mxu0 0
    %8804 = vmatpush1.bf16.msra.mxu0 %v7160
    %8805 = vmatprep.subr.bf16.mxu0 0
    %8806 = vmatpush1.bf16.msra.mxu0 %v7161
    %8807 = vmatprep.subr.bf16.mxu0 0
    %8808 = vmatpush1.bf16.msra.mxu0 %v7162
    %8809 = vmatprep.subr.bf16.mxu0 0
    %8810 = vmatpush1.bf16.msra.mxu0 %v7163
    %8811 = vmatprep.subr.bf16.mxu0 0
    %8812 = vmatpush1.bf16.msra.mxu0 %v7164
    %8813 = vmatprep.subr.bf16.mxu0 0
    %8814 = vmatpush1.bf16.msra.mxu0 %v7165
    %8815 = vmatprep.subr.bf16.mxu0 0
    %8816 = vmatpush1.bf16.msra.mxu0 %v7166
    %8817 = vmatprep.subr.bf16.mxu0 0
    %8818 = vmatpush1.bf16.msra.mxu0 %v7167
    %8819 = vmatprep.subr.bf16.mxu0 0
    %8820 = vmatpush1.bf16.msra.mxu0 %v7168
    %8821 = vmatprep.mubr.bf16.mxu0 %v2394
    %8822 = vmatmul.mubr.bf16.gmra.mrb[0].mxu0 %v2393
    %v8823 = vpop.f32.mrb[0].mxu0
    %v8824 = vadd.f32 %v8783, %v8823
    %v8825 = vpop.f32.mrb[0].mxu0
    %v8826 = vpop.f32.mrb[0].mxu0
    %v8827 = vadd.f32 %v8786, %v8826
    %v8828 = vpop.f32.mrb[0].mxu0
    %8829 = vdwg.mxu0
    %8830 = vmatprep.subr.bf16.mxu0 0
    %8831 = vmatpush1.bf16.msra.mxu0 %v7169
    %8832 = vmatprep.subr.bf16.mxu0 0
    %8833 = vmatpush1.bf16.msra.mxu0 %v7170
    %8834 = vmatprep.subr.bf16.mxu0 0
    %8835 = vmatpush1.bf16.msra.mxu0 %v7171
    %8836 = vmatprep.subr.bf16.mxu0 0
    %8837 = vmatpush1.bf16.msra.mxu0 %v7172
    %8838 = vmatprep.subr.bf16.mxu0 0
    %8839 = vmatpush1.bf16.msra.mxu0 %v7173
    %8840 = vmatprep.subr.bf16.mxu0 0
    %8841 = vmatpush1.bf16.msra.mxu0 %v7174
    %8842 = vmatprep.subr.bf16.mxu0 0
    %8843 = vmatpush1.bf16.msra.mxu0 %v7175
    %8844 = vmatprep.subr.bf16.mxu0 0
    %8845 = vmatpush1.bf16.msra.mxu0 %v7176
    %8846 = vmatprep.subr.bf16.mxu0 0
    %8847 = vmatpush1.bf16.msra.mxu0 %v7177
    %8848 = vmatprep.subr.bf16.mxu0 0
    %8849 = vmatpush1.bf16.msra.mxu0 %v7178
    %8850 = vmatprep.subr.bf16.mxu0 0
    %8851 = vmatpush1.bf16.msra.mxu0 %v7179
    %8852 = vmatprep.subr.bf16.mxu0 0
    %8853 = vmatpush1.bf16.msra.mxu0 %v7180
    %8854 = vmatprep.subr.bf16.mxu0 0
    %8855 = vmatpush1.bf16.msra.mxu0 %v7181
    %8856 = vmatprep.subr.bf16.mxu0 0
    %8857 = vmatpush1.bf16.msra.mxu0 %v7182
    %8858 = vmatprep.subr.bf16.mxu0 0
    %8859 = vmatpush1.bf16.msra.mxu0 %v7183
    %8860 = vmatprep.subr.bf16.mxu0 0
    %8861 = vmatpush1.bf16.msra.mxu0 %v7184
    %8862 = vmatprep.mubr.bf16.mxu0 %v2396
    %8863 = vmatmul.mubr.bf16.gmra.mrb[0].mxu0 %v2395
    %v8864 = vpop.f32.mrb[0].mxu0
    %v8865 = vadd.f32 %v8824, %v8864
    %v8866 = vpop.f32.mrb[0].mxu0
    %v8867 = vpop.f32.mrb[0].mxu0
    %v8868 = vadd.f32 %v8827, %v8867
    %v8869 = vpop.f32.mrb[0].mxu0
    %8870 = vdwg.mxu0
    %8871 = vmatprep.subr.bf16.mxu0 0
    %8872 = vmatpush1.bf16.msra.mxu0 %v7185
    %8873 = vmatprep.subr.bf16.mxu0 0
    %8874 = vmatpush1.bf16.msra.mxu0 %v7186
    %8875 = vmatprep.subr.bf16.mxu0 0
    %8876 = vmatpush1.bf16.msra.mxu0 %v7187
    %8877 = vmatprep.subr.bf16.mxu0 0
    %8878 = vmatpush1.bf16.msra.mxu0 %v7188
    %8879 = vmatprep.subr.bf16.mxu0 0
    %8880 = vmatpush1.bf16.msra.mxu0 %v7189
    %8881 = vmatprep.subr.bf16.mxu0 0
    %8882 = vmatpush1.bf16.msra.mxu0 %v7190
    %8883 = vmatprep.subr.bf16.mxu0 0
    %8884 = vmatpush1.bf16.msra.mxu0 %v7191
    %8885 = vmatprep.subr.bf16.mxu0 0
    %8886 = vmatpush1.bf16.msra.mxu0 %v7192
    %8887 = vmatprep.subr.bf16.mxu0 0
    %8888 = vmatpush1.bf16.msra.mxu0 %v7193
    %8889 = vmatprep.subr.bf16.mxu0 0
    %8890 = vmatpush1.bf16.msra.mxu0 %v7194
    %8891 = vmatprep.subr.bf16.mxu0 0
    %8892 = vmatpush1.bf16.msra.mxu0 %v7195
    %8893 = vmatprep.subr.bf16.mxu0 0
    %8894 = vmatpush1.bf16.msra.mxu0 %v7196
    %8895 = vmatprep.subr.bf16.mxu0 0
    %8896 = vmatpush1.bf16.msra.mxu0 %v7197
    %8897 = vmatprep.subr.bf16.mxu0 0
    %8898 = vmatpush1.bf16.msra.mxu0 %v7198
    %8899 = vmatprep.subr.bf16.mxu0 0
    %8900 = vmatpush1.bf16.msra.mxu0 %v7199
    %8901 = vmatprep.subr.bf16.mxu0 0
    %8902 = vmatpush1.bf16.msra.mxu0 %v7200
    %8903 = vmatprep.mubr.bf16.mxu0 %v2398
    %8904 = vmatmul.mubr.bf16.gmra.mrb[0].mxu0 %v2397
    %v8905 = vpop.f32.mrb[0].mxu0
    %v8906 = vadd.f32 %v8865, %v8905
    %v8907 = vpop.f32.mrb[0].mxu0
    %v8908 = vpop.f32.mrb[0].mxu0
    %v8909 = vadd.f32 %v8868, %v8908
    %v8910 = vpop.f32.mrb[0].mxu0
    %8911 = vdwg.mxu0
    %8912 = vmatprep.subr.bf16.mxu0 0
    %8913 = vmatpush1.bf16.msra.mxu0 %v7201
    %8914 = vmatprep.subr.bf16.mxu0 0
    %8915 = vmatpush1.bf16.msra.mxu0 %v7202
    %8916 = vmatprep.subr.bf16.mxu0 0
    %8917 = vmatpush1.bf16.msra.mxu0 %v7203
    %8918 = vmatprep.subr.bf16.mxu0 0
    %8919 = vmatpush1.bf16.msra.mxu0 %v7204
    %8920 = vmatprep.subr.bf16.mxu0 0
    %8921 = vmatpush1.bf16.msra.mxu0 %v7205
    %8922 = vmatprep.subr.bf16.mxu0 0
    %8923 = vmatpush1.bf16.msra.mxu0 %v7206
    %8924 = vmatprep.subr.bf16.mxu0 0
    %8925 = vmatpush1.bf16.msra.mxu0 %v7207
    %8926 = vmatprep.subr.bf16.mxu0 0
    %8927 = vmatpush1.bf16.msra.mxu0 %v7208
    %8928 = vmatprep.subr.bf16.mxu0 0
    %8929 = vmatpush1.bf16.msra.mxu0 %v7209
    %8930 = vmatprep.subr.bf16.mxu0 0
    %8931 = vmatpush1.bf16.msra.mxu0 %v7210
    %8932 = vmatprep.subr.bf16.mxu0 0
    %8933 = vmatpush1.bf16.msra.mxu0 %v7211
    %8934 = vmatprep.subr.bf16.mxu0 0
    %8935 = vmatpush1.bf16.msra.mxu0 %v7212
    %8936 = vmatprep.subr.bf16.mxu0 0
    %8937 = vmatpush1.bf16.msra.mxu0 %v7213
    %8938 = vmatprep.subr.bf16.mxu0 0
    %8939 = vmatpush1.bf16.msra.mxu0 %v7214
    %8940 = vmatprep.subr.bf16.mxu0 0
    %8941 = vmatpush1.bf16.msra.mxu0 %v7215
    %8942 = vmatprep.subr.bf16.mxu0 0
    %8943 = vmatpush1.bf16.msra.mxu0 %v7216
    %8944 = vmatprep.mubr.bf16.mxu0 %v2400
    %8945 = vmatmul.mubr.bf16.gmra.mrb[0].mxu0 %v2399
    %v8946 = vpop.f32.mrb[0].mxu0
    %v8947 = vadd.f32 %v8906, %v8946
    %v8948 = vpop.f32.mrb[0].mxu0
    %v8949 = vpop.f32.mrb[0].mxu0
    %v8950 = vadd.f32 %v8909, %v8949
    %v8951 = vpop.f32.mrb[0].mxu0
    %8952 = vdwg.mxu0
    %8953 = vmatprep.subr.bf16.mxu0 0
    %8954 = vmatpush1.bf16.msra.mxu0 %v7217
    %8955 = vmatprep.subr.bf16.mxu0 0
    %8956 = vmatpush1.bf16.msra.mxu0 %v7218
    %8957 = vmatprep.subr.bf16.mxu0 0
    %8958 = vmatpush1.bf16.msra.mxu0 %v7219
    %8959 = vmatprep.subr.bf16.mxu0 0
    %8960 = vmatpush1.bf16.msra.mxu0 %v7220
    %8961 = vmatprep.subr.bf16.mxu0 0
    %8962 = vmatpush1.bf16.msra.mxu0 %v7221
    %8963 = vmatprep.subr.bf16.mxu0 0
    %8964 = vmatpush1.bf16.msra.mxu0 %v7222
    %8965 = vmatprep.subr.bf16.mxu0 0
    %8966 = vmatpush1.bf16.msra.mxu0 %v7223
    %8967 = vmatprep.subr.bf16.mxu0 0
    %8968 = vmatpush1.bf16.msra.mxu0 %v7224
    %8969 = vmatprep.subr.bf16.mxu0 0
    %8970 = vmatpush1.bf16.msra.mxu0 %v7225
    %8971 = vmatprep.subr.bf16.mxu0 0
    %8972 = vmatpush1.bf16.msra.mxu0 %v7226
    %8973 = vmatprep.subr.bf16.mxu0 0
    %8974 = vmatpush1.bf16.msra.mxu0 %v7227
    %8975 = vmatprep.subr.bf16.mxu0 0
    %8976 = vmatpush1.bf16.msra.mxu0 %v7228
    %8977 = vmatprep.subr.bf16.mxu0 0
    %8978 = vmatpush1.bf16.msra.mxu0 %v7229
    %8979 = vmatprep.subr.bf16.mxu0 0
    %8980 = vmatpush1.bf16.msra.mxu0 %v7230
    %8981 = vmatprep.subr.bf16.mxu0 0
    %8982 = vmatpush1.bf16.msra.mxu0 %v7231
    %8983 = vmatprep.subr.bf16.mxu0 0
    %8984 = vmatpush1.bf16.msra.mxu0 %v7232
    %8985 = vmatprep.mubr.bf16.mxu0 %v2402
    %8986 = vmatmul.mubr.bf16.gmra.mrb[0].mxu0 %v2401
    %v8987 = vpop.f32.mrb[0].mxu0
    %v8988 = vadd.f32 %v8947, %v8987
    %v8989 = vpop.f32.mrb[0].mxu0
    %v8990 = vpop.f32.mrb[0].mxu0
    %v8991 = vadd.f32 %v8950, %v8990
    %v8992 = vpop.f32.mrb[0].mxu0
    %8993 = vdwg.mxu0
    %8994 = vmatprep.subr.bf16.mxu0 0
    %8995 = vmatpush1.bf16.msra.mxu0 %v7233
    %8996 = vmatprep.subr.bf16.mxu0 0
    %8997 = vmatpush1.bf16.msra.mxu0 %v7234
    %8998 = vmatprep.subr.bf16.mxu0 0
    %8999 = vmatpush1.bf16.msra.mxu0 %v7235
    %9000 = vmatprep.subr.bf16.mxu0 0
    %9001 = vmatpush1.bf16.msra.mxu0 %v7236
    %9002 = vmatprep.subr.bf16.mxu0 0
    %9003 = vmatpush1.bf16.msra.mxu0 %v7237
    %9004 = vmatprep.subr.bf16.mxu0 0
    %9005 = vmatpush1.bf16.msra.mxu0 %v7238
    %9006 = vmatprep.subr.bf16.mxu0 0
    %9007 = vmatpush1.bf16.msra.mxu0 %v7239
    %9008 = vmatprep.subr.bf16.mxu0 0
    %9009 = vmatpush1.bf16.msra.mxu0 %v7240
    %9010 = vmatprep.subr.bf16.mxu0 0
    %9011 = vmatpush1.bf16.msra.mxu0 %v7241
    %9012 = vmatprep.subr.bf16.mxu0 0
    %9013 = vmatpush1.bf16.msra.mxu0 %v7242
    %9014 = vmatprep.subr.bf16.mxu0 0
    %9015 = vmatpush1.bf16.msra.mxu0 %v7243
    %9016 = vmatprep.subr.bf16.mxu0 0
    %9017 = vmatpush1.bf16.msra.mxu0 %v7244
    %9018 = vmatprep.subr.bf16.mxu0 0
    %9019 = vmatpush1.bf16.msra.mxu0 %v7245
    %9020 = vmatprep.subr.bf16.mxu0 0
    %9021 = vmatpush1.bf16.msra.mxu0 %v7246
    %9022 = vmatprep.subr.bf16.mxu0 0
    %9023 = vmatpush1.bf16.msra.mxu0 %v7247
    %9024 = vmatprep.subr.bf16.mxu0 0
    %9025 = vmatpush1.bf16.msra.mxu0 %v7248
    %9026 = vmatprep.mubr.bf16.mxu0 %v2404
    %9027 = vmatmul.mubr.bf16.gmra.mrb[0].mxu0 %v2403
    %v9028 = vpop.f32.mrb[0].mxu0
    %v9029 = vadd.f32 %v8988, %v9028
    %v9030 = vpop.f32.mrb[0].mxu0
    %v9031 = vpop.f32.mrb[0].mxu0
    %v9032 = vadd.f32 %v8991, %v9031
    %v9033 = vpop.f32.mrb[0].mxu0
    %9034 = vdwg.mxu0
    %9035 = vmatprep.subr.bf16.mxu0 0
    %9036 = vmatpush1.bf16.msra.mxu0 %v7249
    %9037 = vmatprep.subr.bf16.mxu0 0
    %9038 = vmatpush1.bf16.msra.mxu0 %v7250
    %9039 = vmatprep.subr.bf16.mxu0 0
    %9040 = vmatpush1.bf16.msra.mxu0 %v7251
    %9041 = vmatprep.subr.bf16.mxu0 0
    %9042 = vmatpush1.bf16.msra.mxu0 %v7252
    %9043 = vmatprep.subr.bf16.mxu0 0
    %9044 = vmatpush1.bf16.msra.mxu0 %v7253
    %9045 = vmatprep.subr.bf16.mxu0 0
    %9046 = vmatpush1.bf16.msra.mxu0 %v7254
    %9047 = vmatprep.subr.bf16.mxu0 0
    %9048 = vmatpush1.bf16.msra.mxu0 %v7255
    %9049 = vmatprep.subr.bf16.mxu0 0
    %9050 = vmatpush1.bf16.msra.mxu0 %v7256
    %9051 = vmatprep.subr.bf16.mxu0 0
    %9052 = vmatpush1.bf16.msra.mxu0 %v7257
    %9053 = vmatprep.subr.bf16.mxu0 0
    %9054 = vmatpush1.bf16.msra.mxu0 %v7258
    %9055 = vmatprep.subr.bf16.mxu0 0
    %9056 = vmatpush1.bf16.msra.mxu0 %v7259
    %9057 = vmatprep.subr.bf16.mxu0 0
    %9058 = vmatpush1.bf16.msra.mxu0 %v7260
    %9059 = vmatprep.subr.bf16.mxu0 0
    %9060 = vmatpush1.bf16.msra.mxu0 %v7261
    %9061 = vmatprep.subr.bf16.mxu0 0
    %9062 = vmatpush1.bf16.msra.mxu0 %v7262
    %9063 = vmatprep.subr.bf16.mxu0 0
    %9064 = vmatpush1.bf16.msra.mxu0 %v7263
    %9065 = vmatprep.subr.bf16.mxu0 0
    %9066 = vmatpush1.bf16.msra.mxu0 %v7264
    %9067 = vmatprep.mubr.bf16.mxu0 %v2406
    %9068 = vmatmul.mubr.bf16.gmra.mrb[0].mxu0 %v2405
    %v9069 = vpop.f32.mrb[0].mxu0
    %v9070 = vadd.f32 %v9029, %v9069
    %v9071 = vpop.f32.mrb[0].mxu0
    %v9072 = vpop.f32.mrb[0].mxu0
    %v9073 = vadd.f32 %v9032, %v9072
    %v9074 = vpop.f32.mrb[0].mxu0
    %9075 = vdwg.mxu0
    %9076 = vmatprep.subr.bf16.mxu0 0
    %9077 = vmatpush1.bf16.msra.mxu0 %v7265
    %9078 = vmatprep.subr.bf16.mxu0 0
    %9079 = vmatpush1.bf16.msra.mxu0 %v7266
    %9080 = vmatprep.subr.bf16.mxu0 0
    %9081 = vmatpush1.bf16.msra.mxu0 %v7267
    %9082 = vmatprep.subr.bf16.mxu0 0
    %9083 = vmatpush1.bf16.msra.mxu0 %v7268
    %9084 = vmatprep.subr.bf16.mxu0 0
    %9085 = vmatpush1.bf16.msra.mxu0 %v7269
    %9086 = vmatprep.subr.bf16.mxu0 0
    %9087 = vmatpush1.bf16.msra.mxu0 %v7270
    %9088 = vmatprep.subr.bf16.mxu0 0
    %9089 = vmatpush1.bf16.msra.mxu0 %v7271
    %9090 = vmatprep.subr.bf16.mxu0 0
    %9091 = vmatpush1.bf16.msra.mxu0 %v7272
    %9092 = vmatprep.subr.bf16.mxu0 0
    %9093 = vmatpush1.bf16.msra.mxu0 %v7273
    %9094 = vmatprep.subr.bf16.mxu0 0
    %9095 = vmatpush1.bf16.msra.mxu0 %v7274
    %9096 = vmatprep.subr.bf16.mxu0 0
    %9097 = vmatpush1.bf16.msra.mxu0 %v7275
    %9098 = vmatprep.subr.bf16.mxu0 0
    %9099 = vmatpush1.bf16.msra.mxu0 %v7276
    %9100 = vmatprep.subr.bf16.mxu0 0
    %9101 = vmatpush1.bf16.msra.mxu0 %v7277
    %9102 = vmatprep.subr.bf16.mxu0 0
    %9103 = vmatpush1.bf16.msra.mxu0 %v7278
    %9104 = vmatprep.subr.bf16.mxu0 0
    %9105 = vmatpush1.bf16.msra.mxu0 %v7279
    %9106 = vmatprep.subr.bf16.mxu0 0
    %9107 = vmatpush1.bf16.msra.mxu0 %v7280
    %9108 = vmatprep.mubr.bf16.mxu0 %v2408
    %9109 = vmatmul.mubr.bf16.gmra.mrb[0].mxu0 %v2407
    %v9110 = vpop.f32.mrb[0].mxu0
    %v9111 = vadd.f32 %v9070, %v9110
    %v9112 = vpop.f32.mrb[0].mxu0
    %v9113 = vpop.f32.mrb[0].mxu0
    %v9114 = vadd.f32 %v9073, %v9113
    %v9115 = vpop.f32.mrb[0].mxu0
    %9116 = vdwg.mxu0
    %9117 = vmatprep.subr.bf16.mxu0 0
    %9118 = vmatpush1.bf16.msra.mxu0 %v7281
    %9119 = vmatprep.subr.bf16.mxu0 0
    %9120 = vmatpush1.bf16.msra.mxu0 %v7282
    %9121 = vmatprep.subr.bf16.mxu0 0
    %9122 = vmatpush1.bf16.msra.mxu0 %v7283
    %9123 = vmatprep.subr.bf16.mxu0 0
    %9124 = vmatpush1.bf16.msra.mxu0 %v7284
    %9125 = vmatprep.subr.bf16.mxu0 0
    %9126 = vmatpush1.bf16.msra.mxu0 %v7285
    %9127 = vmatprep.subr.bf16.mxu0 0
    %9128 = vmatpush1.bf16.msra.mxu0 %v7286
    %9129 = vmatprep.subr.bf16.mxu0 0
    %9130 = vmatpush1.bf16.msra.mxu0 %v7287
    %9131 = vmatprep.subr.bf16.mxu0 0
    %9132 = vmatpush1.bf16.msra.mxu0 %v7288
    %9133 = vmatprep.subr.bf16.mxu0 0
    %9134 = vmatpush1.bf16.msra.mxu0 %v7289
    %9135 = vmatprep.subr.bf16.mxu0 0
    %9136 = vmatpush1.bf16.msra.mxu0 %v7290
    %9137 = vmatprep.subr.bf16.mxu0 0
    %9138 = vmatpush1.bf16.msra.mxu0 %v7291
    %9139 = vmatprep.subr.bf16.mxu0 0
    %9140 = vmatpush1.bf16.msra.mxu0 %v7292
    %9141 = vmatprep.subr.bf16.mxu0 0
    %9142 = vmatpush1.bf16.msra.mxu0 %v7293
    %9143 = vmatprep.subr.bf16.mxu0 0
    %9144 = vmatpush1.bf16.msra.mxu0 %v7294
    %9145 = vmatprep.subr.bf16.mxu0 0
    %9146 = vmatpush1.bf16.msra.mxu0 %v7295
    %9147 = vmatprep.subr.bf16.mxu0 0
    %9148 = vmatpush1.bf16.msra.mxu0 %v7296
    %9149 = vmatprep.mubr.bf16.mxu0 %v2410
    %9150 = vmatmul.mubr.bf16.gmra.mrb[0].mxu0 %v2409
    %v9151 = vpop.f32.mrb[0].mxu0
    %v9152 = vadd.f32 %v9111, %v9151
    %v9153 = vpop.f32.mrb[0].mxu0
    %v9154 = vpop.f32.mrb[0].mxu0
    %v9155 = vadd.f32 %v9114, %v9154
    %v9156 = vpop.f32.mrb[0].mxu0
    %9157 = vdwg.mxu0
    %9158 = vmatprep.subr.bf16.mxu0 0
    %9159 = vmatpush1.bf16.msra.mxu0 %v7297
    %9160 = vmatprep.subr.bf16.mxu0 0
    %9161 = vmatpush1.bf16.msra.mxu0 %v7298
    %9162 = vmatprep.subr.bf16.mxu0 0
    %9163 = vmatpush1.bf16.msra.mxu0 %v7299
    %9164 = vmatprep.subr.bf16.mxu0 0
    %9165 = vmatpush1.bf16.msra.mxu0 %v7300
    %9166 = vmatprep.subr.bf16.mxu0 0
    %9167 = vmatpush1.bf16.msra.mxu0 %v7301
    %9168 = vmatprep.subr.bf16.mxu0 0
    %9169 = vmatpush1.bf16.msra.mxu0 %v7302
    %9170 = vmatprep.subr.bf16.mxu0 0
    %9171 = vmatpush1.bf16.msra.mxu0 %v7303
    %9172 = vmatprep.subr.bf16.mxu0 0
    %9173 = vmatpush1.bf16.msra.mxu0 %v7304
    %9174 = vmatprep.subr.bf16.mxu0 0
    %9175 = vmatpush1.bf16.msra.mxu0 %v7305
    %9176 = vmatprep.subr.bf16.mxu0 0
    %9177 = vmatpush1.bf16.msra.mxu0 %v7306
    %9178 = vmatprep.subr.bf16.mxu0 0
    %9179 = vmatpush1.bf16.msra.mxu0 %v7307
    %9180 = vmatprep.subr.bf16.mxu0 0
    %9181 = vmatpush1.bf16.msra.mxu0 %v7308
    %9182 = vmatprep.subr.bf16.mxu0 0
    %9183 = vmatpush1.bf16.msra.mxu0 %v7309
    %9184 = vmatprep.subr.bf16.mxu0 0
    %9185 = vmatpush1.bf16.msra.mxu0 %v7310
    %9186 = vmatprep.subr.bf16.mxu0 0
    %9187 = vmatpush1.bf16.msra.mxu0 %v7311
    %9188 = vmatprep.subr.bf16.mxu0 0
    %9189 = vmatpush1.bf16.msra.mxu0 %v7312
    %9190 = vmatprep.mubr.bf16.mxu0 %v2412
    %9191 = vmatmul.mubr.bf16.gmra.mrb[0].mxu0 %v2411
    %v9192 = vpop.f32.mrb[0].mxu0
    %v9193 = vadd.f32 %v9152, %v9192
    %v9194 = vpop.f32.mrb[0].mxu0
    %v9195 = vpop.f32.mrb[0].mxu0
    %v9196 = vadd.f32 %v9155, %v9195
    %v9197 = vpop.f32.mrb[0].mxu0
    %9198 = vdwg.mxu0
    %9199 = vmatprep.subr.bf16.mxu0 0
    %9200 = vmatpush1.bf16.msra.mxu0 %v7313
    %9201 = vmatprep.subr.bf16.mxu0 0
    %9202 = vmatpush1.bf16.msra.mxu0 %v7314
    %9203 = vmatprep.subr.bf16.mxu0 0
    %9204 = vmatpush1.bf16.msra.mxu0 %v7315
    %9205 = vmatprep.subr.bf16.mxu0 0
    %9206 = vmatpush1.bf16.msra.mxu0 %v7316
    %9207 = vmatprep.subr.bf16.mxu0 0
    %9208 = vmatpush1.bf16.msra.mxu0 %v7317
    %9209 = vmatprep.subr.bf16.mxu0 0
    %9210 = vmatpush1.bf16.msra.mxu0 %v7318
    %9211 = vmatprep.subr.bf16.mxu0 0
    %9212 = vmatpush1.bf16.msra.mxu0 %v7319
    %9213 = vmatprep.subr.bf16.mxu0 0
    %9214 = vmatpush1.bf16.msra.mxu0 %v7320
    %9215 = vmatprep.subr.bf16.mxu0 0
    %9216 = vmatpush1.bf16.msra.mxu0 %v7321
    %9217 = vmatprep.subr.bf16.mxu0 0
    %9218 = vmatpush1.bf16.msra.mxu0 %v7322
    %9219 = vmatprep.subr.bf16.mxu0 0
    %9220 = vmatpush1.bf16.msra.mxu0 %v7323
    %9221 = vmatprep.subr.bf16.mxu0 0
    %9222 = vmatpush1.bf16.msra.mxu0 %v7324
    %9223 = vmatprep.subr.bf16.mxu0 0
    %9224 = vmatpush1.bf16.msra.mxu0 %v7325
    %9225 = vmatprep.subr.bf16.mxu0 0
    %9226 = vmatpush1.bf16.msra.mxu0 %v7326
    %9227 = vmatprep.subr.bf16.mxu0 0
    %9228 = vmatpush1.bf16.msra.mxu0 %v7327
    %9229 = vmatprep.subr.bf16.mxu0 0
    %9230 = vmatpush1.bf16.msra.mxu0 %v7328
    %9231 = vmatprep.mubr.bf16.mxu0 %v2414
    %9232 = vmatmul.mubr.bf16.gmra.mrb[0].mxu0 %v2413
    %v9233 = vpop.f32.mrb[0].mxu0
    %v9234 = vadd.f32 %v9193, %v9233
    %v9235 = vpop.f32.mrb[0].mxu0
    %v9236 = vpop.f32.mrb[0].mxu0
    %v9237 = vadd.f32 %v9196, %v9236
    %v9238 = vpop.f32.mrb[0].mxu0
    %9239 = vdwg.mxu0
    %9240 = vmatprep.subr.bf16.mxu0 0
    %9241 = vmatpush1.bf16.msra.mxu0 %v7329
    %9242 = vmatprep.subr.bf16.mxu0 0
    %9243 = vmatpush1.bf16.msra.mxu0 %v7330
    %9244 = vmatprep.subr.bf16.mxu0 0
    %9245 = vmatpush1.bf16.msra.mxu0 %v7331
    %9246 = vmatprep.subr.bf16.mxu0 0
    %9247 = vmatpush1.bf16.msra.mxu0 %v7332
    %9248 = vmatprep.subr.bf16.mxu0 0
    %9249 = vmatpush1.bf16.msra.mxu0 %v7333
    %9250 = vmatprep.subr.bf16.mxu0 0
    %9251 = vmatpush1.bf16.msra.mxu0 %v7334
    %9252 = vmatprep.subr.bf16.mxu0 0
    %9253 = vmatpush1.bf16.msra.mxu0 %v7335
    %9254 = vmatprep.subr.bf16.mxu0 0
    %9255 = vmatpush1.bf16.msra.mxu0 %v7336
    %9256 = vmatprep.subr.bf16.mxu0 0
    %9257 = vmatpush1.bf16.msra.mxu0 %v7337
    %9258 = vmatprep.subr.bf16.mxu0 0
    %9259 = vmatpush1.bf16.msra.mxu0 %v7338
    %9260 = vmatprep.subr.bf16.mxu0 0
    %9261 = vmatpush1.bf16.msra.mxu0 %v7339
    %9262 = vmatprep.subr.bf16.mxu0 0
    %9263 = vmatpush1.bf16.msra.mxu0 %v7340
    %9264 = vmatprep.subr.bf16.mxu0 0
    %9265 = vmatpush1.bf16.msra.mxu0 %v7341
    %9266 = vmatprep.subr.bf16.mxu0 0
    %9267 = vmatpush1.bf16.msra.mxu0 %v7342
    %9268 = vmatprep.subr.bf16.mxu0 0
    %9269 = vmatpush1.bf16.msra.mxu0 %v7343
    %9270 = vmatprep.subr.bf16.mxu0 0
    %9271 = vmatpush1.bf16.msra.mxu0 %v7344
    %9272 = vmatprep.mubr.bf16.mxu0 %v2416
    %9273 = vmatmul.mubr.bf16.gmra.mrb[0].mxu0 %v2415
    %v9274 = vpop.f32.mrb[0].mxu0
    %v9275 = vadd.f32 %v9234, %v9274
    %v9276 = vpop.f32.mrb[0].mxu0
    %v9277 = vpop.f32.mrb[0].mxu0
    %v9278 = vadd.f32 %v9237, %v9277
    %v9279 = vpop.f32.mrb[0].mxu0
    %9280 = vdwg.mxu0
    %9281 = vmatprep.subr.bf16.mxu0 0
    %9282 = vmatpush1.bf16.msra.mxu0 %v7345
    %9283 = vmatprep.subr.bf16.mxu0 0
    %9284 = vmatpush1.bf16.msra.mxu0 %v7346
    %9285 = vmatprep.subr.bf16.mxu0 0
    %9286 = vmatpush1.bf16.msra.mxu0 %v7347
    %9287 = vmatprep.subr.bf16.mxu0 0
    %9288 = vmatpush1.bf16.msra.mxu0 %v7348
    %9289 = vmatprep.subr.bf16.mxu0 0
    %9290 = vmatpush1.bf16.msra.mxu0 %v7349
    %9291 = vmatprep.subr.bf16.mxu0 0
    %9292 = vmatpush1.bf16.msra.mxu0 %v7350
    %9293 = vmatprep.subr.bf16.mxu0 0
    %9294 = vmatpush1.bf16.msra.mxu0 %v7351
    %9295 = vmatprep.subr.bf16.mxu0 0
    %9296 = vmatpush1.bf16.msra.mxu0 %v7352
    %9297 = vmatprep.subr.bf16.mxu0 0
    %9298 = vmatpush1.bf16.msra.mxu0 %v7353
    %9299 = vmatprep.subr.bf16.mxu0 0
    %9300 = vmatpush1.bf16.msra.mxu0 %v7354
    %9301 = vmatprep.subr.bf16.mxu0 0
    %9302 = vmatpush1.bf16.msra.mxu0 %v7355
    %9303 = vmatprep.subr.bf16.mxu0 0
    %9304 = vmatpush1.bf16.msra.mxu0 %v7356
    %9305 = vmatprep.subr.bf16.mxu0 0
    %9306 = vmatpush1.bf16.msra.mxu0 %v7357
    %9307 = vmatprep.subr.bf16.mxu0 0
    %9308 = vmatpush1.bf16.msra.mxu0 %v7358
    %9309 = vmatprep.subr.bf16.mxu0 0
    %9310 = vmatpush1.bf16.msra.mxu0 %v7359
    %9311 = vmatprep.subr.bf16.mxu0 0
    %9312 = vmatpush1.bf16.msra.mxu0 %v7360
    %9313 = vmatprep.mubr.bf16.mxu0 %v2418
    %9314 = vmatmul.mubr.bf16.gmra.mrb[0].mxu0 %v2417
    %v9315 = vpop.f32.mrb[0].mxu0
    %v9316 = vadd.f32 %v9275, %v9315
    %v9317 = vpop.f32.mrb[0].mxu0
    %v9318 = vpop.f32.mrb[0].mxu0
    %v9319 = vadd.f32 %v9278, %v9318
    %v9320 = vpop.f32.mrb[0].mxu0
    %9321 = vdwg.mxu0
    %9322 = vmatprep.subr.bf16.mxu0 0
    %9323 = vmatpush1.bf16.msra.mxu0 %v7361
    %9324 = vmatprep.subr.bf16.mxu0 0
    %9325 = vmatpush1.bf16.msra.mxu0 %v7362
    %9326 = vmatprep.subr.bf16.mxu0 0
    %9327 = vmatpush1.bf16.msra.mxu0 %v7363
    %9328 = vmatprep.subr.bf16.mxu0 0
    %9329 = vmatpush1.bf16.msra.mxu0 %v7364
    %9330 = vmatprep.subr.bf16.mxu0 0
    %9331 = vmatpush1.bf16.msra.mxu0 %v7365
    %9332 = vmatprep.subr.bf16.mxu0 0
    %9333 = vmatpush1.bf16.msra.mxu0 %v7366
    %9334 = vmatprep.subr.bf16.mxu0 0
    %9335 = vmatpush1.bf16.msra.mxu0 %v7367
    %9336 = vmatprep.subr.bf16.mxu0 0
    %9337 = vmatpush1.bf16.msra.mxu0 %v7368
    %9338 = vmatprep.subr.bf16.mxu0 0
    %9339 = vmatpush1.bf16.msra.mxu0 %v7369
    %9340 = vmatprep.subr.bf16.mxu0 0
    %9341 = vmatpush1.bf16.msra.mxu0 %v7370
    %9342 = vmatprep.subr.bf16.mxu0 0
    %9343 = vmatpush1.bf16.msra.mxu0 %v7371
    %9344 = vmatprep.subr.bf16.mxu0 0
    %9345 = vmatpush1.bf16.msra.mxu0 %v7372
    %9346 = vmatprep.subr.bf16.mxu0 0
    %9347 = vmatpush1.bf16.msra.mxu0 %v7373
    %9348 = vmatprep.subr.bf16.mxu0 0
    %9349 = vmatpush1.bf16.msra.mxu0 %v7374
    %9350 = vmatprep.subr.bf16.mxu0 0
    %9351 = vmatpush1.bf16.msra.mxu0 %v7375
    %9352 = vmatprep.subr.bf16.mxu0 0
    %9353 = vmatpush1.bf16.msra.mxu0 %v7376
    %9354 = vmatprep.mubr.bf16.mxu0 %v2420
    %9355 = vmatmul.mubr.bf16.gmra.mrb[0].mxu0 %v2419
    %v9356 = vpop.f32.mrb[0].mxu0
    %v9357 = vadd.f32 %v9316, %v9356
    %v9358 = vpop.f32.mrb[0].mxu0
    %v9359 = vpop.f32.mrb[0].mxu0
    %v9360 = vadd.f32 %v9319, %v9359
    %v9361 = vpop.f32.mrb[0].mxu0
    %9362 = vdwg.mxu0
    %9363 = vmatprep.subr.bf16.mxu0 0
    %9364 = vmatpush1.bf16.msra.mxu0 %v7377
    %9365 = vmatprep.subr.bf16.mxu0 0
    %9366 = vmatpush1.bf16.msra.mxu0 %v7378
    %9367 = vmatprep.subr.bf16.mxu0 0
    %9368 = vmatpush1.bf16.msra.mxu0 %v7379
    %9369 = vmatprep.subr.bf16.mxu0 0
    %9370 = vmatpush1.bf16.msra.mxu0 %v7380
    %9371 = vmatprep.subr.bf16.mxu0 0
    %9372 = vmatpush1.bf16.msra.mxu0 %v7381
    %9373 = vmatprep.subr.bf16.mxu0 0
    %9374 = vmatpush1.bf16.msra.mxu0 %v7382
    %9375 = vmatprep.subr.bf16.mxu0 0
    %9376 = vmatpush1.bf16.msra.mxu0 %v7383
    %9377 = vmatprep.subr.bf16.mxu0 0
    %9378 = vmatpush1.bf16.msra.mxu0 %v7384
    %9379 = vmatprep.subr.bf16.mxu0 0
    %9380 = vmatpush1.bf16.msra.mxu0 %v7385
    %9381 = vmatprep.subr.bf16.mxu0 0
    %9382 = vmatpush1.bf16.msra.mxu0 %v7386
    %9383 = vmatprep.subr.bf16.mxu0 0
    %9384 = vmatpush1.bf16.msra.mxu0 %v7387
    %9385 = vmatprep.subr.bf16.mxu0 0
    %9386 = vmatpush1.bf16.msra.mxu0 %v7388
    %9387 = vmatprep.subr.bf16.mxu0 0
    %9388 = vmatpush1.bf16.msra.mxu0 %v7389
    %9389 = vmatprep.subr.bf16.mxu0 0
    %9390 = vmatpush1.bf16.msra.mxu0 %v7390
    %9391 = vmatprep.subr.bf16.mxu0 0
    %9392 = vmatpush1.bf16.msra.mxu0 %v7391
    %9393 = vmatprep.subr.bf16.mxu0 0
    %9394 = vmatpush1.bf16.msra.mxu0 %v7392
    %9395 = vmatprep.mubr.bf16.mxu0 %v2422
    %9396 = vmatmul.mubr.bf16.gmra.mrb[0].mxu0 %v2421
    %v9397 = vpop.f32.mrb[0].mxu0
    %v9398 = vadd.f32 %v9357, %v9397
    %v9399 = vpop.f32.mrb[0].mxu0
    %v9400 = vpop.f32.mrb[0].mxu0
    %v9401 = vadd.f32 %v9360, %v9400
    %v9402 = vpop.f32.mrb[0].mxu0
    %9403 = vdwg.mxu0
    %9404 = vmatprep.subr.bf16.mxu0 0
    %9405 = vmatpush1.bf16.msra.mxu0 %v7393
    %9406 = vmatprep.subr.bf16.mxu0 0
    %9407 = vmatpush1.bf16.msra.mxu0 %v7394
    %9408 = vmatprep.subr.bf16.mxu0 0
    %9409 = vmatpush1.bf16.msra.mxu0 %v7395
    %9410 = vmatprep.subr.bf16.mxu0 0
    %9411 = vmatpush1.bf16.msra.mxu0 %v7396
    %9412 = vmatprep.subr.bf16.mxu0 0
    %9413 = vmatpush1.bf16.msra.mxu0 %v7397
    %9414 = vmatprep.subr.bf16.mxu0 0
    %9415 = vmatpush1.bf16.msra.mxu0 %v7398
    %9416 = vmatprep.subr.bf16.mxu0 0
    %9417 = vmatpush1.bf16.msra.mxu0 %v7399
    %9418 = vmatprep.subr.bf16.mxu0 0
    %9419 = vmatpush1.bf16.msra.mxu0 %v7400
    %9420 = vmatprep.subr.bf16.mxu0 0
    %9421 = vmatpush1.bf16.msra.mxu0 %v7401
    %9422 = vmatprep.subr.bf16.mxu0 0
    %9423 = vmatpush1.bf16.msra.mxu0 %v7402
    %9424 = vmatprep.subr.bf16.mxu0 0
    %9425 = vmatpush1.bf16.msra.mxu0 %v7403
    %9426 = vmatprep.subr.bf16.mxu0 0
    %9427 = vmatpush1.bf16.msra.mxu0 %v7404
    %9428 = vmatprep.subr.bf16.mxu0 0
    %9429 = vmatpush1.bf16.msra.mxu0 %v7405
    %9430 = vmatprep.subr.bf16.mxu0 0
    %9431 = vmatpush1.bf16.msra.mxu0 %v7406
    %9432 = vmatprep.subr.bf16.mxu0 0
    %9433 = vmatpush1.bf16.msra.mxu0 %v7407
    %9434 = vmatprep.subr.bf16.mxu0 0
    %9435 = vmatpush1.bf16.msra.mxu0 %v7408
    %9436 = vmatprep.mubr.bf16.mxu0 %v2424
    %9437 = vmatmul.mubr.bf16.gmra.mrb[0].mxu0 %v2423
    %v9438 = vpop.f32.mrb[0].mxu0
    %v9439 = vadd.f32 %v9398, %v9438
    %v9440 = vpop.f32.mrb[0].mxu0
    %v9441 = vpop.f32.mrb[0].mxu0
    %v9442 = vadd.f32 %v9401, %v9441
    %v9443 = vpop.f32.mrb[0].mxu0
    %9444 = vdwg.mxu0
    %9445 = vmatprep.subr.bf16.mxu0 0
    %9446 = vmatpush1.bf16.msra.mxu0 %v7409
    %9447 = vmatprep.subr.bf16.mxu0 0
    %9448 = vmatpush1.bf16.msra.mxu0 %v7410
    %9449 = vmatprep.subr.bf16.mxu0 0
    %9450 = vmatpush1.bf16.msra.mxu0 %v7411
    %9451 = vmatprep.subr.bf16.mxu0 0
    %9452 = vmatpush1.bf16.msra.mxu0 %v7412
    %9453 = vmatprep.subr.bf16.mxu0 0
    %9454 = vmatpush1.bf16.msra.mxu0 %v7413
    %9455 = vmatprep.subr.bf16.mxu0 0
    %9456 = vmatpush1.bf16.msra.mxu0 %v7414
    %9457 = vmatprep.subr.bf16.mxu0 0
    %9458 = vmatpush1.bf16.msra.mxu0 %v7415
    %9459 = vmatprep.subr.bf16.mxu0 0
    %9460 = vmatpush1.bf16.msra.mxu0 %v7416
    %9461 = vmatprep.subr.bf16.mxu0 0
    %9462 = vmatpush1.bf16.msra.mxu0 %v7417
    %9463 = vmatprep.subr.bf16.mxu0 0
    %9464 = vmatpush1.bf16.msra.mxu0 %v7418
    %9465 = vmatprep.subr.bf16.mxu0 0
    %9466 = vmatpush1.bf16.msra.mxu0 %v7419
    %9467 = vmatprep.subr.bf16.mxu0 0
    %9468 = vmatpush1.bf16.msra.mxu0 %v7420
    %9469 = vmatprep.subr.bf16.mxu0 0
    %9470 = vmatpush1.bf16.msra.mxu0 %v7421
    %9471 = vmatprep.subr.bf16.mxu0 0
    %9472 = vmatpush1.bf16.msra.mxu0 %v7422
    %9473 = vmatprep.subr.bf16.mxu0 0
    %9474 = vmatpush1.bf16.msra.mxu0 %v7423
    %9475 = vmatprep.subr.bf16.mxu0 0
    %9476 = vmatpush1.bf16.msra.mxu0 %v7424
    %9477 = vmatprep.mubr.bf16.mxu0 %v2426
    %9478 = vmatmul.mubr.bf16.gmra.mrb[0].mxu0 %v2425
    %v9479 = vpop.f32.mrb[0].mxu0
    %v9480 = vadd.f32 %v9439, %v9479
    %v9481 = vpop.f32.mrb[0].mxu0
    %v9482 = vpop.f32.mrb[0].mxu0
    %v9483 = vadd.f32 %v9442, %v9482
    %v9484 = vpop.f32.mrb[0].mxu0
    %9485 = vdwg.mxu0
    %9486 = vmatprep.subr.bf16.mxu0 0
    %9487 = vmatpush1.bf16.msra.mxu0 %v7425
    %9488 = vmatprep.subr.bf16.mxu0 0
    %9489 = vmatpush1.bf16.msra.mxu0 %v7426
    %9490 = vmatprep.subr.bf16.mxu0 0
    %9491 = vmatpush1.bf16.msra.mxu0 %v7427
    %9492 = vmatprep.subr.bf16.mxu0 0
    %9493 = vmatpush1.bf16.msra.mxu0 %v7428
    %9494 = vmatprep.subr.bf16.mxu0 0
    %9495 = vmatpush1.bf16.msra.mxu0 %v7429
    %9496 = vmatprep.subr.bf16.mxu0 0
    %9497 = vmatpush1.bf16.msra.mxu0 %v7430
    %9498 = vmatprep.subr.bf16.mxu0 0
    %9499 = vmatpush1.bf16.msra.mxu0 %v7431
    %9500 = vmatprep.subr.bf16.mxu0 0
    %9501 = vmatpush1.bf16.msra.mxu0 %v7432
    %9502 = vmatprep.subr.bf16.mxu0 0
    %9503 = vmatpush1.bf16.msra.mxu0 %v7433
    %9504 = vmatprep.subr.bf16.mxu0 0
    %9505 = vmatpush1.bf16.msra.mxu0 %v7434
    %9506 = vmatprep.subr.bf16.mxu0 0
    %9507 = vmatpush1.bf16.msra.mxu0 %v7435
    %9508 = vmatprep.subr.bf16.mxu0 0
    %9509 = vmatpush1.bf16.msra.mxu0 %v7436
    %9510 = vmatprep.subr.bf16.mxu0 0
    %9511 = vmatpush1.bf16.msra.mxu0 %v7437
    %9512 = vmatprep.subr.bf16.mxu0 0
    %9513 = vmatpush1.bf16.msra.mxu0 %v7438
    %9514 = vmatprep.subr.bf16.mxu0 0
    %9515 = vmatpush1.bf16.msra.mxu0 %v7439
    %9516 = vmatprep.subr.bf16.mxu0 0
    %9517 = vmatpush1.bf16.msra.mxu0 %v7440
    %9518 = vmatprep.mubr.bf16.mxu0 %v2428
    %9519 = vmatmul.mubr.bf16.gmra.mrb[0].mxu0 %v2427
    %v9520 = vpop.f32.mrb[0].mxu0
    %v9521 = vadd.f32 %v9480, %v9520
    %v9522 = vpop.f32.mrb[0].mxu0
    %v9523 = vpop.f32.mrb[0].mxu0
    %v9524 = vadd.f32 %v9483, %v9523
    %v9525 = vpop.f32.mrb[0].mxu0
    %9526 = vdwg.mxu0
    %9527 = vmatprep.subr.bf16.mxu0 0
    %9528 = vmatpush1.bf16.msra.mxu0 %v7441
    %9529 = vmatprep.subr.bf16.mxu0 0
    %9530 = vmatpush1.bf16.msra.mxu0 %v7442
    %9531 = vmatprep.subr.bf16.mxu0 0
    %9532 = vmatpush1.bf16.msra.mxu0 %v7443
    %9533 = vmatprep.subr.bf16.mxu0 0
    %9534 = vmatpush1.bf16.msra.mxu0 %v7444
    %9535 = vmatprep.subr.bf16.mxu0 0
    %9536 = vmatpush1.bf16.msra.mxu0 %v7445
    %9537 = vmatprep.subr.bf16.mxu0 0
    %9538 = vmatpush1.bf16.msra.mxu0 %v7446
    %9539 = vmatprep.subr.bf16.mxu0 0
    %9540 = vmatpush1.bf16.msra.mxu0 %v7447
    %9541 = vmatprep.subr.bf16.mxu0 0
    %9542 = vmatpush1.bf16.msra.mxu0 %v7448
    %9543 = vmatprep.subr.bf16.mxu0 0
    %9544 = vmatpush1.bf16.msra.mxu0 %v7449
    %9545 = vmatprep.subr.bf16.mxu0 0
    %9546 = vmatpush1.bf16.msra.mxu0 %v7450
    %9547 = vmatprep.subr.bf16.mxu0 0
    %9548 = vmatpush1.bf16.msra.mxu0 %v7451
    %9549 = vmatprep.subr.bf16.mxu0 0
    %9550 = vmatpush1.bf16.msra.mxu0 %v7452
    %9551 = vmatprep.subr.bf16.mxu0 0
    %9552 = vmatpush1.bf16.msra.mxu0 %v7453
    %9553 = vmatprep.subr.bf16.mxu0 0
    %9554 = vmatpush1.bf16.msra.mxu0 %v7454
    %9555 = vmatprep.subr.bf16.mxu0 0
    %9556 = vmatpush1.bf16.msra.mxu0 %v7455
    %9557 = vmatprep.subr.bf16.mxu0 0
    %9558 = vmatpush1.bf16.msra.mxu0 %v7456
    %9559 = vmatprep.mubr.bf16.mxu0 %v2430
    %9560 = vmatmul.mubr.bf16.gmra.mrb[0].mxu0 %v2429
    %v9561 = vpop.f32.mrb[0].mxu0
    %v9562 = vadd.f32 %v9521, %v9561
    %v9563 = vpop.f32.mrb[0].mxu0
    %v9564 = vpop.f32.mrb[0].mxu0
    %v9565 = vadd.f32 %v9524, %v9564
    %v9566 = vpop.f32.mrb[0].mxu0
    %9567 = vdwg.mxu0
    %9568 = vmatprep.subr.bf16.mxu0 0
    %9569 = vmatpush1.bf16.msra.mxu0 %v7457
    %9570 = vmatprep.subr.bf16.mxu0 0
    %9571 = vmatpush1.bf16.msra.mxu0 %v7458
    %9572 = vmatprep.subr.bf16.mxu0 0
    %9573 = vmatpush1.bf16.msra.mxu0 %v7459
    %9574 = vmatprep.subr.bf16.mxu0 0
    %9575 = vmatpush1.bf16.msra.mxu0 %v7460
    %9576 = vmatprep.subr.bf16.mxu0 0
    %9577 = vmatpush1.bf16.msra.mxu0 %v7461
    %9578 = vmatprep.subr.bf16.mxu0 0
    %9579 = vmatpush1.bf16.msra.mxu0 %v7462
    %9580 = vmatprep.subr.bf16.mxu0 0
    %9581 = vmatpush1.bf16.msra.mxu0 %v7463
    %9582 = vmatprep.subr.bf16.mxu0 0
    %9583 = vmatpush1.bf16.msra.mxu0 %v7464
    %9584 = vmatprep.subr.bf16.mxu0 0
    %9585 = vmatpush1.bf16.msra.mxu0 %v7465
    %9586 = vmatprep.subr.bf16.mxu0 0
    %9587 = vmatpush1.bf16.msra.mxu0 %v7466
    %9588 = vmatprep.subr.bf16.mxu0 0
    %9589 = vmatpush1.bf16.msra.mxu0 %v7467
    %9590 = vmatprep.subr.bf16.mxu0 0
    %9591 = vmatpush1.bf16.msra.mxu0 %v7468
    %9592 = vmatprep.subr.bf16.mxu0 0
    %9593 = vmatpush1.bf16.msra.mxu0 %v7469
    %9594 = vmatprep.subr.bf16.mxu0 0
    %9595 = vmatpush1.bf16.msra.mxu0 %v7470
    %9596 = vmatprep.subr.bf16.mxu0 0
    %9597 = vmatpush1.bf16.msra.mxu0 %v7471
    %9598 = vmatprep.subr.bf16.mxu0 0
    %9599 = vmatpush1.bf16.msra.mxu0 %v7472
    %9600 = vmatprep.mubr.bf16.mxu0 %v2432
    %9601 = vmatmul.mubr.bf16.gmra.mrb[0].mxu0 %v2431
    %v9602 = vpop.f32.mrb[0].mxu0
    %v9603 = vadd.f32 %v9562, %v9602
    %v9604 = vpop.f32.mrb[0].mxu0
    %v9605 = vpop.f32.mrb[0].mxu0
    %v9606 = vadd.f32 %v9565, %v9605
    %v9607 = vpop.f32.mrb[0].mxu0
    %9608 = vdwg.mxu0
    %9609 = vmatprep.subr.bf16.mxu0 0
    %9610 = vmatpush1.bf16.msra.mxu0 %v7473
    %9611 = vmatprep.subr.bf16.mxu0 0
    %9612 = vmatpush1.bf16.msra.mxu0 %v7474
    %9613 = vmatprep.subr.bf16.mxu0 0
    %9614 = vmatpush1.bf16.msra.mxu0 %v7475
    %9615 = vmatprep.subr.bf16.mxu0 0
    %9616 = vmatpush1.bf16.msra.mxu0 %v7476
    %9617 = vmatprep.subr.bf16.mxu0 0
    %9618 = vmatpush1.bf16.msra.mxu0 %v7477
    %9619 = vmatprep.subr.bf16.mxu0 0
    %9620 = vmatpush1.bf16.msra.mxu0 %v7478
    %9621 = vmatprep.subr.bf16.mxu0 0
    %9622 = vmatpush1.bf16.msra.mxu0 %v7479
    %9623 = vmatprep.subr.bf16.mxu0 0
    %9624 = vmatpush1.bf16.msra.mxu0 %v7480
    %9625 = vmatprep.subr.bf16.mxu0 0
    %9626 = vmatpush1.bf16.msra.mxu0 %v7481
    %9627 = vmatprep.subr.bf16.mxu0 0
    %9628 = vmatpush1.bf16.msra.mxu0 %v7482
    %9629 = vmatprep.subr.bf16.mxu0 0
    %9630 = vmatpush1.bf16.msra.mxu0 %v7483
    %9631 = vmatprep.subr.bf16.mxu0 0
    %9632 = vmatpush1.bf16.msra.mxu0 %v7484
    %9633 = vmatprep.subr.bf16.mxu0 0
    %9634 = vmatpush1.bf16.msra.mxu0 %v7485
    %9635 = vmatprep.subr.bf16.mxu0 0
    %9636 = vmatpush1.bf16.msra.mxu0 %v7486
    %9637 = vmatprep.subr.bf16.mxu0 0
    %9638 = vmatpush1.bf16.msra.mxu0 %v7487
    %9639 = vmatprep.subr.bf16.mxu0 0
    %9640 = vmatpush1.bf16.msra.mxu0 %v7488
    %9641 = vmatprep.mubr.bf16.mxu0 %v2434
    %9642 = vmatmul.mubr.bf16.gmra.mrb[0].mxu0 %v2433
    %v9643 = vpop.f32.mrb[0].mxu0
    %v9644 = vadd.f32 %v9603, %v9643
    %v9645 = vpop.f32.mrb[0].mxu0
    %v9646 = vpop.f32.mrb[0].mxu0
    %v9647 = vadd.f32 %v9606, %v9646
    %v9648 = vpop.f32.mrb[0].mxu0
    %9649 = vdwg.mxu0
    %9650 = vmatprep.subr.bf16.mxu0 0
    %9651 = vmatpush1.bf16.msra.mxu0 %v7489
    %9652 = vmatprep.subr.bf16.mxu0 0
    %9653 = vmatpush1.bf16.msra.mxu0 %v7490
    %9654 = vmatprep.subr.bf16.mxu0 0
    %9655 = vmatpush1.bf16.msra.mxu0 %v7491
    %9656 = vmatprep.subr.bf16.mxu0 0
    %9657 = vmatpush1.bf16.msra.mxu0 %v7492
    %9658 = vmatprep.subr.bf16.mxu0 0
    %9659 = vmatpush1.bf16.msra.mxu0 %v7493
    %9660 = vmatprep.subr.bf16.mxu0 0
    %9661 = vmatpush1.bf16.msra.mxu0 %v7494
    %9662 = vmatprep.subr.bf16.mxu0 0
    %9663 = vmatpush1.bf16.msra.mxu0 %v7495
    %9664 = vmatprep.subr.bf16.mxu0 0
    %9665 = vmatpush1.bf16.msra.mxu0 %v7496
    %9666 = vmatprep.subr.bf16.mxu0 0
    %9667 = vmatpush1.bf16.msra.mxu0 %v7497
    %9668 = vmatprep.subr.bf16.mxu0 0
    %9669 = vmatpush1.bf16.msra.mxu0 %v7498
    %9670 = vmatprep.subr.bf16.mxu0 0
    %9671 = vmatpush1.bf16.msra.mxu0 %v7499
    %9672 = vmatprep.subr.bf16.mxu0 0
    %9673 = vmatpush1.bf16.msra.mxu0 %v7500
    %9674 = vmatprep.subr.bf16.mxu0 0
    %9675 = vmatpush1.bf16.msra.mxu0 %v7501
    %9676 = vmatprep.subr.bf16.mxu0 0
    %9677 = vmatpush1.bf16.msra.mxu0 %v7502
    %9678 = vmatprep.subr.bf16.mxu0 0
    %9679 = vmatpush1.bf16.msra.mxu0 %v7503
    %9680 = vmatprep.subr.bf16.mxu0 0
    %9681 = vmatpush1.bf16.msra.mxu0 %v7504
    %9682 = vmatprep.mubr.bf16.mxu0 %v2436
    %9683 = vmatmul.mubr.bf16.gmra.mrb[0].mxu0 %v2435
    %v9684 = vpop.f32.mrb[0].mxu0
    %v9685 = vadd.f32 %v9644, %v9684
    %v9686 = vpop.f32.mrb[0].mxu0
    %v9687 = vpop.f32.mrb[0].mxu0
    %v9688 = vadd.f32 %v9647, %v9687
    %v9689 = vpop.f32.mrb[0].mxu0
    %9690 = vdwg.mxu0
    %9691 = vmatprep.subr.bf16.mxu0 0
    %9692 = vmatpush1.bf16.msra.mxu0 %v7505
    %9693 = vmatprep.subr.bf16.mxu0 0
    %9694 = vmatpush1.bf16.msra.mxu0 %v7506
    %9695 = vmatprep.subr.bf16.mxu0 0
    %9696 = vmatpush1.bf16.msra.mxu0 %v7507
    %9697 = vmatprep.subr.bf16.mxu0 0
    %9698 = vmatpush1.bf16.msra.mxu0 %v7508
    %9699 = vmatprep.subr.bf16.mxu0 0
    %9700 = vmatpush1.bf16.msra.mxu0 %v7509
    %9701 = vmatprep.subr.bf16.mxu0 0
    %9702 = vmatpush1.bf16.msra.mxu0 %v7510
    %9703 = vmatprep.subr.bf16.mxu0 0
    %9704 = vmatpush1.bf16.msra.mxu0 %v7511
    %9705 = vmatprep.subr.bf16.mxu0 0
    %9706 = vmatpush1.bf16.msra.mxu0 %v7512
    %9707 = vmatprep.subr.bf16.mxu0 0
    %9708 = vmatpush1.bf16.msra.mxu0 %v7513
    %9709 = vmatprep.subr.bf16.mxu0 0
    %9710 = vmatpush1.bf16.msra.mxu0 %v7514
    %9711 = vmatprep.subr.bf16.mxu0 0
    %9712 = vmatpush1.bf16.msra.mxu0 %v7515
    %9713 = vmatprep.subr.bf16.mxu0 0
    %9714 = vmatpush1.bf16.msra.mxu0 %v7516
    %9715 = vmatprep.subr.bf16.mxu0 0
    %9716 = vmatpush1.bf16.msra.mxu0 %v7517
    %9717 = vmatprep.subr.bf16.mxu0 0
    %9718 = vmatpush1.bf16.msra.mxu0 %v7518
    %9719 = vmatprep.subr.bf16.mxu0 0
    %9720 = vmatpush1.bf16.msra.mxu0 %v7519
    %9721 = vmatprep.subr.bf16.mxu0 0
    %9722 = vmatpush1.bf16.msra.mxu0 %v7520
    %9723 = vmatprep.mubr.bf16.mxu0 %v2438
    %9724 = vmatmul.mubr.bf16.gmra.mrb[0].mxu0 %v2437
    %v9725 = vpop.f32.mrb[0].mxu0
    %v9726 = vadd.f32 %v9685, %v9725
    %v9727 = vpop.f32.mrb[0].mxu0
    %v9728 = vpop.f32.mrb[0].mxu0
    %v9729 = vadd.f32 %v9688, %v9728
    %v9730 = vpop.f32.mrb[0].mxu0
    %9731 = vdwg.mxu0
    %9732 = vmatprep.subr.bf16.mxu0 0
    %9733 = vmatpush1.bf16.msra.mxu0 %v7521
    %9734 = vmatprep.subr.bf16.mxu0 0
    %9735 = vmatpush1.bf16.msra.mxu0 %v7522
    %9736 = vmatprep.subr.bf16.mxu0 0
    %9737 = vmatpush1.bf16.msra.mxu0 %v7523
    %9738 = vmatprep.subr.bf16.mxu0 0
    %9739 = vmatpush1.bf16.msra.mxu0 %v7524
    %9740 = vmatprep.subr.bf16.mxu0 0
    %9741 = vmatpush1.bf16.msra.mxu0 %v7525
    %9742 = vmatprep.subr.bf16.mxu0 0
    %9743 = vmatpush1.bf16.msra.mxu0 %v7526
    %9744 = vmatprep.subr.bf16.mxu0 0
    %9745 = vmatpush1.bf16.msra.mxu0 %v7527
    %9746 = vmatprep.subr.bf16.mxu0 0
    %9747 = vmatpush1.bf16.msra.mxu0 %v7528
    %9748 = vmatprep.subr.bf16.mxu0 0
    %9749 = vmatpush1.bf16.msra.mxu0 %v7529
    %9750 = vmatprep.subr.bf16.mxu0 0
    %9751 = vmatpush1.bf16.msra.mxu0 %v7530
    %9752 = vmatprep.subr.bf16.mxu0 0
    %9753 = vmatpush1.bf16.msra.mxu0 %v7531
    %9754 = vmatprep.subr.bf16.mxu0 0
    %9755 = vmatpush1.bf16.msra.mxu0 %v7532
    %9756 = vmatprep.subr.bf16.mxu0 0
    %9757 = vmatpush1.bf16.msra.mxu0 %v7533
    %9758 = vmatprep.subr.bf16.mxu0 0
    %9759 = vmatpush1.bf16.msra.mxu0 %v7534
    %9760 = vmatprep.subr.bf16.mxu0 0
    %9761 = vmatpush1.bf16.msra.mxu0 %v7535
    %9762 = vmatprep.subr.bf16.mxu0 0
    %9763 = vmatpush1.bf16.msra.mxu0 %v7536
    %9764 = vmatprep.mubr.bf16.mxu0 %v2440
    %9765 = vmatmul.mubr.bf16.gmra.mrb[0].mxu0 %v2439
    %v9766 = vpop.f32.mrb[0].mxu0
    %v9767 = vadd.f32 %v9726, %v9766
    %v9768 = vpop.f32.mrb[0].mxu0
    %v9769 = vpop.f32.mrb[0].mxu0
    %v9770 = vadd.f32 %v9729, %v9769
    %v9771 = vpop.f32.mrb[0].mxu0
    %9772 = vdwg.mxu0
    %9773 = vmatprep.subr.bf16.mxu0 0
    %9774 = vmatpush1.bf16.msra.mxu0 %v7537
    %9775 = vmatprep.subr.bf16.mxu0 0
    %9776 = vmatpush1.bf16.msra.mxu0 %v7538
    %9777 = vmatprep.subr.bf16.mxu0 0
    %9778 = vmatpush1.bf16.msra.mxu0 %v7539
    %9779 = vmatprep.subr.bf16.mxu0 0
    %9780 = vmatpush1.bf16.msra.mxu0 %v7540
    %9781 = vmatprep.subr.bf16.mxu0 0
    %9782 = vmatpush1.bf16.msra.mxu0 %v7541
    %9783 = vmatprep.subr.bf16.mxu0 0
    %9784 = vmatpush1.bf16.msra.mxu0 %v7542
    %9785 = vmatprep.subr.bf16.mxu0 0
    %9786 = vmatpush1.bf16.msra.mxu0 %v7543
    %9787 = vmatprep.subr.bf16.mxu0 0
    %9788 = vmatpush1.bf16.msra.mxu0 %v7544
    %9789 = vmatprep.subr.bf16.mxu0 0
    %9790 = vmatpush1.bf16.msra.mxu0 %v7545
    %9791 = vmatprep.subr.bf16.mxu0 0
    %9792 = vmatpush1.bf16.msra.mxu0 %v7546
    %9793 = vmatprep.subr.bf16.mxu0 0
    %9794 = vmatpush1.bf16.msra.mxu0 %v7547
    %9795 = vmatprep.subr.bf16.mxu0 0
    %9796 = vmatpush1.bf16.msra.mxu0 %v7548
    %9797 = vmatprep.subr.bf16.mxu0 0
    %9798 = vmatpush1.bf16.msra.mxu0 %v7549
    %9799 = vmatprep.subr.bf16.mxu0 0
    %9800 = vmatpush1.bf16.msra.mxu0 %v7550
    %9801 = vmatprep.subr.bf16.mxu0 0
    %9802 = vmatpush1.bf16.msra.mxu0 %v7551
    %9803 = vmatprep.subr.bf16.mxu0 0
    %9804 = vmatpush1.bf16.msra.mxu0 %v7552
    %9805 = vmatprep.mubr.bf16.mxu0 %v2442
    %9806 = vmatmul.mubr.bf16.gmra.mrb[0].mxu0 %v2441
    %v9807 = vpop.f32.mrb[0].mxu0
    %v9808 = vadd.f32 %v9767, %v9807
    %v9809 = vpop.f32.mrb[0].mxu0
    %v9810 = vpop.f32.mrb[0].mxu0
    %v9811 = vadd.f32 %v9770, %v9810
    %v9812 = vpop.f32.mrb[0].mxu0
    %9813 = vdwg.mxu0
    %9814 = vmatprep.subr.bf16.mxu0 0
    %9815 = vmatpush1.bf16.msra.mxu0 %v7553
    %9816 = vmatprep.subr.bf16.mxu0 0
    %9817 = vmatpush1.bf16.msra.mxu0 %v7554
    %9818 = vmatprep.subr.bf16.mxu0 0
    %9819 = vmatpush1.bf16.msra.mxu0 %v7555
    %9820 = vmatprep.subr.bf16.mxu0 0
    %9821 = vmatpush1.bf16.msra.mxu0 %v7556
    %9822 = vmatprep.subr.bf16.mxu0 0
    %9823 = vmatpush1.bf16.msra.mxu0 %v7557
    %9824 = vmatprep.subr.bf16.mxu0 0
    %9825 = vmatpush1.bf16.msra.mxu0 %v7558
    %9826 = vmatprep.subr.bf16.mxu0 0
    %9827 = vmatpush1.bf16.msra.mxu0 %v7559
    %9828 = vmatprep.subr.bf16.mxu0 0
    %9829 = vmatpush1.bf16.msra.mxu0 %v7560
    %9830 = vmatprep.subr.bf16.mxu0 0
    %9831 = vmatpush1.bf16.msra.mxu0 %v7561
    %9832 = vmatprep.subr.bf16.mxu0 0
    %9833 = vmatpush1.bf16.msra.mxu0 %v7562
    %9834 = vmatprep.subr.bf16.mxu0 0
    %9835 = vmatpush1.bf16.msra.mxu0 %v7563
    %9836 = vmatprep.subr.bf16.mxu0 0
    %9837 = vmatpush1.bf16.msra.mxu0 %v7564
    %9838 = vmatprep.subr.bf16.mxu0 0
    %9839 = vmatpush1.bf16.msra.mxu0 %v7565
    %9840 = vmatprep.subr.bf16.mxu0 0
    %9841 = vmatpush1.bf16.msra.mxu0 %v7566
    %9842 = vmatprep.subr.bf16.mxu0 0
    %9843 = vmatpush1.bf16.msra.mxu0 %v7567
    %9844 = vmatprep.subr.bf16.mxu0 0
    %9845 = vmatpush1.bf16.msra.mxu0 %v7568
    %9846 = vmatprep.mubr.bf16.mxu0 %v2444
    %9847 = vmatmul.mubr.bf16.gmra.mrb[0].mxu0 %v2443
    %v9848 = vpop.f32.mrb[0].mxu0
    %v9849 = vadd.f32 %v9808, %v9848
    %v9850 = vpop.f32.mrb[0].mxu0
    %v9851 = vpop.f32.mrb[0].mxu0
    %v9852 = vadd.f32 %v9811, %v9851
    %v9853 = vpop.f32.mrb[0].mxu0
    %9854 = vdwg.mxu0
    %9855 = vmatprep.subr.bf16.mxu0 0
    %9856 = vmatpush1.bf16.msra.mxu0 %v7569
    %9857 = vmatprep.subr.bf16.mxu0 0
    %9858 = vmatpush1.bf16.msra.mxu0 %v7570
    %9859 = vmatprep.subr.bf16.mxu0 0
    %9860 = vmatpush1.bf16.msra.mxu0 %v7571
    %9861 = vmatprep.subr.bf16.mxu0 0
    %9862 = vmatpush1.bf16.msra.mxu0 %v7572
    %9863 = vmatprep.subr.bf16.mxu0 0
    %9864 = vmatpush1.bf16.msra.mxu0 %v7573
    %9865 = vmatprep.subr.bf16.mxu0 0
    %9866 = vmatpush1.bf16.msra.mxu0 %v7574
    %9867 = vmatprep.subr.bf16.mxu0 0
    %9868 = vmatpush1.bf16.msra.mxu0 %v7575
    %9869 = vmatprep.subr.bf16.mxu0 0
    %9870 = vmatpush1.bf16.msra.mxu0 %v7576
    %9871 = vmatprep.subr.bf16.mxu0 0
    %9872 = vmatpush1.bf16.msra.mxu0 %v7577
    %9873 = vmatprep.subr.bf16.mxu0 0
    %9874 = vmatpush1.bf16.msra.mxu0 %v7578
    %9875 = vmatprep.subr.bf16.mxu0 0
    %9876 = vmatpush1.bf16.msra.mxu0 %v7579
    %9877 = vmatprep.subr.bf16.mxu0 0
    %9878 = vmatpush1.bf16.msra.mxu0 %v7580
    %9879 = vmatprep.subr.bf16.mxu0 0
    %9880 = vmatpush1.bf16.msra.mxu0 %v7581
    %9881 = vmatprep.subr.bf16.mxu0 0
    %9882 = vmatpush1.bf16.msra.mxu0 %v7582
    %9883 = vmatprep.subr.bf16.mxu0 0
    %9884 = vmatpush1.bf16.msra.mxu0 %v7583
    %9885 = vmatprep.subr.bf16.mxu0 0
    %9886 = vmatpush1.bf16.msra.mxu0 %v7584
    %9887 = vmatprep.mubr.bf16.mxu0 %v2446
    %9888 = vmatmul.mubr.bf16.gmra.mrb[0].mxu0 %v2445
    %v9889 = vpop.f32.mrb[0].mxu0
    %v9890 = vadd.f32 %v9849, %v9889
    %v9891 = vpop.f32.mrb[0].mxu0
    %v9892 = vpop.f32.mrb[0].mxu0
    %v9893 = vadd.f32 %v9852, %v9892
    %v9894 = vpop.f32.mrb[0].mxu0
    %9895 = vdwg.mxu0
    %9896 = vmatprep.subr.bf16.mxu0 0
    %9897 = vmatpush1.bf16.msra.mxu0 %v7585
    %9898 = vmatprep.subr.bf16.mxu0 0
    %9899 = vmatpush1.bf16.msra.mxu0 %v7586
    %9900 = vmatprep.subr.bf16.mxu0 0
    %9901 = vmatpush1.bf16.msra.mxu0 %v7587
    %9902 = vmatprep.subr.bf16.mxu0 0
    %9903 = vmatpush1.bf16.msra.mxu0 %v7588
    %9904 = vmatprep.subr.bf16.mxu0 0
    %9905 = vmatpush1.bf16.msra.mxu0 %v7589
    %9906 = vmatprep.subr.bf16.mxu0 0
    %9907 = vmatpush1.bf16.msra.mxu0 %v7590
    %9908 = vmatprep.subr.bf16.mxu0 0
    %9909 = vmatpush1.bf16.msra.mxu0 %v7591
    %9910 = vmatprep.subr.bf16.mxu0 0
    %9911 = vmatpush1.bf16.msra.mxu0 %v7592
    %9912 = vmatprep.subr.bf16.mxu0 0
    %9913 = vmatpush1.bf16.msra.mxu0 %v7593
    %9914 = vmatprep.subr.bf16.mxu0 0
    %9915 = vmatpush1.bf16.msra.mxu0 %v7594
    %9916 = vmatprep.subr.bf16.mxu0 0
    %9917 = vmatpush1.bf16.msra.mxu0 %v7595
    %9918 = vmatprep.subr.bf16.mxu0 0
    %9919 = vmatpush1.bf16.msra.mxu0 %v7596
    %9920 = vmatprep.subr.bf16.mxu0 0
    %9921 = vmatpush1.bf16.msra.mxu0 %v7597
    %9922 = vmatprep.subr.bf16.mxu0 0
    %9923 = vmatpush1.bf16.msra.mxu0 %v7598
    %9924 = vmatprep.subr.bf16.mxu0 0
    %9925 = vmatpush1.bf16.msra.mxu0 %v7599
    %9926 = vmatprep.subr.bf16.mxu0 0
    %9927 = vmatpush1.bf16.msra.mxu0 %v7600
    %9928 = vmatprep.mubr.bf16.mxu0 %v2448
    %9929 = vmatmul.mubr.bf16.gmra.mrb[0].mxu0 %v2447
    %v9930 = vpop.f32.mrb[0].mxu0
    %v9931 = vadd.f32 %v9890, %v9930
    %v9932 = vpop.f32.mrb[0].mxu0
    %v9933 = vpop.f32.mrb[0].mxu0
    %v9934 = vadd.f32 %v9893, %v9933
    %v9935 = vpop.f32.mrb[0].mxu0
    %9936 = vdwg.mxu0
    %9937 = vmatprep.subr.bf16.mxu0 0
    %9938 = vmatpush1.bf16.msra.mxu0 %v7601
    %9939 = vmatprep.subr.bf16.mxu0 0
    %9940 = vmatpush1.bf16.msra.mxu0 %v7602
    %9941 = vmatprep.subr.bf16.mxu0 0
    %9942 = vmatpush1.bf16.msra.mxu0 %v7603
    %9943 = vmatprep.subr.bf16.mxu0 0
    %9944 = vmatpush1.bf16.msra.mxu0 %v7604
    %9945 = vmatprep.subr.bf16.mxu0 0
    %9946 = vmatpush1.bf16.msra.mxu0 %v7605
    %9947 = vmatprep.subr.bf16.mxu0 0
    %9948 = vmatpush1.bf16.msra.mxu0 %v7606
    %9949 = vmatprep.subr.bf16.mxu0 0
    %9950 = vmatpush1.bf16.msra.mxu0 %v7607
    %9951 = vmatprep.subr.bf16.mxu0 0
    %9952 = vmatpush1.bf16.msra.mxu0 %v7608
    %9953 = vmatprep.subr.bf16.mxu0 0
    %9954 = vmatpush1.bf16.msra.mxu0 %v7609
    %9955 = vmatprep.subr.bf16.mxu0 0
    %9956 = vmatpush1.bf16.msra.mxu0 %v7610
    %9957 = vmatprep.subr.bf16.mxu0 0
    %9958 = vmatpush1.bf16.msra.mxu0 %v7611
    %9959 = vmatprep.subr.bf16.mxu0 0
    %9960 = vmatpush1.bf16.msra.mxu0 %v7612
    %9961 = vmatprep.subr.bf16.mxu0 0
    %9962 = vmatpush1.bf16.msra.mxu0 %v7613
    %9963 = vmatprep.subr.bf16.mxu0 0
    %9964 = vmatpush1.bf16.msra.mxu0 %v7614
    %9965 = vmatprep.subr.bf16.mxu0 0
    %9966 = vmatpush1.bf16.msra.mxu0 %v7615
    %9967 = vmatprep.subr.bf16.mxu0 0
    %9968 = vmatpush1.bf16.msra.mxu0 %v7616
    %9969 = vmatprep.mubr.bf16.mxu0 %v2450
    %9970 = vmatmul.mubr.bf16.gmra.mrb[0].mxu0 %v2449
    %v9971 = vpop.f32.mrb[0].mxu0
    %v9972 = vadd.f32 %v9931, %v9971
    %v9973 = vpop.f32.mrb[0].mxu0
    %v9974 = vpop.f32.mrb[0].mxu0
    %v9975 = vadd.f32 %v9934, %v9974
    %v9976 = vpop.f32.mrb[0].mxu0
    %9977 = vdwg.mxu0
    %9978 = vmatprep.subr.bf16.mxu0 0
    %9979 = vmatpush1.bf16.msra.mxu0 %v7617
    %9980 = vmatprep.subr.bf16.mxu0 0
    %9981 = vmatpush1.bf16.msra.mxu0 %v7618
    %9982 = vmatprep.subr.bf16.mxu0 0
    %9983 = vmatpush1.bf16.msra.mxu0 %v7619
    %9984 = vmatprep.subr.bf16.mxu0 0
    %9985 = vmatpush1.bf16.msra.mxu0 %v7620
    %9986 = vmatprep.subr.bf16.mxu0 0
    %9987 = vmatpush1.bf16.msra.mxu0 %v7621
    %9988 = vmatprep.subr.bf16.mxu0 0
    %9989 = vmatpush1.bf16.msra.mxu0 %v7622
    %9990 = vmatprep.subr.bf16.mxu0 0
    %9991 = vmatpush1.bf16.msra.mxu0 %v7623
    %9992 = vmatprep.subr.bf16.mxu0 0
    %9993 = vmatpush1.bf16.msra.mxu0 %v7624
    %9994 = vmatprep.subr.bf16.mxu0 0
    %9995 = vmatpush1.bf16.msra.mxu0 %v7625
    %9996 = vmatprep.subr.bf16.mxu0 0
    %9997 = vmatpush1.bf16.msra.mxu0 %v7626
    %9998 = vmatprep.subr.bf16.mxu0 0
    %9999 = vmatpush1.bf16.msra.mxu0 %v7627
    %10000 = vmatprep.subr.bf16.mxu0 0
    %10001 = vmatpush1.bf16.msra.mxu0 %v7628
    %10002 = vmatprep.subr.bf16.mxu0 0
    %10003 = vmatpush1.bf16.msra.mxu0 %v7629
    %10004 = vmatprep.subr.bf16.mxu0 0
    %10005 = vmatpush1.bf16.msra.mxu0 %v7630
    %10006 = vmatprep.subr.bf16.mxu0 0
    %10007 = vmatpush1.bf16.msra.mxu0 %v7631
    %10008 = vmatprep.subr.bf16.mxu0 0
    %10009 = vmatpush1.bf16.msra.mxu0 %v7632
    %10010 = vmatprep.mubr.bf16.mxu0 %v2452
    %10011 = vmatmul.mubr.bf16.gmra.mrb[0].mxu0 %v2451
    %v10012 = vpop.f32.mrb[0].mxu0
    %v10013 = vadd.f32 %v9972, %v10012
    %v10014 = vpop.f32.mrb[0].mxu0
    %v10015 = vpop.f32.mrb[0].mxu0
    %v10016 = vadd.f32 %v9975, %v10015
    %v10017 = vpop.f32.mrb[0].mxu0
    %10018 = vdwg.mxu0
    %10019 = vmatprep.subr.bf16.mxu0 0
    %10020 = vmatpush1.bf16.msra.mxu0 %v7633
    %10021 = vmatprep.subr.bf16.mxu0 0
    %10022 = vmatpush1.bf16.msra.mxu0 %v7634
    %10023 = vmatprep.subr.bf16.mxu0 0
    %10024 = vmatpush1.bf16.msra.mxu0 %v7635
    %10025 = vmatprep.subr.bf16.mxu0 0
    %10026 = vmatpush1.bf16.msra.mxu0 %v7636
    %10027 = vmatprep.subr.bf16.mxu0 0
    %10028 = vmatpush1.bf16.msra.mxu0 %v7637
    %10029 = vmatprep.subr.bf16.mxu0 0
    %10030 = vmatpush1.bf16.msra.mxu0 %v7638
    %10031 = vmatprep.subr.bf16.mxu0 0
    %10032 = vmatpush1.bf16.msra.mxu0 %v7639
    %10033 = vmatprep.subr.bf16.mxu0 0
    %10034 = vmatpush1.bf16.msra.mxu0 %v7640
    %10035 = vmatprep.subr.bf16.mxu0 0
    %10036 = vmatpush1.bf16.msra.mxu0 %v7641
    %10037 = vmatprep.subr.bf16.mxu0 0
    %10038 = vmatpush1.bf16.msra.mxu0 %v7642
    %10039 = vmatprep.subr.bf16.mxu0 0
    %10040 = vmatpush1.bf16.msra.mxu0 %v7643
    %10041 = vmatprep.subr.bf16.mxu0 0
    %10042 = vmatpush1.bf16.msra.mxu0 %v7644
    %10043 = vmatprep.subr.bf16.mxu0 0
    %10044 = vmatpush1.bf16.msra.mxu0 %v7645
    %10045 = vmatprep.subr.bf16.mxu0 0
    %10046 = vmatpush1.bf16.msra.mxu0 %v7646
    %10047 = vmatprep.subr.bf16.mxu0 0
    %10048 = vmatpush1.bf16.msra.mxu0 %v7647
    %10049 = vmatprep.subr.bf16.mxu0 0
    %10050 = vmatpush1.bf16.msra.mxu0 %v7648
    %10051 = vmatprep.mubr.bf16.mxu0 %v2454
    %10052 = vmatmul.mubr.bf16.gmra.mrb[0].mxu0 %v2453
    %v10053 = vpop.f32.mrb[0].mxu0
    %v10054 = vadd.f32 %v10013, %v10053
    %v10055 = vpop.f32.mrb[0].mxu0
    %v10056 = vpop.f32.mrb[0].mxu0
    %v10057 = vadd.f32 %v10016, %v10056
    %v10058 = vpop.f32.mrb[0].mxu0
    %10059 = vdwg.mxu0
    %10060 = vmatprep.subr.bf16.mxu0 0
    %10061 = vmatpush1.bf16.msra.mxu0 %v7649
    %10062 = vmatprep.subr.bf16.mxu0 0
    %10063 = vmatpush1.bf16.msra.mxu0 %v7650
    %10064 = vmatprep.subr.bf16.mxu0 0
    %10065 = vmatpush1.bf16.msra.mxu0 %v7651
    %10066 = vmatprep.subr.bf16.mxu0 0
    %10067 = vmatpush1.bf16.msra.mxu0 %v7652
    %10068 = vmatprep.subr.bf16.mxu0 0
    %10069 = vmatpush1.bf16.msra.mxu0 %v7653
    %10070 = vmatprep.subr.bf16.mxu0 0
    %10071 = vmatpush1.bf16.msra.mxu0 %v7654
    %10072 = vmatprep.subr.bf16.mxu0 0
    %10073 = vmatpush1.bf16.msra.mxu0 %v7655
    %10074 = vmatprep.subr.bf16.mxu0 0
    %10075 = vmatpush1.bf16.msra.mxu0 %v7656
    %10076 = vmatprep.subr.bf16.mxu0 0
    %10077 = vmatpush1.bf16.msra.mxu0 %v7657
    %10078 = vmatprep.subr.bf16.mxu0 0
    %10079 = vmatpush1.bf16.msra.mxu0 %v7658
    %10080 = vmatprep.subr.bf16.mxu0 0
    %10081 = vmatpush1.bf16.msra.mxu0 %v7659
    %10082 = vmatprep.subr.bf16.mxu0 0
    %10083 = vmatpush1.bf16.msra.mxu0 %v7660
    %10084 = vmatprep.subr.bf16.mxu0 0
    %10085 = vmatpush1.bf16.msra.mxu0 %v7661
    %10086 = vmatprep.subr.bf16.mxu0 0
    %10087 = vmatpush1.bf16.msra.mxu0 %v7662
    %10088 = vmatprep.subr.bf16.mxu0 0
    %10089 = vmatpush1.bf16.msra.mxu0 %v7663
    %10090 = vmatprep.subr.bf16.mxu0 0
    %10091 = vmatpush1.bf16.msra.mxu0 %v7664
    %10092 = vmatprep.mubr.bf16.mxu0 %v2456
    %10093 = vmatmul.mubr.bf16.gmra.mrb[0].mxu0 %v2455
    %v10094 = vpop.f32.mrb[0].mxu0
    %v10095 = vadd.f32 %v10054, %v10094
    %v10096 = vpop.f32.mrb[0].mxu0
    %v10097 = vpop.f32.mrb[0].mxu0
    %v10098 = vadd.f32 %v10057, %v10097
    %v10099 = vpop.f32.mrb[0].mxu0
    %10100 = vdwg.mxu0
    %10101 = vmatprep.subr.bf16.mxu0 0
    %10102 = vmatpush1.bf16.msra.mxu0 %v7665
    %10103 = vmatprep.subr.bf16.mxu0 0
    %10104 = vmatpush1.bf16.msra.mxu0 %v7666
    %10105 = vmatprep.subr.bf16.mxu0 0
    %10106 = vmatpush1.bf16.msra.mxu0 %v7667
    %10107 = vmatprep.subr.bf16.mxu0 0
    %10108 = vmatpush1.bf16.msra.mxu0 %v7668
    %10109 = vmatprep.subr.bf16.mxu0 0
    %10110 = vmatpush1.bf16.msra.mxu0 %v7669
    %10111 = vmatprep.subr.bf16.mxu0 0
    %10112 = vmatpush1.bf16.msra.mxu0 %v7670
    %10113 = vmatprep.subr.bf16.mxu0 0
    %10114 = vmatpush1.bf16.msra.mxu0 %v7671
    %10115 = vmatprep.subr.bf16.mxu0 0
    %10116 = vmatpush1.bf16.msra.mxu0 %v7672
    %10117 = vmatprep.subr.bf16.mxu0 0
    %10118 = vmatpush1.bf16.msra.mxu0 %v7673
    %10119 = vmatprep.subr.bf16.mxu0 0
    %10120 = vmatpush1.bf16.msra.mxu0 %v7674
    %10121 = vmatprep.subr.bf16.mxu0 0
    %10122 = vmatpush1.bf16.msra.mxu0 %v7675
    %10123 = vmatprep.subr.bf16.mxu0 0
    %10124 = vmatpush1.bf16.msra.mxu0 %v7676
    %10125 = vmatprep.subr.bf16.mxu0 0
    %10126 = vmatpush1.bf16.msra.mxu0 %v7677
    %10127 = vmatprep.subr.bf16.mxu0 0
    %10128 = vmatpush1.bf16.msra.mxu0 %v7678
    %10129 = vmatprep.subr.bf16.mxu0 0
    %10130 = vmatpush1.bf16.msra.mxu0 %v7679
    %10131 = vmatprep.subr.bf16.mxu0 0
    %10132 = vmatpush1.bf16.msra.mxu0 %v7680
    %10133 = vmatprep.mubr.bf16.mxu0 %v2458
    %10134 = vmatmul.mubr.bf16.gmra.mrb[0].mxu0 %v2457
    %v10135 = vpop.f32.mrb[0].mxu0
    %v10136 = vadd.f32 %v10095, %v10135
    %v10137 = vpop.f32.mrb[0].mxu0
    %v10138 = vpop.f32.mrb[0].mxu0
    %v10139 = vadd.f32 %v10098, %v10138
    %v10140 = vpop.f32.mrb[0].mxu0
    %10141 = vdwg.mxu0
    %10142 = vmatprep.subr.bf16.mxu0 0
    %10143 = vmatpush1.bf16.msra.mxu0 %v7681
    %10144 = vmatprep.subr.bf16.mxu0 0
    %10145 = vmatpush1.bf16.msra.mxu0 %v7682
    %10146 = vmatprep.subr.bf16.mxu0 0
    %10147 = vmatpush1.bf16.msra.mxu0 %v7683
    %10148 = vmatprep.subr.bf16.mxu0 0
    %10149 = vmatpush1.bf16.msra.mxu0 %v7684
    %10150 = vmatprep.subr.bf16.mxu0 0
    %10151 = vmatpush1.bf16.msra.mxu0 %v7685
    %10152 = vmatprep.subr.bf16.mxu0 0
    %10153 = vmatpush1.bf16.msra.mxu0 %v7686
    %10154 = vmatprep.subr.bf16.mxu0 0
    %10155 = vmatpush1.bf16.msra.mxu0 %v7687
    %10156 = vmatprep.subr.bf16.mxu0 0
    %10157 = vmatpush1.bf16.msra.mxu0 %v7688
    %10158 = vmatprep.subr.bf16.mxu0 0
    %10159 = vmatpush1.bf16.msra.mxu0 %v7689
    %10160 = vmatprep.subr.bf16.mxu0 0
    %10161 = vmatpush1.bf16.msra.mxu0 %v7690
    %10162 = vmatprep.subr.bf16.mxu0 0
    %10163 = vmatpush1.bf16.msra.mxu0 %v7691
    %10164 = vmatprep.subr.bf16.mxu0 0
    %10165 = vmatpush1.bf16.msra.mxu0 %v7692
    %10166 = vmatprep.subr.bf16.mxu0 0
    %10167 = vmatpush1.bf16.msra.mxu0 %v7693
    %10168 = vmatprep.subr.bf16.mxu0 0
    %10169 = vmatpush1.bf16.msra.mxu0 %v7694
    %10170 = vmatprep.subr.bf16.mxu0 0
    %10171 = vmatpush1.bf16.msra.mxu0 %v7695
    %10172 = vmatprep.subr.bf16.mxu0 0
    %10173 = vmatpush1.bf16.msra.mxu0 %v7696
    %10174 = vmatprep.mubr.bf16.mxu0 %v2460
    %10175 = vmatmul.mubr.bf16.gmra.mrb[0].mxu0 %v2459
    %v10176 = vpop.f32.mrb[0].mxu0
    %v10177 = vadd.f32 %v10136, %v10176
    %v10178 = vpop.f32.mrb[0].mxu0
    %v10179 = vpop.f32.mrb[0].mxu0
    %v10180 = vadd.f32 %v10139, %v10179
    %v10181 = vpop.f32.mrb[0].mxu0
    %10182 = vdwg.mxu0
    %10183 = vmatprep.subr.bf16.mxu0 0
    %10184 = vmatpush1.bf16.msra.mxu0 %v7697
    %10185 = vmatprep.subr.bf16.mxu0 0
    %10186 = vmatpush1.bf16.msra.mxu0 %v7698
    %10187 = vmatprep.subr.bf16.mxu0 0
    %10188 = vmatpush1.bf16.msra.mxu0 %v7699
    %10189 = vmatprep.subr.bf16.mxu0 0
    %10190 = vmatpush1.bf16.msra.mxu0 %v7700
    %10191 = vmatprep.subr.bf16.mxu0 0
    %10192 = vmatpush1.bf16.msra.mxu0 %v7701
    %10193 = vmatprep.subr.bf16.mxu0 0
    %10194 = vmatpush1.bf16.msra.mxu0 %v7702
    %10195 = vmatprep.subr.bf16.mxu0 0
    %10196 = vmatpush1.bf16.msra.mxu0 %v7703
    %10197 = vmatprep.subr.bf16.mxu0 0
    %10198 = vmatpush1.bf16.msra.mxu0 %v7704
    %10199 = vmatprep.subr.bf16.mxu0 0
    %10200 = vmatpush1.bf16.msra.mxu0 %v7705
    %10201 = vmatprep.subr.bf16.mxu0 0
    %10202 = vmatpush1.bf16.msra.mxu0 %v7706
    %10203 = vmatprep.subr.bf16.mxu0 0
    %10204 = vmatpush1.bf16.msra.mxu0 %v7707
    %10205 = vmatprep.subr.bf16.mxu0 0
    %10206 = vmatpush1.bf16.msra.mxu0 %v7708
    %10207 = vmatprep.subr.bf16.mxu0 0
    %10208 = vmatpush1.bf16.msra.mxu0 %v7709
    %10209 = vmatprep.subr.bf16.mxu0 0
    %10210 = vmatpush1.bf16.msra.mxu0 %v7710
    %10211 = vmatprep.subr.bf16.mxu0 0
    %10212 = vmatpush1.bf16.msra.mxu0 %v7711
    %10213 = vmatprep.subr.bf16.mxu0 0
    %10214 = vmatpush1.bf16.msra.mxu0 %v7712
    %10215 = vmatprep.mubr.bf16.mxu0 %v2462
    %10216 = vmatmul.mubr.bf16.gmra.mrb[0].mxu0 %v2461
    %v10217 = vpop.f32.mrb[0].mxu0
    %v10218 = vadd.f32 %v10177, %v10217
    %v10219 = vpop.f32.mrb[0].mxu0
    %v10220 = vpop.f32.mrb[0].mxu0
    %v10221 = vadd.f32 %v10180, %v10220
    %v10222 = vpop.f32.mrb[0].mxu0
    %10223 = vdwg.mxu0
    %10224 = vmatprep.subr.bf16.mxu0 0
    %10225 = vmatpush1.bf16.msra.mxu0 %v7713
    %10226 = vmatprep.subr.bf16.mxu0 0
    %10227 = vmatpush1.bf16.msra.mxu0 %v7714
    %10228 = vmatprep.subr.bf16.mxu0 0
    %10229 = vmatpush1.bf16.msra.mxu0 %v7715
    %10230 = vmatprep.subr.bf16.mxu0 0
    %10231 = vmatpush1.bf16.msra.mxu0 %v7716
    %10232 = vmatprep.subr.bf16.mxu0 0
    %10233 = vmatpush1.bf16.msra.mxu0 %v7717
    %10234 = vmatprep.subr.bf16.mxu0 0
    %10235 = vmatpush1.bf16.msra.mxu0 %v7718
    %10236 = vmatprep.subr.bf16.mxu0 0
    %10237 = vmatpush1.bf16.msra.mxu0 %v7719
    %10238 = vmatprep.subr.bf16.mxu0 0
    %10239 = vmatpush1.bf16.msra.mxu0 %v7720
    %10240 = vmatprep.subr.bf16.mxu0 0
    %10241 = vmatpush1.bf16.msra.mxu0 %v7721
    %10242 = vmatprep.subr.bf16.mxu0 0
    %10243 = vmatpush1.bf16.msra.mxu0 %v7722
    %10244 = vmatprep.subr.bf16.mxu0 0
    %10245 = vmatpush1.bf16.msra.mxu0 %v7723
    %10246 = vmatprep.subr.bf16.mxu0 0
    %10247 = vmatpush1.bf16.msra.mxu0 %v7724
    %10248 = vmatprep.subr.bf16.mxu0 0
    %10249 = vmatpush1.bf16.msra.mxu0 %v7725
    %10250 = vmatprep.subr.bf16.mxu0 0
    %10251 = vmatpush1.bf16.msra.mxu0 %v7726
    %10252 = vmatprep.subr.bf16.mxu0 0
    %10253 = vmatpush1.bf16.msra.mxu0 %v7727
    %10254 = vmatprep.subr.bf16.mxu0 0
    %10255 = vmatpush1.bf16.msra.mxu0 %v7728
    %10256 = vmatprep.mubr.bf16.mxu0 %v2464
    %10257 = vmatmul.mubr.bf16.gmra.mrb[0].mxu0 %v2463
    %v10258 = vpop.f32.mrb[0].mxu0
    %v10259 = vadd.f32 %v10218, %v10258
    %v10260 = vpop.f32.mrb[0].mxu0
    %v10261 = vpop.f32.mrb[0].mxu0
    %v10262 = vadd.f32 %v10221, %v10261
    %v10263 = vpop.f32.mrb[0].mxu0
    %10264 = vdwg.mxu0
    %10265 = vmatprep.subr.bf16.mxu0 0
    %10266 = vmatpush1.bf16.msra.mxu0 %v7729
    %10267 = vmatprep.subr.bf16.mxu0 0
    %10268 = vmatpush1.bf16.msra.mxu0 %v7730
    %10269 = vmatprep.subr.bf16.mxu0 0
    %10270 = vmatpush1.bf16.msra.mxu0 %v7731
    %10271 = vmatprep.subr.bf16.mxu0 0
    %10272 = vmatpush1.bf16.msra.mxu0 %v7732
    %10273 = vmatprep.subr.bf16.mxu0 0
    %10274 = vmatpush1.bf16.msra.mxu0 %v7733
    %10275 = vmatprep.subr.bf16.mxu0 0
    %10276 = vmatpush1.bf16.msra.mxu0 %v7734
    %10277 = vmatprep.subr.bf16.mxu0 0
    %10278 = vmatpush1.bf16.msra.mxu0 %v7735
    %10279 = vmatprep.subr.bf16.mxu0 0
    %10280 = vmatpush1.bf16.msra.mxu0 %v7736
    %10281 = vmatprep.subr.bf16.mxu0 0
    %10282 = vmatpush1.bf16.msra.mxu0 %v7737
    %10283 = vmatprep.subr.bf16.mxu0 0
    %10284 = vmatpush1.bf16.msra.mxu0 %v7738
    %10285 = vmatprep.subr.bf16.mxu0 0
    %10286 = vmatpush1.bf16.msra.mxu0 %v7739
    %10287 = vmatprep.subr.bf16.mxu0 0
    %10288 = vmatpush1.bf16.msra.mxu0 %v7740
    %10289 = vmatprep.subr.bf16.mxu0 0
    %10290 = vmatpush1.bf16.msra.mxu0 %v7741
    %10291 = vmatprep.subr.bf16.mxu0 0
    %10292 = vmatpush1.bf16.msra.mxu0 %v7742
    %10293 = vmatprep.subr.bf16.mxu0 0
    %10294 = vmatpush1.bf16.msra.mxu0 %v7743
    %10295 = vmatprep.subr.bf16.mxu0 0
    %10296 = vmatpush1.bf16.msra.mxu0 %v7744
    %10297 = vmatprep.mubr.bf16.mxu0 %v2466
    %10298 = vmatmul.mubr.bf16.gmra.mrb[0].mxu0 %v2465
    %v10299 = vpop.f32.mrb[0].mxu0
    %v10300 = vadd.f32 %v10259, %v10299
    %v10301 = vpop.f32.mrb[0].mxu0
    %v10302 = vpop.f32.mrb[0].mxu0
    %v10303 = vadd.f32 %v10262, %v10302
    %v10304 = vpop.f32.mrb[0].mxu0
    %10305 = vdwg.mxu0
    %10306 = vmatprep.subr.bf16.mxu0 0
    %10307 = vmatpush1.bf16.msra.mxu0 %v7745
    %10308 = vmatprep.subr.bf16.mxu0 0
    %10309 = vmatpush1.bf16.msra.mxu0 %v7746
    %10310 = vmatprep.subr.bf16.mxu0 0
    %10311 = vmatpush1.bf16.msra.mxu0 %v7747
    %10312 = vmatprep.subr.bf16.mxu0 0
    %10313 = vmatpush1.bf16.msra.mxu0 %v7748
    %10314 = vmatprep.subr.bf16.mxu0 0
    %10315 = vmatpush1.bf16.msra.mxu0 %v7749
    %10316 = vmatprep.subr.bf16.mxu0 0
    %10317 = vmatpush1.bf16.msra.mxu0 %v7750
    %10318 = vmatprep.subr.bf16.mxu0 0
    %10319 = vmatpush1.bf16.msra.mxu0 %v7751
    %10320 = vmatprep.subr.bf16.mxu0 0
    %10321 = vmatpush1.bf16.msra.mxu0 %v7752
    %10322 = vmatprep.subr.bf16.mxu0 0
    %10323 = vmatpush1.bf16.msra.mxu0 %v7753
    %10324 = vmatprep.subr.bf16.mxu0 0
    %10325 = vmatpush1.bf16.msra.mxu0 %v7754
    %10326 = vmatprep.subr.bf16.mxu0 0
    %10327 = vmatpush1.bf16.msra.mxu0 %v7755
    %10328 = vmatprep.subr.bf16.mxu0 0
    %10329 = vmatpush1.bf16.msra.mxu0 %v7756
    %10330 = vmatprep.subr.bf16.mxu0 0
    %10331 = vmatpush1.bf16.msra.mxu0 %v7757
    %10332 = vmatprep.subr.bf16.mxu0 0
    %10333 = vmatpush1.bf16.msra.mxu0 %v7758
    %10334 = vmatprep.subr.bf16.mxu0 0
    %10335 = vmatpush1.bf16.msra.mxu0 %v7759
    %10336 = vmatprep.subr.bf16.mxu0 0
    %10337 = vmatpush1.bf16.msra.mxu0 %v7760
    %10338 = vmatprep.mubr.bf16.mxu0 %v2468
    %10339 = vmatmul.mubr.bf16.gmra.mrb[0].mxu0 %v2467
    %v10340 = vpop.f32.mrb[0].mxu0
    %v10341 = vadd.f32 %v10300, %v10340
    %v10342 = vpop.f32.mrb[0].mxu0
    %v10343 = vpop.f32.mrb[0].mxu0
    %v10344 = vadd.f32 %v10303, %v10343
    %v10345 = vpop.f32.mrb[0].mxu0
    %10346 = vdwg.mxu0
    %10347 = vmatprep.subr.bf16.mxu0 0
    %10348 = vmatpush1.bf16.msra.mxu0 %v7761
    %10349 = vmatprep.subr.bf16.mxu0 0
    %10350 = vmatpush1.bf16.msra.mxu0 %v7762
    %10351 = vmatprep.subr.bf16.mxu0 0
    %10352 = vmatpush1.bf16.msra.mxu0 %v7763
    %10353 = vmatprep.subr.bf16.mxu0 0
    %10354 = vmatpush1.bf16.msra.mxu0 %v7764
    %10355 = vmatprep.subr.bf16.mxu0 0
    %10356 = vmatpush1.bf16.msra.mxu0 %v7765
    %10357 = vmatprep.subr.bf16.mxu0 0
    %10358 = vmatpush1.bf16.msra.mxu0 %v7766
    %10359 = vmatprep.subr.bf16.mxu0 0
    %10360 = vmatpush1.bf16.msra.mxu0 %v7767
    %10361 = vmatprep.subr.bf16.mxu0 0
    %10362 = vmatpush1.bf16.msra.mxu0 %v7768
    %10363 = vmatprep.subr.bf16.mxu0 0
    %10364 = vmatpush1.bf16.msra.mxu0 %v7769
    %10365 = vmatprep.subr.bf16.mxu0 0
    %10366 = vmatpush1.bf16.msra.mxu0 %v7770
    %10367 = vmatprep.subr.bf16.mxu0 0
    %10368 = vmatpush1.bf16.msra.mxu0 %v7771
    %10369 = vmatprep.subr.bf16.mxu0 0
    %10370 = vmatpush1.bf16.msra.mxu0 %v7772
    %10371 = vmatprep.subr.bf16.mxu0 0
    %10372 = vmatpush1.bf16.msra.mxu0 %v7773
    %10373 = vmatprep.subr.bf16.mxu0 0
    %10374 = vmatpush1.bf16.msra.mxu0 %v7774
    %10375 = vmatprep.subr.bf16.mxu0 0
    %10376 = vmatpush1.bf16.msra.mxu0 %v7775
    %10377 = vmatprep.subr.bf16.mxu0 0
    %10378 = vmatpush1.bf16.msra.mxu0 %v7776
    %10379 = vmatprep.mubr.bf16.mxu0 %v2470
    %10380 = vmatmul.mubr.bf16.gmra.mrb[0].mxu0 %v2469
    %v10381 = vpop.f32.mrb[0].mxu0
    %v10382 = vadd.f32 %v10341, %v10381
    %v10383 = vpop.f32.mrb[0].mxu0
    %v10384 = vpop.f32.mrb[0].mxu0
    %v10385 = vadd.f32 %v10344, %v10384
    %v10386 = vpop.f32.mrb[0].mxu0
    %10387 = vdwg.mxu0
    %10388 = vmatprep.subr.bf16.mxu0 0
    %10389 = vmatpush1.bf16.msra.mxu0 %v7777
    %10390 = vmatprep.subr.bf16.mxu0 0
    %10391 = vmatpush1.bf16.msra.mxu0 %v7778
    %10392 = vmatprep.subr.bf16.mxu0 0
    %10393 = vmatpush1.bf16.msra.mxu0 %v7779
    %10394 = vmatprep.subr.bf16.mxu0 0
    %10395 = vmatpush1.bf16.msra.mxu0 %v7780
    %10396 = vmatprep.subr.bf16.mxu0 0
    %10397 = vmatpush1.bf16.msra.mxu0 %v7781
    %10398 = vmatprep.subr.bf16.mxu0 0
    %10399 = vmatpush1.bf16.msra.mxu0 %v7782
    %10400 = vmatprep.subr.bf16.mxu0 0
    %10401 = vmatpush1.bf16.msra.mxu0 %v7783
    %10402 = vmatprep.subr.bf16.mxu0 0
    %10403 = vmatpush1.bf16.msra.mxu0 %v7784
    %10404 = vmatprep.subr.bf16.mxu0 0
    %10405 = vmatpush1.bf16.msra.mxu0 %v7785
    %10406 = vmatprep.subr.bf16.mxu0 0
    %10407 = vmatpush1.bf16.msra.mxu0 %v7786
    %10408 = vmatprep.subr.bf16.mxu0 0
    %10409 = vmatpush1.bf16.msra.mxu0 %v7787
    %10410 = vmatprep.subr.bf16.mxu0 0
    %10411 = vmatpush1.bf16.msra.mxu0 %v7788
    %10412 = vmatprep.subr.bf16.mxu0 0
    %10413 = vmatpush1.bf16.msra.mxu0 %v7789
    %10414 = vmatprep.subr.bf16.mxu0 0
    %10415 = vmatpush1.bf16.msra.mxu0 %v7790
    %10416 = vmatprep.subr.bf16.mxu0 0
    %10417 = vmatpush1.bf16.msra.mxu0 %v7791
    %10418 = vmatprep.subr.bf16.mxu0 0
    %10419 = vmatpush1.bf16.msra.mxu0 %v7792
    %10420 = vmatprep.mubr.bf16.mxu0 %v2472
    %10421 = vmatmul.mubr.bf16.gmra.mrb[0].mxu0 %v2471
    %v10422 = vpop.f32.mrb[0].mxu0
    %v10423 = vadd.f32 %v10382, %v10422
    %v10424 = vpop.f32.mrb[0].mxu0
    %v10425 = vpop.f32.mrb[0].mxu0
    %v10426 = vadd.f32 %v10385, %v10425
    %v10427 = vpop.f32.mrb[0].mxu0
    %10428 = vdwg.mxu0
    %10429 = vmatprep.subr.bf16.mxu0 0
    %10430 = vmatpush1.bf16.msra.mxu0 %v7793
    %10431 = vmatprep.subr.bf16.mxu0 0
    %10432 = vmatpush1.bf16.msra.mxu0 %v7794
    %10433 = vmatprep.subr.bf16.mxu0 0
    %10434 = vmatpush1.bf16.msra.mxu0 %v7795
    %10435 = vmatprep.subr.bf16.mxu0 0
    %10436 = vmatpush1.bf16.msra.mxu0 %v7796
    %10437 = vmatprep.subr.bf16.mxu0 0
    %10438 = vmatpush1.bf16.msra.mxu0 %v7797
    %10439 = vmatprep.subr.bf16.mxu0 0
    %10440 = vmatpush1.bf16.msra.mxu0 %v7798
    %10441 = vmatprep.subr.bf16.mxu0 0
    %10442 = vmatpush1.bf16.msra.mxu0 %v7799
    %10443 = vmatprep.subr.bf16.mxu0 0
    %10444 = vmatpush1.bf16.msra.mxu0 %v7800
    %10445 = vmatprep.subr.bf16.mxu0 0
    %10446 = vmatpush1.bf16.msra.mxu0 %v7801
    %10447 = vmatprep.subr.bf16.mxu0 0
    %10448 = vmatpush1.bf16.msra.mxu0 %v7802
    %10449 = vmatprep.subr.bf16.mxu0 0
    %10450 = vmatpush1.bf16.msra.mxu0 %v7803
    %10451 = vmatprep.subr.bf16.mxu0 0
    %10452 = vmatpush1.bf16.msra.mxu0 %v7804
    %10453 = vmatprep.subr.bf16.mxu0 0
    %10454 = vmatpush1.bf16.msra.mxu0 %v7805
    %10455 = vmatprep.subr.bf16.mxu0 0
    %10456 = vmatpush1.bf16.msra.mxu0 %v7806
    %10457 = vmatprep.subr.bf16.mxu0 0
    %10458 = vmatpush1.bf16.msra.mxu0 %v7807
    %10459 = vmatprep.subr.bf16.mxu0 0
    %10460 = vmatpush1.bf16.msra.mxu0 %v7808
    %10461 = vmatprep.mubr.bf16.mxu0 %v2474
    %10462 = vmatmul.mubr.bf16.gmra.mrb[0].mxu0 %v2473
    %v10463 = vpop.f32.mrb[0].mxu0
    %v10464 = vadd.f32 %v10423, %v10463
    %v10465 = vpop.f32.mrb[0].mxu0
    %v10466 = vpop.f32.mrb[0].mxu0
    %v10467 = vadd.f32 %v10426, %v10466
    %v10468 = vpop.f32.mrb[0].mxu0
    %10469 = vdwg.mxu0
    %10470 = vmatprep.subr.bf16.mxu0 0
    %10471 = vmatpush1.bf16.msra.mxu0 %v7809
    %10472 = vmatprep.subr.bf16.mxu0 0
    %10473 = vmatpush1.bf16.msra.mxu0 %v7810
    %10474 = vmatprep.subr.bf16.mxu0 0
    %10475 = vmatpush1.bf16.msra.mxu0 %v7811
    %10476 = vmatprep.subr.bf16.mxu0 0
    %10477 = vmatpush1.bf16.msra.mxu0 %v7812
    %10478 = vmatprep.subr.bf16.mxu0 0
    %10479 = vmatpush1.bf16.msra.mxu0 %v7813
    %10480 = vmatprep.subr.bf16.mxu0 0
    %10481 = vmatpush1.bf16.msra.mxu0 %v7814
    %10482 = vmatprep.subr.bf16.mxu0 0
    %10483 = vmatpush1.bf16.msra.mxu0 %v7815
    %10484 = vmatprep.subr.bf16.mxu0 0
    %10485 = vmatpush1.bf16.msra.mxu0 %v7816
    %10486 = vmatprep.subr.bf16.mxu0 0
    %10487 = vmatpush1.bf16.msra.mxu0 %v7817
    %10488 = vmatprep.subr.bf16.mxu0 0
    %10489 = vmatpush1.bf16.msra.mxu0 %v7818
    %10490 = vmatprep.subr.bf16.mxu0 0
    %10491 = vmatpush1.bf16.msra.mxu0 %v7819
    %10492 = vmatprep.subr.bf16.mxu0 0
    %10493 = vmatpush1.bf16.msra.mxu0 %v7820
    %10494 = vmatprep.subr.bf16.mxu0 0
    %10495 = vmatpush1.bf16.msra.mxu0 %v7821
    %10496 = vmatprep.subr.bf16.mxu0 0
    %10497 = vmatpush1.bf16.msra.mxu0 %v7822
    %10498 = vmatprep.subr.bf16.mxu0 0
    %10499 = vmatpush1.bf16.msra.mxu0 %v7823
    %10500 = vmatprep.subr.bf16.mxu0 0
    %10501 = vmatpush1.bf16.msra.mxu0 %v7824
    %10502 = vmatprep.mubr.bf16.mxu0 %v2476
    %10503 = vmatmul.mubr.bf16.gmra.mrb[0].mxu0 %v2475
    %v10504 = vpop.f32.mrb[0].mxu0
    %v10505 = vadd.f32 %v10464, %v10504
    %v10506 = vpop.f32.mrb[0].mxu0
    %v10507 = vpop.f32.mrb[0].mxu0
    %v10508 = vadd.f32 %v10467, %v10507
    %v10509 = vpop.f32.mrb[0].mxu0
    %10510 = vdwg.mxu0
    %10511 = vmatprep.subr.bf16.mxu0 0
    %10512 = vmatpush1.bf16.msra.mxu0 %v7825
    %10513 = vmatprep.subr.bf16.mxu0 0
    %10514 = vmatpush1.bf16.msra.mxu0 %v7826
    %10515 = vmatprep.subr.bf16.mxu0 0
    %10516 = vmatpush1.bf16.msra.mxu0 %v7827
    %10517 = vmatprep.subr.bf16.mxu0 0
    %10518 = vmatpush1.bf16.msra.mxu0 %v7828
    %10519 = vmatprep.subr.bf16.mxu0 0
    %10520 = vmatpush1.bf16.msra.mxu0 %v7829
    %10521 = vmatprep.subr.bf16.mxu0 0
    %10522 = vmatpush1.bf16.msra.mxu0 %v7830
    %10523 = vmatprep.subr.bf16.mxu0 0
    %10524 = vmatpush1.bf16.msra.mxu0 %v7831
    %10525 = vmatprep.subr.bf16.mxu0 0
    %10526 = vmatpush1.bf16.msra.mxu0 %v7832
    %10527 = vmatprep.subr.bf16.mxu0 0
    %10528 = vmatpush1.bf16.msra.mxu0 %v7833
    %10529 = vmatprep.subr.bf16.mxu0 0
    %10530 = vmatpush1.bf16.msra.mxu0 %v7834
    %10531 = vmatprep.subr.bf16.mxu0 0
    %10532 = vmatpush1.bf16.msra.mxu0 %v7835
    %10533 = vmatprep.subr.bf16.mxu0 0
    %10534 = vmatpush1.bf16.msra.mxu0 %v7836
    %10535 = vmatprep.subr.bf16.mxu0 0
    %10536 = vmatpush1.bf16.msra.mxu0 %v7837
    %10537 = vmatprep.subr.bf16.mxu0 0
    %10538 = vmatpush1.bf16.msra.mxu0 %v7838
    %10539 = vmatprep.subr.bf16.mxu0 0
    %10540 = vmatpush1.bf16.msra.mxu0 %v7839
    %10541 = vmatprep.subr.bf16.mxu0 0
    %10542 = vmatpush1.bf16.msra.mxu0 %v7840
    %10543 = vmatprep.mubr.bf16.mxu0 %v2478
    %10544 = vmatmul.mubr.bf16.gmra.mrb[0].mxu0 %v2477
    %v10545 = vpop.f32.mrb[0].mxu0
    %v10546 = vadd.f32 %v10505, %v10545
    %v10547 = vpop.f32.mrb[0].mxu0
    %v10548 = vpop.f32.mrb[0].mxu0
    %v10549 = vadd.f32 %v10508, %v10548
    %v10550 = vpop.f32.mrb[0].mxu0
    %10551 = vdwg.mxu0
    %10552 = vmatprep.subr.bf16.mxu0 0
    %10553 = vmatpush1.bf16.msra.mxu0 %v7841
    %10554 = vmatprep.subr.bf16.mxu0 0
    %10555 = vmatpush1.bf16.msra.mxu0 %v7842
    %10556 = vmatprep.subr.bf16.mxu0 0
    %10557 = vmatpush1.bf16.msra.mxu0 %v7843
    %10558 = vmatprep.subr.bf16.mxu0 0
    %10559 = vmatpush1.bf16.msra.mxu0 %v7844
    %10560 = vmatprep.subr.bf16.mxu0 0
    %10561 = vmatpush1.bf16.msra.mxu0 %v7845
    %10562 = vmatprep.subr.bf16.mxu0 0
    %10563 = vmatpush1.bf16.msra.mxu0 %v7846
    %10564 = vmatprep.subr.bf16.mxu0 0
    %10565 = vmatpush1.bf16.msra.mxu0 %v7847
    %10566 = vmatprep.subr.bf16.mxu0 0
    %10567 = vmatpush1.bf16.msra.mxu0 %v7848
    %10568 = vmatprep.subr.bf16.mxu0 0
    %10569 = vmatpush1.bf16.msra.mxu0 %v7849
    %10570 = vmatprep.subr.bf16.mxu0 0
    %10571 = vmatpush1.bf16.msra.mxu0 %v7850
    %10572 = vmatprep.subr.bf16.mxu0 0
    %10573 = vmatpush1.bf16.msra.mxu0 %v7851
    %10574 = vmatprep.subr.bf16.mxu0 0
    %10575 = vmatpush1.bf16.msra.mxu0 %v7852
    %10576 = vmatprep.subr.bf16.mxu0 0
    %10577 = vmatpush1.bf16.msra.mxu0 %v7853
    %10578 = vmatprep.subr.bf16.mxu0 0
    %10579 = vmatpush1.bf16.msra.mxu0 %v7854
    %10580 = vmatprep.subr.bf16.mxu0 0
    %10581 = vmatpush1.bf16.msra.mxu0 %v7855
    %10582 = vmatprep.subr.bf16.mxu0 0
    %10583 = vmatpush1.bf16.msra.mxu0 %v7856
    %10584 = vmatprep.mubr.bf16.mxu0 %v2480
    %10585 = vmatmul.mubr.bf16.gmra.mrb[0].mxu0 %v2479
    %v10586 = vpop.f32.mrb[0].mxu0
    %v10587 = vadd.f32 %v10546, %v10586
    %v10588 = vpop.f32.mrb[0].mxu0
    %v10589 = vpop.f32.mrb[0].mxu0
    %v10590 = vadd.f32 %v10549, %v10589
    %v10591 = vpop.f32.mrb[0].mxu0
    %10592 = vdwg.mxu0
    %v10593 = vadd.f32 %v79, %v10587
    %v10594 = vadd.f32 %v80, %v10590
    %10595 = vst [vmem:[#allocation10] sm:$0xff] %v10593
    %10596 = vst [vmem:[#allocation10 + $0x8] sm:$0xff] %v10594
    // Predicated region
    $region42: #{mlp_forward.1} parent=1 // pred_check
      %p10597 = pneg %p73
    $region43: #{mlp_forward.1} parent=1 // pred_check_branch
      %10599 = sbr.rel (%p10597) target = $region45
    $region44: #{mlp_forward.1} parent=1 // pred_region
      %v10600 = vld [vmem:[#allocation10] sm:$0xff]
      %v10601 = vld [vmem:[#allocation10 + $0x8] sm:$0xff]
      %v10602 = vld [vmem:[#allocation5] sm:$0x1]
      %v10604 = vlaneseq
      %v10605 = vshrl.u32 %v10604, 7
      %v10606 = vsub.s32 0, %v10605
      %v10607 = vrot.slane %v10602, %v10606
      %v10609 = vadd.f32 %v10600, %v10607
      %v10610 = vadd.f32 %v10601, %v10607
      %v10611 = vmax.f32 %v10609, 0.0
      %v10612 = vmax.f32 %v10610, 0.0
      %v10613 = vpack.c.bf16 %v10612, %v10611
      %v10614 = vld [vmem:[#allocation7] sm:$0xf]
      %v10615 = vld [vmem:[#allocation7 + $0x4] sm:$0xf]
      %v10616 = vld [vmem:[#allocation7 + $0x8] sm:$0xf]
      %v10617 = vld [vmem:[#allocation7 + $0xc] sm:$0xf]
      %v10618 = vld [vmem:[#allocation7 + $0x10] sm:$0xf]
      %v10619 = vld [vmem:[#allocation7 + $0x14] sm:$0xf]
      %v10620 = vld [vmem:[#allocation7 + $0x18] sm:$0xf]
      %v10621 = vld [vmem:[#allocation7 + $0x1c] sm:$0xf]
      %v10622 = vld [vmem:[#allocation7 + $0x20] sm:$0xf]
      %v10623 = vld [vmem:[#allocation7 + $0x24] sm:$0xf]
      %v10624 = vld [vmem:[#allocation7 + $0x28] sm:$0xf]
      %v10625 = vld [vmem:[#allocation7 + $0x2c] sm:$0xf]
      %v10626 = vld [vmem:[#allocation7 + $0x30] sm:$0xf]
      %v10627 = vld [vmem:[#allocation7 + $0x34] sm:$0xf]
      %v10628 = vld [vmem:[#allocation7 + $0x38] sm:$0xf]
      %v10629 = vld [vmem:[#allocation7 + $0x3c] sm:$0xf]
      %v10630 = vld [vmem:[#allocation8] sm:$0x1]
      %v10632 = vlaneseq
      %v10633 = vshrl.u32 %v10632, 7
      %v10634 = vsub.s32 0, %v10633
      %v10635 = vrot.slane %v10630, %v10634
      %v10653 = vunpack.c.l.b16 %v10614
      %v10654 = vunpack.c.l.b16 %v10615
      %v10655 = vunpack.c.l.b16 %v10616
      %v10656 = vunpack.c.l.b16 %v10617
      %v10657 = vunpack.c.l.b16 %v10618
      %v10658 = vunpack.c.l.b16 %v10619
      %v10659 = vunpack.c.l.b16 %v10620
      %v10660 = vunpack.c.l.b16 %v10621
      %v10661 = vunpack.c.l.b16 %v10622
      %v10662 = vunpack.c.l.b16 %v10623
      %v10663 = vunpack.c.l.b16 %v10624
      %v10664 = vunpack.c.l.b16 %v10625
      %v10665 = vunpack.c.l.b16 %v10626
      %v10666 = vunpack.c.l.b16 %v10627
      %v10667 = vunpack.c.l.b16 %v10628
      %v10668 = vunpack.c.l.b16 %v10629
      %v10669 = vpack.c.b16 %v10654, %v10653
      %v10670 = vpack.c.b16 %v10656, %v10655
      %v10671 = vpack.c.b16 %v10658, %v10657
      %v10672 = vpack.c.b16 %v10660, %v10659
      %v10673 = vpack.c.b16 %v10662, %v10661
      %v10674 = vpack.c.b16 %v10664, %v10663
      %v10675 = vpack.c.b16 %v10666, %v10665
      %v10676 = vpack.c.b16 %v10668, %v10667
      %10685 = vmatprep.subr.bf16.mxu0 0
      %10686 = vmatpush1.bf16.msra.mxu0 %v10669
      %10687 = vmatprep.subr.bf16.mxu0 0
      %10688 = vmatpush1.bf16.msra.mxu0 %v10670
      %10689 = vmatprep.subr.bf16.mxu0 0
      %10690 = vmatpush1.bf16.msra.mxu0 %v10671
      %10691 = vmatprep.subr.bf16.mxu0 0
      %10692 = vmatpush1.bf16.msra.mxu0 %v10672
      %10693 = vmatprep.subr.bf16.mxu0 0
      %10694 = vmatpush1.bf16.msra.mxu0 %v10673
      %10695 = vmatprep.subr.bf16.mxu0 0
      %10696 = vmatpush1.bf16.msra.mxu0 %v10674
      %10697 = vmatprep.subr.bf16.mxu0 0
      %10698 = vmatpush1.bf16.msra.mxu0 %v10675
      %10699 = vmatprep.subr.bf16.mxu0 0
      %10700 = vmatpush1.bf16.msra.mxu0 %v10676
      %10701 = vmatprep.subr.bf16.mxu0 0
      %10702 = vmatpush1.bf16.msra.mxu0 0
      %10703 = vmatprep.subr.bf16.mxu0 0
      %10704 = vmatpush1.bf16.msra.mxu0 0
      %10705 = vmatprep.subr.bf16.mxu0 0
      %10706 = vmatpush1.bf16.msra.mxu0 0
      %10707 = vmatprep.subr.bf16.mxu0 0
      %10708 = vmatpush1.bf16.msra.mxu0 0
      %10709 = vmatprep.subr.bf16.mxu0 0
      %10710 = vmatpush1.bf16.msra.mxu0 0
      %10711 = vmatprep.subr.bf16.mxu0 0
      %10712 = vmatpush1.bf16.msra.mxu0 0
      %10713 = vmatprep.subr.bf16.mxu0 0
      %10714 = vmatpush1.bf16.msra.mxu0 0
      %10715 = vmatprep.subr.bf16.mxu0 0
      %10716 = vmatpush1.bf16.msra.mxu0 0
      %10717 = vmatprep.mubr.bf16.mxu0 0
      %10718 = vmatmul.mubr.bf16.gmra.mrb[0].mxu0 %v10613
      %v10719 = vpop.f32.mrb[0].mxu0
      %v10720 = vadd.f32 %v10635, %v10719
      %v10721 = vpop.f32.mrb[0].mxu0
      %v10722 = vpop.f32.mrb[0].mxu0
      %v10723 = vadd.f32 %v10635, %v10722
      %v10724 = vpop.f32.mrb[0].mxu0
      %10725 = vdwg.mxu0
      %10726 = vst [vmem:[#allocation10] sm:$0xff] %v10720
      %10727 = vst [vmem:[#allocation10 + $0x8] sm:$0xff] %v10723
    $region45: #{mlp_forward.1} parent=1 // pred_fallthru
      _
    // Predicated region
    $region46: #{mlp_forward.1} parent=1 // pred_check
      _
    $region47: #{mlp_forward.1} parent=1 // pred_check_branch
      %10729 = sbr.rel (0) target = $region49
    $region48: #{mlp_forward.1} parent=1 // pred_region
      %s10731 = ssub.s32 256, 32
      %10732 = vsyncadd [#allocation4], %s10731
      %s10733 = sshll.u32 [#allocation10], 4
      %s10734 = int_to_ptr.vmem [resolvable:$true] %s10733
      %10739 = dma.vmem_to_hbm [thread:$0]  %s10734, 32, %s5, [#allocation4], 32, 32, 2
    $region49: #{mlp_forward.1} parent=1 // pred_fallthru
      _
    // Predicated region
    $region50: #{mlp_forward.1} parent=1 // pred_check
      _
    $region51: #{mlp_forward.1} parent=1 // pred_check_branch
      %10741 = sbr.rel (0) target = $region53
    $region52: #{mlp_forward.1} parent=1 // pred_region
      %10742 = dma.done [#allocation4], 256
    $region53: #{mlp_forward.1} parent=1 // pred_fallthru
      _
    %10743 = vsyncpa [#allocation3], 1
    %10744 = vsyncpa [#allocation6], 1
    %10745 = vsyncpa [#allocation9], 1
    %10746 = vsyncpa [#allocation4], 1

</llo_original>
